<compile_context>
chip_gen: v7x
topology: tpu7x:2x2x1
jax: 0.10.0
libtpu: 0.0.40
codegen_flags: <defaults>
</compile_context>

<pallas_src>
import functools

import jax
import jax.numpy as jnp
from jax.experimental import pallas as pl
from jax.experimental.pallas import tpu as pltpu


def _silu(x):
    return x * jax.nn.sigmoid(x)


# ---------------------------------------------------------------------------
# Shared in-kernel helper: fused GroupNorm -> SiLU -> 3x3 conv (padding=1)
#   x:     (Hp*Wp, C)   zero-padded image, rows flattened (Hp = H+3, Wp = W+1+pad_r)
#   gg:    (C, C)       group-averaging matrix (1/(cg*H*W) where channels share a group)
#   gamma, beta: (1, C)
#   mask:  (Hp*Wp, 1)   1.0 on real pixels, 0.0 on the zero-padding halo
#   w_ref: (9, C, Cout) conv taps, k = 3*dy + dx
#   returns (H*W, Cout) f32 conv output (bias NOT added here).
# ---------------------------------------------------------------------------
def _gn_silu_conv3x3(x, gg, gamma, beta, mask, w_ref, *, H, W, Wp, eps):
    # GroupNorm statistics: the halo is exactly zero, so plain sums over the
    # padded tile equal sums over the real pixels; the true count 1/(cg*H*W)
    # is baked into gg.
    csum = jnp.sum(x, axis=0, keepdims=True)                        # (1, C)
    csq = jnp.sum(x * x, axis=0, keepdims=True)                     # (1, C)
    mean = jnp.dot(csum, gg, preferred_element_type=jnp.float32)    # per-channel group mean
    ex2 = jnp.dot(csq, gg, preferred_element_type=jnp.float32)      # per-channel group E[x^2]
    var = jnp.maximum(ex2 - mean * mean, 0.0)
    inv = jax.lax.rsqrt(var + eps)
    y = (x - mean) * (inv * gamma) + beta
    y = _silu(y) * mask                                             # re-zero the halo

    # 3x3 conv as 9 shifted matmuls over the flat padded layout.  Row
    # oh*Wp + ow of `acc` is output pixel (oh, ow) for ow < W; columns
    # ow >= W are junk and dropped below.
    Cout = w_ref.shape[-1]
    acc = jnp.zeros((H * Wp, Cout), jnp.float32)
    for k in range(9):
        dy, dx = k // 3, k % 3
        s = dy * Wp + dx
        acc = acc + jnp.dot(y[s:s + H * Wp, :], w_ref[k],
                            preferred_element_type=jnp.float32)
    # Wp and W are multiples of 8 at typical sizes -> layout-clean reshapes.
    return acc.reshape(H, Wp, Cout)[:, :W, :].reshape(H * W, Cout)


# ---------------------------------------------------------------------------
# Kernel 1: GN1 + SiLU + conv1 + bias + fused time embedding
# ---------------------------------------------------------------------------
def _block1_kernel(x_ref, gg_ref, gamma_ref, beta_ref, mask_ref, w_ref, b_ref,
                   t_ref, ltw_ref, ltb_ref, o_ref, *, H, W, Wp, eps):
    conv = _gn_silu_conv3x3(x_ref[0], gg_ref[...], gamma_ref[...], beta_ref[...],
                            mask_ref[...], w_ref, H=H, W=W, Wp=Wp, eps=eps)
    # time embedding: silu(time) @ W^T + b  -> (1, Cout), broadcast over pixels
    temb = jnp.dot(_silu(t_ref[0]), ltw_ref[...],
                   preferred_element_type=jnp.float32) + ltb_ref[...]
    o_ref[0] = conv + b_ref[...] + temb


# ---------------------------------------------------------------------------
# Kernel 2a: GN2 + SiLU + conv2 + bias + residual 1x1 conv
# ---------------------------------------------------------------------------
def _block2_res_kernel(x_ref, gg_ref, gamma_ref, beta_ref, mask_ref, w_ref, b_ref,
                       r_ref, wr_ref, br_ref, o_ref, *, H, W, Wp, eps):
    conv = _gn_silu_conv3x3(x_ref[0], gg_ref[...], gamma_ref[...], beta_ref[...],
                            mask_ref[...], w_ref, H=H, W=W, Wp=Wp, eps=eps)
    res = jnp.dot(r_ref[0], wr_ref[...],
                  preferred_element_type=jnp.float32) + br_ref[...]
    o_ref[0] = conv + b_ref[...] + res


# ---------------------------------------------------------------------------
# Kernel 2b: GN2 + SiLU + conv2 + bias + identity residual (no wr/br DMA)
# ---------------------------------------------------------------------------
def _block2_id_kernel(x_ref, gg_ref, gamma_ref, beta_ref, mask_ref, w_ref, b_ref,
                      r_ref, o_ref, *, H, W, Wp, eps):
    conv = _gn_silu_conv3x3(x_ref[0], gg_ref[...], gamma_ref[...], beta_ref[...],
                            mask_ref[...], w_ref, H=H, W=W, Wp=Wp, eps=eps)
    o_ref[0] = conv + b_ref[...] + r_ref[0]


# ---------------------------------------------------------------------------
# Host-side helpers (layout plumbing only)
# ---------------------------------------------------------------------------
def _group_avg_matrix(C, num_groups, hw):
    cg = C // num_groups
    gid = jnp.arange(C) // cg
    same = (gid[:, None] == gid[None, :]).astype(jnp.float32)
    return same / float(cg * hw)


def _pad_flatten(x_nhwc, H, W, pad_r):
    # (N, H, W, C) -> (N, Hp*Wp, C) zero-padded, rows flattened.
    N, _, _, C = x_nhwc.shape
    Hp, Wp = H + 3, W + 1 + pad_r
    xp = jnp.pad(x_nhwc, ((0, 0), (1, 2), (1, pad_r), (0, 0)))
    return xp.reshape(N, Hp * Wp, C)


# ---------------------------------------------------------------------------
# Full residual block
# ---------------------------------------------------------------------------
def unet_residual_block(feature, time, params, num_groups=32, eps=1e-5):
    """feature: (N, Cin, H, W) NCHW float32, time: (N, n_time). Returns (N, Cout, H, W)."""
    N, Cin, H, W = feature.shape
    Cout = params["conv1_w"].shape[0]
    n_time = time.shape[1]

    pad_r = (-(W + 1)) % 8 or 8            # >= 1 halo column and Wp % 8 == 0
    Hp, Wp = H + 3, W + 1 + pad_r
    HW = H * W

    # single NCHW -> NHWC transpose at the input boundary
    x_nhwc = jnp.transpose(feature, (0, 2, 3, 1))
    x_flat = _pad_flatten(x_nhwc, H, W, pad_r)

    mask = jnp.pad(jnp.ones((H, W), jnp.float32),
                   ((1, 2), (1, pad_r))).reshape(Hp * Wp, 1)

    gg1 = _group_avg_matrix(Cin, num_groups, HW)
    gg2 = _group_avg_matrix(Cout, num_groups, HW)
    gamma1 = params["gn1_gamma"].reshape(1, Cin)
    beta1 = params["gn1_beta"].reshape(1, Cin)
    gamma2 = params["gn2_gamma"].reshape(1, Cout)
    beta2 = params["gn2_beta"].reshape(1, Cout)
    w9_1 = jnp.transpose(params["conv1_w"], (2, 3, 1, 0)).reshape(9, Cin, Cout)
    b1 = params["conv1_b"].reshape(1, Cout)
    w9_2 = jnp.transpose(params["conv2_w"], (2, 3, 1, 0)).reshape(9, Cout, Cout)
    b2 = params["conv2_b"].reshape(1, Cout)
    ltw = jnp.transpose(params["lt_w"])                    # (n_time, Cout)
    ltb = params["lt_b"].reshape(1, Cout)
    time3 = time.reshape(N, 1, n_time)

    const2 = lambda n: (0, 0)
    const3 = lambda n: (0, 0, 0)

    # ---- kernel 1: GN1 + SiLU + conv1 + time embedding -------------------
    merged_flat = pl.pallas_call(
        functools.partial(_block1_kernel, H=H, W=W, Wp=Wp, eps=eps),
        out_shape=jax.ShapeDtypeStruct((N, HW, Cout), jnp.float32),
        grid=(N,),
        in_specs=[
            pl.BlockSpec((1, Hp * Wp, Cin), lambda n: (n, 0, 0)),
            pl.BlockSpec((Cin, Cin), const2),
            pl.BlockSpec((1, Cin), const2),
            pl.BlockSpec((1, Cin), const2),
            pl.BlockSpec((Hp * Wp, 1), const2),
            pl.BlockSpec((9, Cin, Cout), const3),
            pl.BlockSpec((1, Cout), const2),
            pl.BlockSpec((1, 1, n_time), lambda n: (n, 0, 0)),
            pl.BlockSpec((n_time, Cout), const2),
            pl.BlockSpec((1, Cout), const2),
        ],
        out_specs=pl.BlockSpec((1, HW, Cout), lambda n: (n, 0, 0)),
        compiler_params=pltpu.CompilerParams(dimension_semantics=("parallel",)),
    )(x_flat, gg1, gamma1, beta1, mask, w9_1, b1, time3, ltw, ltb)

    # re-pad the merged activation for conv2 (XLA-side, single pass)
    m_flat = _pad_flatten(merged_flat.reshape(N, H, W, Cout), H, W, pad_r)
    r_flat = x_nhwc.reshape(N, HW, Cin)                    # residual branch input

    use_res_conv = (Cin != Cout)
    if use_res_conv:
        wr = jnp.transpose(params["res_w"][:, :, 0, 0])    # (Cin, Cout)
        br = params["res_b"].reshape(1, Cout)
        kernel2 = functools.partial(_block2_res_kernel, H=H, W=W, Wp=Wp, eps=eps)
        extra_specs = [
            pl.BlockSpec((1, HW, Cin), lambda n: (n, 0, 0)),
            pl.BlockSpec((Cin, Cout), const2),
            pl.BlockSpec((1, Cout), const2),
        ]
        extra_args = (r_flat, wr, br)
    else:
        kernel2 = functools.partial(_block2_id_kernel, H=H, W=W, Wp=Wp, eps=eps)
        extra_specs = [pl.BlockSpec((1, HW, Cin), lambda n: (n, 0, 0))]
        extra_args = (r_flat,)

    # ---- kernel 2: GN2 + SiLU + conv2 + residual --------------------------
    out_flat = pl.pallas_call(
        kernel2,
        out_shape=jax.ShapeDtypeStruct((N, HW, Cout), jnp.float32),
        grid=(N,),
        in_specs=[
            pl.BlockSpec((1, Hp * Wp, Cout), lambda n: (n, 0, 0)),
            pl.BlockSpec((Cout, Cout), const2),
            pl.BlockSpec((1, Cout), const2),
            pl.BlockSpec((1, Cout), const2),
            pl.BlockSpec((Hp * Wp, 1), const2),
            pl.BlockSpec((9, Cout, Cout), const3),
            pl.BlockSpec((1, Cout), const2),
        ] + extra_specs,
        out_specs=pl.BlockSpec((1, HW, Cout), lambda n: (n, 0, 0)),
        compiler_params=pltpu.CompilerParams(dimension_semantics=("parallel",)),
    )(m_flat, gg2, gamma2, beta2, mask, w9_2, b2, *extra_args)

    # single NHWC -> NCHW transpose at the output boundary
    return jnp.transpose(out_flat.reshape(N, H, W, Cout), (0, 3, 1, 2))


# ---------------------------------------------------------------------------
# Pure-JAX reference (for correctness check)
# ---------------------------------------------------------------------------
def reference(feature, time, params, num_groups=32, eps=1e-5):
    def gn(x, gamma, beta):
        N, C, H, W = x.shape
        xg = x.reshape(N, num_groups, C // num_groups, H, W)
        mean = xg.mean(axis=(2, 3, 4), keepdims=True)
        var = jnp.square(xg - mean).mean(axis=(2, 3, 4), keepdims=True)
        xn = ((xg - mean) / jnp.sqrt(var + eps)).reshape(N, C, H, W)
        return xn * gamma[None, :, None, None] + beta[None, :, None, None]

    def conv(x, w, b, pad):
        y = jax.lax.conv_general_dilated(
            x, w, (1, 1), [(pad, pad), (pad, pad)],
            dimension_numbers=("NCHW", "OIHW", "NCHW"),
            precision=jax.lax.Precision.HIGHEST)
        return y + b[None, :, None, None]

    h = conv(_silu(gn(feature, params["gn1_gamma"], params["gn1_beta"])),
             params["conv1_w"], params["conv1_b"], 1)
    t = jnp.matmul(_silu(time), params["lt_w"].T,
                   precision=jax.lax.Precision.HIGHEST) + params["lt_b"]
    m = h + t[:, :, None, None]
    m = conv(_silu(gn(m, params["gn2_gamma"], params["gn2_beta"])),
             params["conv2_w"], params["conv2_b"], 1)
    if feature.shape[1] != params["conv1_w"].shape[0]:
        r = conv(feature, params["res_w"], params["res_b"], 0)
    else:
        r = feature
    return m + r


def _make_params(key, Cin, Cout, n_time):
    keys = jax.random.split(key, 12)
    p = {
        "gn1_gamma": jnp.ones((Cin,), jnp.float32) + 0.1 * jax.random.normal(keys[0], (Cin,)),
        "gn1_beta": 0.1 * jax.random.normal(keys[1], (Cin,)),
        "conv1_w": 0.05 * jax.random.normal(keys[2], (Cout, Cin, 3, 3)),
        "conv1_b": 0.05 * jax.random.normal(keys[3], (Cout,)),
        "lt_w": 0.05 * jax.random.normal(keys[4], (Cout, n_time)),
        "lt_b": 0.05 * jax.random.normal(keys[5], (Cout,)),
        "gn2_gamma": jnp.ones((Cout,), jnp.float32) + 0.1 * jax.random.normal(keys[6], (Cout,)),
        "gn2_beta": 0.1 * jax.random.normal(keys[7], (Cout,)),
        "conv2_w": 0.05 * jax.random.normal(keys[8], (Cout, Cout, 3, 3)),
        "conv2_b": 0.05 * jax.random.normal(keys[9], (Cout,)),
    }
    if Cin != Cout:
        p["res_w"] = 0.05 * jax.random.normal(keys[10], (Cout, Cin, 1, 1))
        p["res_b"] = 0.05 * jax.random.normal(keys[11], (Cout,))
    return p


if __name__ == "__main__":
    # GroupNorm(32, C) requires C % 32 == 0 -> smallest sensible shapes.
    N, H, W, n_time = 2, 16, 16, 128
    block = jax.jit(unet_residual_block)
    # (32 -> 64): 1x1-conv residual path; (64 -> 64): identity residual path.
    for (Cin, Cout) in [(32, 64), (64, 64)]:
        params = _make_params(jax.random.PRNGKey(0), Cin, Cout, n_time)
        feature = jax.random.normal(jax.random.PRNGKey(1), (N, Cin, H, W), jnp.float32)
        time = jax.random.normal(jax.random.PRNGKey(2), (N, n_time), jnp.float32)

        out = jax.block_until_ready(block(feature, time, params))
        assert out.shape == (N, Cout, H, W)

        ref = reference(feature, time, params)
        max_err = float(jnp.max(jnp.abs(out - ref)))
        assert max_err < 1e-2, (
            f"(Cin={Cin}, Cout={Cout}) mismatch vs reference: max abs err = {max_err}")
    print("KERNEL_OK")
</pallas_src>

<mosaic_0001>
module attributes {stable_mosaic.version = 11 : i64} {
  func.func @_block2_res_kernel(%arg0: i32, %arg1: memref<1x456x64xf32, #tpu.memory_space<vmem>>, %arg2: memref<64x64xf32, #tpu.memory_space<vmem>>, %arg3: memref<1x64xf32, #tpu.memory_space<vmem>>, %arg4: memref<1x64xf32, #tpu.memory_space<vmem>>, %arg5: memref<456x1xf32, #tpu.memory_space<vmem>>, %arg6: memref<9x64x64xf32, #tpu.memory_space<vmem>>, %arg7: memref<1x64xf32, #tpu.memory_space<vmem>>, %arg8: memref<1x256x32xf32, #tpu.memory_space<vmem>>, %arg9: memref<32x64xf32, #tpu.memory_space<vmem>>, %arg10: memref<1x64xf32, #tpu.memory_space<vmem>>, %arg11: memref<1x256x64xf32, #tpu.memory_space<vmem>>) attributes {dimension_semantics = [#tpu.dimension_semantics<parallel>], iteration_bounds = array<i64: 2>, scalar_prefetch = 0 : i64, scratch_operands = 0 : i64, tpu.core_type = #tpu.core_type<tc>, window_params = [{transform_indices = @transform_0, window_bounds = array<i64: 1, 456, 64>}, {pipeline_mode = #tpu.pipeline_mode<synchronous>, transform_indices = @transform_1, window_bounds = array<i64: 64, 64>}, {pipeline_mode = #tpu.pipeline_mode<synchronous>, transform_indices = @transform_2, window_bounds = array<i64: 1, 64>}, {pipeline_mode = #tpu.pipeline_mode<synchronous>, transform_indices = @transform_3, window_bounds = array<i64: 1, 64>}, {pipeline_mode = #tpu.pipeline_mode<synchronous>, transform_indices = @transform_4, window_bounds = array<i64: 456, 1>}, {pipeline_mode = #tpu.pipeline_mode<synchronous>, transform_indices = @transform_5, window_bounds = array<i64: 9, 64, 64>}, {pipeline_mode = #tpu.pipeline_mode<synchronous>, transform_indices = @transform_6, window_bounds = array<i64: 1, 64>}, {transform_indices = @transform_7, window_bounds = array<i64: 1, 256, 32>}, {pipeline_mode = #tpu.pipeline_mode<synchronous>, transform_indices = @transform_8, window_bounds = array<i64: 32, 64>}, {pipeline_mode = #tpu.pipeline_mode<synchronous>, transform_indices = @transform_9, window_bounds = array<i64: 1, 64>}, {transform_indices = @transform_10, window_bounds = array<i64: 1, 256, 64>}]} {
    %c0 = arith.constant 0 : index
    %c0_0 = arith.constant 0 : index
    %c0_1 = arith.constant 0 : index
    %0 = vector.load %arg1[%c0, %c0_0, %c0_1] : memref<1x456x64xf32, #tpu.memory_space<vmem>>, vector<1x456x64xf32>
    %1 = vector.shape_cast %0 : vector<1x456x64xf32> to vector<456x64xf32>
    %c0_2 = arith.constant 0 : index
    %c0_3 = arith.constant 0 : index
    %2 = vector.load %arg2[%c0_2, %c0_3] : memref<64x64xf32, #tpu.memory_space<vmem>>, vector<64x64xf32>
    %c0_4 = arith.constant 0 : index
    %c0_5 = arith.constant 0 : index
    %3 = vector.load %arg3[%c0_4, %c0_5] : memref<1x64xf32, #tpu.memory_space<vmem>>, vector<1x64xf32>
    %c0_6 = arith.constant 0 : index
    %c0_7 = arith.constant 0 : index
    %4 = vector.load %arg4[%c0_6, %c0_7] : memref<1x64xf32, #tpu.memory_space<vmem>>, vector<1x64xf32>
    %c0_8 = arith.constant 0 : index
    %c0_9 = arith.constant 0 : index
    %5 = vector.load %arg5[%c0_8, %c0_9] : memref<456x1xf32, #tpu.memory_space<vmem>>, vector<456x1xf32>
    %cst = arith.constant dense<0.000000e+00> : vector<64xf32>
    %6 = vector.multi_reduction <add>, %1, %cst [0] : vector<456x64xf32> to vector<64xf32>
    %7 = vector.shape_cast %6 : vector<64xf32> to vector<1x64xf32>
    %8 = arith.mulf %1, %1 : vector<456x64xf32>
    %cst_10 = arith.constant dense<0.000000e+00> : vector<64xf32>
    %9 = vector.multi_reduction <add>, %8, %cst_10 [0] : vector<456x64xf32> to vector<64xf32>
    %10 = vector.shape_cast %9 : vector<64xf32> to vector<1x64xf32>
    %cst_11 = arith.constant dense<0.000000e+00> : vector<1x64xf32>
    %11 = tpu.matmul %7, %2, %cst_11 {dimension_numbers = #tpu.dot_dimension_numbers<[1], [0], [0], [1], [0, 0, 1, 1], [], []>} : vector<1x64xf32>, vector<64x64xf32>, vector<1x64xf32> -> vector<1x64xf32>
    %cst_12 = arith.constant dense<0.000000e+00> : vector<1x64xf32>
    %12 = tpu.matmul %10, %2, %cst_12 {dimension_numbers = #tpu.dot_dimension_numbers<[1], [0], [0], [1], [0, 0, 1, 1], [], []>} : vector<1x64xf32>, vector<64x64xf32>, vector<1x64xf32> -> vector<1x64xf32>
    %13 = arith.mulf %11, %11 : vector<1x64xf32>
    %14 = arith.subf %12, %13 : vector<1x64xf32>
    %cst_13 = arith.constant 0.000000e+00 : f32
    %15 = vector.broadcast %cst_13 : f32 to vector<1x64xf32>
    %16 = arith.maximumf %14, %15 : vector<1x64xf32>
    %cst_14 = arith.constant 9.99999974E-6 : f32
    %17 = vector.broadcast %cst_14 : f32 to vector<1x64xf32>
    %18 = arith.addf %16, %17 : vector<1x64xf32>
    %19 = math.rsqrt %18 : vector<1x64xf32>
    %20 = vector.broadcast %11 : vector<1x64xf32> to vector<456x64xf32>
    %21 = arith.subf %1, %20 : vector<456x64xf32>
    %22 = arith.mulf %19, %3 : vector<1x64xf32>
    %23 = vector.broadcast %22 : vector<1x64xf32> to vector<456x64xf32>
    %24 = arith.mulf %21, %23 : vector<456x64xf32>
    %25 = vector.broadcast %4 : vector<1x64xf32> to vector<456x64xf32>
    %26 = arith.addf %24, %25 : vector<456x64xf32>
    %27 = arith.negf %26 : vector<456x64xf32>
    %28 = math.exp %27 : vector<456x64xf32>
    %cst_15 = arith.constant 1.000000e+00 : f32
    %29 = vector.broadcast %cst_15 : f32 to vector<456x64xf32>
    %30 = arith.addf %29, %28 : vector<456x64xf32>
    %31 = arith.divf %29, %30 : vector<456x64xf32>
    %32 = arith.mulf %26, %31 : vector<456x64xf32>
    %33 = vector.broadcast %5 : vector<456x1xf32> to vector<456x64xf32>
    %34 = arith.mulf %32, %33 : vector<456x64xf32>
    %cst_16 = arith.constant 0.000000e+00 : f32
    %35 = vector.broadcast %cst_16 : f32 to vector<384x64xf32>
    %36 = vector.extract_strided_slice %34 {offsets = [0, 0], sizes = [384, 64], strides = [1, 1]} : vector<456x64xf32> to vector<384x64xf32>
    %c0_17 = arith.constant 0 : index
    %c0_18 = arith.constant 0 : index
    %c0_19 = arith.constant 0 : index
    %37 = vector.load %arg6[%c0_17, %c0_18, %c0_19] : memref<9x64x64xf32, #tpu.memory_space<vmem>>, vector<1x64x64xf32>
    %38 = vector.shape_cast %37 : vector<1x64x64xf32> to vector<64x64xf32>
    %cst_20 = arith.constant dense<0.000000e+00> : vector<384x64xf32>
    %39 = tpu.matmul %36, %38, %cst_20 {dimension_numbers = #tpu.dot_dimension_numbers<[1], [0], [0], [1], [0, 0, 1, 1], [], []>} : vector<384x64xf32>, vector<64x64xf32>, vector<384x64xf32> -> vector<384x64xf32>
    %40 = arith.addf %35, %39 : vector<384x64xf32>
    %41 = vector.extract_strided_slice %34 {offsets = [1, 0], sizes = [384, 64], strides = [1, 1]} : vector<456x64xf32> to vector<384x64xf32>
    %c1 = arith.constant 1 : index
    %c0_21 = arith.constant 0 : index
    %c0_22 = arith.constant 0 : index
    %42 = vector.load %arg6[%c1, %c0_21, %c0_22] : memref<9x64x64xf32, #tpu.memory_space<vmem>>, vector<1x64x64xf32>
    %43 = vector.shape_cast %42 : vector<1x64x64xf32> to vector<64x64xf32>
    %cst_23 = arith.constant dense<0.000000e+00> : vector<384x64xf32>
    %44 = tpu.matmul %41, %43, %cst_23 {dimension_numbers = #tpu.dot_dimension_numbers<[1], [0], [0], [1], [0, 0, 1, 1], [], []>} : vector<384x64xf32>, vector<64x64xf32>, vector<384x64xf32> -> vector<384x64xf32>
    %45 = arith.addf %40, %44 : vector<384x64xf32>
    %46 = vector.extract_strided_slice %34 {offsets = [2, 0], sizes = [384, 64], strides = [1, 1]} : vector<456x64xf32> to vector<384x64xf32>
    %c2 = arith.constant 2 : index
    %c0_24 = arith.constant 0 : index
    %c0_25 = arith.constant 0 : index
    %47 = vector.load %arg6[%c2, %c0_24, %c0_25] : memref<9x64x64xf32, #tpu.memory_space<vmem>>, vector<1x64x64xf32>
    %48 = vector.shape_cast %47 : vector<1x64x64xf32> to vector<64x64xf32>
    %cst_26 = arith.constant dense<0.000000e+00> : vector<384x64xf32>
    %49 = tpu.matmul %46, %48, %cst_26 {dimension_numbers = #tpu.dot_dimension_numbers<[1], [0], [0], [1], [0, 0, 1, 1], [], []>} : vector<384x64xf32>, vector<64x64xf32>, vector<384x64xf32> -> vector<384x64xf32>
    %50 = arith.addf %45, %49 : vector<384x64xf32>
    %51 = vector.extract_strided_slice %34 {offsets = [24, 0], sizes = [384, 64], strides = [1, 1]} : vector<456x64xf32> to vector<384x64xf32>
    %c3 = arith.constant 3 : index
    %c0_27 = arith.constant 0 : index
    %c0_28 = arith.constant 0 : index
    %52 = vector.load %arg6[%c3, %c0_27, %c0_28] : memref<9x64x64xf32, #tpu.memory_space<vmem>>, vector<1x64x64xf32>
    %53 = vector.shape_cast %52 : vector<1x64x64xf32> to vector<64x64xf32>
    %cst_29 = arith.constant dense<0.000000e+00> : vector<384x64xf32>
    %54 = tpu.matmul %51, %53, %cst_29 {dimension_numbers = #tpu.dot_dimension_numbers<[1], [0], [0], [1], [0, 0, 1, 1], [], []>} : vector<384x64xf32>, vector<64x64xf32>, vector<384x64xf32> -> vector<384x64xf32>
    %55 = arith.addf %50, %54 : vector<384x64xf32>
    %56 = vector.extract_strided_slice %34 {offsets = [25, 0], sizes = [384, 64], strides = [1, 1]} : vector<456x64xf32> to vector<384x64xf32>
    %c4 = arith.constant 4 : index
    %c0_30 = arith.constant 0 : index
    %c0_31 = arith.constant 0 : index
    %57 = vector.load %arg6[%c4, %c0_30, %c0_31] : memref<9x64x64xf32, #tpu.memory_space<vmem>>, vector<1x64x64xf32>
    %58 = vector.shape_cast %57 : vector<1x64x64xf32> to vector<64x64xf32>
    %cst_32 = arith.constant dense<0.000000e+00> : vector<384x64xf32>
    %59 = tpu.matmul %56, %58, %cst_32 {dimension_numbers = #tpu.dot_dimension_numbers<[1], [0], [0], [1], [0, 0, 1, 1], [], []>} : vector<384x64xf32>, vector<64x64xf32>, vector<384x64xf32> -> vector<384x64xf32>
    %60 = arith.addf %55, %59 : vector<384x64xf32>
    %61 = vector.extract_strided_slice %34 {offsets = [26, 0], sizes = [384, 64], strides = [1, 1]} : vector<456x64xf32> to vector<384x64xf32>
    %c5 = arith.constant 5 : index
    %c0_33 = arith.constant 0 : index
    %c0_34 = arith.constant 0 : index
    %62 = vector.load %arg6[%c5, %c0_33, %c0_34] : memref<9x64x64xf32, #tpu.memory_space<vmem>>, vector<1x64x64xf32>
    %63 = vector.shape_cast %62 : vector<1x64x64xf32> to vector<64x64xf32>
    %cst_35 = arith.constant dense<0.000000e+00> : vector<384x64xf32>
    %64 = tpu.matmul %61, %63, %cst_35 {dimension_numbers = #tpu.dot_dimension_numbers<[1], [0], [0], [1], [0, 0, 1, 1], [], []>} : vector<384x64xf32>, vector<64x64xf32>, vector<384x64xf32> -> vector<384x64xf32>
    %65 = arith.addf %60, %64 : vector<384x64xf32>
    %66 = vector.extract_strided_slice %34 {offsets = [48, 0], sizes = [384, 64], strides = [1, 1]} : vector<456x64xf32> to vector<384x64xf32>
    %c6 = arith.constant 6 : index
    %c0_36 = arith.constant 0 : index
    %c0_37 = arith.constant 0 : index
    %67 = vector.load %arg6[%c6, %c0_36, %c0_37] : memref<9x64x64xf32, #tpu.memory_space<vmem>>, vector<1x64x64xf32>
    %68 = vector.shape_cast %67 : vector<1x64x64xf32> to vector<64x64xf32>
    %cst_38 = arith.constant dense<0.000000e+00> : vector<384x64xf32>
    %69 = tpu.matmul %66, %68, %cst_38 {dimension_numbers = #tpu.dot_dimension_numbers<[1], [0], [0], [1], [0, 0, 1, 1], [], []>} : vector<384x64xf32>, vector<64x64xf32>, vector<384x64xf32> -> vector<384x64xf32>
    %70 = arith.addf %65, %69 : vector<384x64xf32>
    %71 = vector.extract_strided_slice %34 {offsets = [49, 0], sizes = [384, 64], strides = [1, 1]} : vector<456x64xf32> to vector<384x64xf32>
    %c7 = arith.constant 7 : index
    %c0_39 = arith.constant 0 : index
    %c0_40 = arith.constant 0 : index
    %72 = vector.load %arg6[%c7, %c0_39, %c0_40] : memref<9x64x64xf32, #tpu.memory_space<vmem>>, vector<1x64x64xf32>
    %73 = vector.shape_cast %72 : vector<1x64x64xf32> to vector<64x64xf32>
    %cst_41 = arith.constant dense<0.000000e+00> : vector<384x64xf32>
    %74 = tpu.matmul %71, %73, %cst_41 {dimension_numbers = #tpu.dot_dimension_numbers<[1], [0], [0], [1], [0, 0, 1, 1], [], []>} : vector<384x64xf32>, vector<64x64xf32>, vector<384x64xf32> -> vector<384x64xf32>
    %75 = arith.addf %70, %74 : vector<384x64xf32>
    %76 = vector.extract_strided_slice %34 {offsets = [50, 0], sizes = [384, 64], strides = [1, 1]} : vector<456x64xf32> to vector<384x64xf32>
    %c8 = arith.constant 8 : index
    %c0_42 = arith.constant 0 : index
    %c0_43 = arith.constant 0 : index
    %77 = vector.load %arg6[%c8, %c0_42, %c0_43] : memref<9x64x64xf32, #tpu.memory_space<vmem>>, vector<1x64x64xf32>
    %78 = vector.shape_cast %77 : vector<1x64x64xf32> to vector<64x64xf32>
    %cst_44 = arith.constant dense<0.000000e+00> : vector<384x64xf32>
    %79 = tpu.matmul %76, %78, %cst_44 {dimension_numbers = #tpu.dot_dimension_numbers<[1], [0], [0], [1], [0, 0, 1, 1], [], []>} : vector<384x64xf32>, vector<64x64xf32>, vector<384x64xf32> -> vector<384x64xf32>
    %80 = arith.addf %75, %79 : vector<384x64xf32>
    %81 = vector.shape_cast %80 : vector<384x64xf32> to vector<16x24x64xf32>
    %82 = vector.extract_strided_slice %81 {offsets = [0, 0, 0], sizes = [16, 16, 64], strides = [1, 1, 1]} : vector<16x24x64xf32> to vector<16x16x64xf32>
    %83 = vector.shape_cast %82 : vector<16x16x64xf32> to vector<256x64xf32>
    %c0_45 = arith.constant 0 : index
    %c0_46 = arith.constant 0 : index
    %c0_47 = arith.constant 0 : index
    %84 = vector.load %arg8[%c0_45, %c0_46, %c0_47] : memref<1x256x32xf32, #tpu.memory_space<vmem>>, vector<1x256x32xf32>
    %85 = vector.shape_cast %84 : vector<1x256x32xf32> to vector<256x32xf32>
    %c0_48 = arith.constant 0 : index
    %c0_49 = arith.constant 0 : index
    %86 = vector.load %arg9[%c0_48, %c0_49] : memref<32x64xf32, #tpu.memory_space<vmem>>, vector<32x64xf32>
    %cst_50 = arith.constant dense<0.000000e+00> : vector<256x64xf32>
    %87 = tpu.matmul %85, %86, %cst_50 {dimension_numbers = #tpu.dot_dimension_numbers<[1], [0], [0], [1], [0, 0, 1, 1], [], []>} : vector<256x32xf32>, vector<32x64xf32>, vector<256x64xf32> -> vector<256x64xf32>
    %c0_51 = arith.constant 0 : index
    %c0_52 = arith.constant 0 : index
    %88 = vector.load %arg10[%c0_51, %c0_52] : memref<1x64xf32, #tpu.memory_space<vmem>>, vector<1x64xf32>
    %89 = vector.broadcast %88 : vector<1x64xf32> to vector<256x64xf32>
    %90 = arith.addf %87, %89 : vector<256x64xf32>
    %c0_53 = arith.constant 0 : index
    %c0_54 = arith.constant 0 : index
    %91 = vector.load %arg7[%c0_53, %c0_54] : memref<1x64xf32, #tpu.memory_space<vmem>>, vector<1x64xf32>
    %92 = vector.broadcast %91 : vector<1x64xf32> to vector<256x64xf32>
    %93 = arith.addf %83, %92 : vector<256x64xf32>
    %94 = arith.addf %93, %90 : vector<256x64xf32>
    %c0_55 = arith.constant 0 : index
    %c0_56 = arith.constant 0 : index
    %c0_57 = arith.constant 0 : index
    %95 = vector.load %arg11[%c0_55, %c0_56, %c0_57] : memref<1x256x64xf32, #tpu.memory_space<vmem>>, vector<1x256x64xf32>
    %96 = vector.shape_cast %95 : vector<1x256x64xf32> to vector<256x64xf32>
    %97 = vector.shape_cast %94 : vector<256x64xf32> to vector<1x256x64xf32>
    tpu.vector_store %arg11[%c0_55, %c0_56, %c0_57], %97 {strides = array<i32>} : memref<1x256x64xf32, #tpu.memory_space<vmem>>, vector<1x256x64xf32>,
    return
  }
  func.func @transform_0(%arg0: i32) -> (i32, i32, i32) {
    %c0_i32 = arith.constant 0 : i32
    %c0_i32_0 = arith.constant 0 : i32
    %c0_i32_1 = arith.constant 0 : i32
    return %arg0, %c0_i32, %c0_i32_0 : i32, i32, i32
  }
  func.func @transform_1(%arg0: i32) -> (i32, i32) {
    %c0_i32 = arith.constant 0 : i32
    %c0_i32_0 = arith.constant 0 : i32
    %c0_i32_1 = arith.constant 0 : i32
    return %c0_i32, %c0_i32_0 : i32, i32
  }
  func.func @transform_2(%arg0: i32) -> (i32, i32) {
    %c0_i32 = arith.constant 0 : i32
    %c0_i32_0 = arith.constant 0 : i32
    %c0_i32_1 = arith.constant 0 : i32
    return %c0_i32, %c0_i32_0 : i32, i32
  }
  func.func @transform_3(%arg0: i32) -> (i32, i32) {
    %c0_i32 = arith.constant 0 : i32
    %c0_i32_0 = arith.constant 0 : i32
    %c0_i32_1 = arith.constant 0 : i32
    return %c0_i32, %c0_i32_0 : i32, i32
  }
  func.func @transform_4(%arg0: i32) -> (i32, i32) {
    %c0_i32 = arith.constant 0 : i32
    %c0_i32_0 = arith.constant 0 : i32
    %c0_i32_1 = arith.constant 0 : i32
    return %c0_i32, %c0_i32_0 : i32, i32
  }
  func.func @transform_5(%arg0: i32) -> (i32, i32, i32) {
    %c0_i32 = arith.constant 0 : i32
    %c0_i32_0 = arith.constant 0 : i32
    %c0_i32_1 = arith.constant 0 : i32
    %c0_i32_2 = arith.constant 0 : i32
    return %c0_i32, %c0_i32_0, %c0_i32_1 : i32, i32, i32
  }
  func.func @transform_6(%arg0: i32) -> (i32, i32) {
    %c0_i32 = arith.constant 0 : i32
    %c0_i32_0 = arith.constant 0 : i32
    %c0_i32_1 = arith.constant 0 : i32
    return %c0_i32, %c0_i32_0 : i32, i32
  }
  func.func @transform_7(%arg0: i32) -> (i32, i32, i32) {
    %c0_i32 = arith.constant 0 : i32
    %c0_i32_0 = arith.constant 0 : i32
    %c0_i32_1 = arith.constant 0 : i32
    return %arg0, %c0_i32, %c0_i32_0 : i32, i32, i32
  }
  func.func @transform_8(%arg0: i32) -> (i32, i32) {
    %c0_i32 = arith.constant 0 : i32
    %c0_i32_0 = arith.constant 0 : i32
    %c0_i32_1 = arith.constant 0 : i32
    return %c0_i32, %c0_i32_0 : i32, i32
  }
  func.func @transform_9(%arg0: i32) -> (i32, i32) {
    %c0_i32 = arith.constant 0 : i32
    %c0_i32_0 = arith.constant 0 : i32
    %c0_i32_1 = arith.constant 0 : i32
    return %c0_i32, %c0_i32_0 : i32, i32
  }
  func.func @transform_10(%arg0: i32) -> (i32, i32, i32) {
    %c0_i32 = arith.constant 0 : i32
    %c0_i32_0 = arith.constant 0 : i32
    %c0_i32_1 = arith.constant 0 : i32
    return %arg0, %c0_i32, %c0_i32_0 : i32, i32, i32
  }
}

module attributes {stable_mosaic.version = 11 : i64} {
  func.func @_block1_kernel(%arg0: i32, %arg1: memref<1x456x32xf32, #tpu.memory_space<vmem>>, %arg2: memref<32x32xf32, #tpu.memory_space<vmem>>, %arg3: memref<1x32xf32, #tpu.memory_space<vmem>>, %arg4: memref<1x32xf32, #tpu.memory_space<vmem>>, %arg5: memref<456x1xf32, #tpu.memory_space<vmem>>, %arg6: memref<9x32x64xf32, #tpu.memory_space<vmem>>, %arg7: memref<1x64xf32, #tpu.memory_space<vmem>>, %arg8: memref<1x1x128xf32, #tpu.memory_space<vmem>>, %arg9: memref<128x64xf32, #tpu.memory_space<vmem>>, %arg10: memref<1x64xf32, #tpu.memory_space<vmem>>, %arg11: memref<1x256x64xf32, #tpu.memory_space<vmem>>) attributes {dimension_semantics = [#tpu.dimension_semantics<parallel>], iteration_bounds = array<i64: 2>, scalar_prefetch = 0 : i64, scratch_operands = 0 : i64, tpu.core_type = #tpu.core_type<tc>, window_params = [{transform_indices = @transform_0, window_bounds = array<i64: 1, 456, 32>}, {pipeline_mode = #tpu.pipeline_mode<synchronous>, transform_indices = @transform_1, window_bounds = array<i64: 32, 32>}, {pipeline_mode = #tpu.pipeline_mode<synchronous>, transform_indices = @transform_2, window_bounds = array<i64: 1, 32>}, {pipeline_mode = #tpu.pipeline_mode<synchronous>, transform_indices = @transform_3, window_bounds = array<i64: 1, 32>}, {pipeline_mode = #tpu.pipeline_mode<synchronous>, transform_indices = @transform_4, window_bounds = array<i64: 456, 1>}, {pipeline_mode = #tpu.pipeline_mode<synchronous>, transform_indices = @transform_5, window_bounds = array<i64: 9, 32, 64>}, {pipeline_mode = #tpu.pipeline_mode<synchronous>, transform_indices = @transform_6, window_bounds = array<i64: 1, 64>}, {transform_indices = @transform_7, window_bounds = array<i64: 1, 1, 128>}, {pipeline_mode = #tpu.pipeline_mode<synchronous>, transform_indices = @transform_8, window_bounds = array<i64: 128, 64>}, {pipeline_mode = #tpu.pipeline_mode<synchronous>, transform_indices = @transform_9, window_bounds = array<i64: 1, 64>}, {transform_indices = @transform_10, window_bounds = array<i64: 1, 256, 64>}]} {
    %c0 = arith.constant 0 : index
    %c0_0 = arith.constant 0 : index
    %c0_1 = arith.constant 0 : index
    %0 = vector.load %arg1[%c0, %c0_0, %c0_1] : memref<1x456x32xf32, #tpu.memory_space<vmem>>, vector<1x456x32xf32>
    %1 = vector.shape_cast %0 : vector<1x456x32xf32> to vector<456x32xf32>
    %c0_2 = arith.constant 0 : index
    %c0_3 = arith.constant 0 : index
    %2 = vector.load %arg2[%c0_2, %c0_3] : memref<32x32xf32, #tpu.memory_space<vmem>>, vector<32x32xf32>
    %c0_4 = arith.constant 0 : index
    %c0_5 = arith.constant 0 : index
    %3 = vector.load %arg3[%c0_4, %c0_5] : memref<1x32xf32, #tpu.memory_space<vmem>>, vector<1x32xf32>
    %c0_6 = arith.constant 0 : index
    %c0_7 = arith.constant 0 : index
    %4 = vector.load %arg4[%c0_6, %c0_7] : memref<1x32xf32, #tpu.memory_space<vmem>>, vector<1x32xf32>
    %c0_8 = arith.constant 0 : index
    %c0_9 = arith.constant 0 : index
    %5 = vector.load %arg5[%c0_8, %c0_9] : memref<456x1xf32, #tpu.memory_space<vmem>>, vector<456x1xf32>
    %cst = arith.constant dense<0.000000e+00> : vector<32xf32>
    %6 = vector.multi_reduction <add>, %1, %cst [0] : vector<456x32xf32> to vector<32xf32>
    %7 = vector.shape_cast %6 : vector<32xf32> to vector<1x32xf32>
    %8 = arith.mulf %1, %1 : vector<456x32xf32>
    %cst_10 = arith.constant dense<0.000000e+00> : vector<32xf32>
    %9 = vector.multi_reduction <add>, %8, %cst_10 [0] : vector<456x32xf32> to vector<32xf32>
    %10 = vector.shape_cast %9 : vector<32xf32> to vector<1x32xf32>
    %cst_11 = arith.constant dense<0.000000e+00> : vector<1x32xf32>
    %11 = tpu.matmul %7, %2, %cst_11 {dimension_numbers = #tpu.dot_dimension_numbers<[1], [0], [0], [1], [0, 0, 1, 1], [], []>} : vector<1x32xf32>, vector<32x32xf32>, vector<1x32xf32> -> vector<1x32xf32>
    %cst_12 = arith.constant dense<0.000000e+00> : vector<1x32xf32>
    %12 = tpu.matmul %10, %2, %cst_12 {dimension_numbers = #tpu.dot_dimension_numbers<[1], [0], [0], [1], [0, 0, 1, 1], [], []>} : vector<1x32xf32>, vector<32x32xf32>, vector<1x32xf32> -> vector<1x32xf32>
    %13 = arith.mulf %11, %11 : vector<1x32xf32>
    %14 = arith.subf %12, %13 : vector<1x32xf32>
    %cst_13 = arith.constant 0.000000e+00 : f32
    %15 = vector.broadcast %cst_13 : f32 to vector<1x32xf32>
    %16 = arith.maximumf %14, %15 : vector<1x32xf32>
    %cst_14 = arith.constant 9.99999974E-6 : f32
    %17 = vector.broadcast %cst_14 : f32 to vector<1x32xf32>
    %18 = arith.addf %16, %17 : vector<1x32xf32>
    %19 = math.rsqrt %18 : vector<1x32xf32>
    %20 = vector.broadcast %11 : vector<1x32xf32> to vector<456x32xf32>
    %21 = arith.subf %1, %20 : vector<456x32xf32>
    %22 = arith.mulf %19, %3 : vector<1x32xf32>
    %23 = vector.broadcast %22 : vector<1x32xf32> to vector<456x32xf32>
    %24 = arith.mulf %21, %23 : vector<456x32xf32>
    %25 = vector.broadcast %4 : vector<1x32xf32> to vector<456x32xf32>
    %26 = arith.addf %24, %25 : vector<456x32xf32>
    %27 = arith.negf %26 : vector<456x32xf32>
    %28 = math.exp %27 : vector<456x32xf32>
    %cst_15 = arith.constant 1.000000e+00 : f32
    %29 = vector.broadcast %cst_15 : f32 to vector<456x32xf32>
    %30 = arith.addf %29, %28 : vector<456x32xf32>
    %31 = arith.divf %29, %30 : vector<456x32xf32>
    %32 = arith.mulf %26, %31 : vector<456x32xf32>
    %33 = vector.broadcast %5 : vector<456x1xf32> to vector<456x32xf32>
    %34 = arith.mulf %32, %33 : vector<456x32xf32>
    %cst_16 = arith.constant 0.000000e+00 : f32
    %35 = vector.broadcast %cst_16 : f32 to vector<384x64xf32>
    %36 = vector.extract_strided_slice %34 {offsets = [0, 0], sizes = [384, 32], strides = [1, 1]} : vector<456x32xf32> to vector<384x32xf32>
    %c0_17 = arith.constant 0 : index
    %c0_18 = arith.constant 0 : index
    %c0_19 = arith.constant 0 : index
    %37 = vector.load %arg6[%c0_17, %c0_18, %c0_19] : memref<9x32x64xf32, #tpu.memory_space<vmem>>, vector<1x32x64xf32>
    %38 = vector.shape_cast %37 : vector<1x32x64xf32> to vector<32x64xf32>
    %cst_20 = arith.constant dense<0.000000e+00> : vector<384x64xf32>
    %39 = tpu.matmul %36, %38, %cst_20 {dimension_numbers = #tpu.dot_dimension_numbers<[1], [0], [0], [1], [0, 0, 1, 1], [], []>} : vector<384x32xf32>, vector<32x64xf32>, vector<384x64xf32> -> vector<384x64xf32>
    %40 = arith.addf %35, %39 : vector<384x64xf32>
    %41 = vector.extract_strided_slice %34 {offsets = [1, 0], sizes = [384, 32], strides = [1, 1]} : vector<456x32xf32> to vector<384x32xf32>
    %c1 = arith.constant 1 : index
    %c0_21 = arith.constant 0 : index
    %c0_22 = arith.constant 0 : index
    %42 = vector.load %arg6[%c1, %c0_21, %c0_22] : memref<9x32x64xf32, #tpu.memory_space<vmem>>, vector<1x32x64xf32>
    %43 = vector.shape_cast %42 : vector<1x32x64xf32> to vector<32x64xf32>
    %cst_23 = arith.constant dense<0.000000e+00> : vector<384x64xf32>
    %44 = tpu.matmul %41, %43, %cst_23 {dimension_numbers = #tpu.dot_dimension_numbers<[1], [0], [0], [1], [0, 0, 1, 1], [], []>} : vector<384x32xf32>, vector<32x64xf32>, vector<384x64xf32> -> vector<384x64xf32>
    %45 = arith.addf %40, %44 : vector<384x64xf32>
    %46 = vector.extract_strided_slice %34 {offsets = [2, 0], sizes = [384, 32], strides = [1, 1]} : vector<456x32xf32> to vector<384x32xf32>
    %c2 = arith.constant 2 : index
    %c0_24 = arith.constant 0 : index
    %c0_25 = arith.constant 0 : index
    %47 = vector.load %arg6[%c2, %c0_24, %c0_25] : memref<9x32x64xf32, #tpu.memory_space<vmem>>, vector<1x32x64xf32>
    %48 = vector.shape_cast %47 : vector<1x32x64xf32> to vector<32x64xf32>
    %cst_26 = arith.constant dense<0.000000e+00> : vector<384x64xf32>
    %49 = tpu.matmul %46, %48, %cst_26 {dimension_numbers = #tpu.dot_dimension_numbers<[1], [0], [0], [1], [0, 0, 1, 1], [], []>} : vector<384x32xf32>, vector<32x64xf32>, vector<384x64xf32> -> vector<384x64xf32>
    %50 = arith.addf %45, %49 : vector<384x64xf32>
    %51 = vector.extract_strided_slice %34 {offsets = [24, 0], sizes = [384, 32], strides = [1, 1]} : vector<456x32xf32> to vector<384x32xf32>
    %c3 = arith.constant 3 : index
    %c0_27 = arith.constant 0 : index
    %c0_28 = arith.constant 0 : index
    %52 = vector.load %arg6[%c3, %c0_27, %c0_28] : memref<9x32x64xf32, #tpu.memory_space<vmem>>, vector<1x32x64xf32>
    %53 = vector.shape_cast %52 : vector<1x32x64xf32> to vector<32x64xf32>
    %cst_29 = arith.constant dense<0.000000e+00> : vector<384x64xf32>
    %54 = tpu.matmul %51, %53, %cst_29 {dimension_numbers = #tpu.dot_dimension_numbers<[1], [0], [0], [1], [0, 0, 1, 1], [], []>} : vector<384x32xf32>, vector<32x64xf32>, vector<384x64xf32> -> vector<384x64xf32>
    %55 = arith.addf %50, %54 : vector<384x64xf32>
    %56 = vector.extract_strided_slice %34 {offsets = [25, 0], sizes = [384, 32], strides = [1, 1]} : vector<456x32xf32> to vector<384x32xf32>
    %c4 = arith.constant 4 : index
    %c0_30 = arith.constant 0 : index
    %c0_31 = arith.constant 0 : index
    %57 = vector.load %arg6[%c4, %c0_30, %c0_31] : memref<9x32x64xf32, #tpu.memory_space<vmem>>, vector<1x32x64xf32>
    %58 = vector.shape_cast %57 : vector<1x32x64xf32> to vector<32x64xf32>
    %cst_32 = arith.constant dense<0.000000e+00> : vector<384x64xf32>
    %59 = tpu.matmul %56, %58, %cst_32 {dimension_numbers = #tpu.dot_dimension_numbers<[1], [0], [0], [1], [0, 0, 1, 1], [], []>} : vector<384x32xf32>, vector<32x64xf32>, vector<384x64xf32> -> vector<384x64xf32>
    %60 = arith.addf %55, %59 : vector<384x64xf32>
    %61 = vector.extract_strided_slice %34 {offsets = [26, 0], sizes = [384, 32], strides = [1, 1]} : vector<456x32xf32> to vector<384x32xf32>
    %c5 = arith.constant 5 : index
    %c0_33 = arith.constant 0 : index
    %c0_34 = arith.constant 0 : index
    %62 = vector.load %arg6[%c5, %c0_33, %c0_34] : memref<9x32x64xf32, #tpu.memory_space<vmem>>, vector<1x32x64xf32>
    %63 = vector.shape_cast %62 : vector<1x32x64xf32> to vector<32x64xf32>
    %cst_35 = arith.constant dense<0.000000e+00> : vector<384x64xf32>
    %64 = tpu.matmul %61, %63, %cst_35 {dimension_numbers = #tpu.dot_dimension_numbers<[1], [0], [0], [1], [0, 0, 1, 1], [], []>} : vector<384x32xf32>, vector<32x64xf32>, vector<384x64xf32> -> vector<384x64xf32>
    %65 = arith.addf %60, %64 : vector<384x64xf32>
    %66 = vector.extract_strided_slice %34 {offsets = [48, 0], sizes = [384, 32], strides = [1, 1]} : vector<456x32xf32> to vector<384x32xf32>
    %c6 = arith.constant 6 : index
    %c0_36 = arith.constant 0 : index
    %c0_37 = arith.constant 0 : index
    %67 = vector.load %arg6[%c6, %c0_36, %c0_37] : memref<9x32x64xf32, #tpu.memory_space<vmem>>, vector<1x32x64xf32>
    %68 = vector.shape_cast %67 : vector<1x32x64xf32> to vector<32x64xf32>
    %cst_38 = arith.constant dense<0.000000e+00> : vector<384x64xf32>
    %69 = tpu.matmul %66, %68, %cst_38 {dimension_numbers = #tpu.dot_dimension_numbers<[1], [0], [0], [1], [0, 0, 1, 1], [], []>} : vector<384x32xf32>, vector<32x64xf32>, vector<384x64xf32> -> vector<384x64xf32>
    %70 = arith.addf %65, %69 : vector<384x64xf32>
    %71 = vector.extract_strided_slice %34 {offsets = [49, 0], sizes = [384, 32], strides = [1, 1]} : vector<456x32xf32> to vector<384x32xf32>
    %c7 = arith.constant 7 : index
    %c0_39 = arith.constant 0 : index
    %c0_40 = arith.constant 0 : index
    %72 = vector.load %arg6[%c7, %c0_39, %c0_40] : memref<9x32x64xf32, #tpu.memory_space<vmem>>, vector<1x32x64xf32>
    %73 = vector.shape_cast %72 : vector<1x32x64xf32> to vector<32x64xf32>
    %cst_41 = arith.constant dense<0.000000e+00> : vector<384x64xf32>
    %74 = tpu.matmul %71, %73, %cst_41 {dimension_numbers = #tpu.dot_dimension_numbers<[1], [0], [0], [1], [0, 0, 1, 1], [], []>} : vector<384x32xf32>, vector<32x64xf32>, vector<384x64xf32> -> vector<384x64xf32>
    %75 = arith.addf %70, %74 : vector<384x64xf32>
    %76 = vector.extract_strided_slice %34 {offsets = [50, 0], sizes = [384, 32], strides = [1, 1]} : vector<456x32xf32> to vector<384x32xf32>
    %c8 = arith.constant 8 : index
    %c0_42 = arith.constant 0 : index
    %c0_43 = arith.constant 0 : index
    %77 = vector.load %arg6[%c8, %c0_42, %c0_43] : memref<9x32x64xf32, #tpu.memory_space<vmem>>, vector<1x32x64xf32>
    %78 = vector.shape_cast %77 : vector<1x32x64xf32> to vector<32x64xf32>
    %cst_44 = arith.constant dense<0.000000e+00> : vector<384x64xf32>
    %79 = tpu.matmul %76, %78, %cst_44 {dimension_numbers = #tpu.dot_dimension_numbers<[1], [0], [0], [1], [0, 0, 1, 1], [], []>} : vector<384x32xf32>, vector<32x64xf32>, vector<384x64xf32> -> vector<384x64xf32>
    %80 = arith.addf %75, %79 : vector<384x64xf32>
    %81 = vector.shape_cast %80 : vector<384x64xf32> to vector<16x24x64xf32>
    %82 = vector.extract_strided_slice %81 {offsets = [0, 0, 0], sizes = [16, 16, 64], strides = [1, 1, 1]} : vector<16x24x64xf32> to vector<16x16x64xf32>
    %83 = vector.shape_cast %82 : vector<16x16x64xf32> to vector<256x64xf32>
    %c0_45 = arith.constant 0 : index
    %c0_46 = arith.constant 0 : index
    %c0_47 = arith.constant 0 : index
    %84 = vector.load %arg8[%c0_45, %c0_46, %c0_47] : memref<1x1x128xf32, #tpu.memory_space<vmem>>, vector<1x1x128xf32>
    %85 = vector.shape_cast %84 : vector<1x1x128xf32> to vector<1x128xf32>
    %86 = arith.negf %85 : vector<1x128xf32>
    %87 = math.exp %86 : vector<1x128xf32>
    %cst_48 = arith.constant 1.000000e+00 : f32
    %88 = vector.broadcast %cst_48 : f32 to vector<1x128xf32>
    %89 = arith.addf %88, %87 : vector<1x128xf32>
    %90 = arith.divf %88, %89 : vector<1x128xf32>
    %91 = arith.mulf %85, %90 : vector<1x128xf32>
    %c0_49 = arith.constant 0 : index
    %c0_50 = arith.constant 0 : index
    %92 = vector.load %arg9[%c0_49, %c0_50] : memref<128x64xf32, #tpu.memory_space<vmem>>, vector<128x64xf32>
    %cst_51 = arith.constant dense<0.000000e+00> : vector<1x64xf32>
    %93 = tpu.matmul %91, %92, %cst_51 {dimension_numbers = #tpu.dot_dimension_numbers<[1], [0], [0], [1], [0, 0, 1, 1], [], []>} : vector<1x128xf32>, vector<128x64xf32>, vector<1x64xf32> -> vector<1x64xf32>
    %c0_52 = arith.constant 0 : index
    %c0_53 = arith.constant 0 : index
    %94 = vector.load %arg10[%c0_52, %c0_53] : memref<1x64xf32, #tpu.memory_space<vmem>>, vector<1x64xf32>
    %95 = arith.addf %93, %94 : vector<1x64xf32>
    %c0_54 = arith.constant 0 : index
    %c0_55 = arith.constant 0 : index
    %96 = vector.load %arg7[%c0_54, %c0_55] : memref<1x64xf32, #tpu.memory_space<vmem>>, vector<1x64xf32>
    %97 = vector.broadcast %96 : vector<1x64xf32> to vector<256x64xf32>
    %98 = arith.addf %83, %97 : vector<256x64xf32>
    %99 = vector.broadcast %95 : vector<1x64xf32> to vector<256x64xf32>
    %100 = arith.addf %98, %99 : vector<256x64xf32>
    %c0_56 = arith.constant 0 : index
    %c0_57 = arith.constant 0 : index
    %c0_58 = arith.constant 0 : index
    %101 = vector.load %arg11[%c0_56, %c0_57, %c0_58] : memref<1x256x64xf32, #tpu.memory_space<vmem>>, vector<1x256x64xf32>
    %102 = vector.shape_cast %101 : vector<1x256x64xf32> to vector<256x64xf32>
    %103 = vector.shape_cast %100 : vector<256x64xf32> to vector<1x256x64xf32>
    tpu.vector_store %arg11[%c0_56, %c0_57, %c0_58], %103 {strides = array<i32>} : memref<1x256x64xf32, #tpu.memory_space<vmem>>, vector<1x256x64xf32>,
    return
  }
  func.func @transform_0(%arg0: i32) -> (i32, i32, i32) {
    %c0_i32 = arith.constant 0 : i32
    %c0_i32_0 = arith.constant 0 : i32
    %c0_i32_1 = arith.constant 0 : i32
    return %arg0, %c0_i32, %c0_i32_0 : i32, i32, i32
  }
  func.func @transform_1(%arg0: i32) -> (i32, i32) {
    %c0_i32 = arith.constant 0 : i32
    %c0_i32_0 = arith.constant 0 : i32
    %c0_i32_1 = arith.constant 0 : i32
    return %c0_i32, %c0_i32_0 : i32, i32
  }
  func.func @transform_2(%arg0: i32) -> (i32, i32) {
    %c0_i32 = arith.constant 0 : i32
    %c0_i32_0 = arith.constant 0 : i32
    %c0_i32_1 = arith.constant 0 : i32
    return %c0_i32, %c0_i32_0 : i32, i32
  }
  func.func @transform_3(%arg0: i32) -> (i32, i32) {
    %c0_i32 = arith.constant 0 : i32
    %c0_i32_0 = arith.constant 0 : i32
    %c0_i32_1 = arith.constant 0 : i32
    return %c0_i32, %c0_i32_0 : i32, i32
  }
  func.func @transform_4(%arg0: i32) -> (i32, i32) {
    %c0_i32 = arith.constant 0 : i32
    %c0_i32_0 = arith.constant 0 : i32
    %c0_i32_1 = arith.constant 0 : i32
    return %c0_i32, %c0_i32_0 : i32, i32
  }
  func.func @transform_5(%arg0: i32) -> (i32, i32, i32) {
    %c0_i32 = arith.constant 0 : i32
    %c0_i32_0 = arith.constant 0 : i32
    %c0_i32_1 = arith.constant 0 : i32
    %c0_i32_2 = arith.constant 0 : i32
    return %c0_i32, %c0_i32_0, %c0_i32_1 : i32, i32, i32
  }
  func.func @transform_6(%arg0: i32) -> (i32, i32) {
    %c0_i32 = arith.constant 0 : i32
    %c0_i32_0 = arith.constant 0 : i32
    %c0_i32_1 = arith.constant 0 : i32
    return %c0_i32, %c0_i32_0 : i32, i32
  }
  func.func @transform_7(%arg0: i32) -> (i32, i32, i32) {
    %c0_i32 = arith.constant 0 : i32
    %c0_i32_0 = arith.constant 0 : i32
    %c0_i32_1 = arith.constant 0 : i32
    return %arg0, %c0_i32, %c0_i32_0 : i32, i32, i32
  }
  func.func @transform_8(%arg0: i32) -> (i32, i32) {
    %c0_i32 = arith.constant 0 : i32
    %c0_i32_0 = arith.constant 0 : i32
    %c0_i32_1 = arith.constant 0 : i32
    return %c0_i32, %c0_i32_0 : i32, i32
  }
  func.func @transform_9(%arg0: i32) -> (i32, i32) {
    %c0_i32 = arith.constant 0 : i32
    %c0_i32_0 = arith.constant 0 : i32
    %c0_i32_1 = arith.constant 0 : i32
    return %c0_i32, %c0_i32_0 : i32, i32
  }
  func.func @transform_10(%arg0: i32) -> (i32, i32, i32) {
    %c0_i32 = arith.constant 0 : i32
    %c0_i32_0 = arith.constant 0 : i32
    %c0_i32_1 = arith.constant 0 : i32
    return %arg0, %c0_i32, %c0_i32_0 : i32, i32, i32
  }
}

</mosaic_0001>

<llo_original>
// kernel: unet_residual_block.3
$region0: #{unet_residual_block.3}
  #allocation0 [shape = 'u32[]', space=smem, size = 0x4, offset = 0x4, fixed_abs, tag = 'smem constant byte address 0x4 - core index']
  #allocation1 [shape = 'u32[144,128]{1,0:T(1,128)}', space=vmem, size = 0x12000, scoped, tag = 'internal scratch']
  %s0 = inlined_call_operand.vmem [shape: f32[2,456,64], index: 0, kind: input, shape index: {}]
  %s1 = inlined_call_operand.vmem [shape: f32[64,64], index: 1, kind: input, shape index: {}]
  %s2 = inlined_call_operand.vmem [shape: f32[1,64], index: 2, kind: input, shape index: {}]
  %s3 = inlined_call_operand.vmem [shape: f32[1,64], index: 3, kind: input, shape index: {}]
  %s4 = inlined_call_operand.vmem [shape: f32[456,1], index: 4, kind: input, shape index: {}]
  %s5 = inlined_call_operand.vmem [shape: f32[9,64,64], index: 5, kind: input, shape index: {}]
  %s6 = inlined_call_operand.vmem [shape: f32[1,64], index: 6, kind: input, shape index: {}]
  %s7 = inlined_call_operand.vmem [shape: f32[2,256,32], index: 7, kind: input, shape index: {}]
  %s8 = inlined_call_operand.vmem [shape: f32[32,64], index: 8, kind: input, shape index: {}]
  %s9 = inlined_call_operand.vmem [shape: f32[1,64], index: 9, kind: input, shape index: {}]
  %s10 = inlined_call_operand.hbm [shape: f32[2,256,64], index: 10, kind: output, shape index: {}]
  %s11 = sld [smem:[#allocation0]]
  $region73: #{unet_residual_block.3} parent=0
    _
  %s13 = ssub.s32 1, %s11
  %s14 = scalar_select 0, %s13, %s11
  $region1: #{unet_residual_block.3} parent=0
    #allocation2 [shape = 'u8[262144]{0}', space=vmem, size = 0x40000, scoped, tag = 'output window, operand 0']
    #allocation3 [shape = 's32[2]{0}', space=sflag, size = 0x8, scoped, tag = 'scoped memory for unet_residual_block.3']
    %15 = vsyncpa [#allocation3], 0
    %s16 = scalar_lea.sflag [#allocation3], 1
    %17 = vsyncpa %s16, 0
    loop: start=0, step=1, limit=4
    $region2: #{unet_residual_block.3} parent=1 // loop_pre_header
      _
    $region3: #{unet_residual_block.3} parent=1 // loop_header
      %s19 = sphi 0, %s23
      %p20 = scmp.ge.s32.totalorder %s19, 4
      %s29 = sphi 0, %s31
      %s32 = sphi 0, %s29
      %s33 = sphi 0, %s32
      %s49 = sphi 0, %s33
      %s53 = sphi 0, %s53
      %s55 = sphi 0, %s53
      %s56 = sphi 0, %s55
      %s70 = sphi 0, %s56
      %s74 = sphi 0, %s74
      %s76 = sphi 0, %s74
      %s77 = sphi 0, %s76
      %s91 = sphi 0, %s77
      %s95 = sphi 0, %s95
      %s97 = sphi 0, %s95
      %s98 = sphi 0, %s97
      %s112 = sphi 0, %s98
      %s116 = sphi 0, %s116
      %s118 = sphi 0, %s116
      %s119 = sphi 0, %s118
      %s133 = sphi 0, %s119
      %s137 = sphi 0, %s137
      %s139 = sphi 0, %s137
      %s140 = sphi 0, %s139
      %s154 = sphi 0, %s140
      %s158 = sphi 0, %s158
      %s160 = sphi 0, %s158
      %s161 = sphi 0, %s160
      %s175 = sphi 0, %s161
      %s181 = sphi 0, %s183
      %s184 = sphi 0, %s181
      %s185 = sphi 0, %s184
      %s201 = sphi 0, %s185
      %s205 = sphi 0, %s205
      %s207 = sphi 0, %s205
      %s208 = sphi 0, %s207
      %s222 = sphi 0, %s208
      %s226 = sphi 0, %s226
      %s228 = sphi 0, %s226
      %s229 = sphi 0, %s228
      %s243 = sphi 0, %s229
      %s249 = sphi 0, %s251
      %s252 = sphi 0, %s249
      %s253 = sphi 0, %s252
      %s269 = sphi 0, %s253
    $region4: #{unet_residual_block.3} parent=1 // loop_header_branch
      %22 = sbr.rel (%p20) target = $region8
    $region5: #{unet_residual_block.3} parent=1 // loop_body
      %s24 = ssub.s32 %s19, 1
      %s25 = ssub.s32 %s19, 2
      %s26 = sadd.s32 %s19, 1
      %s27 = ssub.s32 %s19, %s26
      %p28 = scmp.eq.s32.totalorder %s27, 0
      %s30 = sadd.s32 %s29, 1
      %s31 = scalar_select %p28, %s29, %s30
      %p34 = pneg %p28
      %p35 = scmp.eq.s32.totalorder %s19, 1
      %p36 = por %p34, %p35
      %p37 = scmp.ne.s32.totalorder %s29, %s32
      %p38 = scmp.eq.s32.totalorder %s19, 0
      %p39 = por %p37, %p38
      %p40 = scmp.ne.s32.totalorder %s29, %s32
      %p41 = scmp.eq.s32.totalorder %s24, 1
      %p42 = por %p40, %p41
      %p43 = scmp.ne.s32.totalorder %s32, %s33
      %p44 = scmp.eq.s32.totalorder %s24, 0
      %p45 = por %p43, %p44
      %p46 = scmp.ne.s32.totalorder %s32, %s33
      %p47 = scmp.eq.s32.totalorder %s25, 1
      %p48 = por %p46, %p47
      %p50 = scmp.ne.s32.totalorder %s33, %s49
      %p51 = scmp.eq.s32.totalorder %s25, 0
      %p52 = por %p50, %p51
      %s54 = sadd.s32 %s53, 1
      %p57 = scmp.eq.s32.totalorder %s19, 1
      %p58 = scmp.ne.s32.totalorder %s53, %s55
      %p59 = scmp.eq.s32.totalorder %s19, 0
      %p60 = por %p58, %p59
      %p61 = scmp.ne.s32.totalorder %s53, %s55
      %p62 = scmp.eq.s32.totalorder %s24, 1
      %p63 = por %p61, %p62
      %p64 = scmp.ne.s32.totalorder %s55, %s56
      %p65 = scmp.eq.s32.totalorder %s24, 0
      %p66 = por %p64, %p65
      %p67 = scmp.ne.s32.totalorder %s55, %s56
      %p68 = scmp.eq.s32.totalorder %s25, 1
      %p69 = por %p67, %p68
      %p71 = scmp.ne.s32.totalorder %s56, %s70
      %p72 = scmp.eq.s32.totalorder %s25, 0
      %p73 = por %p71, %p72
      %s75 = sadd.s32 %s74, 1
      %p78 = scmp.eq.s32.totalorder %s19, 1
      %p79 = scmp.ne.s32.totalorder %s74, %s76
      %p80 = scmp.eq.s32.totalorder %s19, 0
      %p81 = por %p79, %p80
      %p82 = scmp.ne.s32.totalorder %s74, %s76
      %p83 = scmp.eq.s32.totalorder %s24, 1
      %p84 = por %p82, %p83
      %p85 = scmp.ne.s32.totalorder %s76, %s77
      %p86 = scmp.eq.s32.totalorder %s24, 0
      %p87 = por %p85, %p86
      %p88 = scmp.ne.s32.totalorder %s76, %s77
      %p89 = scmp.eq.s32.totalorder %s25, 1
      %p90 = por %p88, %p89
      %p92 = scmp.ne.s32.totalorder %s77, %s91
      %p93 = scmp.eq.s32.totalorder %s25, 0
      %p94 = por %p92, %p93
      %s96 = sadd.s32 %s95, 1
      %p99 = scmp.eq.s32.totalorder %s19, 1
      %p100 = scmp.ne.s32.totalorder %s95, %s97
      %p101 = scmp.eq.s32.totalorder %s19, 0
      %p102 = por %p100, %p101
      %p103 = scmp.ne.s32.totalorder %s95, %s97
      %p104 = scmp.eq.s32.totalorder %s24, 1
      %p105 = por %p103, %p104
      %p106 = scmp.ne.s32.totalorder %s97, %s98
      %p107 = scmp.eq.s32.totalorder %s24, 0
      %p108 = por %p106, %p107
      %p109 = scmp.ne.s32.totalorder %s97, %s98
      %p110 = scmp.eq.s32.totalorder %s25, 1
      %p111 = por %p109, %p110
      %p113 = scmp.ne.s32.totalorder %s98, %s112
      %p114 = scmp.eq.s32.totalorder %s25, 0
      %p115 = por %p113, %p114
      %s117 = sadd.s32 %s116, 1
      %p120 = scmp.eq.s32.totalorder %s19, 1
      %p121 = scmp.ne.s32.totalorder %s116, %s118
      %p122 = scmp.eq.s32.totalorder %s19, 0
      %p123 = por %p121, %p122
      %p124 = scmp.ne.s32.totalorder %s116, %s118
      %p125 = scmp.eq.s32.totalorder %s24, 1
      %p126 = por %p124, %p125
      %p127 = scmp.ne.s32.totalorder %s118, %s119
      %p128 = scmp.eq.s32.totalorder %s24, 0
      %p129 = por %p127, %p128
      %p130 = scmp.ne.s32.totalorder %s118, %s119
      %p131 = scmp.eq.s32.totalorder %s25, 1
      %p132 = por %p130, %p131
      %p134 = scmp.ne.s32.totalorder %s119, %s133
      %p135 = scmp.eq.s32.totalorder %s25, 0
      %p136 = por %p134, %p135
      %s138 = sadd.s32 %s137, 1
      %p141 = scmp.eq.s32.totalorder %s19, 1
      %p142 = scmp.ne.s32.totalorder %s137, %s139
      %p143 = scmp.eq.s32.totalorder %s19, 0
      %p144 = por %p142, %p143
      %p145 = scmp.ne.s32.totalorder %s137, %s139
      %p146 = scmp.eq.s32.totalorder %s24, 1
      %p147 = por %p145, %p146
      %p148 = scmp.ne.s32.totalorder %s139, %s140
      %p149 = scmp.eq.s32.totalorder %s24, 0
      %p150 = por %p148, %p149
      %p151 = scmp.ne.s32.totalorder %s139, %s140
      %p152 = scmp.eq.s32.totalorder %s25, 1
      %p153 = por %p151, %p152
      %p155 = scmp.ne.s32.totalorder %s140, %s154
      %p156 = scmp.eq.s32.totalorder %s25, 0
      %p157 = por %p155, %p156
      %s159 = sadd.s32 %s158, 1
      %p162 = scmp.eq.s32.totalorder %s19, 1
      %p163 = scmp.ne.s32.totalorder %s158, %s160
      %p164 = scmp.eq.s32.totalorder %s19, 0
      %p165 = por %p163, %p164
      %p166 = scmp.ne.s32.totalorder %s158, %s160
      %p167 = scmp.eq.s32.totalorder %s24, 1
      %p168 = por %p166, %p167
      %p169 = scmp.ne.s32.totalorder %s160, %s161
      %p170 = scmp.eq.s32.totalorder %s24, 0
      %p171 = por %p169, %p170
      %p172 = scmp.ne.s32.totalorder %s160, %s161
      %p173 = scmp.eq.s32.totalorder %s25, 1
      %p174 = por %p172, %p173
      %p176 = scmp.ne.s32.totalorder %s161, %s175
      %p177 = scmp.eq.s32.totalorder %s25, 0
      %p178 = por %p176, %p177
      %s179 = ssub.s32 %s19, %s26
      %p180 = scmp.eq.s32.totalorder %s179, 0
      %s182 = sadd.s32 %s181, 1
      %s183 = scalar_select %p180, %s181, %s182
      %p186 = pneg %p180
      %p187 = scmp.eq.s32.totalorder %s19, 1
      %p188 = por %p186, %p187
      %p189 = scmp.ne.s32.totalorder %s181, %s184
      %p190 = scmp.eq.s32.totalorder %s19, 0
      %p191 = por %p189, %p190
      %p192 = scmp.ne.s32.totalorder %s181, %s184
      %p193 = scmp.eq.s32.totalorder %s24, 1
      %p194 = por %p192, %p193
      %p195 = scmp.ne.s32.totalorder %s184, %s185
      %p196 = scmp.eq.s32.totalorder %s24, 0
      %p197 = por %p195, %p196
      %p198 = scmp.ne.s32.totalorder %s184, %s185
      %p199 = scmp.eq.s32.totalorder %s25, 1
      %p200 = por %p198, %p199
      %p202 = scmp.ne.s32.totalorder %s185, %s201
      %p203 = scmp.eq.s32.totalorder %s25, 0
      %p204 = por %p202, %p203
      %s206 = sadd.s32 %s205, 1
      %p209 = scmp.eq.s32.totalorder %s19, 1
      %p210 = scmp.ne.s32.totalorder %s205, %s207
      %p211 = scmp.eq.s32.totalorder %s19, 0
      %p212 = por %p210, %p211
      %p213 = scmp.ne.s32.totalorder %s205, %s207
      %p214 = scmp.eq.s32.totalorder %s24, 1
      %p215 = por %p213, %p214
      %p216 = scmp.ne.s32.totalorder %s207, %s208
      %p217 = scmp.eq.s32.totalorder %s24, 0
      %p218 = por %p216, %p217
      %p219 = scmp.ne.s32.totalorder %s207, %s208
      %p220 = scmp.eq.s32.totalorder %s25, 1
      %p221 = por %p219, %p220
      %p223 = scmp.ne.s32.totalorder %s208, %s222
      %p224 = scmp.eq.s32.totalorder %s25, 0
      %p225 = por %p223, %p224
      %s227 = sadd.s32 %s226, 1
      %p230 = scmp.eq.s32.totalorder %s19, 1
      %p231 = scmp.ne.s32.totalorder %s226, %s228
      %p232 = scmp.eq.s32.totalorder %s19, 0
      %p233 = por %p231, %p232
      %p234 = scmp.ne.s32.totalorder %s226, %s228
      %p235 = scmp.eq.s32.totalorder %s24, 1
      %p236 = por %p234, %p235
      %p237 = scmp.ne.s32.totalorder %s228, %s229
      %p238 = scmp.eq.s32.totalorder %s24, 0
      %p239 = por %p237, %p238
      %p240 = scmp.ne.s32.totalorder %s228, %s229
      %p241 = scmp.eq.s32.totalorder %s25, 1
      %p242 = por %p240, %p241
      %p244 = scmp.ne.s32.totalorder %s229, %s243
      %p245 = scmp.eq.s32.totalorder %s25, 0
      %p246 = por %p244, %p245
      %s247 = ssub.s32 %s19, %s26
      %p248 = scmp.eq.s32.totalorder %s247, 0
      %s250 = sadd.s32 %s249, 1
      %s251 = scalar_select %p248, %s249, %s250
      %p254 = pneg %p248
      %p255 = scmp.eq.s32.totalorder %s19, 1
      %p256 = por %p254, %p255
      %p257 = scmp.ne.s32.totalorder %s249, %s252
      %p258 = scmp.eq.s32.totalorder %s19, 0
      %p259 = por %p257, %p258
      %p260 = scmp.ne.s32.totalorder %s249, %s252
      %p261 = scmp.eq.s32.totalorder %s24, 1
      %p262 = por %p260, %p261
      %p263 = scmp.ne.s32.totalorder %s252, %s253
      %p264 = scmp.eq.s32.totalorder %s24, 0
      %p265 = por %p263, %p264
      %p266 = scmp.ne.s32.totalorder %s252, %s253
      %p267 = scmp.eq.s32.totalorder %s25, 1
      %p268 = por %p266, %p267
      %p270 = scmp.ne.s32.totalorder %s253, %s269
      %p271 = scmp.eq.s32.totalorder %s25, 0
      %p272 = por %p270, %p271
      %p273 = scmp.le.s32.totalorder 1, %s19
      %p274 = scmp.lt.s32.totalorder %s19, 3
      %p275 = pnand %p273, %p274
      %p276 = pneg %p275
      // Predicated region
      $region9: #{unet_residual_block.3} parent=5 // pred_check
        _
      $region10: #{unet_residual_block.3} parent=5 // pred_check_branch
        %278 = sbr.rel (%p275) target = $region12
      $region11: #{unet_residual_block.3} parent=5 // pred_region
        %s279 = ssub.s32 %s19, 1
        // Predicated region
        $region13: #{unet_residual_block.3} parent=11 // pred_check
          %p280 = pneg %p66
        $region14: #{unet_residual_block.3} parent=11 // pred_check_branch
          %282 = sbr.rel (%p280) target = $region16
        $region15: #{unet_residual_block.3} parent=11 // pred_region
          _
        $region16: #{unet_residual_block.3} parent=11 // pred_fallthru
          _
        // Predicated region
        $region17: #{unet_residual_block.3} parent=11 // pred_check
          %p283 = pneg %p87
        $region18: #{unet_residual_block.3} parent=11 // pred_check_branch
          %285 = sbr.rel (%p283) target = $region20
        $region19: #{unet_residual_block.3} parent=11 // pred_region
          _
        $region20: #{unet_residual_block.3} parent=11 // pred_fallthru
          _
        // Predicated region
        $region21: #{unet_residual_block.3} parent=11 // pred_check
          %p286 = pneg %p108
        $region22: #{unet_residual_block.3} parent=11 // pred_check_branch
          %288 = sbr.rel (%p286) target = $region24
        $region23: #{unet_residual_block.3} parent=11 // pred_region
          _
        $region24: #{unet_residual_block.3} parent=11 // pred_fallthru
          _
        // Predicated region
        $region25: #{unet_residual_block.3} parent=11 // pred_check
          %p289 = pneg %p129
        $region26: #{unet_residual_block.3} parent=11 // pred_check_branch
          %291 = sbr.rel (%p289) target = $region28
        $region27: #{unet_residual_block.3} parent=11 // pred_region
          _
        $region28: #{unet_residual_block.3} parent=11 // pred_fallthru
          _
        // Predicated region
        $region29: #{unet_residual_block.3} parent=11 // pred_check
          %p292 = pneg %p150
        $region30: #{unet_residual_block.3} parent=11 // pred_check_branch
          %294 = sbr.rel (%p292) target = $region32
        $region31: #{unet_residual_block.3} parent=11 // pred_region
          _
        $region32: #{unet_residual_block.3} parent=11 // pred_fallthru
          _
        // Predicated region
        $region33: #{unet_residual_block.3} parent=11 // pred_check
          %p295 = pneg %p171
        $region34: #{unet_residual_block.3} parent=11 // pred_check_branch
          %297 = sbr.rel (%p295) target = $region36
        $region35: #{unet_residual_block.3} parent=11 // pred_region
          _
        $region36: #{unet_residual_block.3} parent=11 // pred_fallthru
          _
        // Predicated region
        $region37: #{unet_residual_block.3} parent=11 // pred_check
          %p298 = pneg %p218
        $region38: #{unet_residual_block.3} parent=11 // pred_check_branch
          %300 = sbr.rel (%p298) target = $region40
        $region39: #{unet_residual_block.3} parent=11 // pred_region
          _
        $region40: #{unet_residual_block.3} parent=11 // pred_fallthru
          _
        // Predicated region
        $region41: #{unet_residual_block.3} parent=11 // pred_check
          %p301 = pneg %p239
        $region42: #{unet_residual_block.3} parent=11 // pred_check_branch
          %303 = sbr.rel (%p301) target = $region44
        $region43: #{unet_residual_block.3} parent=11 // pred_region
          _
        $region44: #{unet_residual_block.3} parent=11 // pred_fallthru
          _
      $region12: #{unet_residual_block.3} parent=5 // pred_fallthru
        _
      %p304 = scmp.lt.s32.totalorder %s19, 2
      // Predicated region
      $region45: #{unet_residual_block.3} parent=5 // pred_check
        %p305 = pneg %p304
      $region46: #{unet_residual_block.3} parent=5 // pred_check_branch
        %307 = sbr.rel (%p305) target = $region48
      $region47: #{unet_residual_block.3} parent=5 // pred_region
        // Predicated region
        $region49: #{unet_residual_block.3} parent=47 // pred_check
          %p308 = pneg %p39
        $region50: #{unet_residual_block.3} parent=47 // pred_check_branch
          %310 = sbr.rel (%p308) target = $region52
        $region51: #{unet_residual_block.3} parent=47 // pred_region
          %p311 = scmp.lt.s32.totalorder %s19, 1
          %s312 = scalar_select %p311, %s19, 1
          %s313 = smul.addr %s312, 57
          %s314 = smul.addr %s313, 8
          %s315 = scalar_lea.vmem %s0, %s314
        $region52: #{unet_residual_block.3} parent=47 // pred_fallthru
          _
        // Predicated region
        $region53: #{unet_residual_block.3} parent=47 // pred_check
          %p316 = pneg %p191
        $region54: #{unet_residual_block.3} parent=47 // pred_check_branch
          %318 = sbr.rel (%p316) target = $region56
        $region55: #{unet_residual_block.3} parent=47 // pred_region
          %p319 = scmp.lt.s32.totalorder %s19, 1
          %s320 = scalar_select %p319, %s19, 1
          %s321 = smul.addr %s320, 32
          %s322 = smul.addr %s321, 8
          %s323 = scalar_lea.vmem %s7, %s322
        $region56: #{unet_residual_block.3} parent=47 // pred_fallthru
          _
      $region48: #{unet_residual_block.3} parent=5 // pred_fallthru
        _
      %p324 = scmp.le.s32.totalorder 1, %s19
      %p325 = scmp.lt.s32.totalorder %s19, 3
      %p326 = pnand %p324, %p325
      %p327 = pneg %p326
      // Predicated region
      $region57: #{unet_residual_block.3} parent=5 // pred_check
        _
      $region58: #{unet_residual_block.3} parent=5 // pred_check_branch
        %329 = sbr.rel (%p326) target = $region60
      $region59: #{unet_residual_block.3} parent=5 // pred_region
        %s330 = ssub.s32 %s19, 1
        %p331 = scmp.lt.s32.totalorder %s24, 1
        %s332 = scalar_select %p331, %s24, 1
        %s333 = smul.addr %s332, 57
        %s334 = smul.addr %s333, 8
        %s335 = scalar_lea.vmem %s0, %s334
        %p336 = pneg %p45
        %p337 = pneg %p42
        %p338 = pneg %p66
        %p339 = pneg %p63
        %p340 = pneg %p87
        %p341 = pneg %p84
        %p342 = pneg %p108
        %p343 = pneg %p105
        %p344 = pneg %p129
        %p345 = pneg %p126
        %p346 = pneg %p150
        %p347 = pneg %p147
        %p348 = pneg %p171
        %p349 = pneg %p168
        %p350 = scmp.lt.s32.totalorder %s24, 1
        %s351 = scalar_select %p350, %s24, 1
        %s352 = smul.addr %s351, 32
        %s353 = smul.addr %s352, 8
        %s354 = scalar_lea.vmem %s7, %s353
        %p355 = pneg %p197
        %p356 = pneg %p194
        %p357 = pneg %p218
        %p358 = pneg %p215
        %p359 = pneg %p239
        %p360 = pneg %p236
        %p361 = pneg %p265
        %p362 = pneg %p262
        %s363 = sand.u32 %s252, 1
        %s364 = scalar_lea.sflag [#allocation3], %s363
        %s365 = sand.u32 %s252, 1
        %s366 = smul.addr %s365, 256
        %s367 = scalar_lea.vmem [#allocation2], %s366
        %p368 = scmp.lt.s32.totalorder %s24, 1
        %s369 = scalar_select %p368, %s24, 1
        %s370 = smul.addr %s369, 57
        %s371 = smul.addr %s370, 8
        %s372 = scalar_lea.vmem %s0, %s371
        %p373 = scmp.lt.s32.totalorder %s24, 1
        %s374 = scalar_select %p373, %s24, 1
        %s375 = smul.addr %s374, 32
        %s376 = smul.addr %s375, 8
        %s377 = scalar_lea.vmem %s7, %s376
        %v378 = vld [vmem:[%s372] sm:$0xff]
        %v379 = vld [vmem:[%s372 + $0x8] sm:$0xff]
        %v380 = vld [vmem:[%s372 + $0x10] sm:$0xff]
        %v381 = vld [vmem:[%s372 + $0x18] sm:$0xff]
        %v382 = vld [vmem:[%s372 + $0x20] sm:$0xff]
        %v383 = vld [vmem:[%s372 + $0x28] sm:$0xff]
        %v384 = vld [vmem:[%s372 + $0x30] sm:$0xff]
        %v385 = vld [vmem:[%s372 + $0x38] sm:$0xff]
        %v386 = vld [vmem:[%s372 + $0x40] sm:$0xff]
        %v387 = vld [vmem:[%s372 + $0x48] sm:$0xff]
        %v388 = vld [vmem:[%s372 + $0x50] sm:$0xff]
        %v389 = vld [vmem:[%s372 + $0x58] sm:$0xff]
        %v390 = vld [vmem:[%s372 + $0x60] sm:$0xff]
        %v391 = vld [vmem:[%s372 + $0x68] sm:$0xff]
        %v392 = vld [vmem:[%s372 + $0x70] sm:$0xff]
        %v393 = vld [vmem:[%s372 + $0x78] sm:$0xff]
        %v394 = vld [vmem:[%s372 + $0x80] sm:$0xff]
        %v395 = vld [vmem:[%s372 + $0x88] sm:$0xff]
        %v396 = vld [vmem:[%s372 + $0x90] sm:$0xff]
        %v397 = vld [vmem:[%s372 + $0x98] sm:$0xff]
        %v398 = vld [vmem:[%s372 + $0xa0] sm:$0xff]
        %v399 = vld [vmem:[%s372 + $0xa8] sm:$0xff]
        %v400 = vld [vmem:[%s372 + $0xb0] sm:$0xff]
        %v401 = vld [vmem:[%s372 + $0xb8] sm:$0xff]
        %v402 = vld [vmem:[%s372 + $0xc0] sm:$0xff]
        %v403 = vld [vmem:[%s372 + $0xc8] sm:$0xff]
        %v404 = vld [vmem:[%s372 + $0xd0] sm:$0xff]
        %v405 = vld [vmem:[%s372 + $0xd8] sm:$0xff]
        %v406 = vld [vmem:[%s372 + $0xe0] sm:$0xff]
        %v407 = vld [vmem:[%s372 + $0xe8] sm:$0xff]
        %v408 = vld [vmem:[%s372 + $0xf0] sm:$0xff]
        %v409 = vld [vmem:[%s372 + $0xf8] sm:$0xff]
        %v410 = vld [vmem:[%s372 + $0x100] sm:$0xff]
        %v411 = vld [vmem:[%s372 + $0x108] sm:$0xff]
        %v412 = vld [vmem:[%s372 + $0x110] sm:$0xff]
        %v413 = vld [vmem:[%s372 + $0x118] sm:$0xff]
        %v414 = vld [vmem:[%s372 + $0x120] sm:$0xff]
        %v415 = vld [vmem:[%s372 + $0x128] sm:$0xff]
        %v416 = vld [vmem:[%s372 + $0x130] sm:$0xff]
        %v417 = vld [vmem:[%s372 + $0x138] sm:$0xff]
        %v418 = vld [vmem:[%s372 + $0x140] sm:$0xff]
        %v419 = vld [vmem:[%s372 + $0x148] sm:$0xff]
        %v420 = vld [vmem:[%s372 + $0x150] sm:$0xff]
        %v421 = vld [vmem:[%s372 + $0x158] sm:$0xff]
        %v422 = vld [vmem:[%s372 + $0x160] sm:$0xff]
        %v423 = vld [vmem:[%s372 + $0x168] sm:$0xff]
        %v424 = vld [vmem:[%s372 + $0x170] sm:$0xff]
        %v425 = vld [vmem:[%s372 + $0x178] sm:$0xff]
        %v426 = vld [vmem:[%s372 + $0x180] sm:$0xff]
        %v427 = vld [vmem:[%s372 + $0x188] sm:$0xff]
        %v428 = vld [vmem:[%s372 + $0x190] sm:$0xff]
        %v429 = vld [vmem:[%s372 + $0x198] sm:$0xff]
        %v430 = vld [vmem:[%s372 + $0x1a0] sm:$0xff]
        %v431 = vld [vmem:[%s372 + $0x1a8] sm:$0xff]
        %v432 = vld [vmem:[%s372 + $0x1b0] sm:$0xff]
        %v433 = vld [vmem:[%s372 + $0x1b8] sm:$0xff]
        %v434 = vld [vmem:[%s372 + $0x1c0] sm:$0xff]
        %v435 = vld [vmem:[%s1] sm:$0xff]
        %v436 = vld [vmem:[%s1 + $0x8] sm:$0xff]
        %v437 = vld [vmem:[%s1 + $0x10] sm:$0xff]
        %v438 = vld [vmem:[%s1 + $0x18] sm:$0xff]
        %v439 = vld [vmem:[%s1 + $0x20] sm:$0xff]
        %v440 = vld [vmem:[%s1 + $0x28] sm:$0xff]
        %v441 = vld [vmem:[%s1 + $0x30] sm:$0xff]
        %v442 = vld [vmem:[%s1 + $0x38] sm:$0xff]
        %v443 = vld [vmem:[%s2] sm:$0x1]
        %v444 = vld [vmem:[%s3] sm:$0x1]
        %v445 = vld [vmem:[%s4] sm:$0xff]
        %v446 = vld [vmem:[%s4 + $0x8] sm:$0xff]
        %v447 = vld [vmem:[%s4 + $0x10] sm:$0xff]
        %v448 = vld [vmem:[%s4 + $0x18] sm:$0xff]
        %v449 = vld [vmem:[%s4 + $0x20] sm:$0xff]
        %v450 = vld [vmem:[%s4 + $0x28] sm:$0xff]
        %v451 = vld [vmem:[%s4 + $0x30] sm:$0xff]
        %v452 = vld [vmem:[%s4 + $0x38] sm:$0xff]
        %v453 = vld [vmem:[%s4 + $0x40] sm:$0xff]
        %v454 = vld [vmem:[%s4 + $0x48] sm:$0xff]
        %v455 = vld [vmem:[%s4 + $0x50] sm:$0xff]
        %v456 = vld [vmem:[%s4 + $0x58] sm:$0xff]
        %v457 = vld [vmem:[%s4 + $0x60] sm:$0xff]
        %v458 = vld [vmem:[%s4 + $0x68] sm:$0xff]
        %v459 = vld [vmem:[%s4 + $0x70] sm:$0xff]
        %v460 = vld [vmem:[%s4 + $0x78] sm:$0xff]
        %v461 = vld [vmem:[%s4 + $0x80] sm:$0xff]
        %v462 = vld [vmem:[%s4 + $0x88] sm:$0xff]
        %v463 = vld [vmem:[%s4 + $0x90] sm:$0xff]
        %v464 = vld [vmem:[%s4 + $0x98] sm:$0xff]
        %v465 = vld [vmem:[%s4 + $0xa0] sm:$0xff]
        %v466 = vld [vmem:[%s4 + $0xa8] sm:$0xff]
        %v467 = vld [vmem:[%s4 + $0xb0] sm:$0xff]
        %v468 = vld [vmem:[%s4 + $0xb8] sm:$0xff]
        %v469 = vld [vmem:[%s4 + $0xc0] sm:$0xff]
        %v470 = vld [vmem:[%s4 + $0xc8] sm:$0xff]
        %v471 = vld [vmem:[%s4 + $0xd0] sm:$0xff]
        %v472 = vld [vmem:[%s4 + $0xd8] sm:$0xff]
        %v473 = vld [vmem:[%s4 + $0xe0] sm:$0xff]
        %v474 = vld [vmem:[%s4 + $0xe8] sm:$0xff]
        %v475 = vld [vmem:[%s4 + $0xf0] sm:$0xff]
        %v476 = vld [vmem:[%s4 + $0xf8] sm:$0xff]
        %v477 = vld [vmem:[%s4 + $0x100] sm:$0xff]
        %v478 = vld [vmem:[%s4 + $0x108] sm:$0xff]
        %v479 = vld [vmem:[%s4 + $0x110] sm:$0xff]
        %v480 = vld [vmem:[%s4 + $0x118] sm:$0xff]
        %v481 = vld [vmem:[%s4 + $0x120] sm:$0xff]
        %v482 = vld [vmem:[%s4 + $0x128] sm:$0xff]
        %v483 = vld [vmem:[%s4 + $0x130] sm:$0xff]
        %v484 = vld [vmem:[%s4 + $0x138] sm:$0xff]
        %v485 = vld [vmem:[%s4 + $0x140] sm:$0xff]
        %v486 = vld [vmem:[%s4 + $0x148] sm:$0xff]
        %v487 = vld [vmem:[%s4 + $0x150] sm:$0xff]
        %v488 = vld [vmem:[%s4 + $0x158] sm:$0xff]
        %v489 = vld [vmem:[%s4 + $0x160] sm:$0xff]
        %v490 = vld [vmem:[%s4 + $0x168] sm:$0xff]
        %v491 = vld [vmem:[%s4 + $0x170] sm:$0xff]
        %v492 = vld [vmem:[%s4 + $0x178] sm:$0xff]
        %v493 = vld [vmem:[%s4 + $0x180] sm:$0xff]
        %v494 = vld [vmem:[%s4 + $0x188] sm:$0xff]
        %v495 = vld [vmem:[%s4 + $0x190] sm:$0xff]
        %v496 = vld [vmem:[%s4 + $0x198] sm:$0xff]
        %v497 = vld [vmem:[%s4 + $0x1a0] sm:$0xff]
        %v498 = vld [vmem:[%s4 + $0x1a8] sm:$0xff]
        %v499 = vld [vmem:[%s4 + $0x1b0] sm:$0xff]
        %vm500 = vcmask 523264
        %v501 = vsel %vm500, %v378, 0.0
        %v502 = vsel %vm500, %v379, 0.0
        %v503 = vadd.f32 %v501, %v502
        %v504 = vsel %vm500, %v380, 0.0
        %v505 = vadd.f32 %v503, %v504
        %v506 = vsel %vm500, %v381, 0.0
        %v507 = vadd.f32 %v505, %v506
        %v508 = vsel %vm500, %v382, 0.0
        %v509 = vadd.f32 %v507, %v508
        %v510 = vsel %vm500, %v383, 0.0
        %v511 = vadd.f32 %v509, %v510
        %v512 = vsel %vm500, %v384, 0.0
        %v513 = vadd.f32 %v511, %v512
        %v514 = vsel %vm500, %v385, 0.0
        %v515 = vadd.f32 %v513, %v514
        %v516 = vsel %vm500, %v386, 0.0
        %v517 = vadd.f32 %v515, %v516
        %v518 = vsel %vm500, %v387, 0.0
        %v519 = vadd.f32 %v517, %v518
        %v520 = vsel %vm500, %v388, 0.0
        %v521 = vadd.f32 %v519, %v520
        %v522 = vsel %vm500, %v389, 0.0
        %v523 = vadd.f32 %v521, %v522
        %v524 = vsel %vm500, %v390, 0.0
        %v525 = vadd.f32 %v523, %v524
        %v526 = vsel %vm500, %v391, 0.0
        %v527 = vadd.f32 %v525, %v526
        %v528 = vsel %vm500, %v392, 0.0
        %v529 = vadd.f32 %v527, %v528
        %v530 = vsel %vm500, %v393, 0.0
        %v531 = vadd.f32 %v529, %v530
        %v532 = vsel %vm500, %v394, 0.0
        %v533 = vadd.f32 %v531, %v532
        %v534 = vsel %vm500, %v395, 0.0
        %v535 = vadd.f32 %v533, %v534
        %v536 = vsel %vm500, %v396, 0.0
        %v537 = vadd.f32 %v535, %v536
        %v538 = vsel %vm500, %v397, 0.0
        %v539 = vadd.f32 %v537, %v538
        %v540 = vsel %vm500, %v398, 0.0
        %v541 = vadd.f32 %v539, %v540
        %v542 = vsel %vm500, %v399, 0.0
        %v543 = vadd.f32 %v541, %v542
        %v544 = vsel %vm500, %v400, 0.0
        %v545 = vadd.f32 %v543, %v544
        %v546 = vsel %vm500, %v401, 0.0
        %v547 = vadd.f32 %v545, %v546
        %v548 = vsel %vm500, %v402, 0.0
        %v549 = vadd.f32 %v547, %v548
        %v550 = vsel %vm500, %v403, 0.0
        %v551 = vadd.f32 %v549, %v550
        %v552 = vsel %vm500, %v404, 0.0
        %v553 = vadd.f32 %v551, %v552
        %v554 = vsel %vm500, %v405, 0.0
        %v555 = vadd.f32 %v553, %v554
        %v556 = vsel %vm500, %v406, 0.0
        %v557 = vadd.f32 %v555, %v556
        %v558 = vsel %vm500, %v407, 0.0
        %v559 = vadd.f32 %v557, %v558
        %v560 = vsel %vm500, %v408, 0.0
        %v561 = vadd.f32 %v559, %v560
        %v562 = vsel %vm500, %v409, 0.0
        %v563 = vadd.f32 %v561, %v562
        %v564 = vsel %vm500, %v410, 0.0
        %v565 = vadd.f32 %v563, %v564
        %v566 = vsel %vm500, %v411, 0.0
        %v567 = vadd.f32 %v565, %v566
        %v568 = vsel %vm500, %v412, 0.0
        %v569 = vadd.f32 %v567, %v568
        %v570 = vsel %vm500, %v413, 0.0
        %v571 = vadd.f32 %v569, %v570
        %v572 = vsel %vm500, %v414, 0.0
        %v573 = vadd.f32 %v571, %v572
        %v574 = vsel %vm500, %v415, 0.0
        %v575 = vadd.f32 %v573, %v574
        %v576 = vsel %vm500, %v416, 0.0
        %v577 = vadd.f32 %v575, %v576
        %v578 = vsel %vm500, %v417, 0.0
        %v579 = vadd.f32 %v577, %v578
        %v580 = vsel %vm500, %v418, 0.0
        %v581 = vadd.f32 %v579, %v580
        %v582 = vsel %vm500, %v419, 0.0
        %v583 = vadd.f32 %v581, %v582
        %v584 = vsel %vm500, %v420, 0.0
        %v585 = vadd.f32 %v583, %v584
        %v586 = vsel %vm500, %v421, 0.0
        %v587 = vadd.f32 %v585, %v586
        %v588 = vsel %vm500, %v422, 0.0
        %v589 = vadd.f32 %v587, %v588
        %v590 = vsel %vm500, %v423, 0.0
        %v591 = vadd.f32 %v589, %v590
        %v592 = vsel %vm500, %v424, 0.0
        %v593 = vadd.f32 %v591, %v592
        %v594 = vsel %vm500, %v425, 0.0
        %v595 = vadd.f32 %v593, %v594
        %v596 = vsel %vm500, %v426, 0.0
        %v597 = vadd.f32 %v595, %v596
        %v598 = vsel %vm500, %v427, 0.0
        %v599 = vadd.f32 %v597, %v598
        %v600 = vsel %vm500, %v428, 0.0
        %v601 = vadd.f32 %v599, %v600
        %v602 = vsel %vm500, %v429, 0.0
        %v603 = vadd.f32 %v601, %v602
        %v604 = vsel %vm500, %v430, 0.0
        %v605 = vadd.f32 %v603, %v604
        %v606 = vsel %vm500, %v431, 0.0
        %v607 = vadd.f32 %v605, %v606
        %v608 = vsel %vm500, %v432, 0.0
        %v609 = vadd.f32 %v607, %v608
        %v610 = vsel %vm500, %v433, 0.0
        %v611 = vadd.f32 %v609, %v610
        %v612 = vsel %vm500, %v434, 0.0
        %v613 = vadd.f32 %v611, %v612
        %v614 = vrot.slane %v613, 4
        %v615 = vadd.f32 %v613, %v614
        %v616 = vrot.slane %v615, 2
        %v617 = vadd.f32 %v615, %v616
        %v618 = vrot.slane %v617, 1
        %v619 = vadd.f32 %v617, %v618
        %v620 = vmul.f32 %v378, %v378
        %v621 = vmul.f32 %v379, %v379
        %v622 = vmul.f32 %v380, %v380
        %v623 = vmul.f32 %v381, %v381
        %v624 = vmul.f32 %v382, %v382
        %v625 = vmul.f32 %v383, %v383
        %v626 = vmul.f32 %v384, %v384
        %v627 = vmul.f32 %v385, %v385
        %v628 = vmul.f32 %v386, %v386
        %v629 = vmul.f32 %v387, %v387
        %v630 = vmul.f32 %v388, %v388
        %v631 = vmul.f32 %v389, %v389
        %v632 = vmul.f32 %v390, %v390
        %v633 = vmul.f32 %v391, %v391
        %v634 = vmul.f32 %v392, %v392
        %v635 = vmul.f32 %v393, %v393
        %v636 = vmul.f32 %v394, %v394
        %v637 = vmul.f32 %v395, %v395
        %v638 = vmul.f32 %v396, %v396
        %v639 = vmul.f32 %v397, %v397
        %v640 = vmul.f32 %v398, %v398
        %v641 = vmul.f32 %v399, %v399
        %v642 = vmul.f32 %v400, %v400
        %v643 = vmul.f32 %v401, %v401
        %v644 = vmul.f32 %v402, %v402
        %v645 = vmul.f32 %v403, %v403
        %v646 = vmul.f32 %v404, %v404
        %v647 = vmul.f32 %v405, %v405
        %v648 = vmul.f32 %v406, %v406
        %v649 = vmul.f32 %v407, %v407
        %v650 = vmul.f32 %v408, %v408
        %v651 = vmul.f32 %v409, %v409
        %v652 = vmul.f32 %v410, %v410
        %v653 = vmul.f32 %v411, %v411
        %v654 = vmul.f32 %v412, %v412
        %v655 = vmul.f32 %v413, %v413
        %v656 = vmul.f32 %v414, %v414
        %v657 = vmul.f32 %v415, %v415
        %v658 = vmul.f32 %v416, %v416
        %v659 = vmul.f32 %v417, %v417
        %v660 = vmul.f32 %v418, %v418
        %v661 = vmul.f32 %v419, %v419
        %v662 = vmul.f32 %v420, %v420
        %v663 = vmul.f32 %v421, %v421
        %v664 = vmul.f32 %v422, %v422
        %v665 = vmul.f32 %v423, %v423
        %v666 = vmul.f32 %v424, %v424
        %v667 = vmul.f32 %v425, %v425
        %v668 = vmul.f32 %v426, %v426
        %v669 = vmul.f32 %v427, %v427
        %v670 = vmul.f32 %v428, %v428
        %v671 = vmul.f32 %v429, %v429
        %v672 = vmul.f32 %v430, %v430
        %v673 = vmul.f32 %v431, %v431
        %v674 = vmul.f32 %v432, %v432
        %v675 = vmul.f32 %v433, %v433
        %v676 = vmul.f32 %v434, %v434
        %v677 = vsel %vm500, %v620, 0.0
        %v678 = vsel %vm500, %v621, 0.0
        %v679 = vadd.f32 %v677, %v678
        %v680 = vsel %vm500, %v622, 0.0
        %v681 = vadd.f32 %v679, %v680
        %v682 = vsel %vm500, %v623, 0.0
        %v683 = vadd.f32 %v681, %v682
        %v684 = vsel %vm500, %v624, 0.0
        %v685 = vadd.f32 %v683, %v684
        %v686 = vsel %vm500, %v625, 0.0
        %v687 = vadd.f32 %v685, %v686
        %v688 = vsel %vm500, %v626, 0.0
        %v689 = vadd.f32 %v687, %v688
        %v690 = vsel %vm500, %v627, 0.0
        %v691 = vadd.f32 %v689, %v690
        %v692 = vsel %vm500, %v628, 0.0
        %v693 = vadd.f32 %v691, %v692
        %v694 = vsel %vm500, %v629, 0.0
        %v695 = vadd.f32 %v693, %v694
        %v696 = vsel %vm500, %v630, 0.0
        %v697 = vadd.f32 %v695, %v696
        %v698 = vsel %vm500, %v631, 0.0
        %v699 = vadd.f32 %v697, %v698
        %v700 = vsel %vm500, %v632, 0.0
        %v701 = vadd.f32 %v699, %v700
        %v702 = vsel %vm500, %v633, 0.0
        %v703 = vadd.f32 %v701, %v702
        %v704 = vsel %vm500, %v634, 0.0
        %v705 = vadd.f32 %v703, %v704
        %v706 = vsel %vm500, %v635, 0.0
        %v707 = vadd.f32 %v705, %v706
        %v708 = vsel %vm500, %v636, 0.0
        %v709 = vadd.f32 %v707, %v708
        %v710 = vsel %vm500, %v637, 0.0
        %v711 = vadd.f32 %v709, %v710
        %v712 = vsel %vm500, %v638, 0.0
        %v713 = vadd.f32 %v711, %v712
        %v714 = vsel %vm500, %v639, 0.0
        %v715 = vadd.f32 %v713, %v714
        %v716 = vsel %vm500, %v640, 0.0
        %v717 = vadd.f32 %v715, %v716
        %v718 = vsel %vm500, %v641, 0.0
        %v719 = vadd.f32 %v717, %v718
        %v720 = vsel %vm500, %v642, 0.0
        %v721 = vadd.f32 %v719, %v720
        %v722 = vsel %vm500, %v643, 0.0
        %v723 = vadd.f32 %v721, %v722
        %v724 = vsel %vm500, %v644, 0.0
        %v725 = vadd.f32 %v723, %v724
        %v726 = vsel %vm500, %v645, 0.0
        %v727 = vadd.f32 %v725, %v726
        %v728 = vsel %vm500, %v646, 0.0
        %v729 = vadd.f32 %v727, %v728
        %v730 = vsel %vm500, %v647, 0.0
        %v731 = vadd.f32 %v729, %v730
        %v732 = vsel %vm500, %v648, 0.0
        %v733 = vadd.f32 %v731, %v732
        %v734 = vsel %vm500, %v649, 0.0
        %v735 = vadd.f32 %v733, %v734
        %v736 = vsel %vm500, %v650, 0.0
        %v737 = vadd.f32 %v735, %v736
        %v738 = vsel %vm500, %v651, 0.0
        %v739 = vadd.f32 %v737, %v738
        %v740 = vsel %vm500, %v652, 0.0
        %v741 = vadd.f32 %v739, %v740
        %v742 = vsel %vm500, %v653, 0.0
        %v743 = vadd.f32 %v741, %v742
        %v744 = vsel %vm500, %v654, 0.0
        %v745 = vadd.f32 %v743, %v744
        %v746 = vsel %vm500, %v655, 0.0
        %v747 = vadd.f32 %v745, %v746
        %v748 = vsel %vm500, %v656, 0.0
        %v749 = vadd.f32 %v747, %v748
        %v750 = vsel %vm500, %v657, 0.0
        %v751 = vadd.f32 %v749, %v750
        %v752 = vsel %vm500, %v658, 0.0
        %v753 = vadd.f32 %v751, %v752
        %v754 = vsel %vm500, %v659, 0.0
        %v755 = vadd.f32 %v753, %v754
        %v756 = vsel %vm500, %v660, 0.0
        %v757 = vadd.f32 %v755, %v756
        %v758 = vsel %vm500, %v661, 0.0
        %v759 = vadd.f32 %v757, %v758
        %v760 = vsel %vm500, %v662, 0.0
        %v761 = vadd.f32 %v759, %v760
        %v762 = vsel %vm500, %v663, 0.0
        %v763 = vadd.f32 %v761, %v762
        %v764 = vsel %vm500, %v664, 0.0
        %v765 = vadd.f32 %v763, %v764
        %v766 = vsel %vm500, %v665, 0.0
        %v767 = vadd.f32 %v765, %v766
        %v768 = vsel %vm500, %v666, 0.0
        %v769 = vadd.f32 %v767, %v768
        %v770 = vsel %vm500, %v667, 0.0
        %v771 = vadd.f32 %v769, %v770
        %v772 = vsel %vm500, %v668, 0.0
        %v773 = vadd.f32 %v771, %v772
        %v774 = vsel %vm500, %v669, 0.0
        %v775 = vadd.f32 %v773, %v774
        %v776 = vsel %vm500, %v670, 0.0
        %v777 = vadd.f32 %v775, %v776
        %v778 = vsel %vm500, %v671, 0.0
        %v779 = vadd.f32 %v777, %v778
        %v780 = vsel %vm500, %v672, 0.0
        %v781 = vadd.f32 %v779, %v780
        %v782 = vsel %vm500, %v673, 0.0
        %v783 = vadd.f32 %v781, %v782
        %v784 = vsel %vm500, %v674, 0.0
        %v785 = vadd.f32 %v783, %v784
        %v786 = vsel %vm500, %v675, 0.0
        %v787 = vadd.f32 %v785, %v786
        %v788 = vsel %vm500, %v676, 0.0
        %v789 = vadd.f32 %v787, %v788
        %v790 = vrot.slane %v789, 4
        %v791 = vadd.f32 %v789, %v790
        %v792 = vrot.slane %v791, 2
        %v793 = vadd.f32 %v791, %v792
        %v794 = vrot.slane %v793, 1
        %v795 = vadd.f32 %v793, %v794
        %v797 = vsel %vm500, %v619, 0
        %799 = vmatprep.subr.mxu0 0.0
        %800 = vmatpush1.msra.mxu0 %v435
        %801 = vmatprep.subr.mxu0 0.0
        %802 = vmatpush1.msra.mxu0 %v436
        %803 = vmatprep.subr.mxu0 0.0
        %804 = vmatpush1.msra.mxu0 %v437
        %805 = vmatprep.subr.mxu0 0.0
        %806 = vmatpush1.msra.mxu0 %v438
        %807 = vmatprep.subr.mxu0 0.0
        %808 = vmatpush1.msra.mxu0 %v439
        %809 = vmatprep.subr.mxu0 0.0
        %810 = vmatpush1.msra.mxu0 %v440
        %811 = vmatprep.subr.mxu0 0.0
        %812 = vmatpush1.msra.mxu0 %v441
        %813 = vmatprep.subr.mxu0 0.0
        %814 = vmatpush1.msra.mxu0 %v442
        %815 = vmatprep.subr.mxu0 0.0
        %816 = vmatpush1.msra.mxu0 0.0
        %817 = vmatprep.subr.mxu0 0.0
        %818 = vmatpush1.msra.mxu0 0.0
        %819 = vmatprep.subr.mxu0 0.0
        %820 = vmatpush1.msra.mxu0 0.0
        %821 = vmatprep.subr.mxu0 0.0
        %822 = vmatpush1.msra.mxu0 0.0
        %823 = vmatprep.subr.mxu0 0.0
        %824 = vmatpush1.msra.mxu0 0.0
        %825 = vmatprep.subr.mxu0 0.0
        %826 = vmatpush1.msra.mxu0 0.0
        %827 = vmatprep.subr.mxu0 0.0
        %828 = vmatpush1.msra.mxu0 0.0
        %829 = vmatprep.subr.mxu0 0.0
        %830 = vmatpush1.msra.mxu0 0.0
        %831 = vmatprep.subr.mxu0 0.0
        %832 = vmatpush1.msra.mxu0 0.0
        %833 = vmatprep.subr.mxu0 0.0
        %834 = vmatpush1.msra.mxu0 0.0
        %835 = vmatprep.subr.mxu0 0.0
        %836 = vmatpush1.msra.mxu0 0.0
        %837 = vmatprep.subr.mxu0 0.0
        %838 = vmatpush1.msra.mxu0 0.0
        %839 = vmatprep.subr.mxu0 0.0
        %840 = vmatpush1.msra.mxu0 0.0
        %841 = vmatprep.subr.mxu0 0.0
        %842 = vmatpush1.msra.mxu0 0.0
        %843 = vmatprep.subr.mxu0 0.0
        %844 = vmatpush1.msra.mxu0 0.0
        %845 = vmatprep.subr.mxu0 0.0
        %846 = vmatpush1.msra.mxu0 0.0
        %847 = vmatprep.subr.mxu0 0.0
        %848 = vmatpush1.msra.mxu0 0.0
        %849 = vmatprep.subr.mxu0 0.0
        %850 = vmatpush1.msra.mxu0 0.0
        %851 = vmatprep.subr.mxu0 0.0
        %852 = vmatpush1.msra.mxu0 0.0
        %853 = vmatprep.subr.mxu0 0.0
        %854 = vmatpush1.msra.mxu0 0.0
        %855 = vmatprep.subr.mxu0 0.0
        %856 = vmatpush1.msra.mxu0 0.0
        %857 = vmatprep.subr.mxu0 0.0
        %858 = vmatpush1.msra.mxu0 0.0
        %859 = vmatprep.subr.mxu0 0.0
        %860 = vmatpush1.msra.mxu0 0.0
        %861 = vmatprep.subr.mxu0 0.0
        %862 = vmatpush1.msra.mxu0 0.0
        %863 = vmatprep.mubr.f32.mxu0 0.0
        %864 = vmatmul.mubr.f32.gmra.mrb[0].mxu0 %v797
        %v865 = vpop.f32.mrb[0].mxu0
        %v866 = vadd.f32 0.0, %v865
        %v867 = vpop.f32.mrb[0].mxu0
        %868 = vdwg.mxu0
        %v870 = vsel %vm500, %v795, 0
        %872 = vmatprep.subr.mxu0 0.0
        %873 = vmatpush1.msra.mxu0 %v435
        %874 = vmatprep.subr.mxu0 0.0
        %875 = vmatpush1.msra.mxu0 %v436
        %876 = vmatprep.subr.mxu0 0.0
        %877 = vmatpush1.msra.mxu0 %v437
        %878 = vmatprep.subr.mxu0 0.0
        %879 = vmatpush1.msra.mxu0 %v438
        %880 = vmatprep.subr.mxu0 0.0
        %881 = vmatpush1.msra.mxu0 %v439
        %882 = vmatprep.subr.mxu0 0.0
        %883 = vmatpush1.msra.mxu0 %v440
        %884 = vmatprep.subr.mxu0 0.0
        %885 = vmatpush1.msra.mxu0 %v441
        %886 = vmatprep.subr.mxu0 0.0
        %887 = vmatpush1.msra.mxu0 %v442
        %888 = vmatprep.subr.mxu0 0.0
        %889 = vmatpush1.msra.mxu0 0.0
        %890 = vmatprep.subr.mxu0 0.0
        %891 = vmatpush1.msra.mxu0 0.0
        %892 = vmatprep.subr.mxu0 0.0
        %893 = vmatpush1.msra.mxu0 0.0
        %894 = vmatprep.subr.mxu0 0.0
        %895 = vmatpush1.msra.mxu0 0.0
        %896 = vmatprep.subr.mxu0 0.0
        %897 = vmatpush1.msra.mxu0 0.0
        %898 = vmatprep.subr.mxu0 0.0
        %899 = vmatpush1.msra.mxu0 0.0
        %900 = vmatprep.subr.mxu0 0.0
        %901 = vmatpush1.msra.mxu0 0.0
        %902 = vmatprep.subr.mxu0 0.0
        %903 = vmatpush1.msra.mxu0 0.0
        %904 = vmatprep.subr.mxu0 0.0
        %905 = vmatpush1.msra.mxu0 0.0
        %906 = vmatprep.subr.mxu0 0.0
        %907 = vmatpush1.msra.mxu0 0.0
        %908 = vmatprep.subr.mxu0 0.0
        %909 = vmatpush1.msra.mxu0 0.0
        %910 = vmatprep.subr.mxu0 0.0
        %911 = vmatpush1.msra.mxu0 0.0
        %912 = vmatprep.subr.mxu0 0.0
        %913 = vmatpush1.msra.mxu0 0.0
        %914 = vmatprep.subr.mxu0 0.0
        %915 = vmatpush1.msra.mxu0 0.0
        %916 = vmatprep.subr.mxu0 0.0
        %917 = vmatpush1.msra.mxu0 0.0
        %918 = vmatprep.subr.mxu0 0.0
        %919 = vmatpush1.msra.mxu0 0.0
        %920 = vmatprep.subr.mxu0 0.0
        %921 = vmatpush1.msra.mxu0 0.0
        %922 = vmatprep.subr.mxu0 0.0
        %923 = vmatpush1.msra.mxu0 0.0
        %924 = vmatprep.subr.mxu0 0.0
        %925 = vmatpush1.msra.mxu0 0.0
        %926 = vmatprep.subr.mxu0 0.0
        %927 = vmatpush1.msra.mxu0 0.0
        %928 = vmatprep.subr.mxu0 0.0
        %929 = vmatpush1.msra.mxu0 0.0
        %930 = vmatprep.subr.mxu0 0.0
        %931 = vmatpush1.msra.mxu0 0.0
        %932 = vmatprep.subr.mxu0 0.0
        %933 = vmatpush1.msra.mxu0 0.0
        %934 = vmatprep.subr.mxu0 0.0
        %935 = vmatpush1.msra.mxu0 0.0
        %936 = vmatprep.mubr.f32.mxu0 0.0
        %937 = vmatmul.mubr.f32.gmra.mrb[0].mxu0 %v870
        %v938 = vpop.f32.mrb[0].mxu0
        %v939 = vadd.f32 0.0, %v938
        %v940 = vpop.f32.mrb[0].mxu0
        %941 = vdwg.mxu0
        %v942 = vmul.f32 %v866, %v866
        %v943 = vsub.f32 %v939, %v942
        %v944 = vmax.f32 %v943, 0.0
        %v945 = vadd.f32 %v944, 1e-05
        %v946 = vrsqrt.pop %v945
        %v947 = vlaneseq
        %v948 = vshrl.u32 %v947, 7
        %v949 = vsub.s32 0, %v948
        %v950 = vrot.slane %v866, %v949
        %v951 = vsub.f32 %v378, %v950
        %v952 = vsub.f32 %v379, %v950
        %v953 = vsub.f32 %v380, %v950
        %v954 = vsub.f32 %v381, %v950
        %v955 = vsub.f32 %v382, %v950
        %v956 = vsub.f32 %v383, %v950
        %v957 = vsub.f32 %v384, %v950
        %v958 = vsub.f32 %v385, %v950
        %v959 = vsub.f32 %v386, %v950
        %v960 = vsub.f32 %v387, %v950
        %v961 = vsub.f32 %v388, %v950
        %v962 = vsub.f32 %v389, %v950
        %v963 = vsub.f32 %v390, %v950
        %v964 = vsub.f32 %v391, %v950
        %v965 = vsub.f32 %v392, %v950
        %v966 = vsub.f32 %v393, %v950
        %v967 = vsub.f32 %v394, %v950
        %v968 = vsub.f32 %v395, %v950
        %v969 = vsub.f32 %v396, %v950
        %v970 = vsub.f32 %v397, %v950
        %v971 = vsub.f32 %v398, %v950
        %v972 = vsub.f32 %v399, %v950
        %v973 = vsub.f32 %v400, %v950
        %v974 = vsub.f32 %v401, %v950
        %v975 = vsub.f32 %v402, %v950
        %v976 = vsub.f32 %v403, %v950
        %v977 = vsub.f32 %v404, %v950
        %v978 = vsub.f32 %v405, %v950
        %v979 = vsub.f32 %v406, %v950
        %v980 = vsub.f32 %v407, %v950
        %v981 = vsub.f32 %v408, %v950
        %v982 = vsub.f32 %v409, %v950
        %v983 = vsub.f32 %v410, %v950
        %v984 = vsub.f32 %v411, %v950
        %v985 = vsub.f32 %v412, %v950
        %v986 = vsub.f32 %v413, %v950
        %v987 = vsub.f32 %v414, %v950
        %v988 = vsub.f32 %v415, %v950
        %v989 = vsub.f32 %v416, %v950
        %v990 = vsub.f32 %v417, %v950
        %v991 = vsub.f32 %v418, %v950
        %v992 = vsub.f32 %v419, %v950
        %v993 = vsub.f32 %v420, %v950
        %v994 = vsub.f32 %v421, %v950
        %v995 = vsub.f32 %v422, %v950
        %v996 = vsub.f32 %v423, %v950
        %v997 = vsub.f32 %v424, %v950
        %v998 = vsub.f32 %v425, %v950
        %v999 = vsub.f32 %v426, %v950
        %v1000 = vsub.f32 %v427, %v950
        %v1001 = vsub.f32 %v428, %v950
        %v1002 = vsub.f32 %v429, %v950
        %v1003 = vsub.f32 %v430, %v950
        %v1004 = vsub.f32 %v431, %v950
        %v1005 = vsub.f32 %v432, %v950
        %v1006 = vmul.f32 %v946, %v443
        %v1007 = vlaneseq
        %v1008 = vshrl.u32 %v1007, 7
        %v1009 = vsub.s32 0, %v1008
        %v1010 = vrot.slane %v1006, %v1009
        %v1011 = vmul.f32 %v951, %v1010
        %v1012 = vmul.f32 %v952, %v1010
        %v1013 = vmul.f32 %v953, %v1010
        %v1014 = vmul.f32 %v954, %v1010
        %v1015 = vmul.f32 %v955, %v1010
        %v1016 = vmul.f32 %v956, %v1010
        %v1017 = vmul.f32 %v957, %v1010
        %v1018 = vmul.f32 %v958, %v1010
        %v1019 = vmul.f32 %v959, %v1010
        %v1020 = vmul.f32 %v960, %v1010
        %v1021 = vmul.f32 %v961, %v1010
        %v1022 = vmul.f32 %v962, %v1010
        %v1023 = vmul.f32 %v963, %v1010
        %v1024 = vmul.f32 %v964, %v1010
        %v1025 = vmul.f32 %v965, %v1010
        %v1026 = vmul.f32 %v966, %v1010
        %v1027 = vmul.f32 %v967, %v1010
        %v1028 = vmul.f32 %v968, %v1010
        %v1029 = vmul.f32 %v969, %v1010
        %v1030 = vmul.f32 %v970, %v1010
        %v1031 = vmul.f32 %v971, %v1010
        %v1032 = vmul.f32 %v972, %v1010
        %v1033 = vmul.f32 %v973, %v1010
        %v1034 = vmul.f32 %v974, %v1010
        %v1035 = vmul.f32 %v975, %v1010
        %v1036 = vmul.f32 %v976, %v1010
        %v1037 = vmul.f32 %v977, %v1010
        %v1038 = vmul.f32 %v978, %v1010
        %v1039 = vmul.f32 %v979, %v1010
        %v1040 = vmul.f32 %v980, %v1010
        %v1041 = vmul.f32 %v981, %v1010
        %v1042 = vmul.f32 %v982, %v1010
        %v1043 = vmul.f32 %v983, %v1010
        %v1044 = vmul.f32 %v984, %v1010
        %v1045 = vmul.f32 %v985, %v1010
        %v1046 = vmul.f32 %v986, %v1010
        %v1047 = vmul.f32 %v987, %v1010
        %v1048 = vmul.f32 %v988, %v1010
        %v1049 = vmul.f32 %v989, %v1010
        %v1050 = vmul.f32 %v990, %v1010
        %v1051 = vmul.f32 %v991, %v1010
        %v1052 = vmul.f32 %v992, %v1010
        %v1053 = vmul.f32 %v993, %v1010
        %v1054 = vmul.f32 %v994, %v1010
        %v1055 = vmul.f32 %v995, %v1010
        %v1056 = vmul.f32 %v996, %v1010
        %v1057 = vmul.f32 %v997, %v1010
        %v1058 = vmul.f32 %v998, %v1010
        %v1059 = vmul.f32 %v999, %v1010
        %v1060 = vmul.f32 %v1000, %v1010
        %v1061 = vmul.f32 %v1001, %v1010
        %v1062 = vmul.f32 %v1002, %v1010
        %v1063 = vmul.f32 %v1003, %v1010
        %v1064 = vmul.f32 %v1004, %v1010
        %v1065 = vmul.f32 %v1005, %v1010
        %v1067 = vlaneseq
        %v1068 = vshrl.u32 %v1067, 7
        %v1069 = vsub.s32 0, %v1068
        %v1070 = vrot.slane %v444, %v1069
        %v1072 = vadd.f32 %v1011, %v1070
        %v1073 = vadd.f32 %v1012, %v1070
        %v1074 = vadd.f32 %v1013, %v1070
        %v1075 = vadd.f32 %v1014, %v1070
        %v1076 = vadd.f32 %v1015, %v1070
        %v1077 = vadd.f32 %v1016, %v1070
        %v1078 = vadd.f32 %v1017, %v1070
        %v1079 = vadd.f32 %v1018, %v1070
        %v1080 = vadd.f32 %v1019, %v1070
        %v1081 = vadd.f32 %v1020, %v1070
        %v1082 = vadd.f32 %v1021, %v1070
        %v1083 = vadd.f32 %v1022, %v1070
        %v1084 = vadd.f32 %v1023, %v1070
        %v1085 = vadd.f32 %v1024, %v1070
        %v1086 = vadd.f32 %v1025, %v1070
        %v1087 = vadd.f32 %v1026, %v1070
        %v1088 = vadd.f32 %v1027, %v1070
        %v1089 = vadd.f32 %v1028, %v1070
        %v1090 = vadd.f32 %v1029, %v1070
        %v1091 = vadd.f32 %v1030, %v1070
        %v1092 = vadd.f32 %v1031, %v1070
        %v1093 = vadd.f32 %v1032, %v1070
        %v1094 = vadd.f32 %v1033, %v1070
        %v1095 = vadd.f32 %v1034, %v1070
        %v1096 = vadd.f32 %v1035, %v1070
        %v1097 = vadd.f32 %v1036, %v1070
        %v1098 = vadd.f32 %v1037, %v1070
        %v1099 = vadd.f32 %v1038, %v1070
        %v1100 = vadd.f32 %v1039, %v1070
        %v1101 = vadd.f32 %v1040, %v1070
        %v1102 = vadd.f32 %v1041, %v1070
        %v1103 = vadd.f32 %v1042, %v1070
        %v1104 = vadd.f32 %v1043, %v1070
        %v1105 = vadd.f32 %v1044, %v1070
        %v1106 = vadd.f32 %v1045, %v1070
        %v1107 = vadd.f32 %v1046, %v1070
        %v1108 = vadd.f32 %v1047, %v1070
        %v1109 = vadd.f32 %v1048, %v1070
        %v1110 = vadd.f32 %v1049, %v1070
        %v1111 = vadd.f32 %v1050, %v1070
        %v1112 = vadd.f32 %v1051, %v1070
        %v1113 = vadd.f32 %v1052, %v1070
        %v1114 = vadd.f32 %v1053, %v1070
        %v1115 = vadd.f32 %v1054, %v1070
        %v1116 = vadd.f32 %v1055, %v1070
        %v1117 = vadd.f32 %v1056, %v1070
        %v1118 = vadd.f32 %v1057, %v1070
        %v1119 = vadd.f32 %v1058, %v1070
        %v1120 = vadd.f32 %v1059, %v1070
        %v1121 = vadd.f32 %v1060, %v1070
        %v1122 = vadd.f32 %v1061, %v1070
        %v1123 = vadd.f32 %v1062, %v1070
        %v1124 = vadd.f32 %v1063, %v1070
        %v1125 = vadd.f32 %v1064, %v1070
        %v1126 = vadd.f32 %v1065, %v1070
        %v1127 = vxor.u32 %v1072, 2147483648
        %v1128 = vxor.u32 %v1073, 2147483648
        %v1129 = vxor.u32 %v1074, 2147483648
        %v1130 = vxor.u32 %v1075, 2147483648
        %v1131 = vxor.u32 %v1076, 2147483648
        %v1132 = vxor.u32 %v1077, 2147483648
        %v1133 = vxor.u32 %v1078, 2147483648
        %v1134 = vxor.u32 %v1079, 2147483648
        %v1135 = vxor.u32 %v1080, 2147483648
        %v1136 = vxor.u32 %v1081, 2147483648
        %v1137 = vxor.u32 %v1082, 2147483648
        %v1138 = vxor.u32 %v1083, 2147483648
        %v1139 = vxor.u32 %v1084, 2147483648
        %v1140 = vxor.u32 %v1085, 2147483648
        %v1141 = vxor.u32 %v1086, 2147483648
        %v1142 = vxor.u32 %v1087, 2147483648
        %v1143 = vxor.u32 %v1088, 2147483648
        %v1144 = vxor.u32 %v1089, 2147483648
        %v1145 = vxor.u32 %v1090, 2147483648
        %v1146 = vxor.u32 %v1091, 2147483648
        %v1147 = vxor.u32 %v1092, 2147483648
        %v1148 = vxor.u32 %v1093, 2147483648
        %v1149 = vxor.u32 %v1094, 2147483648
        %v1150 = vxor.u32 %v1095, 2147483648
        %v1151 = vxor.u32 %v1096, 2147483648
        %v1152 = vxor.u32 %v1097, 2147483648
        %v1153 = vxor.u32 %v1098, 2147483648
        %v1154 = vxor.u32 %v1099, 2147483648
        %v1155 = vxor.u32 %v1100, 2147483648
        %v1156 = vxor.u32 %v1101, 2147483648
        %v1157 = vxor.u32 %v1102, 2147483648
        %v1158 = vxor.u32 %v1103, 2147483648
        %v1159 = vxor.u32 %v1104, 2147483648
        %v1160 = vxor.u32 %v1105, 2147483648
        %v1161 = vxor.u32 %v1106, 2147483648
        %v1162 = vxor.u32 %v1107, 2147483648
        %v1163 = vxor.u32 %v1108, 2147483648
        %v1164 = vxor.u32 %v1109, 2147483648
        %v1165 = vxor.u32 %v1110, 2147483648
        %v1166 = vxor.u32 %v1111, 2147483648
        %v1167 = vxor.u32 %v1112, 2147483648
        %v1168 = vxor.u32 %v1113, 2147483648
        %v1169 = vxor.u32 %v1114, 2147483648
        %v1170 = vxor.u32 %v1115, 2147483648
        %v1171 = vxor.u32 %v1116, 2147483648
        %v1172 = vxor.u32 %v1117, 2147483648
        %v1173 = vxor.u32 %v1118, 2147483648
        %v1174 = vxor.u32 %v1119, 2147483648
        %v1175 = vxor.u32 %v1120, 2147483648
        %v1176 = vxor.u32 %v1121, 2147483648
        %v1177 = vxor.u32 %v1122, 2147483648
        %v1178 = vxor.u32 %v1123, 2147483648
        %v1179 = vxor.u32 %v1124, 2147483648
        %v1180 = vxor.u32 %v1125, 2147483648
        %v1181 = vxor.u32 %v1126, 2147483648
        %v1182 = vmul.f32 %v1127, 1.442695
        %v1183 = vpow.pop %v1182
        %v1184 = vmul.f32 %v1128, 1.442695
        %v1185 = vpow.pop %v1184
        %v1186 = vmul.f32 %v1129, 1.442695
        %v1187 = vpow.pop %v1186
        %v1188 = vmul.f32 %v1130, 1.442695
        %v1189 = vpow.pop %v1188
        %v1190 = vmul.f32 %v1131, 1.442695
        %v1191 = vpow.pop %v1190
        %v1192 = vmul.f32 %v1132, 1.442695
        %v1193 = vpow.pop %v1192
        %v1194 = vmul.f32 %v1133, 1.442695
        %v1195 = vpow.pop %v1194
        %v1196 = vmul.f32 %v1134, 1.442695
        %v1197 = vpow.pop %v1196
        %v1198 = vmul.f32 %v1135, 1.442695
        %v1199 = vpow.pop %v1198
        %v1200 = vmul.f32 %v1136, 1.442695
        %v1201 = vpow.pop %v1200
        %v1202 = vmul.f32 %v1137, 1.442695
        %v1203 = vpow.pop %v1202
        %v1204 = vmul.f32 %v1138, 1.442695
        %v1205 = vpow.pop %v1204
        %v1206 = vmul.f32 %v1139, 1.442695
        %v1207 = vpow.pop %v1206
        %v1208 = vmul.f32 %v1140, 1.442695
        %v1209 = vpow.pop %v1208
        %v1210 = vmul.f32 %v1141, 1.442695
        %v1211 = vpow.pop %v1210
        %v1212 = vmul.f32 %v1142, 1.442695
        %v1213 = vpow.pop %v1212
        %v1214 = vmul.f32 %v1143, 1.442695
        %v1215 = vpow.pop %v1214
        %v1216 = vmul.f32 %v1144, 1.442695
        %v1217 = vpow.pop %v1216
        %v1218 = vmul.f32 %v1145, 1.442695
        %v1219 = vpow.pop %v1218
        %v1220 = vmul.f32 %v1146, 1.442695
        %v1221 = vpow.pop %v1220
        %v1222 = vmul.f32 %v1147, 1.442695
        %v1223 = vpow.pop %v1222
        %v1224 = vmul.f32 %v1148, 1.442695
        %v1225 = vpow.pop %v1224
        %v1226 = vmul.f32 %v1149, 1.442695
        %v1227 = vpow.pop %v1226
        %v1228 = vmul.f32 %v1150, 1.442695
        %v1229 = vpow.pop %v1228
        %v1230 = vmul.f32 %v1151, 1.442695
        %v1231 = vpow.pop %v1230
        %v1232 = vmul.f32 %v1152, 1.442695
        %v1233 = vpow.pop %v1232
        %v1234 = vmul.f32 %v1153, 1.442695
        %v1235 = vpow.pop %v1234
        %v1236 = vmul.f32 %v1154, 1.442695
        %v1237 = vpow.pop %v1236
        %v1238 = vmul.f32 %v1155, 1.442695
        %v1239 = vpow.pop %v1238
        %v1240 = vmul.f32 %v1156, 1.442695
        %v1241 = vpow.pop %v1240
        %v1242 = vmul.f32 %v1157, 1.442695
        %v1243 = vpow.pop %v1242
        %v1244 = vmul.f32 %v1158, 1.442695
        %v1245 = vpow.pop %v1244
        %v1246 = vmul.f32 %v1159, 1.442695
        %v1247 = vpow.pop %v1246
        %v1248 = vmul.f32 %v1160, 1.442695
        %v1249 = vpow.pop %v1248
        %v1250 = vmul.f32 %v1161, 1.442695
        %v1251 = vpow.pop %v1250
        %v1252 = vmul.f32 %v1162, 1.442695
        %v1253 = vpow.pop %v1252
        %v1254 = vmul.f32 %v1163, 1.442695
        %v1255 = vpow.pop %v1254
        %v1256 = vmul.f32 %v1164, 1.442695
        %v1257 = vpow.pop %v1256
        %v1258 = vmul.f32 %v1165, 1.442695
        %v1259 = vpow.pop %v1258
        %v1260 = vmul.f32 %v1166, 1.442695
        %v1261 = vpow.pop %v1260
        %v1262 = vmul.f32 %v1167, 1.442695
        %v1263 = vpow.pop %v1262
        %v1264 = vmul.f32 %v1168, 1.442695
        %v1265 = vpow.pop %v1264
        %v1266 = vmul.f32 %v1169, 1.442695
        %v1267 = vpow.pop %v1266
        %v1268 = vmul.f32 %v1170, 1.442695
        %v1269 = vpow.pop %v1268
        %v1270 = vmul.f32 %v1171, 1.442695
        %v1271 = vpow.pop %v1270
        %v1272 = vmul.f32 %v1172, 1.442695
        %v1273 = vpow.pop %v1272
        %v1274 = vmul.f32 %v1173, 1.442695
        %v1275 = vpow.pop %v1274
        %v1276 = vmul.f32 %v1174, 1.442695
        %v1277 = vpow.pop %v1276
        %v1278 = vmul.f32 %v1175, 1.442695
        %v1279 = vpow.pop %v1278
        %v1280 = vmul.f32 %v1176, 1.442695
        %v1281 = vpow.pop %v1280
        %v1282 = vmul.f32 %v1177, 1.442695
        %v1283 = vpow.pop %v1282
        %v1284 = vmul.f32 %v1178, 1.442695
        %v1285 = vpow.pop %v1284
        %v1286 = vmul.f32 %v1179, 1.442695
        %v1287 = vpow.pop %v1286
        %v1288 = vmul.f32 %v1180, 1.442695
        %v1289 = vpow.pop %v1288
        %v1290 = vmul.f32 %v1181, 1.442695
        %v1291 = vpow.pop %v1290
        %v1292 = vadd.f32 %v1183, 1.0
        %v1293 = vadd.f32 %v1185, 1.0
        %v1294 = vadd.f32 %v1187, 1.0
        %v1295 = vadd.f32 %v1189, 1.0
        %v1296 = vadd.f32 %v1191, 1.0
        %v1297 = vadd.f32 %v1193, 1.0
        %v1298 = vadd.f32 %v1195, 1.0
        %v1299 = vadd.f32 %v1197, 1.0
        %v1300 = vadd.f32 %v1199, 1.0
        %v1301 = vadd.f32 %v1201, 1.0
        %v1302 = vadd.f32 %v1203, 1.0
        %v1303 = vadd.f32 %v1205, 1.0
        %v1304 = vadd.f32 %v1207, 1.0
        %v1305 = vadd.f32 %v1209, 1.0
        %v1306 = vadd.f32 %v1211, 1.0
        %v1307 = vadd.f32 %v1213, 1.0
        %v1308 = vadd.f32 %v1215, 1.0
        %v1309 = vadd.f32 %v1217, 1.0
        %v1310 = vadd.f32 %v1219, 1.0
        %v1311 = vadd.f32 %v1221, 1.0
        %v1312 = vadd.f32 %v1223, 1.0
        %v1313 = vadd.f32 %v1225, 1.0
        %v1314 = vadd.f32 %v1227, 1.0
        %v1315 = vadd.f32 %v1229, 1.0
        %v1316 = vadd.f32 %v1231, 1.0
        %v1317 = vadd.f32 %v1233, 1.0
        %v1318 = vadd.f32 %v1235, 1.0
        %v1319 = vadd.f32 %v1237, 1.0
        %v1320 = vadd.f32 %v1239, 1.0
        %v1321 = vadd.f32 %v1241, 1.0
        %v1322 = vadd.f32 %v1243, 1.0
        %v1323 = vadd.f32 %v1245, 1.0
        %v1324 = vadd.f32 %v1247, 1.0
        %v1325 = vadd.f32 %v1249, 1.0
        %v1326 = vadd.f32 %v1251, 1.0
        %v1327 = vadd.f32 %v1253, 1.0
        %v1328 = vadd.f32 %v1255, 1.0
        %v1329 = vadd.f32 %v1257, 1.0
        %v1330 = vadd.f32 %v1259, 1.0
        %v1331 = vadd.f32 %v1261, 1.0
        %v1332 = vadd.f32 %v1263, 1.0
        %v1333 = vadd.f32 %v1265, 1.0
        %v1334 = vadd.f32 %v1267, 1.0
        %v1335 = vadd.f32 %v1269, 1.0
        %v1336 = vadd.f32 %v1271, 1.0
        %v1337 = vadd.f32 %v1273, 1.0
        %v1338 = vadd.f32 %v1275, 1.0
        %v1339 = vadd.f32 %v1277, 1.0
        %v1340 = vadd.f32 %v1279, 1.0
        %v1341 = vadd.f32 %v1281, 1.0
        %v1342 = vadd.f32 %v1283, 1.0
        %v1343 = vadd.f32 %v1285, 1.0
        %v1344 = vadd.f32 %v1287, 1.0
        %v1345 = vadd.f32 %v1289, 1.0
        %v1346 = vadd.f32 %v1291, 1.0
        %v1347 = vrcp.pop %v1292
        %v1348 = vmul.f32 1.0, %v1347
        %v1349 = vrcp.pop %v1293
        %v1350 = vmul.f32 1.0, %v1349
        %v1351 = vrcp.pop %v1294
        %v1352 = vmul.f32 1.0, %v1351
        %v1353 = vrcp.pop %v1295
        %v1354 = vmul.f32 1.0, %v1353
        %v1355 = vrcp.pop %v1296
        %v1356 = vmul.f32 1.0, %v1355
        %v1357 = vrcp.pop %v1297
        %v1358 = vmul.f32 1.0, %v1357
        %v1359 = vrcp.pop %v1298
        %v1360 = vmul.f32 1.0, %v1359
        %v1361 = vrcp.pop %v1299
        %v1362 = vmul.f32 1.0, %v1361
        %v1363 = vrcp.pop %v1300
        %v1364 = vmul.f32 1.0, %v1363
        %v1365 = vrcp.pop %v1301
        %v1366 = vmul.f32 1.0, %v1365
        %v1367 = vrcp.pop %v1302
        %v1368 = vmul.f32 1.0, %v1367
        %v1369 = vrcp.pop %v1303
        %v1370 = vmul.f32 1.0, %v1369
        %v1371 = vrcp.pop %v1304
        %v1372 = vmul.f32 1.0, %v1371
        %v1373 = vrcp.pop %v1305
        %v1374 = vmul.f32 1.0, %v1373
        %v1375 = vrcp.pop %v1306
        %v1376 = vmul.f32 1.0, %v1375
        %v1377 = vrcp.pop %v1307
        %v1378 = vmul.f32 1.0, %v1377
        %v1379 = vrcp.pop %v1308
        %v1380 = vmul.f32 1.0, %v1379
        %v1381 = vrcp.pop %v1309
        %v1382 = vmul.f32 1.0, %v1381
        %v1383 = vrcp.pop %v1310
        %v1384 = vmul.f32 1.0, %v1383
        %v1385 = vrcp.pop %v1311
        %v1386 = vmul.f32 1.0, %v1385
        %v1387 = vrcp.pop %v1312
        %v1388 = vmul.f32 1.0, %v1387
        %v1389 = vrcp.pop %v1313
        %v1390 = vmul.f32 1.0, %v1389
        %v1391 = vrcp.pop %v1314
        %v1392 = vmul.f32 1.0, %v1391
        %v1393 = vrcp.pop %v1315
        %v1394 = vmul.f32 1.0, %v1393
        %v1395 = vrcp.pop %v1316
        %v1396 = vmul.f32 1.0, %v1395
        %v1397 = vrcp.pop %v1317
        %v1398 = vmul.f32 1.0, %v1397
        %v1399 = vrcp.pop %v1318
        %v1400 = vmul.f32 1.0, %v1399
        %v1401 = vrcp.pop %v1319
        %v1402 = vmul.f32 1.0, %v1401
        %v1403 = vrcp.pop %v1320
        %v1404 = vmul.f32 1.0, %v1403
        %v1405 = vrcp.pop %v1321
        %v1406 = vmul.f32 1.0, %v1405
        %v1407 = vrcp.pop %v1322
        %v1408 = vmul.f32 1.0, %v1407
        %v1409 = vrcp.pop %v1323
        %v1410 = vmul.f32 1.0, %v1409
        %v1411 = vrcp.pop %v1324
        %v1412 = vmul.f32 1.0, %v1411
        %v1413 = vrcp.pop %v1325
        %v1414 = vmul.f32 1.0, %v1413
        %v1415 = vrcp.pop %v1326
        %v1416 = vmul.f32 1.0, %v1415
        %v1417 = vrcp.pop %v1327
        %v1418 = vmul.f32 1.0, %v1417
        %v1419 = vrcp.pop %v1328
        %v1420 = vmul.f32 1.0, %v1419
        %v1421 = vrcp.pop %v1329
        %v1422 = vmul.f32 1.0, %v1421
        %v1423 = vrcp.pop %v1330
        %v1424 = vmul.f32 1.0, %v1423
        %v1425 = vrcp.pop %v1331
        %v1426 = vmul.f32 1.0, %v1425
        %v1427 = vrcp.pop %v1332
        %v1428 = vmul.f32 1.0, %v1427
        %v1429 = vrcp.pop %v1333
        %v1430 = vmul.f32 1.0, %v1429
        %v1431 = vrcp.pop %v1334
        %v1432 = vmul.f32 1.0, %v1431
        %v1433 = vrcp.pop %v1335
        %v1434 = vmul.f32 1.0, %v1433
        %v1435 = vrcp.pop %v1336
        %v1436 = vmul.f32 1.0, %v1435
        %v1437 = vrcp.pop %v1337
        %v1438 = vmul.f32 1.0, %v1437
        %v1439 = vrcp.pop %v1338
        %v1440 = vmul.f32 1.0, %v1439
        %v1441 = vrcp.pop %v1339
        %v1442 = vmul.f32 1.0, %v1441
        %v1443 = vrcp.pop %v1340
        %v1444 = vmul.f32 1.0, %v1443
        %v1445 = vrcp.pop %v1341
        %v1446 = vmul.f32 1.0, %v1445
        %v1447 = vrcp.pop %v1342
        %v1448 = vmul.f32 1.0, %v1447
        %v1449 = vrcp.pop %v1343
        %v1450 = vmul.f32 1.0, %v1449
        %v1451 = vrcp.pop %v1344
        %v1452 = vmul.f32 1.0, %v1451
        %v1453 = vrcp.pop %v1345
        %v1454 = vmul.f32 1.0, %v1453
        %v1455 = vrcp.pop %v1346
        %v1456 = vmul.f32 1.0, %v1455
        %v1457 = vmul.f32 %v1072, %v1348
        %v1458 = vmul.f32 %v1073, %v1350
        %v1459 = vmul.f32 %v1074, %v1352
        %v1460 = vmul.f32 %v1075, %v1354
        %v1461 = vmul.f32 %v1076, %v1356
        %v1462 = vmul.f32 %v1077, %v1358
        %v1463 = vmul.f32 %v1078, %v1360
        %v1464 = vmul.f32 %v1079, %v1362
        %v1465 = vmul.f32 %v1080, %v1364
        %v1466 = vmul.f32 %v1081, %v1366
        %v1467 = vmul.f32 %v1082, %v1368
        %v1468 = vmul.f32 %v1083, %v1370
        %v1469 = vmul.f32 %v1084, %v1372
        %v1470 = vmul.f32 %v1085, %v1374
        %v1471 = vmul.f32 %v1086, %v1376
        %v1472 = vmul.f32 %v1087, %v1378
        %v1473 = vmul.f32 %v1088, %v1380
        %v1474 = vmul.f32 %v1089, %v1382
        %v1475 = vmul.f32 %v1090, %v1384
        %v1476 = vmul.f32 %v1091, %v1386
        %v1477 = vmul.f32 %v1092, %v1388
        %v1478 = vmul.f32 %v1093, %v1390
        %v1479 = vmul.f32 %v1094, %v1392
        %v1480 = vmul.f32 %v1095, %v1394
        %v1481 = vmul.f32 %v1096, %v1396
        %v1482 = vmul.f32 %v1097, %v1398
        %v1483 = vmul.f32 %v1098, %v1400
        %v1484 = vmul.f32 %v1099, %v1402
        %v1485 = vmul.f32 %v1100, %v1404
        %v1486 = vmul.f32 %v1101, %v1406
        %v1487 = vmul.f32 %v1102, %v1408
        %v1488 = vmul.f32 %v1103, %v1410
        %v1489 = vmul.f32 %v1104, %v1412
        %v1490 = vmul.f32 %v1105, %v1414
        %v1491 = vmul.f32 %v1106, %v1416
        %v1492 = vmul.f32 %v1107, %v1418
        %v1493 = vmul.f32 %v1108, %v1420
        %v1494 = vmul.f32 %v1109, %v1422
        %v1495 = vmul.f32 %v1110, %v1424
        %v1496 = vmul.f32 %v1111, %v1426
        %v1497 = vmul.f32 %v1112, %v1428
        %v1498 = vmul.f32 %v1113, %v1430
        %v1499 = vmul.f32 %v1114, %v1432
        %v1500 = vmul.f32 %v1115, %v1434
        %v1501 = vmul.f32 %v1116, %v1436
        %v1502 = vmul.f32 %v1117, %v1438
        %v1503 = vmul.f32 %v1118, %v1440
        %v1504 = vmul.f32 %v1119, %v1442
        %v1505 = vmul.f32 %v1120, %v1444
        %v1506 = vmul.f32 %v1121, %v1446
        %v1507 = vmul.f32 %v1122, %v1448
        %v1508 = vmul.f32 %v1123, %v1450
        %v1509 = vmul.f32 %v1124, %v1452
        %v1510 = vmul.f32 %v1125, %v1454
        %v1511 = vmul.f32 %v1126, %v1456
        %1513 = vset.pattern.permute.xlu0 0
        %1514 = vperm.xlu0 %1513, %v445
        %v1515 = vpop.permute.xlu0 %1514
        %1518 = vset.pattern.permute.xlu0 0
        %1519 = vperm.xlu0 %1518, %v446
        %v1520 = vpop.permute.xlu0 %1519
        %1523 = vset.pattern.permute.xlu0 0
        %1524 = vperm.xlu0 %1523, %v447
        %v1525 = vpop.permute.xlu0 %1524
        %1528 = vset.pattern.permute.xlu0 0
        %1529 = vperm.xlu0 %1528, %v448
        %v1530 = vpop.permute.xlu0 %1529
        %1533 = vset.pattern.permute.xlu0 0
        %1534 = vperm.xlu0 %1533, %v449
        %v1535 = vpop.permute.xlu0 %1534
        %1538 = vset.pattern.permute.xlu0 0
        %1539 = vperm.xlu0 %1538, %v450
        %v1540 = vpop.permute.xlu0 %1539
        %1543 = vset.pattern.permute.xlu0 0
        %1544 = vperm.xlu0 %1543, %v451
        %v1545 = vpop.permute.xlu0 %1544
        %1548 = vset.pattern.permute.xlu0 0
        %1549 = vperm.xlu0 %1548, %v452
        %v1550 = vpop.permute.xlu0 %1549
        %1553 = vset.pattern.permute.xlu0 0
        %1554 = vperm.xlu0 %1553, %v453
        %v1555 = vpop.permute.xlu0 %1554
        %1558 = vset.pattern.permute.xlu0 0
        %1559 = vperm.xlu0 %1558, %v454
        %v1560 = vpop.permute.xlu0 %1559
        %1563 = vset.pattern.permute.xlu0 0
        %1564 = vperm.xlu0 %1563, %v455
        %v1565 = vpop.permute.xlu0 %1564
        %1568 = vset.pattern.permute.xlu0 0
        %1569 = vperm.xlu0 %1568, %v456
        %v1570 = vpop.permute.xlu0 %1569
        %1573 = vset.pattern.permute.xlu0 0
        %1574 = vperm.xlu0 %1573, %v457
        %v1575 = vpop.permute.xlu0 %1574
        %1578 = vset.pattern.permute.xlu0 0
        %1579 = vperm.xlu0 %1578, %v458
        %v1580 = vpop.permute.xlu0 %1579
        %1583 = vset.pattern.permute.xlu0 0
        %1584 = vperm.xlu0 %1583, %v459
        %v1585 = vpop.permute.xlu0 %1584
        %1588 = vset.pattern.permute.xlu0 0
        %1589 = vperm.xlu0 %1588, %v460
        %v1590 = vpop.permute.xlu0 %1589
        %1593 = vset.pattern.permute.xlu0 0
        %1594 = vperm.xlu0 %1593, %v461
        %v1595 = vpop.permute.xlu0 %1594
        %1598 = vset.pattern.permute.xlu0 0
        %1599 = vperm.xlu0 %1598, %v462
        %v1600 = vpop.permute.xlu0 %1599
        %1603 = vset.pattern.permute.xlu0 0
        %1604 = vperm.xlu0 %1603, %v463
        %v1605 = vpop.permute.xlu0 %1604
        %1608 = vset.pattern.permute.xlu0 0
        %1609 = vperm.xlu0 %1608, %v464
        %v1610 = vpop.permute.xlu0 %1609
        %1613 = vset.pattern.permute.xlu0 0
        %1614 = vperm.xlu0 %1613, %v465
        %v1615 = vpop.permute.xlu0 %1614
        %1618 = vset.pattern.permute.xlu0 0
        %1619 = vperm.xlu0 %1618, %v466
        %v1620 = vpop.permute.xlu0 %1619
        %1623 = vset.pattern.permute.xlu0 0
        %1624 = vperm.xlu0 %1623, %v467
        %v1625 = vpop.permute.xlu0 %1624
        %1628 = vset.pattern.permute.xlu0 0
        %1629 = vperm.xlu0 %1628, %v468
        %v1630 = vpop.permute.xlu0 %1629
        %1633 = vset.pattern.permute.xlu0 0
        %1634 = vperm.xlu0 %1633, %v469
        %v1635 = vpop.permute.xlu0 %1634
        %1638 = vset.pattern.permute.xlu0 0
        %1639 = vperm.xlu0 %1638, %v470
        %v1640 = vpop.permute.xlu0 %1639
        %1643 = vset.pattern.permute.xlu0 0
        %1644 = vperm.xlu0 %1643, %v471
        %v1645 = vpop.permute.xlu0 %1644
        %1648 = vset.pattern.permute.xlu0 0
        %1649 = vperm.xlu0 %1648, %v472
        %v1650 = vpop.permute.xlu0 %1649
        %1653 = vset.pattern.permute.xlu0 0
        %1654 = vperm.xlu0 %1653, %v473
        %v1655 = vpop.permute.xlu0 %1654
        %1658 = vset.pattern.permute.xlu0 0
        %1659 = vperm.xlu0 %1658, %v474
        %v1660 = vpop.permute.xlu0 %1659
        %1663 = vset.pattern.permute.xlu0 0
        %1664 = vperm.xlu0 %1663, %v475
        %v1665 = vpop.permute.xlu0 %1664
        %1668 = vset.pattern.permute.xlu0 0
        %1669 = vperm.xlu0 %1668, %v476
        %v1670 = vpop.permute.xlu0 %1669
        %1673 = vset.pattern.permute.xlu0 0
        %1674 = vperm.xlu0 %1673, %v477
        %v1675 = vpop.permute.xlu0 %1674
        %1678 = vset.pattern.permute.xlu0 0
        %1679 = vperm.xlu0 %1678, %v478
        %v1680 = vpop.permute.xlu0 %1679
        %1683 = vset.pattern.permute.xlu0 0
        %1684 = vperm.xlu0 %1683, %v479
        %v1685 = vpop.permute.xlu0 %1684
        %1688 = vset.pattern.permute.xlu0 0
        %1689 = vperm.xlu0 %1688, %v480
        %v1690 = vpop.permute.xlu0 %1689
        %1693 = vset.pattern.permute.xlu0 0
        %1694 = vperm.xlu0 %1693, %v481
        %v1695 = vpop.permute.xlu0 %1694
        %1698 = vset.pattern.permute.xlu0 0
        %1699 = vperm.xlu0 %1698, %v482
        %v1700 = vpop.permute.xlu0 %1699
        %1703 = vset.pattern.permute.xlu0 0
        %1704 = vperm.xlu0 %1703, %v483
        %v1705 = vpop.permute.xlu0 %1704
        %1708 = vset.pattern.permute.xlu0 0
        %1709 = vperm.xlu0 %1708, %v484
        %v1710 = vpop.permute.xlu0 %1709
        %1713 = vset.pattern.permute.xlu0 0
        %1714 = vperm.xlu0 %1713, %v485
        %v1715 = vpop.permute.xlu0 %1714
        %1718 = vset.pattern.permute.xlu0 0
        %1719 = vperm.xlu0 %1718, %v486
        %v1720 = vpop.permute.xlu0 %1719
        %1723 = vset.pattern.permute.xlu0 0
        %1724 = vperm.xlu0 %1723, %v487
        %v1725 = vpop.permute.xlu0 %1724
        %1728 = vset.pattern.permute.xlu0 0
        %1729 = vperm.xlu0 %1728, %v488
        %v1730 = vpop.permute.xlu0 %1729
        %1733 = vset.pattern.permute.xlu0 0
        %1734 = vperm.xlu0 %1733, %v489
        %v1735 = vpop.permute.xlu0 %1734
        %1738 = vset.pattern.permute.xlu0 0
        %1739 = vperm.xlu0 %1738, %v490
        %v1740 = vpop.permute.xlu0 %1739
        %1743 = vset.pattern.permute.xlu0 0
        %1744 = vperm.xlu0 %1743, %v491
        %v1745 = vpop.permute.xlu0 %1744
        %1748 = vset.pattern.permute.xlu0 0
        %1749 = vperm.xlu0 %1748, %v492
        %v1750 = vpop.permute.xlu0 %1749
        %1753 = vset.pattern.permute.xlu0 0
        %1754 = vperm.xlu0 %1753, %v493
        %v1755 = vpop.permute.xlu0 %1754
        %1758 = vset.pattern.permute.xlu0 0
        %1759 = vperm.xlu0 %1758, %v494
        %v1760 = vpop.permute.xlu0 %1759
        %1763 = vset.pattern.permute.xlu0 0
        %1764 = vperm.xlu0 %1763, %v495
        %v1765 = vpop.permute.xlu0 %1764
        %1768 = vset.pattern.permute.xlu0 0
        %1769 = vperm.xlu0 %1768, %v496
        %v1770 = vpop.permute.xlu0 %1769
        %1773 = vset.pattern.permute.xlu0 0
        %1774 = vperm.xlu0 %1773, %v497
        %v1775 = vpop.permute.xlu0 %1774
        %1778 = vset.pattern.permute.xlu0 0
        %1779 = vperm.xlu0 %1778, %v498
        %v1780 = vpop.permute.xlu0 %1779
        %1783 = vset.pattern.permute.xlu0 0
        %1784 = vperm.xlu0 %1783, %v499
        %v1785 = vpop.permute.xlu0 %1784
        %v1787 = vmul.f32 %v1457, %v1515
        %v1788 = vmul.f32 %v1458, %v1520
        %v1789 = vmul.f32 %v1459, %v1525
        %v1790 = vmul.f32 %v1460, %v1530
        %v1791 = vmul.f32 %v1461, %v1535
        %v1792 = vmul.f32 %v1462, %v1540
        %v1793 = vmul.f32 %v1463, %v1545
        %v1794 = vmul.f32 %v1464, %v1550
        %v1795 = vmul.f32 %v1465, %v1555
        %v1796 = vmul.f32 %v1466, %v1560
        %v1797 = vmul.f32 %v1467, %v1565
        %v1798 = vmul.f32 %v1468, %v1570
        %v1799 = vmul.f32 %v1469, %v1575
        %v1800 = vmul.f32 %v1470, %v1580
        %v1801 = vmul.f32 %v1471, %v1585
        %v1802 = vmul.f32 %v1472, %v1590
        %v1803 = vmul.f32 %v1473, %v1595
        %v1804 = vmul.f32 %v1474, %v1600
        %v1805 = vmul.f32 %v1475, %v1605
        %v1806 = vmul.f32 %v1476, %v1610
        %v1807 = vmul.f32 %v1477, %v1615
        %v1808 = vmul.f32 %v1478, %v1620
        %v1809 = vmul.f32 %v1479, %v1625
        %v1810 = vmul.f32 %v1480, %v1630
        %v1811 = vmul.f32 %v1481, %v1635
        %v1812 = vmul.f32 %v1482, %v1640
        %v1813 = vmul.f32 %v1483, %v1645
        %v1814 = vmul.f32 %v1484, %v1650
        %v1815 = vmul.f32 %v1485, %v1655
        %v1816 = vmul.f32 %v1486, %v1660
        %v1817 = vmul.f32 %v1487, %v1665
        %v1818 = vmul.f32 %v1488, %v1670
        %v1819 = vmul.f32 %v1489, %v1675
        %v1820 = vmul.f32 %v1490, %v1680
        %v1821 = vmul.f32 %v1491, %v1685
        %v1822 = vmul.f32 %v1492, %v1690
        %v1823 = vmul.f32 %v1493, %v1695
        %v1824 = vmul.f32 %v1494, %v1700
        %v1825 = vmul.f32 %v1495, %v1705
        %v1826 = vmul.f32 %v1496, %v1710
        %v1827 = vmul.f32 %v1497, %v1715
        %v1828 = vmul.f32 %v1498, %v1720
        %v1829 = vmul.f32 %v1499, %v1725
        %v1830 = vmul.f32 %v1500, %v1730
        %v1831 = vmul.f32 %v1501, %v1735
        %v1832 = vmul.f32 %v1502, %v1740
        %v1833 = vmul.f32 %v1503, %v1745
        %v1834 = vmul.f32 %v1504, %v1750
        %v1835 = vmul.f32 %v1505, %v1755
        %v1836 = vmul.f32 %v1506, %v1760
        %v1837 = vmul.f32 %v1507, %v1765
        %v1838 = vmul.f32 %v1508, %v1770
        %v1839 = vmul.f32 %v1509, %v1775
        %v1840 = vmul.f32 %v1510, %v1780
        %v1841 = vmul.f32 %v1511, %v1785
        %v1842 = vld [vmem:[%s5] sm:$0xff]
        %v1843 = vld [vmem:[%s5 + $0x8] sm:$0xff]
        %v1844 = vld [vmem:[%s5 + $0x10] sm:$0xff]
        %v1845 = vld [vmem:[%s5 + $0x18] sm:$0xff]
        %v1846 = vld [vmem:[%s5 + $0x20] sm:$0xff]
        %v1847 = vld [vmem:[%s5 + $0x28] sm:$0xff]
        %v1848 = vld [vmem:[%s5 + $0x30] sm:$0xff]
        %v1849 = vld [vmem:[%s5 + $0x38] sm:$0xff]
        %s1850 = scalar_lea.vmem %s5, 64
        %v1851 = vld [vmem:[%s1850] sm:$0xff]
        %v1852 = vld [vmem:[%s1850 + $0x8] sm:$0xff]
        %v1853 = vld [vmem:[%s1850 + $0x10] sm:$0xff]
        %v1854 = vld [vmem:[%s1850 + $0x18] sm:$0xff]
        %v1855 = vld [vmem:[%s1850 + $0x20] sm:$0xff]
        %v1856 = vld [vmem:[%s1850 + $0x28] sm:$0xff]
        %v1857 = vld [vmem:[%s1850 + $0x30] sm:$0xff]
        %v1858 = vld [vmem:[%s1850 + $0x38] sm:$0xff]
        %vm1908 = vcmask 1046528
        %v1909 = vrot.slane %v1787, 1
        %v1910 = vrot.slane %v1788, 1
        %v1911 = vsel %vm1908, %v1909, %v1910
        %v1912 = vrot.slane %v1789, 1
        %v1913 = vsel %vm1908, %v1910, %v1912
        %v1914 = vrot.slane %v1790, 1
        %v1915 = vsel %vm1908, %v1912, %v1914
        %v1916 = vrot.slane %v1791, 1
        %v1917 = vsel %vm1908, %v1914, %v1916
        %v1918 = vrot.slane %v1792, 1
        %v1919 = vsel %vm1908, %v1916, %v1918
        %v1920 = vrot.slane %v1793, 1
        %v1921 = vsel %vm1908, %v1918, %v1920
        %v1922 = vrot.slane %v1794, 1
        %v1923 = vsel %vm1908, %v1920, %v1922
        %v1924 = vrot.slane %v1795, 1
        %v1925 = vsel %vm1908, %v1922, %v1924
        %v1926 = vrot.slane %v1796, 1
        %v1927 = vsel %vm1908, %v1924, %v1926
        %v1928 = vrot.slane %v1797, 1
        %v1929 = vsel %vm1908, %v1926, %v1928
        %v1930 = vrot.slane %v1798, 1
        %v1931 = vsel %vm1908, %v1928, %v1930
        %v1932 = vrot.slane %v1799, 1
        %v1933 = vsel %vm1908, %v1930, %v1932
        %v1934 = vrot.slane %v1800, 1
        %v1935 = vsel %vm1908, %v1932, %v1934
        %v1936 = vrot.slane %v1801, 1
        %v1937 = vsel %vm1908, %v1934, %v1936
        %v1938 = vrot.slane %v1802, 1
        %v1939 = vsel %vm1908, %v1936, %v1938
        %v1940 = vrot.slane %v1803, 1
        %v1941 = vsel %vm1908, %v1938, %v1940
        %v1942 = vrot.slane %v1804, 1
        %v1943 = vsel %vm1908, %v1940, %v1942
        %v1944 = vrot.slane %v1805, 1
        %v1945 = vsel %vm1908, %v1942, %v1944
        %v1946 = vrot.slane %v1806, 1
        %v1947 = vsel %vm1908, %v1944, %v1946
        %v1948 = vrot.slane %v1807, 1
        %v1949 = vsel %vm1908, %v1946, %v1948
        %v1950 = vrot.slane %v1808, 1
        %v1951 = vsel %vm1908, %v1948, %v1950
        %v1952 = vrot.slane %v1809, 1
        %v1953 = vsel %vm1908, %v1950, %v1952
        %v1954 = vrot.slane %v1810, 1
        %v1955 = vsel %vm1908, %v1952, %v1954
        %v1956 = vrot.slane %v1811, 1
        %v1957 = vsel %vm1908, %v1954, %v1956
        %v1958 = vrot.slane %v1812, 1
        %v1959 = vsel %vm1908, %v1956, %v1958
        %v1960 = vrot.slane %v1813, 1
        %v1961 = vsel %vm1908, %v1958, %v1960
        %v1962 = vrot.slane %v1814, 1
        %v1963 = vsel %vm1908, %v1960, %v1962
        %v1964 = vrot.slane %v1815, 1
        %v1965 = vsel %vm1908, %v1962, %v1964
        %v1966 = vrot.slane %v1816, 1
        %v1967 = vsel %vm1908, %v1964, %v1966
        %v1968 = vrot.slane %v1817, 1
        %v1969 = vsel %vm1908, %v1966, %v1968
        %v1970 = vrot.slane %v1818, 1
        %v1971 = vsel %vm1908, %v1968, %v1970
        %v1972 = vrot.slane %v1819, 1
        %v1973 = vsel %vm1908, %v1970, %v1972
        %v1974 = vrot.slane %v1820, 1
        %v1975 = vsel %vm1908, %v1972, %v1974
        %v1976 = vrot.slane %v1821, 1
        %v1977 = vsel %vm1908, %v1974, %v1976
        %v1978 = vrot.slane %v1822, 1
        %v1979 = vsel %vm1908, %v1976, %v1978
        %v1980 = vrot.slane %v1823, 1
        %v1981 = vsel %vm1908, %v1978, %v1980
        %v1982 = vrot.slane %v1824, 1
        %v1983 = vsel %vm1908, %v1980, %v1982
        %v1984 = vrot.slane %v1825, 1
        %v1985 = vsel %vm1908, %v1982, %v1984
        %v1986 = vrot.slane %v1826, 1
        %v1987 = vsel %vm1908, %v1984, %v1986
        %v1988 = vrot.slane %v1827, 1
        %v1989 = vsel %vm1908, %v1986, %v1988
        %v1990 = vrot.slane %v1828, 1
        %v1991 = vsel %vm1908, %v1988, %v1990
        %v1992 = vrot.slane %v1829, 1
        %v1993 = vsel %vm1908, %v1990, %v1992
        %v1994 = vrot.slane %v1830, 1
        %v1995 = vsel %vm1908, %v1992, %v1994
        %v1996 = vrot.slane %v1831, 1
        %v1997 = vsel %vm1908, %v1994, %v1996
        %v1998 = vrot.slane %v1832, 1
        %v1999 = vsel %vm1908, %v1996, %v1998
        %v2000 = vrot.slane %v1833, 1
        %v2001 = vsel %vm1908, %v1998, %v2000
        %v2002 = vrot.slane %v1834, 1
        %v2003 = vsel %vm1908, %v2000, %v2002
        %v2004 = vrot.slane %v1835, 1
        %v2005 = vsel %vm1908, %v2002, %v2004
        %v2006 = vsel %vm500, %v1911, 0
        %v2008 = vsel %vm500, %v1913, 0
        %v2010 = vsel %vm500, %v1915, 0
        %v2012 = vsel %vm500, %v1917, 0
        %v2014 = vsel %vm500, %v1919, 0
        %v2016 = vsel %vm500, %v1921, 0
        %v2018 = vsel %vm500, %v1923, 0
        %v2020 = vsel %vm500, %v1925, 0
        %v2022 = vsel %vm500, %v1927, 0
        %v2024 = vsel %vm500, %v1929, 0
        %v2026 = vsel %vm500, %v1931, 0
        %v2028 = vsel %vm500, %v1933, 0
        %v2030 = vsel %vm500, %v1935, 0
        %v2032 = vsel %vm500, %v1937, 0
        %v2034 = vsel %vm500, %v1939, 0
        %v2036 = vsel %vm500, %v1941, 0
        %v2038 = vsel %vm500, %v1943, 0
        %v2040 = vsel %vm500, %v1945, 0
        %v2042 = vsel %vm500, %v1947, 0
        %v2044 = vsel %vm500, %v1949, 0
        %v2046 = vsel %vm500, %v1951, 0
        %v2048 = vsel %vm500, %v1953, 0
        %v2050 = vsel %vm500, %v1955, 0
        %v2052 = vsel %vm500, %v1957, 0
        %v2054 = vsel %vm500, %v1959, 0
        %v2056 = vsel %vm500, %v1961, 0
        %v2058 = vsel %vm500, %v1963, 0
        %v2060 = vsel %vm500, %v1965, 0
        %v2062 = vsel %vm500, %v1967, 0
        %v2064 = vsel %vm500, %v1969, 0
        %v2066 = vsel %vm500, %v1971, 0
        %v2068 = vsel %vm500, %v1973, 0
        %v2070 = vsel %vm500, %v1975, 0
        %v2072 = vsel %vm500, %v1977, 0
        %v2074 = vsel %vm500, %v1979, 0
        %v2076 = vsel %vm500, %v1981, 0
        %v2078 = vsel %vm500, %v1983, 0
        %v2080 = vsel %vm500, %v1985, 0
        %v2082 = vsel %vm500, %v1987, 0
        %v2084 = vsel %vm500, %v1989, 0
        %v2086 = vsel %vm500, %v1991, 0
        %v2088 = vsel %vm500, %v1993, 0
        %v2090 = vsel %vm500, %v1995, 0
        %v2092 = vsel %vm500, %v1997, 0
        %v2094 = vsel %vm500, %v1999, 0
        %v2096 = vsel %vm500, %v2001, 0
        %v2098 = vsel %vm500, %v2003, 0
        %v2100 = vsel %vm500, %v2005, 0
        %2102 = vmatprep.subr.mxu0 0.0
        %2103 = vmatpush1.msra.mxu0 %v1851
        %2104 = vmatprep.subr.mxu0 0.0
        %2105 = vmatpush1.msra.mxu0 %v1852
        %2106 = vmatprep.subr.mxu0 0.0
        %2107 = vmatpush1.msra.mxu0 %v1853
        %2108 = vmatprep.subr.mxu0 0.0
        %2109 = vmatpush1.msra.mxu0 %v1854
        %2110 = vmatprep.subr.mxu0 0.0
        %2111 = vmatpush1.msra.mxu0 %v1855
        %2112 = vmatprep.subr.mxu0 0.0
        %2113 = vmatpush1.msra.mxu0 %v1856
        %2114 = vmatprep.subr.mxu0 0.0
        %2115 = vmatpush1.msra.mxu0 %v1857
        %2116 = vmatprep.subr.mxu0 0.0
        %2117 = vmatpush1.msra.mxu0 %v1858
        %2118 = vmatprep.subr.mxu0 0.0
        %2119 = vmatpush1.msra.mxu0 0.0
        %2120 = vmatprep.subr.mxu0 0.0
        %2121 = vmatpush1.msra.mxu0 0.0
        %2122 = vmatprep.subr.mxu0 0.0
        %2123 = vmatpush1.msra.mxu0 0.0
        %2124 = vmatprep.subr.mxu0 0.0
        %2125 = vmatpush1.msra.mxu0 0.0
        %2126 = vmatprep.subr.mxu0 0.0
        %2127 = vmatpush1.msra.mxu0 0.0
        %2128 = vmatprep.subr.mxu0 0.0
        %2129 = vmatpush1.msra.mxu0 0.0
        %2130 = vmatprep.subr.mxu0 0.0
        %2131 = vmatpush1.msra.mxu0 0.0
        %2132 = vmatprep.subr.mxu0 0.0
        %2133 = vmatpush1.msra.mxu0 0.0
        %2134 = vmatprep.subr.mxu0 0.0
        %2135 = vmatpush1.msra.mxu0 0.0
        %2136 = vmatprep.subr.mxu0 0.0
        %2137 = vmatpush1.msra.mxu0 0.0
        %2138 = vmatprep.subr.mxu0 0.0
        %2139 = vmatpush1.msra.mxu0 0.0
        %2140 = vmatprep.subr.mxu0 0.0
        %2141 = vmatpush1.msra.mxu0 0.0
        %2142 = vmatprep.subr.mxu0 0.0
        %2143 = vmatpush1.msra.mxu0 0.0
        %2144 = vmatprep.subr.mxu0 0.0
        %2145 = vmatpush1.msra.mxu0 0.0
        %2146 = vmatprep.subr.mxu0 0.0
        %2147 = vmatpush1.msra.mxu0 0.0
        %2148 = vmatprep.subr.mxu0 0.0
        %2149 = vmatpush1.msra.mxu0 0.0
        %2150 = vmatprep.subr.mxu0 0.0
        %2151 = vmatpush1.msra.mxu0 0.0
        %2152 = vmatprep.subr.mxu0 0.0
        %2153 = vmatpush1.msra.mxu0 0.0
        %2154 = vmatprep.subr.mxu0 0.0
        %2155 = vmatpush1.msra.mxu0 0.0
        %2156 = vmatprep.subr.mxu0 0.0
        %2157 = vmatpush1.msra.mxu0 0.0
        %2158 = vmatprep.subr.mxu0 0.0
        %2159 = vmatpush1.msra.mxu0 0.0
        %2160 = vmatprep.subr.mxu0 0.0
        %2161 = vmatpush1.msra.mxu0 0.0
        %2162 = vmatprep.subr.mxu0 0.0
        %2163 = vmatpush1.msra.mxu0 0.0
        %2164 = vmatprep.subr.mxu0 0.0
        %2165 = vmatpush1.msra.mxu0 0.0
        %2166 = vmatprep.mubr.f32.mxu0 0.0
        %2167 = vmatmul.mubr.f32.gmra.mrb[0].mxu0 %v2006
        %v2168 = vpop.f32.mrb[0].mxu0
        %v2169 = vadd.f32 0.0, %v2168
        %v2170 = vpop.f32.mrb[0].mxu0
        %2171 = vmatprep.mubr.f32.mxu0 0.0
        %2172 = vmatmul.mubr.f32.gmra.mrb[0].mxu0 %v2008
        %v2173 = vpop.f32.mrb[0].mxu0
        %v2174 = vadd.f32 0.0, %v2173
        %v2175 = vpop.f32.mrb[0].mxu0
        %2176 = vmatprep.mubr.f32.mxu0 0.0
        %2177 = vmatmul.mubr.f32.gmra.mrb[0].mxu0 %v2010
        %v2178 = vpop.f32.mrb[0].mxu0
        %v2179 = vpop.f32.mrb[0].mxu0
        %2180 = vmatprep.mubr.f32.mxu0 0.0
        %2181 = vmatmul.mubr.f32.gmra.mrb[0].mxu0 %v2012
        %v2182 = vpop.f32.mrb[0].mxu0
        %v2183 = vadd.f32 0.0, %v2182
        %v2184 = vpop.f32.mrb[0].mxu0
        %2185 = vmatprep.mubr.f32.mxu0 0.0
        %2186 = vmatmul.mubr.f32.gmra.mrb[0].mxu0 %v2014
        %v2187 = vpop.f32.mrb[0].mxu0
        %v2188 = vadd.f32 0.0, %v2187
        %v2189 = vpop.f32.mrb[0].mxu0
        %2190 = vmatprep.mubr.f32.mxu0 0.0
        %2191 = vmatmul.mubr.f32.gmra.mrb[0].mxu0 %v2016
        %v2192 = vpop.f32.mrb[0].mxu0
        %v2193 = vpop.f32.mrb[0].mxu0
        %2194 = vmatprep.mubr.f32.mxu0 0.0
        %2195 = vmatmul.mubr.f32.gmra.mrb[0].mxu0 %v2018
        %v2196 = vpop.f32.mrb[0].mxu0
        %v2197 = vadd.f32 0.0, %v2196
        %v2198 = vpop.f32.mrb[0].mxu0
        %2199 = vmatprep.mubr.f32.mxu0 0.0
        %2200 = vmatmul.mubr.f32.gmra.mrb[0].mxu0 %v2020
        %v2201 = vpop.f32.mrb[0].mxu0
        %v2202 = vadd.f32 0.0, %v2201
        %v2203 = vpop.f32.mrb[0].mxu0
        %2204 = vmatprep.mubr.f32.mxu0 0.0
        %2205 = vmatmul.mubr.f32.gmra.mrb[0].mxu0 %v2022
        %v2206 = vpop.f32.mrb[0].mxu0
        %v2207 = vpop.f32.mrb[0].mxu0
        %2208 = vmatprep.mubr.f32.mxu0 0.0
        %2209 = vmatmul.mubr.f32.gmra.mrb[0].mxu0 %v2024
        %v2210 = vpop.f32.mrb[0].mxu0
        %v2211 = vadd.f32 0.0, %v2210
        %v2212 = vpop.f32.mrb[0].mxu0
        %2213 = vmatprep.mubr.f32.mxu0 0.0
        %2214 = vmatmul.mubr.f32.gmra.mrb[0].mxu0 %v2026
        %v2215 = vpop.f32.mrb[0].mxu0
        %v2216 = vadd.f32 0.0, %v2215
        %v2217 = vpop.f32.mrb[0].mxu0
        %2218 = vmatprep.mubr.f32.mxu0 0.0
        %2219 = vmatmul.mubr.f32.gmra.mrb[0].mxu0 %v2028
        %v2220 = vpop.f32.mrb[0].mxu0
        %v2221 = vpop.f32.mrb[0].mxu0
        %2222 = vmatprep.mubr.f32.mxu0 0.0
        %2223 = vmatmul.mubr.f32.gmra.mrb[0].mxu0 %v2030
        %v2224 = vpop.f32.mrb[0].mxu0
        %v2225 = vadd.f32 0.0, %v2224
        %v2226 = vpop.f32.mrb[0].mxu0
        %2227 = vmatprep.mubr.f32.mxu0 0.0
        %2228 = vmatmul.mubr.f32.gmra.mrb[0].mxu0 %v2032
        %v2229 = vpop.f32.mrb[0].mxu0
        %v2230 = vadd.f32 0.0, %v2229
        %v2231 = vpop.f32.mrb[0].mxu0
        %2232 = vmatprep.mubr.f32.mxu0 0.0
        %2233 = vmatmul.mubr.f32.gmra.mrb[0].mxu0 %v2034
        %v2234 = vpop.f32.mrb[0].mxu0
        %v2235 = vpop.f32.mrb[0].mxu0
        %2236 = vmatprep.mubr.f32.mxu0 0.0
        %2237 = vmatmul.mubr.f32.gmra.mrb[0].mxu0 %v2036
        %v2238 = vpop.f32.mrb[0].mxu0
        %v2239 = vadd.f32 0.0, %v2238
        %v2240 = vpop.f32.mrb[0].mxu0
        %2241 = vmatprep.mubr.f32.mxu0 0.0
        %2242 = vmatmul.mubr.f32.gmra.mrb[0].mxu0 %v2038
        %v2243 = vpop.f32.mrb[0].mxu0
        %v2244 = vadd.f32 0.0, %v2243
        %v2245 = vpop.f32.mrb[0].mxu0
        %2246 = vmatprep.mubr.f32.mxu0 0.0
        %2247 = vmatmul.mubr.f32.gmra.mrb[0].mxu0 %v2040
        %v2248 = vpop.f32.mrb[0].mxu0
        %v2249 = vpop.f32.mrb[0].mxu0
        %2250 = vmatprep.mubr.f32.mxu0 0.0
        %2251 = vmatmul.mubr.f32.gmra.mrb[0].mxu0 %v2042
        %v2252 = vpop.f32.mrb[0].mxu0
        %v2253 = vadd.f32 0.0, %v2252
        %v2254 = vpop.f32.mrb[0].mxu0
        %2255 = vmatprep.mubr.f32.mxu0 0.0
        %2256 = vmatmul.mubr.f32.gmra.mrb[0].mxu0 %v2044
        %v2257 = vpop.f32.mrb[0].mxu0
        %v2258 = vadd.f32 0.0, %v2257
        %v2259 = vpop.f32.mrb[0].mxu0
        %2260 = vmatprep.mubr.f32.mxu0 0.0
        %2261 = vmatmul.mubr.f32.gmra.mrb[0].mxu0 %v2046
        %v2262 = vpop.f32.mrb[0].mxu0
        %v2263 = vpop.f32.mrb[0].mxu0
        %2264 = vmatprep.mubr.f32.mxu0 0.0
        %2265 = vmatmul.mubr.f32.gmra.mrb[0].mxu0 %v2048
        %v2266 = vpop.f32.mrb[0].mxu0
        %v2267 = vadd.f32 0.0, %v2266
        %v2268 = vpop.f32.mrb[0].mxu0
        %2269 = vmatprep.mubr.f32.mxu0 0.0
        %2270 = vmatmul.mubr.f32.gmra.mrb[0].mxu0 %v2050
        %v2271 = vpop.f32.mrb[0].mxu0
        %v2272 = vadd.f32 0.0, %v2271
        %v2273 = vpop.f32.mrb[0].mxu0
        %2274 = vmatprep.mubr.f32.mxu0 0.0
        %2275 = vmatmul.mubr.f32.gmra.mrb[0].mxu0 %v2052
        %v2276 = vpop.f32.mrb[0].mxu0
        %v2277 = vpop.f32.mrb[0].mxu0
        %2278 = vmatprep.mubr.f32.mxu0 0.0
        %2279 = vmatmul.mubr.f32.gmra.mrb[0].mxu0 %v2054
        %v2280 = vpop.f32.mrb[0].mxu0
        %v2281 = vadd.f32 0.0, %v2280
        %v2282 = vpop.f32.mrb[0].mxu0
        %2283 = vmatprep.mubr.f32.mxu0 0.0
        %2284 = vmatmul.mubr.f32.gmra.mrb[0].mxu0 %v2056
        %v2285 = vpop.f32.mrb[0].mxu0
        %v2286 = vadd.f32 0.0, %v2285
        %v2287 = vpop.f32.mrb[0].mxu0
        %2288 = vmatprep.mubr.f32.mxu0 0.0
        %2289 = vmatmul.mubr.f32.gmra.mrb[0].mxu0 %v2058
        %v2290 = vpop.f32.mrb[0].mxu0
        %v2291 = vpop.f32.mrb[0].mxu0
        %2292 = vmatprep.mubr.f32.mxu0 0.0
        %2293 = vmatmul.mubr.f32.gmra.mrb[0].mxu0 %v2060
        %v2294 = vpop.f32.mrb[0].mxu0
        %v2295 = vadd.f32 0.0, %v2294
        %v2296 = vpop.f32.mrb[0].mxu0
        %2297 = vmatprep.mubr.f32.mxu0 0.0
        %2298 = vmatmul.mubr.f32.gmra.mrb[0].mxu0 %v2062
        %v2299 = vpop.f32.mrb[0].mxu0
        %v2300 = vadd.f32 0.0, %v2299
        %v2301 = vpop.f32.mrb[0].mxu0
        %2302 = vmatprep.mubr.f32.mxu0 0.0
        %2303 = vmatmul.mubr.f32.gmra.mrb[0].mxu0 %v2064
        %v2304 = vpop.f32.mrb[0].mxu0
        %v2305 = vpop.f32.mrb[0].mxu0
        %2306 = vmatprep.mubr.f32.mxu0 0.0
        %2307 = vmatmul.mubr.f32.gmra.mrb[0].mxu0 %v2066
        %v2308 = vpop.f32.mrb[0].mxu0
        %v2309 = vadd.f32 0.0, %v2308
        %v2310 = vpop.f32.mrb[0].mxu0
        %2311 = vmatprep.mubr.f32.mxu0 0.0
        %2312 = vmatmul.mubr.f32.gmra.mrb[0].mxu0 %v2068
        %v2313 = vpop.f32.mrb[0].mxu0
        %v2314 = vadd.f32 0.0, %v2313
        %v2315 = vpop.f32.mrb[0].mxu0
        %2316 = vmatprep.mubr.f32.mxu0 0.0
        %2317 = vmatmul.mubr.f32.gmra.mrb[0].mxu0 %v2070
        %v2318 = vpop.f32.mrb[0].mxu0
        %v2319 = vpop.f32.mrb[0].mxu0
        %2320 = vmatprep.mubr.f32.mxu0 0.0
        %2321 = vmatmul.mubr.f32.gmra.mrb[0].mxu0 %v2072
        %v2322 = vpop.f32.mrb[0].mxu0
        %v2323 = vadd.f32 0.0, %v2322
        %v2324 = vpop.f32.mrb[0].mxu0
        %2325 = vmatprep.mubr.f32.mxu0 0.0
        %2326 = vmatmul.mubr.f32.gmra.mrb[0].mxu0 %v2074
        %v2327 = vpop.f32.mrb[0].mxu0
        %v2328 = vadd.f32 0.0, %v2327
        %v2329 = vpop.f32.mrb[0].mxu0
        %2330 = vmatprep.mubr.f32.mxu0 0.0
        %2331 = vmatmul.mubr.f32.gmra.mrb[0].mxu0 %v2076
        %v2332 = vpop.f32.mrb[0].mxu0
        %v2333 = vpop.f32.mrb[0].mxu0
        %2334 = vmatprep.mubr.f32.mxu0 0.0
        %2335 = vmatmul.mubr.f32.gmra.mrb[0].mxu0 %v2078
        %v2336 = vpop.f32.mrb[0].mxu0
        %v2337 = vadd.f32 0.0, %v2336
        %v2338 = vpop.f32.mrb[0].mxu0
        %2339 = vmatprep.mubr.f32.mxu0 0.0
        %2340 = vmatmul.mubr.f32.gmra.mrb[0].mxu0 %v2080
        %v2341 = vpop.f32.mrb[0].mxu0
        %v2342 = vadd.f32 0.0, %v2341
        %v2343 = vpop.f32.mrb[0].mxu0
        %2344 = vmatprep.mubr.f32.mxu0 0.0
        %2345 = vmatmul.mubr.f32.gmra.mrb[0].mxu0 %v2082
        %v2346 = vpop.f32.mrb[0].mxu0
        %v2347 = vpop.f32.mrb[0].mxu0
        %2348 = vmatprep.mubr.f32.mxu0 0.0
        %2349 = vmatmul.mubr.f32.gmra.mrb[0].mxu0 %v2084
        %v2350 = vpop.f32.mrb[0].mxu0
        %v2351 = vadd.f32 0.0, %v2350
        %v2352 = vpop.f32.mrb[0].mxu0
        %2353 = vmatprep.mubr.f32.mxu0 0.0
        %2354 = vmatmul.mubr.f32.gmra.mrb[0].mxu0 %v2086
        %v2355 = vpop.f32.mrb[0].mxu0
        %v2356 = vadd.f32 0.0, %v2355
        %v2357 = vpop.f32.mrb[0].mxu0
        %2358 = vmatprep.mubr.f32.mxu0 0.0
        %2359 = vmatmul.mubr.f32.gmra.mrb[0].mxu0 %v2088
        %v2360 = vpop.f32.mrb[0].mxu0
        %v2361 = vpop.f32.mrb[0].mxu0
        %2362 = vmatprep.mubr.f32.mxu0 0.0
        %2363 = vmatmul.mubr.f32.gmra.mrb[0].mxu0 %v2090
        %v2364 = vpop.f32.mrb[0].mxu0
        %v2365 = vadd.f32 0.0, %v2364
        %v2366 = vpop.f32.mrb[0].mxu0
        %2367 = vmatprep.mubr.f32.mxu0 0.0
        %2368 = vmatmul.mubr.f32.gmra.mrb[0].mxu0 %v2092
        %v2369 = vpop.f32.mrb[0].mxu0
        %v2370 = vadd.f32 0.0, %v2369
        %v2371 = vpop.f32.mrb[0].mxu0
        %2372 = vmatprep.mubr.f32.mxu0 0.0
        %2373 = vmatmul.mubr.f32.gmra.mrb[0].mxu0 %v2094
        %v2374 = vpop.f32.mrb[0].mxu0
        %v2375 = vpop.f32.mrb[0].mxu0
        %2376 = vmatprep.mubr.f32.mxu0 0.0
        %2377 = vmatmul.mubr.f32.gmra.mrb[0].mxu0 %v2096
        %v2378 = vpop.f32.mrb[0].mxu0
        %v2379 = vadd.f32 0.0, %v2378
        %v2380 = vpop.f32.mrb[0].mxu0
        %2381 = vmatprep.mubr.f32.mxu0 0.0
        %2382 = vmatmul.mubr.f32.gmra.mrb[0].mxu0 %v2098
        %v2383 = vpop.f32.mrb[0].mxu0
        %v2384 = vadd.f32 0.0, %v2383
        %v2385 = vpop.f32.mrb[0].mxu0
        %2386 = vmatprep.mubr.f32.mxu0 0.0
        %2387 = vmatmul.mubr.f32.gmra.mrb[0].mxu0 %v2100
        %v2388 = vpop.f32.mrb[0].mxu0
        %v2389 = vpop.f32.mrb[0].mxu0
        %2390 = vdwg.mxu0
        %v2391 = vsel %vm500, %v1787, 0
        %v2393 = vsel %vm500, %v1788, 0
        %v2395 = vsel %vm500, %v1789, 0
        %v2397 = vsel %vm500, %v1790, 0
        %v2399 = vsel %vm500, %v1791, 0
        %v2401 = vsel %vm500, %v1792, 0
        %v2403 = vsel %vm500, %v1793, 0
        %v2405 = vsel %vm500, %v1794, 0
        %v2407 = vsel %vm500, %v1795, 0
        %v2409 = vsel %vm500, %v1796, 0
        %v2411 = vsel %vm500, %v1797, 0
        %v2413 = vsel %vm500, %v1798, 0
        %v2415 = vsel %vm500, %v1799, 0
        %v2417 = vsel %vm500, %v1800, 0
        %v2419 = vsel %vm500, %v1801, 0
        %v2421 = vsel %vm500, %v1802, 0
        %v2423 = vsel %vm500, %v1803, 0
        %v2425 = vsel %vm500, %v1804, 0
        %v2427 = vsel %vm500, %v1805, 0
        %v2429 = vsel %vm500, %v1806, 0
        %v2431 = vsel %vm500, %v1807, 0
        %v2433 = vsel %vm500, %v1808, 0
        %v2435 = vsel %vm500, %v1809, 0
        %v2437 = vsel %vm500, %v1810, 0
        %v2439 = vsel %vm500, %v1811, 0
        %v2441 = vsel %vm500, %v1812, 0
        %v2443 = vsel %vm500, %v1813, 0
        %v2445 = vsel %vm500, %v1814, 0
        %v2447 = vsel %vm500, %v1815, 0
        %v2449 = vsel %vm500, %v1816, 0
        %v2451 = vsel %vm500, %v1817, 0
        %v2453 = vsel %vm500, %v1818, 0
        %v2455 = vsel %vm500, %v1819, 0
        %v2457 = vsel %vm500, %v1820, 0
        %v2459 = vsel %vm500, %v1821, 0
        %v2461 = vsel %vm500, %v1822, 0
        %v2463 = vsel %vm500, %v1823, 0
        %v2465 = vsel %vm500, %v1824, 0
        %v2467 = vsel %vm500, %v1825, 0
        %v2469 = vsel %vm500, %v1826, 0
        %v2471 = vsel %vm500, %v1827, 0
        %v2473 = vsel %vm500, %v1828, 0
        %v2475 = vsel %vm500, %v1829, 0
        %v2477 = vsel %vm500, %v1830, 0
        %v2479 = vsel %vm500, %v1831, 0
        %v2481 = vsel %vm500, %v1832, 0
        %v2483 = vsel %vm500, %v1833, 0
        %v2485 = vsel %vm500, %v1834, 0
        %2487 = vmatprep.subr.mxu0 0.0
        %2488 = vmatpush1.msra.mxu0 %v1842
        %2489 = vmatprep.subr.mxu0 0.0
        %2490 = vmatpush1.msra.mxu0 %v1843
        %2491 = vmatprep.subr.mxu0 0.0
        %2492 = vmatpush1.msra.mxu0 %v1844
        %2493 = vmatprep.subr.mxu0 0.0
        %2494 = vmatpush1.msra.mxu0 %v1845
        %2495 = vmatprep.subr.mxu0 0.0
        %2496 = vmatpush1.msra.mxu0 %v1846
        %2497 = vmatprep.subr.mxu0 0.0
        %2498 = vmatpush1.msra.mxu0 %v1847
        %2499 = vmatprep.subr.mxu0 0.0
        %2500 = vmatpush1.msra.mxu0 %v1848
        %2501 = vmatprep.subr.mxu0 0.0
        %2502 = vmatpush1.msra.mxu0 %v1849
        %2503 = vmatprep.subr.mxu0 0.0
        %2504 = vmatpush1.msra.mxu0 0.0
        %2505 = vmatprep.subr.mxu0 0.0
        %2506 = vmatpush1.msra.mxu0 0.0
        %2507 = vmatprep.subr.mxu0 0.0
        %2508 = vmatpush1.msra.mxu0 0.0
        %2509 = vmatprep.subr.mxu0 0.0
        %2510 = vmatpush1.msra.mxu0 0.0
        %2511 = vmatprep.subr.mxu0 0.0
        %2512 = vmatpush1.msra.mxu0 0.0
        %2513 = vmatprep.subr.mxu0 0.0
        %2514 = vmatpush1.msra.mxu0 0.0
        %2515 = vmatprep.subr.mxu0 0.0
        %2516 = vmatpush1.msra.mxu0 0.0
        %2517 = vmatprep.subr.mxu0 0.0
        %2518 = vmatpush1.msra.mxu0 0.0
        %2519 = vmatprep.subr.mxu0 0.0
        %2520 = vmatpush1.msra.mxu0 0.0
        %2521 = vmatprep.subr.mxu0 0.0
        %2522 = vmatpush1.msra.mxu0 0.0
        %2523 = vmatprep.subr.mxu0 0.0
        %2524 = vmatpush1.msra.mxu0 0.0
        %2525 = vmatprep.subr.mxu0 0.0
        %2526 = vmatpush1.msra.mxu0 0.0
        %2527 = vmatprep.subr.mxu0 0.0
        %2528 = vmatpush1.msra.mxu0 0.0
        %2529 = vmatprep.subr.mxu0 0.0
        %2530 = vmatpush1.msra.mxu0 0.0
        %2531 = vmatprep.subr.mxu0 0.0
        %2532 = vmatpush1.msra.mxu0 0.0
        %2533 = vmatprep.subr.mxu0 0.0
        %2534 = vmatpush1.msra.mxu0 0.0
        %2535 = vmatprep.subr.mxu0 0.0
        %2536 = vmatpush1.msra.mxu0 0.0
        %2537 = vmatprep.subr.mxu0 0.0
        %2538 = vmatpush1.msra.mxu0 0.0
        %2539 = vmatprep.subr.mxu0 0.0
        %2540 = vmatpush1.msra.mxu0 0.0
        %2541 = vmatprep.subr.mxu0 0.0
        %2542 = vmatpush1.msra.mxu0 0.0
        %2543 = vmatprep.subr.mxu0 0.0
        %2544 = vmatpush1.msra.mxu0 0.0
        %2545 = vmatprep.subr.mxu0 0.0
        %2546 = vmatpush1.msra.mxu0 0.0
        %2547 = vmatprep.subr.mxu0 0.0
        %2548 = vmatpush1.msra.mxu0 0.0
        %2549 = vmatprep.subr.mxu0 0.0
        %2550 = vmatpush1.msra.mxu0 0.0
        %2551 = vmatprep.mubr.f32.mxu0 0.0
        %2552 = vmatmul.mubr.f32.gmra.mrb[0].mxu0 %v2391
        %v2553 = vpop.f32.mrb[0].mxu0
        %v2554 = vadd.f32 %v2169, %v2553
        %v2555 = vpop.f32.mrb[0].mxu0
        %2556 = vmatprep.mubr.f32.mxu0 0.0
        %2557 = vmatmul.mubr.f32.gmra.mrb[0].mxu0 %v2393
        %v2558 = vpop.f32.mrb[0].mxu0
        %v2559 = vadd.f32 %v2174, %v2558
        %v2560 = vpop.f32.mrb[0].mxu0
        %2561 = vmatprep.mubr.f32.mxu0 0.0
        %2562 = vmatmul.mubr.f32.gmra.mrb[0].mxu0 %v2395
        %v2563 = vpop.f32.mrb[0].mxu0
        %v2564 = vpop.f32.mrb[0].mxu0
        %2565 = vmatprep.mubr.f32.mxu0 0.0
        %2566 = vmatmul.mubr.f32.gmra.mrb[0].mxu0 %v2397
        %v2567 = vpop.f32.mrb[0].mxu0
        %v2568 = vadd.f32 %v2183, %v2567
        %v2569 = vpop.f32.mrb[0].mxu0
        %2570 = vmatprep.mubr.f32.mxu0 0.0
        %2571 = vmatmul.mubr.f32.gmra.mrb[0].mxu0 %v2399
        %v2572 = vpop.f32.mrb[0].mxu0
        %v2573 = vadd.f32 %v2188, %v2572
        %v2574 = vpop.f32.mrb[0].mxu0
        %2575 = vmatprep.mubr.f32.mxu0 0.0
        %2576 = vmatmul.mubr.f32.gmra.mrb[0].mxu0 %v2401
        %v2577 = vpop.f32.mrb[0].mxu0
        %v2578 = vpop.f32.mrb[0].mxu0
        %2579 = vmatprep.mubr.f32.mxu0 0.0
        %2580 = vmatmul.mubr.f32.gmra.mrb[0].mxu0 %v2403
        %v2581 = vpop.f32.mrb[0].mxu0
        %v2582 = vadd.f32 %v2197, %v2581
        %v2583 = vpop.f32.mrb[0].mxu0
        %2584 = vmatprep.mubr.f32.mxu0 0.0
        %2585 = vmatmul.mubr.f32.gmra.mrb[0].mxu0 %v2405
        %v2586 = vpop.f32.mrb[0].mxu0
        %v2587 = vadd.f32 %v2202, %v2586
        %v2588 = vpop.f32.mrb[0].mxu0
        %2589 = vmatprep.mubr.f32.mxu0 0.0
        %2590 = vmatmul.mubr.f32.gmra.mrb[0].mxu0 %v2407
        %v2591 = vpop.f32.mrb[0].mxu0
        %v2592 = vpop.f32.mrb[0].mxu0
        %2593 = vmatprep.mubr.f32.mxu0 0.0
        %2594 = vmatmul.mubr.f32.gmra.mrb[0].mxu0 %v2409
        %v2595 = vpop.f32.mrb[0].mxu0
        %v2596 = vadd.f32 %v2211, %v2595
        %v2597 = vpop.f32.mrb[0].mxu0
        %2598 = vmatprep.mubr.f32.mxu0 0.0
        %2599 = vmatmul.mubr.f32.gmra.mrb[0].mxu0 %v2411
        %v2600 = vpop.f32.mrb[0].mxu0
        %v2601 = vadd.f32 %v2216, %v2600
        %v2602 = vpop.f32.mrb[0].mxu0
        %2603 = vmatprep.mubr.f32.mxu0 0.0
        %2604 = vmatmul.mubr.f32.gmra.mrb[0].mxu0 %v2413
        %v2605 = vpop.f32.mrb[0].mxu0
        %v2606 = vpop.f32.mrb[0].mxu0
        %2607 = vmatprep.mubr.f32.mxu0 0.0
        %2608 = vmatmul.mubr.f32.gmra.mrb[0].mxu0 %v2415
        %v2609 = vpop.f32.mrb[0].mxu0
        %v2610 = vadd.f32 %v2225, %v2609
        %v2611 = vpop.f32.mrb[0].mxu0
        %2612 = vmatprep.mubr.f32.mxu0 0.0
        %2613 = vmatmul.mubr.f32.gmra.mrb[0].mxu0 %v2417
        %v2614 = vpop.f32.mrb[0].mxu0
        %v2615 = vadd.f32 %v2230, %v2614
        %v2616 = vpop.f32.mrb[0].mxu0
        %2617 = vmatprep.mubr.f32.mxu0 0.0
        %2618 = vmatmul.mubr.f32.gmra.mrb[0].mxu0 %v2419
        %v2619 = vpop.f32.mrb[0].mxu0
        %v2620 = vpop.f32.mrb[0].mxu0
        %2621 = vmatprep.mubr.f32.mxu0 0.0
        %2622 = vmatmul.mubr.f32.gmra.mrb[0].mxu0 %v2421
        %v2623 = vpop.f32.mrb[0].mxu0
        %v2624 = vadd.f32 %v2239, %v2623
        %v2625 = vpop.f32.mrb[0].mxu0
        %2626 = vmatprep.mubr.f32.mxu0 0.0
        %2627 = vmatmul.mubr.f32.gmra.mrb[0].mxu0 %v2423
        %v2628 = vpop.f32.mrb[0].mxu0
        %v2629 = vadd.f32 %v2244, %v2628
        %v2630 = vpop.f32.mrb[0].mxu0
        %2631 = vmatprep.mubr.f32.mxu0 0.0
        %2632 = vmatmul.mubr.f32.gmra.mrb[0].mxu0 %v2425
        %v2633 = vpop.f32.mrb[0].mxu0
        %v2634 = vpop.f32.mrb[0].mxu0
        %2635 = vmatprep.mubr.f32.mxu0 0.0
        %2636 = vmatmul.mubr.f32.gmra.mrb[0].mxu0 %v2427
        %v2637 = vpop.f32.mrb[0].mxu0
        %v2638 = vadd.f32 %v2253, %v2637
        %v2639 = vpop.f32.mrb[0].mxu0
        %2640 = vmatprep.mubr.f32.mxu0 0.0
        %2641 = vmatmul.mubr.f32.gmra.mrb[0].mxu0 %v2429
        %v2642 = vpop.f32.mrb[0].mxu0
        %v2643 = vadd.f32 %v2258, %v2642
        %v2644 = vpop.f32.mrb[0].mxu0
        %2645 = vmatprep.mubr.f32.mxu0 0.0
        %2646 = vmatmul.mubr.f32.gmra.mrb[0].mxu0 %v2431
        %v2647 = vpop.f32.mrb[0].mxu0
        %v2648 = vpop.f32.mrb[0].mxu0
        %2649 = vmatprep.mubr.f32.mxu0 0.0
        %2650 = vmatmul.mubr.f32.gmra.mrb[0].mxu0 %v2433
        %v2651 = vpop.f32.mrb[0].mxu0
        %v2652 = vadd.f32 %v2267, %v2651
        %v2653 = vpop.f32.mrb[0].mxu0
        %2654 = vmatprep.mubr.f32.mxu0 0.0
        %2655 = vmatmul.mubr.f32.gmra.mrb[0].mxu0 %v2435
        %v2656 = vpop.f32.mrb[0].mxu0
        %v2657 = vadd.f32 %v2272, %v2656
        %v2658 = vpop.f32.mrb[0].mxu0
        %2659 = vmatprep.mubr.f32.mxu0 0.0
        %2660 = vmatmul.mubr.f32.gmra.mrb[0].mxu0 %v2437
        %v2661 = vpop.f32.mrb[0].mxu0
        %v2662 = vpop.f32.mrb[0].mxu0
        %2663 = vmatprep.mubr.f32.mxu0 0.0
        %2664 = vmatmul.mubr.f32.gmra.mrb[0].mxu0 %v2439
        %v2665 = vpop.f32.mrb[0].mxu0
        %v2666 = vadd.f32 %v2281, %v2665
        %v2667 = vpop.f32.mrb[0].mxu0
        %2668 = vmatprep.mubr.f32.mxu0 0.0
        %2669 = vmatmul.mubr.f32.gmra.mrb[0].mxu0 %v2441
        %v2670 = vpop.f32.mrb[0].mxu0
        %v2671 = vadd.f32 %v2286, %v2670
        %v2672 = vpop.f32.mrb[0].mxu0
        %2673 = vmatprep.mubr.f32.mxu0 0.0
        %2674 = vmatmul.mubr.f32.gmra.mrb[0].mxu0 %v2443
        %v2675 = vpop.f32.mrb[0].mxu0
        %v2676 = vpop.f32.mrb[0].mxu0
        %2677 = vmatprep.mubr.f32.mxu0 0.0
        %2678 = vmatmul.mubr.f32.gmra.mrb[0].mxu0 %v2445
        %v2679 = vpop.f32.mrb[0].mxu0
        %v2680 = vadd.f32 %v2295, %v2679
        %v2681 = vpop.f32.mrb[0].mxu0
        %2682 = vmatprep.mubr.f32.mxu0 0.0
        %2683 = vmatmul.mubr.f32.gmra.mrb[0].mxu0 %v2447
        %v2684 = vpop.f32.mrb[0].mxu0
        %v2685 = vadd.f32 %v2300, %v2684
        %v2686 = vpop.f32.mrb[0].mxu0
        %2687 = vmatprep.mubr.f32.mxu0 0.0
        %2688 = vmatmul.mubr.f32.gmra.mrb[0].mxu0 %v2449
        %v2689 = vpop.f32.mrb[0].mxu0
        %v2690 = vpop.f32.mrb[0].mxu0
        %2691 = vmatprep.mubr.f32.mxu0 0.0
        %2692 = vmatmul.mubr.f32.gmra.mrb[0].mxu0 %v2451
        %v2693 = vpop.f32.mrb[0].mxu0
        %v2694 = vadd.f32 %v2309, %v2693
        %v2695 = vpop.f32.mrb[0].mxu0
        %2696 = vmatprep.mubr.f32.mxu0 0.0
        %2697 = vmatmul.mubr.f32.gmra.mrb[0].mxu0 %v2453
        %v2698 = vpop.f32.mrb[0].mxu0
        %v2699 = vadd.f32 %v2314, %v2698
        %v2700 = vpop.f32.mrb[0].mxu0
        %2701 = vmatprep.mubr.f32.mxu0 0.0
        %2702 = vmatmul.mubr.f32.gmra.mrb[0].mxu0 %v2455
        %v2703 = vpop.f32.mrb[0].mxu0
        %v2704 = vpop.f32.mrb[0].mxu0
        %2705 = vmatprep.mubr.f32.mxu0 0.0
        %2706 = vmatmul.mubr.f32.gmra.mrb[0].mxu0 %v2457
        %v2707 = vpop.f32.mrb[0].mxu0
        %v2708 = vadd.f32 %v2323, %v2707
        %v2709 = vpop.f32.mrb[0].mxu0
        %2710 = vmatprep.mubr.f32.mxu0 0.0
        %2711 = vmatmul.mubr.f32.gmra.mrb[0].mxu0 %v2459
        %v2712 = vpop.f32.mrb[0].mxu0
        %v2713 = vadd.f32 %v2328, %v2712
        %v2714 = vpop.f32.mrb[0].mxu0
        %2715 = vmatprep.mubr.f32.mxu0 0.0
        %2716 = vmatmul.mubr.f32.gmra.mrb[0].mxu0 %v2461
        %v2717 = vpop.f32.mrb[0].mxu0
        %v2718 = vpop.f32.mrb[0].mxu0
        %2719 = vmatprep.mubr.f32.mxu0 0.0
        %2720 = vmatmul.mubr.f32.gmra.mrb[0].mxu0 %v2463
        %v2721 = vpop.f32.mrb[0].mxu0
        %v2722 = vadd.f32 %v2337, %v2721
        %v2723 = vpop.f32.mrb[0].mxu0
        %2724 = vmatprep.mubr.f32.mxu0 0.0
        %2725 = vmatmul.mubr.f32.gmra.mrb[0].mxu0 %v2465
        %v2726 = vpop.f32.mrb[0].mxu0
        %v2727 = vadd.f32 %v2342, %v2726
        %v2728 = vpop.f32.mrb[0].mxu0
        %2729 = vmatprep.mubr.f32.mxu0 0.0
        %2730 = vmatmul.mubr.f32.gmra.mrb[0].mxu0 %v2467
        %v2731 = vpop.f32.mrb[0].mxu0
        %v2732 = vpop.f32.mrb[0].mxu0
        %2733 = vmatprep.mubr.f32.mxu0 0.0
        %2734 = vmatmul.mubr.f32.gmra.mrb[0].mxu0 %v2469
        %v2735 = vpop.f32.mrb[0].mxu0
        %v2736 = vadd.f32 %v2351, %v2735
        %v2737 = vpop.f32.mrb[0].mxu0
        %2738 = vmatprep.mubr.f32.mxu0 0.0
        %2739 = vmatmul.mubr.f32.gmra.mrb[0].mxu0 %v2471
        %v2740 = vpop.f32.mrb[0].mxu0
        %v2741 = vadd.f32 %v2356, %v2740
        %v2742 = vpop.f32.mrb[0].mxu0
        %2743 = vmatprep.mubr.f32.mxu0 0.0
        %2744 = vmatmul.mubr.f32.gmra.mrb[0].mxu0 %v2473
        %v2745 = vpop.f32.mrb[0].mxu0
        %v2746 = vpop.f32.mrb[0].mxu0
        %2747 = vmatprep.mubr.f32.mxu0 0.0
        %2748 = vmatmul.mubr.f32.gmra.mrb[0].mxu0 %v2475
        %v2749 = vpop.f32.mrb[0].mxu0
        %v2750 = vadd.f32 %v2365, %v2749
        %v2751 = vpop.f32.mrb[0].mxu0
        %2752 = vmatprep.mubr.f32.mxu0 0.0
        %2753 = vmatmul.mubr.f32.gmra.mrb[0].mxu0 %v2477
        %v2754 = vpop.f32.mrb[0].mxu0
        %v2755 = vadd.f32 %v2370, %v2754
        %v2756 = vpop.f32.mrb[0].mxu0
        %2757 = vmatprep.mubr.f32.mxu0 0.0
        %2758 = vmatmul.mubr.f32.gmra.mrb[0].mxu0 %v2479
        %v2759 = vpop.f32.mrb[0].mxu0
        %v2760 = vpop.f32.mrb[0].mxu0
        %2761 = vmatprep.mubr.f32.mxu0 0.0
        %2762 = vmatmul.mubr.f32.gmra.mrb[0].mxu0 %v2481
        %v2763 = vpop.f32.mrb[0].mxu0
        %v2764 = vadd.f32 %v2379, %v2763
        %v2765 = vpop.f32.mrb[0].mxu0
        %2766 = vmatprep.mubr.f32.mxu0 0.0
        %2767 = vmatmul.mubr.f32.gmra.mrb[0].mxu0 %v2483
        %v2768 = vpop.f32.mrb[0].mxu0
        %v2769 = vadd.f32 %v2384, %v2768
        %v2770 = vpop.f32.mrb[0].mxu0
        %2771 = vmatprep.mubr.f32.mxu0 0.0
        %2772 = vmatmul.mubr.f32.gmra.mrb[0].mxu0 %v2485
        %v2773 = vpop.f32.mrb[0].mxu0
        %v2774 = vpop.f32.mrb[0].mxu0
        %2775 = vdwg.mxu0
        %s2776 = scalar_lea.vmem %s5, 128
        %v2777 = vld [vmem:[%s2776] sm:$0xff]
        %v2778 = vld [vmem:[%s2776 + $0x8] sm:$0xff]
        %v2779 = vld [vmem:[%s2776 + $0x10] sm:$0xff]
        %v2780 = vld [vmem:[%s2776 + $0x18] sm:$0xff]
        %v2781 = vld [vmem:[%s2776 + $0x20] sm:$0xff]
        %v2782 = vld [vmem:[%s2776 + $0x28] sm:$0xff]
        %v2783 = vld [vmem:[%s2776 + $0x30] sm:$0xff]
        %v2784 = vld [vmem:[%s2776 + $0x38] sm:$0xff]
        %vm2785 = vcmask 1045504
        %v2786 = vrot.slane %v1787, 2
        %v2787 = vrot.slane %v1788, 2
        %v2788 = vsel %vm2785, %v2786, %v2787
        %v2789 = vrot.slane %v1789, 2
        %v2790 = vsel %vm2785, %v2787, %v2789
        %v2791 = vrot.slane %v1790, 2
        %v2792 = vsel %vm2785, %v2789, %v2791
        %v2793 = vrot.slane %v1791, 2
        %v2794 = vsel %vm2785, %v2791, %v2793
        %v2795 = vrot.slane %v1792, 2
        %v2796 = vsel %vm2785, %v2793, %v2795
        %v2797 = vrot.slane %v1793, 2
        %v2798 = vsel %vm2785, %v2795, %v2797
        %v2799 = vrot.slane %v1794, 2
        %v2800 = vsel %vm2785, %v2797, %v2799
        %v2801 = vrot.slane %v1795, 2
        %v2802 = vsel %vm2785, %v2799, %v2801
        %v2803 = vrot.slane %v1796, 2
        %v2804 = vsel %vm2785, %v2801, %v2803
        %v2805 = vrot.slane %v1797, 2
        %v2806 = vsel %vm2785, %v2803, %v2805
        %v2807 = vrot.slane %v1798, 2
        %v2808 = vsel %vm2785, %v2805, %v2807
        %v2809 = vrot.slane %v1799, 2
        %v2810 = vsel %vm2785, %v2807, %v2809
        %v2811 = vrot.slane %v1800, 2
        %v2812 = vsel %vm2785, %v2809, %v2811
        %v2813 = vrot.slane %v1801, 2
        %v2814 = vsel %vm2785, %v2811, %v2813
        %v2815 = vrot.slane %v1802, 2
        %v2816 = vsel %vm2785, %v2813, %v2815
        %v2817 = vrot.slane %v1803, 2
        %v2818 = vsel %vm2785, %v2815, %v2817
        %v2819 = vrot.slane %v1804, 2
        %v2820 = vsel %vm2785, %v2817, %v2819
        %v2821 = vrot.slane %v1805, 2
        %v2822 = vsel %vm2785, %v2819, %v2821
        %v2823 = vrot.slane %v1806, 2
        %v2824 = vsel %vm2785, %v2821, %v2823
        %v2825 = vrot.slane %v1807, 2
        %v2826 = vsel %vm2785, %v2823, %v2825
        %v2827 = vrot.slane %v1808, 2
        %v2828 = vsel %vm2785, %v2825, %v2827
        %v2829 = vrot.slane %v1809, 2
        %v2830 = vsel %vm2785, %v2827, %v2829
        %v2831 = vrot.slane %v1810, 2
        %v2832 = vsel %vm2785, %v2829, %v2831
        %v2833 = vrot.slane %v1811, 2
        %v2834 = vsel %vm2785, %v2831, %v2833
        %v2835 = vrot.slane %v1812, 2
        %v2836 = vsel %vm2785, %v2833, %v2835
        %v2837 = vrot.slane %v1813, 2
        %v2838 = vsel %vm2785, %v2835, %v2837
        %v2839 = vrot.slane %v1814, 2
        %v2840 = vsel %vm2785, %v2837, %v2839
        %v2841 = vrot.slane %v1815, 2
        %v2842 = vsel %vm2785, %v2839, %v2841
        %v2843 = vrot.slane %v1816, 2
        %v2844 = vsel %vm2785, %v2841, %v2843
        %v2845 = vrot.slane %v1817, 2
        %v2846 = vsel %vm2785, %v2843, %v2845
        %v2847 = vrot.slane %v1818, 2
        %v2848 = vsel %vm2785, %v2845, %v2847
        %v2849 = vrot.slane %v1819, 2
        %v2850 = vsel %vm2785, %v2847, %v2849
        %v2851 = vrot.slane %v1820, 2
        %v2852 = vsel %vm2785, %v2849, %v2851
        %v2853 = vrot.slane %v1821, 2
        %v2854 = vsel %vm2785, %v2851, %v2853
        %v2855 = vrot.slane %v1822, 2
        %v2856 = vsel %vm2785, %v2853, %v2855
        %v2857 = vrot.slane %v1823, 2
        %v2858 = vsel %vm2785, %v2855, %v2857
        %v2859 = vrot.slane %v1824, 2
        %v2860 = vsel %vm2785, %v2857, %v2859
        %v2861 = vrot.slane %v1825, 2
        %v2862 = vsel %vm2785, %v2859, %v2861
        %v2863 = vrot.slane %v1826, 2
        %v2864 = vsel %vm2785, %v2861, %v2863
        %v2865 = vrot.slane %v1827, 2
        %v2866 = vsel %vm2785, %v2863, %v2865
        %v2867 = vrot.slane %v1828, 2
        %v2868 = vsel %vm2785, %v2865, %v2867
        %v2869 = vrot.slane %v1829, 2
        %v2870 = vsel %vm2785, %v2867, %v2869
        %v2871 = vrot.slane %v1830, 2
        %v2872 = vsel %vm2785, %v2869, %v2871
        %v2873 = vrot.slane %v1831, 2
        %v2874 = vsel %vm2785, %v2871, %v2873
        %v2875 = vrot.slane %v1832, 2
        %v2876 = vsel %vm2785, %v2873, %v2875
        %v2877 = vrot.slane %v1833, 2
        %v2878 = vsel %vm2785, %v2875, %v2877
        %v2879 = vrot.slane %v1834, 2
        %v2880 = vsel %vm2785, %v2877, %v2879
        %v2881 = vrot.slane %v1835, 2
        %v2882 = vsel %vm2785, %v2879, %v2881
        %v2883 = vsel %vm500, %v2788, 0
        %v2885 = vsel %vm500, %v2790, 0
        %v2887 = vsel %vm500, %v2792, 0
        %v2889 = vsel %vm500, %v2794, 0
        %v2891 = vsel %vm500, %v2796, 0
        %v2893 = vsel %vm500, %v2798, 0
        %v2895 = vsel %vm500, %v2800, 0
        %v2897 = vsel %vm500, %v2802, 0
        %v2899 = vsel %vm500, %v2804, 0
        %v2901 = vsel %vm500, %v2806, 0
        %v2903 = vsel %vm500, %v2808, 0
        %v2905 = vsel %vm500, %v2810, 0
        %v2907 = vsel %vm500, %v2812, 0
        %v2909 = vsel %vm500, %v2814, 0
        %v2911 = vsel %vm500, %v2816, 0
        %v2913 = vsel %vm500, %v2818, 0
        %v2915 = vsel %vm500, %v2820, 0
        %v2917 = vsel %vm500, %v2822, 0
        %v2919 = vsel %vm500, %v2824, 0
        %v2921 = vsel %vm500, %v2826, 0
        %v2923 = vsel %vm500, %v2828, 0
        %v2925 = vsel %vm500, %v2830, 0
        %v2927 = vsel %vm500, %v2832, 0
        %v2929 = vsel %vm500, %v2834, 0
        %v2931 = vsel %vm500, %v2836, 0
        %v2933 = vsel %vm500, %v2838, 0
        %v2935 = vsel %vm500, %v2840, 0
        %v2937 = vsel %vm500, %v2842, 0
        %v2939 = vsel %vm500, %v2844, 0
        %v2941 = vsel %vm500, %v2846, 0
        %v2943 = vsel %vm500, %v2848, 0
        %v2945 = vsel %vm500, %v2850, 0
        %v2947 = vsel %vm500, %v2852, 0
        %v2949 = vsel %vm500, %v2854, 0
        %v2951 = vsel %vm500, %v2856, 0
        %v2953 = vsel %vm500, %v2858, 0
        %v2955 = vsel %vm500, %v2860, 0
        %v2957 = vsel %vm500, %v2862, 0
        %v2959 = vsel %vm500, %v2864, 0
        %v2961 = vsel %vm500, %v2866, 0
        %v2963 = vsel %vm500, %v2868, 0
        %v2965 = vsel %vm500, %v2870, 0
        %v2967 = vsel %vm500, %v2872, 0
        %v2969 = vsel %vm500, %v2874, 0
        %v2971 = vsel %vm500, %v2876, 0
        %v2973 = vsel %vm500, %v2878, 0
        %v2975 = vsel %vm500, %v2880, 0
        %v2977 = vsel %vm500, %v2882, 0
        %2979 = vmatprep.subr.mxu0 0.0
        %2980 = vmatpush1.msra.mxu0 %v2777
        %2981 = vmatprep.subr.mxu0 0.0
        %2982 = vmatpush1.msra.mxu0 %v2778
        %2983 = vmatprep.subr.mxu0 0.0
        %2984 = vmatpush1.msra.mxu0 %v2779
        %2985 = vmatprep.subr.mxu0 0.0
        %2986 = vmatpush1.msra.mxu0 %v2780
        %2987 = vmatprep.subr.mxu0 0.0
        %2988 = vmatpush1.msra.mxu0 %v2781
        %2989 = vmatprep.subr.mxu0 0.0
        %2990 = vmatpush1.msra.mxu0 %v2782
        %2991 = vmatprep.subr.mxu0 0.0
        %2992 = vmatpush1.msra.mxu0 %v2783
        %2993 = vmatprep.subr.mxu0 0.0
        %2994 = vmatpush1.msra.mxu0 %v2784
        %2995 = vmatprep.subr.mxu0 0.0
        %2996 = vmatpush1.msra.mxu0 0.0
        %2997 = vmatprep.subr.mxu0 0.0
        %2998 = vmatpush1.msra.mxu0 0.0
        %2999 = vmatprep.subr.mxu0 0.0
        %3000 = vmatpush1.msra.mxu0 0.0
        %3001 = vmatprep.subr.mxu0 0.0
        %3002 = vmatpush1.msra.mxu0 0.0
        %3003 = vmatprep.subr.mxu0 0.0
        %3004 = vmatpush1.msra.mxu0 0.0
        %3005 = vmatprep.subr.mxu0 0.0
        %3006 = vmatpush1.msra.mxu0 0.0
        %3007 = vmatprep.subr.mxu0 0.0
        %3008 = vmatpush1.msra.mxu0 0.0
        %3009 = vmatprep.subr.mxu0 0.0
        %3010 = vmatpush1.msra.mxu0 0.0
        %3011 = vmatprep.subr.mxu0 0.0
        %3012 = vmatpush1.msra.mxu0 0.0
        %3013 = vmatprep.subr.mxu0 0.0
        %3014 = vmatpush1.msra.mxu0 0.0
        %3015 = vmatprep.subr.mxu0 0.0
        %3016 = vmatpush1.msra.mxu0 0.0
        %3017 = vmatprep.subr.mxu0 0.0
        %3018 = vmatpush1.msra.mxu0 0.0
        %3019 = vmatprep.subr.mxu0 0.0
        %3020 = vmatpush1.msra.mxu0 0.0
        %3021 = vmatprep.subr.mxu0 0.0
        %3022 = vmatpush1.msra.mxu0 0.0
        %3023 = vmatprep.subr.mxu0 0.0
        %3024 = vmatpush1.msra.mxu0 0.0
        %3025 = vmatprep.subr.mxu0 0.0
        %3026 = vmatpush1.msra.mxu0 0.0
        %3027 = vmatprep.subr.mxu0 0.0
        %3028 = vmatpush1.msra.mxu0 0.0
        %3029 = vmatprep.subr.mxu0 0.0
        %3030 = vmatpush1.msra.mxu0 0.0
        %3031 = vmatprep.subr.mxu0 0.0
        %3032 = vmatpush1.msra.mxu0 0.0
        %3033 = vmatprep.subr.mxu0 0.0
        %3034 = vmatpush1.msra.mxu0 0.0
        %3035 = vmatprep.subr.mxu0 0.0
        %3036 = vmatpush1.msra.mxu0 0.0
        %3037 = vmatprep.subr.mxu0 0.0
        %3038 = vmatpush1.msra.mxu0 0.0
        %3039 = vmatprep.subr.mxu0 0.0
        %3040 = vmatpush1.msra.mxu0 0.0
        %3041 = vmatprep.subr.mxu0 0.0
        %3042 = vmatpush1.msra.mxu0 0.0
        %3043 = vmatprep.mubr.f32.mxu0 0.0
        %3044 = vmatmul.mubr.f32.gmra.mrb[0].mxu0 %v2883
        %v3045 = vpop.f32.mrb[0].mxu0
        %v3046 = vadd.f32 0.0, %v3045
        %v3047 = vpop.f32.mrb[0].mxu0
        %3048 = vmatprep.mubr.f32.mxu0 0.0
        %3049 = vmatmul.mubr.f32.gmra.mrb[0].mxu0 %v2885
        %v3050 = vpop.f32.mrb[0].mxu0
        %v3051 = vadd.f32 0.0, %v3050
        %v3052 = vpop.f32.mrb[0].mxu0
        %3053 = vmatprep.mubr.f32.mxu0 0.0
        %3054 = vmatmul.mubr.f32.gmra.mrb[0].mxu0 %v2887
        %v3055 = vpop.f32.mrb[0].mxu0
        %v3056 = vpop.f32.mrb[0].mxu0
        %3057 = vmatprep.mubr.f32.mxu0 0.0
        %3058 = vmatmul.mubr.f32.gmra.mrb[0].mxu0 %v2889
        %v3059 = vpop.f32.mrb[0].mxu0
        %v3060 = vadd.f32 0.0, %v3059
        %v3061 = vpop.f32.mrb[0].mxu0
        %3062 = vmatprep.mubr.f32.mxu0 0.0
        %3063 = vmatmul.mubr.f32.gmra.mrb[0].mxu0 %v2891
        %v3064 = vpop.f32.mrb[0].mxu0
        %v3065 = vadd.f32 0.0, %v3064
        %v3066 = vpop.f32.mrb[0].mxu0
        %3067 = vmatprep.mubr.f32.mxu0 0.0
        %3068 = vmatmul.mubr.f32.gmra.mrb[0].mxu0 %v2893
        %v3069 = vpop.f32.mrb[0].mxu0
        %v3070 = vpop.f32.mrb[0].mxu0
        %3071 = vmatprep.mubr.f32.mxu0 0.0
        %3072 = vmatmul.mubr.f32.gmra.mrb[0].mxu0 %v2895
        %v3073 = vpop.f32.mrb[0].mxu0
        %v3074 = vadd.f32 0.0, %v3073
        %v3075 = vpop.f32.mrb[0].mxu0
        %3076 = vmatprep.mubr.f32.mxu0 0.0
        %3077 = vmatmul.mubr.f32.gmra.mrb[0].mxu0 %v2897
        %v3078 = vpop.f32.mrb[0].mxu0
        %v3079 = vadd.f32 0.0, %v3078
        %v3080 = vpop.f32.mrb[0].mxu0
        %3081 = vmatprep.mubr.f32.mxu0 0.0
        %3082 = vmatmul.mubr.f32.gmra.mrb[0].mxu0 %v2899
        %v3083 = vpop.f32.mrb[0].mxu0
        %v3084 = vpop.f32.mrb[0].mxu0
        %3085 = vmatprep.mubr.f32.mxu0 0.0
        %3086 = vmatmul.mubr.f32.gmra.mrb[0].mxu0 %v2901
        %v3087 = vpop.f32.mrb[0].mxu0
        %v3088 = vadd.f32 0.0, %v3087
        %v3089 = vpop.f32.mrb[0].mxu0
        %3090 = vmatprep.mubr.f32.mxu0 0.0
        %3091 = vmatmul.mubr.f32.gmra.mrb[0].mxu0 %v2903
        %v3092 = vpop.f32.mrb[0].mxu0
        %v3093 = vadd.f32 0.0, %v3092
        %v3094 = vpop.f32.mrb[0].mxu0
        %3095 = vmatprep.mubr.f32.mxu0 0.0
        %3096 = vmatmul.mubr.f32.gmra.mrb[0].mxu0 %v2905
        %v3097 = vpop.f32.mrb[0].mxu0
        %v3098 = vpop.f32.mrb[0].mxu0
        %3099 = vmatprep.mubr.f32.mxu0 0.0
        %3100 = vmatmul.mubr.f32.gmra.mrb[0].mxu0 %v2907
        %v3101 = vpop.f32.mrb[0].mxu0
        %v3102 = vadd.f32 0.0, %v3101
        %v3103 = vpop.f32.mrb[0].mxu0
        %3104 = vmatprep.mubr.f32.mxu0 0.0
        %3105 = vmatmul.mubr.f32.gmra.mrb[0].mxu0 %v2909
        %v3106 = vpop.f32.mrb[0].mxu0
        %v3107 = vadd.f32 0.0, %v3106
        %v3108 = vpop.f32.mrb[0].mxu0
        %3109 = vmatprep.mubr.f32.mxu0 0.0
        %3110 = vmatmul.mubr.f32.gmra.mrb[0].mxu0 %v2911
        %v3111 = vpop.f32.mrb[0].mxu0
        %v3112 = vpop.f32.mrb[0].mxu0
        %3113 = vmatprep.mubr.f32.mxu0 0.0
        %3114 = vmatmul.mubr.f32.gmra.mrb[0].mxu0 %v2913
        %v3115 = vpop.f32.mrb[0].mxu0
        %v3116 = vadd.f32 0.0, %v3115
        %v3117 = vpop.f32.mrb[0].mxu0
        %3118 = vmatprep.mubr.f32.mxu0 0.0
        %3119 = vmatmul.mubr.f32.gmra.mrb[0].mxu0 %v2915
        %v3120 = vpop.f32.mrb[0].mxu0
        %v3121 = vadd.f32 0.0, %v3120
        %v3122 = vpop.f32.mrb[0].mxu0
        %3123 = vmatprep.mubr.f32.mxu0 0.0
        %3124 = vmatmul.mubr.f32.gmra.mrb[0].mxu0 %v2917
        %v3125 = vpop.f32.mrb[0].mxu0
        %v3126 = vpop.f32.mrb[0].mxu0
        %3127 = vmatprep.mubr.f32.mxu0 0.0
        %3128 = vmatmul.mubr.f32.gmra.mrb[0].mxu0 %v2919
        %v3129 = vpop.f32.mrb[0].mxu0
        %v3130 = vadd.f32 0.0, %v3129
        %v3131 = vpop.f32.mrb[0].mxu0
        %3132 = vmatprep.mubr.f32.mxu0 0.0
        %3133 = vmatmul.mubr.f32.gmra.mrb[0].mxu0 %v2921
        %v3134 = vpop.f32.mrb[0].mxu0
        %v3135 = vadd.f32 0.0, %v3134
        %v3136 = vpop.f32.mrb[0].mxu0
        %3137 = vmatprep.mubr.f32.mxu0 0.0
        %3138 = vmatmul.mubr.f32.gmra.mrb[0].mxu0 %v2923
        %v3139 = vpop.f32.mrb[0].mxu0
        %v3140 = vpop.f32.mrb[0].mxu0
        %3141 = vmatprep.mubr.f32.mxu0 0.0
        %3142 = vmatmul.mubr.f32.gmra.mrb[0].mxu0 %v2925
        %v3143 = vpop.f32.mrb[0].mxu0
        %v3144 = vadd.f32 0.0, %v3143
        %v3145 = vpop.f32.mrb[0].mxu0
        %3146 = vmatprep.mubr.f32.mxu0 0.0
        %3147 = vmatmul.mubr.f32.gmra.mrb[0].mxu0 %v2927
        %v3148 = vpop.f32.mrb[0].mxu0
        %v3149 = vadd.f32 0.0, %v3148
        %v3150 = vpop.f32.mrb[0].mxu0
        %3151 = vmatprep.mubr.f32.mxu0 0.0
        %3152 = vmatmul.mubr.f32.gmra.mrb[0].mxu0 %v2929
        %v3153 = vpop.f32.mrb[0].mxu0
        %v3154 = vpop.f32.mrb[0].mxu0
        %3155 = vmatprep.mubr.f32.mxu0 0.0
        %3156 = vmatmul.mubr.f32.gmra.mrb[0].mxu0 %v2931
        %v3157 = vpop.f32.mrb[0].mxu0
        %v3158 = vadd.f32 0.0, %v3157
        %v3159 = vpop.f32.mrb[0].mxu0
        %3160 = vmatprep.mubr.f32.mxu0 0.0
        %3161 = vmatmul.mubr.f32.gmra.mrb[0].mxu0 %v2933
        %v3162 = vpop.f32.mrb[0].mxu0
        %v3163 = vadd.f32 0.0, %v3162
        %v3164 = vpop.f32.mrb[0].mxu0
        %3165 = vmatprep.mubr.f32.mxu0 0.0
        %3166 = vmatmul.mubr.f32.gmra.mrb[0].mxu0 %v2935
        %v3167 = vpop.f32.mrb[0].mxu0
        %v3168 = vpop.f32.mrb[0].mxu0
        %3169 = vmatprep.mubr.f32.mxu0 0.0
        %3170 = vmatmul.mubr.f32.gmra.mrb[0].mxu0 %v2937
        %v3171 = vpop.f32.mrb[0].mxu0
        %v3172 = vadd.f32 0.0, %v3171
        %v3173 = vpop.f32.mrb[0].mxu0
        %3174 = vmatprep.mubr.f32.mxu0 0.0
        %3175 = vmatmul.mubr.f32.gmra.mrb[0].mxu0 %v2939
        %v3176 = vpop.f32.mrb[0].mxu0
        %v3177 = vadd.f32 0.0, %v3176
        %v3178 = vpop.f32.mrb[0].mxu0
        %3179 = vmatprep.mubr.f32.mxu0 0.0
        %3180 = vmatmul.mubr.f32.gmra.mrb[0].mxu0 %v2941
        %v3181 = vpop.f32.mrb[0].mxu0
        %v3182 = vpop.f32.mrb[0].mxu0
        %3183 = vmatprep.mubr.f32.mxu0 0.0
        %3184 = vmatmul.mubr.f32.gmra.mrb[0].mxu0 %v2943
        %v3185 = vpop.f32.mrb[0].mxu0
        %v3186 = vadd.f32 0.0, %v3185
        %v3187 = vpop.f32.mrb[0].mxu0
        %3188 = vmatprep.mubr.f32.mxu0 0.0
        %3189 = vmatmul.mubr.f32.gmra.mrb[0].mxu0 %v2945
        %v3190 = vpop.f32.mrb[0].mxu0
        %v3191 = vadd.f32 0.0, %v3190
        %v3192 = vpop.f32.mrb[0].mxu0
        %3193 = vmatprep.mubr.f32.mxu0 0.0
        %3194 = vmatmul.mubr.f32.gmra.mrb[0].mxu0 %v2947
        %v3195 = vpop.f32.mrb[0].mxu0
        %v3196 = vpop.f32.mrb[0].mxu0
        %3197 = vmatprep.mubr.f32.mxu0 0.0
        %3198 = vmatmul.mubr.f32.gmra.mrb[0].mxu0 %v2949
        %v3199 = vpop.f32.mrb[0].mxu0
        %v3200 = vadd.f32 0.0, %v3199
        %v3201 = vpop.f32.mrb[0].mxu0
        %3202 = vmatprep.mubr.f32.mxu0 0.0
        %3203 = vmatmul.mubr.f32.gmra.mrb[0].mxu0 %v2951
        %v3204 = vpop.f32.mrb[0].mxu0
        %v3205 = vadd.f32 0.0, %v3204
        %v3206 = vpop.f32.mrb[0].mxu0
        %3207 = vmatprep.mubr.f32.mxu0 0.0
        %3208 = vmatmul.mubr.f32.gmra.mrb[0].mxu0 %v2953
        %v3209 = vpop.f32.mrb[0].mxu0
        %v3210 = vpop.f32.mrb[0].mxu0
        %3211 = vmatprep.mubr.f32.mxu0 0.0
        %3212 = vmatmul.mubr.f32.gmra.mrb[0].mxu0 %v2955
        %v3213 = vpop.f32.mrb[0].mxu0
        %v3214 = vadd.f32 0.0, %v3213
        %v3215 = vpop.f32.mrb[0].mxu0
        %3216 = vmatprep.mubr.f32.mxu0 0.0
        %3217 = vmatmul.mubr.f32.gmra.mrb[0].mxu0 %v2957
        %v3218 = vpop.f32.mrb[0].mxu0
        %v3219 = vadd.f32 0.0, %v3218
        %v3220 = vpop.f32.mrb[0].mxu0
        %3221 = vmatprep.mubr.f32.mxu0 0.0
        %3222 = vmatmul.mubr.f32.gmra.mrb[0].mxu0 %v2959
        %v3223 = vpop.f32.mrb[0].mxu0
        %v3224 = vpop.f32.mrb[0].mxu0
        %3225 = vmatprep.mubr.f32.mxu0 0.0
        %3226 = vmatmul.mubr.f32.gmra.mrb[0].mxu0 %v2961
        %v3227 = vpop.f32.mrb[0].mxu0
        %v3228 = vadd.f32 0.0, %v3227
        %v3229 = vpop.f32.mrb[0].mxu0
        %3230 = vmatprep.mubr.f32.mxu0 0.0
        %3231 = vmatmul.mubr.f32.gmra.mrb[0].mxu0 %v2963
        %v3232 = vpop.f32.mrb[0].mxu0
        %v3233 = vadd.f32 0.0, %v3232
        %v3234 = vpop.f32.mrb[0].mxu0
        %3235 = vmatprep.mubr.f32.mxu0 0.0
        %3236 = vmatmul.mubr.f32.gmra.mrb[0].mxu0 %v2965
        %v3237 = vpop.f32.mrb[0].mxu0
        %v3238 = vpop.f32.mrb[0].mxu0
        %3239 = vmatprep.mubr.f32.mxu0 0.0
        %3240 = vmatmul.mubr.f32.gmra.mrb[0].mxu0 %v2967
        %v3241 = vpop.f32.mrb[0].mxu0
        %v3242 = vadd.f32 0.0, %v3241
        %v3243 = vpop.f32.mrb[0].mxu0
        %3244 = vmatprep.mubr.f32.mxu0 0.0
        %3245 = vmatmul.mubr.f32.gmra.mrb[0].mxu0 %v2969
        %v3246 = vpop.f32.mrb[0].mxu0
        %v3247 = vadd.f32 0.0, %v3246
        %v3248 = vpop.f32.mrb[0].mxu0
        %3249 = vmatprep.mubr.f32.mxu0 0.0
        %3250 = vmatmul.mubr.f32.gmra.mrb[0].mxu0 %v2971
        %v3251 = vpop.f32.mrb[0].mxu0
        %v3252 = vpop.f32.mrb[0].mxu0
        %3253 = vmatprep.mubr.f32.mxu0 0.0
        %3254 = vmatmul.mubr.f32.gmra.mrb[0].mxu0 %v2973
        %v3255 = vpop.f32.mrb[0].mxu0
        %v3256 = vadd.f32 0.0, %v3255
        %v3257 = vpop.f32.mrb[0].mxu0
        %3258 = vmatprep.mubr.f32.mxu0 0.0
        %3259 = vmatmul.mubr.f32.gmra.mrb[0].mxu0 %v2975
        %v3260 = vpop.f32.mrb[0].mxu0
        %v3261 = vadd.f32 0.0, %v3260
        %v3262 = vpop.f32.mrb[0].mxu0
        %3263 = vmatprep.mubr.f32.mxu0 0.0
        %3264 = vmatmul.mubr.f32.gmra.mrb[0].mxu0 %v2977
        %v3265 = vpop.f32.mrb[0].mxu0
        %v3266 = vpop.f32.mrb[0].mxu0
        %3267 = vdwg.mxu0
        %v3268 = vadd.f32 %v2554, %v3046
        %v3269 = vadd.f32 %v2559, %v3051
        %v3270 = vadd.f32 %v2568, %v3060
        %v3271 = vadd.f32 %v2573, %v3065
        %v3272 = vadd.f32 %v2582, %v3074
        %v3273 = vadd.f32 %v2587, %v3079
        %v3274 = vadd.f32 %v2596, %v3088
        %v3275 = vadd.f32 %v2601, %v3093
        %v3276 = vadd.f32 %v2610, %v3102
        %v3277 = vadd.f32 %v2615, %v3107
        %v3278 = vadd.f32 %v2624, %v3116
        %v3279 = vadd.f32 %v2629, %v3121
        %v3280 = vadd.f32 %v2638, %v3130
        %v3281 = vadd.f32 %v2643, %v3135
        %v3282 = vadd.f32 %v2652, %v3144
        %v3283 = vadd.f32 %v2657, %v3149
        %v3284 = vadd.f32 %v2666, %v3158
        %v3285 = vadd.f32 %v2671, %v3163
        %v3286 = vadd.f32 %v2680, %v3172
        %v3287 = vadd.f32 %v2685, %v3177
        %v3288 = vadd.f32 %v2694, %v3186
        %v3289 = vadd.f32 %v2699, %v3191
        %v3290 = vadd.f32 %v2708, %v3200
        %v3291 = vadd.f32 %v2713, %v3205
        %v3292 = vadd.f32 %v2722, %v3214
        %v3293 = vadd.f32 %v2727, %v3219
        %v3294 = vadd.f32 %v2736, %v3228
        %v3295 = vadd.f32 %v2741, %v3233
        %v3296 = vadd.f32 %v2750, %v3242
        %v3297 = vadd.f32 %v2755, %v3247
        %v3298 = vadd.f32 %v2764, %v3256
        %v3299 = vadd.f32 %v2769, %v3261
        %s3300 = scalar_lea.vmem %s5, 192
        %v3301 = vld [vmem:[%s3300] sm:$0xff]
        %v3302 = vld [vmem:[%s3300 + $0x8] sm:$0xff]
        %v3303 = vld [vmem:[%s3300 + $0x10] sm:$0xff]
        %v3304 = vld [vmem:[%s3300 + $0x18] sm:$0xff]
        %v3305 = vld [vmem:[%s3300 + $0x20] sm:$0xff]
        %v3306 = vld [vmem:[%s3300 + $0x28] sm:$0xff]
        %v3307 = vld [vmem:[%s3300 + $0x30] sm:$0xff]
        %v3308 = vld [vmem:[%s3300 + $0x38] sm:$0xff]
        %v3309 = vsel %vm500, %v1835, 0
        %v3312 = vsel %vm500, %v1836, 0
        %v3315 = vsel %vm500, %v1837, 0
        %3317 = vmatprep.subr.mxu0 0.0
        %3318 = vmatpush1.msra.mxu0 %v3301
        %3319 = vmatprep.subr.mxu0 0.0
        %3320 = vmatpush1.msra.mxu0 %v3302
        %3321 = vmatprep.subr.mxu0 0.0
        %3322 = vmatpush1.msra.mxu0 %v3303
        %3323 = vmatprep.subr.mxu0 0.0
        %3324 = vmatpush1.msra.mxu0 %v3304
        %3325 = vmatprep.subr.mxu0 0.0
        %3326 = vmatpush1.msra.mxu0 %v3305
        %3327 = vmatprep.subr.mxu0 0.0
        %3328 = vmatpush1.msra.mxu0 %v3306
        %3329 = vmatprep.subr.mxu0 0.0
        %3330 = vmatpush1.msra.mxu0 %v3307
        %3331 = vmatprep.subr.mxu0 0.0
        %3332 = vmatpush1.msra.mxu0 %v3308
        %3333 = vmatprep.subr.mxu0 0.0
        %3334 = vmatpush1.msra.mxu0 0.0
        %3335 = vmatprep.subr.mxu0 0.0
        %3336 = vmatpush1.msra.mxu0 0.0
        %3337 = vmatprep.subr.mxu0 0.0
        %3338 = vmatpush1.msra.mxu0 0.0
        %3339 = vmatprep.subr.mxu0 0.0
        %3340 = vmatpush1.msra.mxu0 0.0
        %3341 = vmatprep.subr.mxu0 0.0
        %3342 = vmatpush1.msra.mxu0 0.0
        %3343 = vmatprep.subr.mxu0 0.0
        %3344 = vmatpush1.msra.mxu0 0.0
        %3345 = vmatprep.subr.mxu0 0.0
        %3346 = vmatpush1.msra.mxu0 0.0
        %3347 = vmatprep.subr.mxu0 0.0
        %3348 = vmatpush1.msra.mxu0 0.0
        %3349 = vmatprep.subr.mxu0 0.0
        %3350 = vmatpush1.msra.mxu0 0.0
        %3351 = vmatprep.subr.mxu0 0.0
        %3352 = vmatpush1.msra.mxu0 0.0
        %3353 = vmatprep.subr.mxu0 0.0
        %3354 = vmatpush1.msra.mxu0 0.0
        %3355 = vmatprep.subr.mxu0 0.0
        %3356 = vmatpush1.msra.mxu0 0.0
        %3357 = vmatprep.subr.mxu0 0.0
        %3358 = vmatpush1.msra.mxu0 0.0
        %3359 = vmatprep.subr.mxu0 0.0
        %3360 = vmatpush1.msra.mxu0 0.0
        %3361 = vmatprep.subr.mxu0 0.0
        %3362 = vmatpush1.msra.mxu0 0.0
        %3363 = vmatprep.subr.mxu0 0.0
        %3364 = vmatpush1.msra.mxu0 0.0
        %3365 = vmatprep.subr.mxu0 0.0
        %3366 = vmatpush1.msra.mxu0 0.0
        %3367 = vmatprep.subr.mxu0 0.0
        %3368 = vmatpush1.msra.mxu0 0.0
        %3369 = vmatprep.subr.mxu0 0.0
        %3370 = vmatpush1.msra.mxu0 0.0
        %3371 = vmatprep.subr.mxu0 0.0
        %3372 = vmatpush1.msra.mxu0 0.0
        %3373 = vmatprep.subr.mxu0 0.0
        %3374 = vmatpush1.msra.mxu0 0.0
        %3375 = vmatprep.subr.mxu0 0.0
        %3376 = vmatpush1.msra.mxu0 0.0
        %3377 = vmatprep.subr.mxu0 0.0
        %3378 = vmatpush1.msra.mxu0 0.0
        %3379 = vmatprep.subr.mxu0 0.0
        %3380 = vmatpush1.msra.mxu0 0.0
        %3381 = vmatprep.mubr.f32.mxu0 0.0
        %3382 = vmatmul.mubr.f32.gmra.mrb[0].mxu0 %v2397
        %v3383 = vpop.f32.mrb[0].mxu0
        %v3384 = vadd.f32 0.0, %v3383
        %v3385 = vpop.f32.mrb[0].mxu0
        %3386 = vmatprep.mubr.f32.mxu0 0.0
        %3387 = vmatmul.mubr.f32.gmra.mrb[0].mxu0 %v2399
        %v3388 = vpop.f32.mrb[0].mxu0
        %v3389 = vadd.f32 0.0, %v3388
        %v3390 = vpop.f32.mrb[0].mxu0
        %3391 = vmatprep.mubr.f32.mxu0 0.0
        %3392 = vmatmul.mubr.f32.gmra.mrb[0].mxu0 %v2401
        %v3393 = vpop.f32.mrb[0].mxu0
        %v3394 = vpop.f32.mrb[0].mxu0
        %3395 = vmatprep.mubr.f32.mxu0 0.0
        %3396 = vmatmul.mubr.f32.gmra.mrb[0].mxu0 %v2403
        %v3397 = vpop.f32.mrb[0].mxu0
        %v3398 = vadd.f32 0.0, %v3397
        %v3399 = vpop.f32.mrb[0].mxu0
        %3400 = vmatprep.mubr.f32.mxu0 0.0
        %3401 = vmatmul.mubr.f32.gmra.mrb[0].mxu0 %v2405
        %v3402 = vpop.f32.mrb[0].mxu0
        %v3403 = vadd.f32 0.0, %v3402
        %v3404 = vpop.f32.mrb[0].mxu0
        %3405 = vmatprep.mubr.f32.mxu0 0.0
        %3406 = vmatmul.mubr.f32.gmra.mrb[0].mxu0 %v2407
        %v3407 = vpop.f32.mrb[0].mxu0
        %v3408 = vpop.f32.mrb[0].mxu0
        %3409 = vmatprep.mubr.f32.mxu0 0.0
        %3410 = vmatmul.mubr.f32.gmra.mrb[0].mxu0 %v2409
        %v3411 = vpop.f32.mrb[0].mxu0
        %v3412 = vadd.f32 0.0, %v3411
        %v3413 = vpop.f32.mrb[0].mxu0
        %3414 = vmatprep.mubr.f32.mxu0 0.0
        %3415 = vmatmul.mubr.f32.gmra.mrb[0].mxu0 %v2411
        %v3416 = vpop.f32.mrb[0].mxu0
        %v3417 = vadd.f32 0.0, %v3416
        %v3418 = vpop.f32.mrb[0].mxu0
        %3419 = vmatprep.mubr.f32.mxu0 0.0
        %3420 = vmatmul.mubr.f32.gmra.mrb[0].mxu0 %v2413
        %v3421 = vpop.f32.mrb[0].mxu0
        %v3422 = vpop.f32.mrb[0].mxu0
        %3423 = vmatprep.mubr.f32.mxu0 0.0
        %3424 = vmatmul.mubr.f32.gmra.mrb[0].mxu0 %v2415
        %v3425 = vpop.f32.mrb[0].mxu0
        %v3426 = vadd.f32 0.0, %v3425
        %v3427 = vpop.f32.mrb[0].mxu0
        %3428 = vmatprep.mubr.f32.mxu0 0.0
        %3429 = vmatmul.mubr.f32.gmra.mrb[0].mxu0 %v2417
        %v3430 = vpop.f32.mrb[0].mxu0
        %v3431 = vadd.f32 0.0, %v3430
        %v3432 = vpop.f32.mrb[0].mxu0
        %3433 = vmatprep.mubr.f32.mxu0 0.0
        %3434 = vmatmul.mubr.f32.gmra.mrb[0].mxu0 %v2419
        %v3435 = vpop.f32.mrb[0].mxu0
        %v3436 = vpop.f32.mrb[0].mxu0
        %3437 = vmatprep.mubr.f32.mxu0 0.0
        %3438 = vmatmul.mubr.f32.gmra.mrb[0].mxu0 %v2421
        %v3439 = vpop.f32.mrb[0].mxu0
        %v3440 = vadd.f32 0.0, %v3439
        %v3441 = vpop.f32.mrb[0].mxu0
        %3442 = vmatprep.mubr.f32.mxu0 0.0
        %3443 = vmatmul.mubr.f32.gmra.mrb[0].mxu0 %v2423
        %v3444 = vpop.f32.mrb[0].mxu0
        %v3445 = vadd.f32 0.0, %v3444
        %v3446 = vpop.f32.mrb[0].mxu0
        %3447 = vmatprep.mubr.f32.mxu0 0.0
        %3448 = vmatmul.mubr.f32.gmra.mrb[0].mxu0 %v2425
        %v3449 = vpop.f32.mrb[0].mxu0
        %v3450 = vpop.f32.mrb[0].mxu0
        %3451 = vmatprep.mubr.f32.mxu0 0.0
        %3452 = vmatmul.mubr.f32.gmra.mrb[0].mxu0 %v2427
        %v3453 = vpop.f32.mrb[0].mxu0
        %v3454 = vadd.f32 0.0, %v3453
        %v3455 = vpop.f32.mrb[0].mxu0
        %3456 = vmatprep.mubr.f32.mxu0 0.0
        %3457 = vmatmul.mubr.f32.gmra.mrb[0].mxu0 %v2429
        %v3458 = vpop.f32.mrb[0].mxu0
        %v3459 = vadd.f32 0.0, %v3458
        %v3460 = vpop.f32.mrb[0].mxu0
        %3461 = vmatprep.mubr.f32.mxu0 0.0
        %3462 = vmatmul.mubr.f32.gmra.mrb[0].mxu0 %v2431
        %v3463 = vpop.f32.mrb[0].mxu0
        %v3464 = vpop.f32.mrb[0].mxu0
        %3465 = vmatprep.mubr.f32.mxu0 0.0
        %3466 = vmatmul.mubr.f32.gmra.mrb[0].mxu0 %v2433
        %v3467 = vpop.f32.mrb[0].mxu0
        %v3468 = vadd.f32 0.0, %v3467
        %v3469 = vpop.f32.mrb[0].mxu0
        %3470 = vmatprep.mubr.f32.mxu0 0.0
        %3471 = vmatmul.mubr.f32.gmra.mrb[0].mxu0 %v2435
        %v3472 = vpop.f32.mrb[0].mxu0
        %v3473 = vadd.f32 0.0, %v3472
        %v3474 = vpop.f32.mrb[0].mxu0
        %3475 = vmatprep.mubr.f32.mxu0 0.0
        %3476 = vmatmul.mubr.f32.gmra.mrb[0].mxu0 %v2437
        %v3477 = vpop.f32.mrb[0].mxu0
        %v3478 = vpop.f32.mrb[0].mxu0
        %3479 = vmatprep.mubr.f32.mxu0 0.0
        %3480 = vmatmul.mubr.f32.gmra.mrb[0].mxu0 %v2439
        %v3481 = vpop.f32.mrb[0].mxu0
        %v3482 = vadd.f32 0.0, %v3481
        %v3483 = vpop.f32.mrb[0].mxu0
        %3484 = vmatprep.mubr.f32.mxu0 0.0
        %3485 = vmatmul.mubr.f32.gmra.mrb[0].mxu0 %v2441
        %v3486 = vpop.f32.mrb[0].mxu0
        %v3487 = vadd.f32 0.0, %v3486
        %v3488 = vpop.f32.mrb[0].mxu0
        %3489 = vmatprep.mubr.f32.mxu0 0.0
        %3490 = vmatmul.mubr.f32.gmra.mrb[0].mxu0 %v2443
        %v3491 = vpop.f32.mrb[0].mxu0
        %v3492 = vpop.f32.mrb[0].mxu0
        %3493 = vmatprep.mubr.f32.mxu0 0.0
        %3494 = vmatmul.mubr.f32.gmra.mrb[0].mxu0 %v2445
        %v3495 = vpop.f32.mrb[0].mxu0
        %v3496 = vadd.f32 0.0, %v3495
        %v3497 = vpop.f32.mrb[0].mxu0
        %3498 = vmatprep.mubr.f32.mxu0 0.0
        %3499 = vmatmul.mubr.f32.gmra.mrb[0].mxu0 %v2447
        %v3500 = vpop.f32.mrb[0].mxu0
        %v3501 = vadd.f32 0.0, %v3500
        %v3502 = vpop.f32.mrb[0].mxu0
        %3503 = vmatprep.mubr.f32.mxu0 0.0
        %3504 = vmatmul.mubr.f32.gmra.mrb[0].mxu0 %v2449
        %v3505 = vpop.f32.mrb[0].mxu0
        %v3506 = vpop.f32.mrb[0].mxu0
        %3507 = vmatprep.mubr.f32.mxu0 0.0
        %3508 = vmatmul.mubr.f32.gmra.mrb[0].mxu0 %v2451
        %v3509 = vpop.f32.mrb[0].mxu0
        %v3510 = vadd.f32 0.0, %v3509
        %v3511 = vpop.f32.mrb[0].mxu0
        %3512 = vmatprep.mubr.f32.mxu0 0.0
        %3513 = vmatmul.mubr.f32.gmra.mrb[0].mxu0 %v2453
        %v3514 = vpop.f32.mrb[0].mxu0
        %v3515 = vadd.f32 0.0, %v3514
        %v3516 = vpop.f32.mrb[0].mxu0
        %3517 = vmatprep.mubr.f32.mxu0 0.0
        %3518 = vmatmul.mubr.f32.gmra.mrb[0].mxu0 %v2455
        %v3519 = vpop.f32.mrb[0].mxu0
        %v3520 = vpop.f32.mrb[0].mxu0
        %3521 = vmatprep.mubr.f32.mxu0 0.0
        %3522 = vmatmul.mubr.f32.gmra.mrb[0].mxu0 %v2457
        %v3523 = vpop.f32.mrb[0].mxu0
        %v3524 = vadd.f32 0.0, %v3523
        %v3525 = vpop.f32.mrb[0].mxu0
        %3526 = vmatprep.mubr.f32.mxu0 0.0
        %3527 = vmatmul.mubr.f32.gmra.mrb[0].mxu0 %v2459
        %v3528 = vpop.f32.mrb[0].mxu0
        %v3529 = vadd.f32 0.0, %v3528
        %v3530 = vpop.f32.mrb[0].mxu0
        %3531 = vmatprep.mubr.f32.mxu0 0.0
        %3532 = vmatmul.mubr.f32.gmra.mrb[0].mxu0 %v2461
        %v3533 = vpop.f32.mrb[0].mxu0
        %v3534 = vpop.f32.mrb[0].mxu0
        %3535 = vmatprep.mubr.f32.mxu0 0.0
        %3536 = vmatmul.mubr.f32.gmra.mrb[0].mxu0 %v2463
        %v3537 = vpop.f32.mrb[0].mxu0
        %v3538 = vadd.f32 0.0, %v3537
        %v3539 = vpop.f32.mrb[0].mxu0
        %3540 = vmatprep.mubr.f32.mxu0 0.0
        %3541 = vmatmul.mubr.f32.gmra.mrb[0].mxu0 %v2465
        %v3542 = vpop.f32.mrb[0].mxu0
        %v3543 = vadd.f32 0.0, %v3542
        %v3544 = vpop.f32.mrb[0].mxu0
        %3545 = vmatprep.mubr.f32.mxu0 0.0
        %3546 = vmatmul.mubr.f32.gmra.mrb[0].mxu0 %v2467
        %v3547 = vpop.f32.mrb[0].mxu0
        %v3548 = vpop.f32.mrb[0].mxu0
        %3549 = vmatprep.mubr.f32.mxu0 0.0
        %3550 = vmatmul.mubr.f32.gmra.mrb[0].mxu0 %v2469
        %v3551 = vpop.f32.mrb[0].mxu0
        %v3552 = vadd.f32 0.0, %v3551
        %v3553 = vpop.f32.mrb[0].mxu0
        %3554 = vmatprep.mubr.f32.mxu0 0.0
        %3555 = vmatmul.mubr.f32.gmra.mrb[0].mxu0 %v2471
        %v3556 = vpop.f32.mrb[0].mxu0
        %v3557 = vadd.f32 0.0, %v3556
        %v3558 = vpop.f32.mrb[0].mxu0
        %3559 = vmatprep.mubr.f32.mxu0 0.0
        %3560 = vmatmul.mubr.f32.gmra.mrb[0].mxu0 %v2473
        %v3561 = vpop.f32.mrb[0].mxu0
        %v3562 = vpop.f32.mrb[0].mxu0
        %3563 = vmatprep.mubr.f32.mxu0 0.0
        %3564 = vmatmul.mubr.f32.gmra.mrb[0].mxu0 %v2475
        %v3565 = vpop.f32.mrb[0].mxu0
        %v3566 = vadd.f32 0.0, %v3565
        %v3567 = vpop.f32.mrb[0].mxu0
        %3568 = vmatprep.mubr.f32.mxu0 0.0
        %3569 = vmatmul.mubr.f32.gmra.mrb[0].mxu0 %v2477
        %v3570 = vpop.f32.mrb[0].mxu0
        %v3571 = vadd.f32 0.0, %v3570
        %v3572 = vpop.f32.mrb[0].mxu0
        %3573 = vmatprep.mubr.f32.mxu0 0.0
        %3574 = vmatmul.mubr.f32.gmra.mrb[0].mxu0 %v2479
        %v3575 = vpop.f32.mrb[0].mxu0
        %v3576 = vpop.f32.mrb[0].mxu0
        %3577 = vmatprep.mubr.f32.mxu0 0.0
        %3578 = vmatmul.mubr.f32.gmra.mrb[0].mxu0 %v2481
        %v3579 = vpop.f32.mrb[0].mxu0
        %v3580 = vadd.f32 0.0, %v3579
        %v3581 = vpop.f32.mrb[0].mxu0
        %3582 = vmatprep.mubr.f32.mxu0 0.0
        %3583 = vmatmul.mubr.f32.gmra.mrb[0].mxu0 %v2483
        %v3584 = vpop.f32.mrb[0].mxu0
        %v3585 = vadd.f32 0.0, %v3584
        %v3586 = vpop.f32.mrb[0].mxu0
        %3587 = vmatprep.mubr.f32.mxu0 0.0
        %3588 = vmatmul.mubr.f32.gmra.mrb[0].mxu0 %v2485
        %v3589 = vpop.f32.mrb[0].mxu0
        %v3590 = vpop.f32.mrb[0].mxu0
        %3591 = vmatprep.mubr.f32.mxu0 0.0
        %3592 = vmatmul.mubr.f32.gmra.mrb[0].mxu0 %v3309
        %v3593 = vpop.f32.mrb[0].mxu0
        %v3594 = vadd.f32 0.0, %v3593
        %v3595 = vpop.f32.mrb[0].mxu0
        %3596 = vmatprep.mubr.f32.mxu0 0.0
        %3597 = vmatmul.mubr.f32.gmra.mrb[0].mxu0 %v3312
        %v3598 = vpop.f32.mrb[0].mxu0
        %v3599 = vadd.f32 0.0, %v3598
        %v3600 = vpop.f32.mrb[0].mxu0
        %3601 = vmatprep.mubr.f32.mxu0 0.0
        %3602 = vmatmul.mubr.f32.gmra.mrb[0].mxu0 %v3315
        %v3603 = vpop.f32.mrb[0].mxu0
        %v3604 = vpop.f32.mrb[0].mxu0
        %3605 = vdwg.mxu0
        %v3606 = vadd.f32 %v3268, %v3384
        %v3607 = vadd.f32 %v3269, %v3389
        %v3608 = vadd.f32 %v3270, %v3398
        %v3609 = vadd.f32 %v3271, %v3403
        %v3610 = vadd.f32 %v3272, %v3412
        %v3611 = vadd.f32 %v3273, %v3417
        %v3612 = vadd.f32 %v3274, %v3426
        %v3613 = vadd.f32 %v3275, %v3431
        %v3614 = vadd.f32 %v3276, %v3440
        %v3615 = vadd.f32 %v3277, %v3445
        %v3616 = vadd.f32 %v3278, %v3454
        %v3617 = vadd.f32 %v3279, %v3459
        %v3618 = vadd.f32 %v3280, %v3468
        %v3619 = vadd.f32 %v3281, %v3473
        %v3620 = vadd.f32 %v3282, %v3482
        %v3621 = vadd.f32 %v3283, %v3487
        %v3622 = vadd.f32 %v3284, %v3496
        %v3623 = vadd.f32 %v3285, %v3501
        %v3624 = vadd.f32 %v3286, %v3510
        %v3625 = vadd.f32 %v3287, %v3515
        %v3626 = vadd.f32 %v3288, %v3524
        %v3627 = vadd.f32 %v3289, %v3529
        %v3628 = vadd.f32 %v3290, %v3538
        %v3629 = vadd.f32 %v3291, %v3543
        %v3630 = vadd.f32 %v3292, %v3552
        %v3631 = vadd.f32 %v3293, %v3557
        %v3632 = vadd.f32 %v3294, %v3566
        %v3633 = vadd.f32 %v3295, %v3571
        %v3634 = vadd.f32 %v3296, %v3580
        %v3635 = vadd.f32 %v3297, %v3585
        %v3636 = vadd.f32 %v3298, %v3594
        %v3637 = vadd.f32 %v3299, %v3599
        %s3638 = scalar_lea.vmem %s5, 256
        %v3639 = vld [vmem:[%s3638] sm:$0xff]
        %v3640 = vld [vmem:[%s3638 + $0x8] sm:$0xff]
        %v3641 = vld [vmem:[%s3638 + $0x10] sm:$0xff]
        %v3642 = vld [vmem:[%s3638 + $0x18] sm:$0xff]
        %v3643 = vld [vmem:[%s3638 + $0x20] sm:$0xff]
        %v3644 = vld [vmem:[%s3638 + $0x28] sm:$0xff]
        %v3645 = vld [vmem:[%s3638 + $0x30] sm:$0xff]
        %v3646 = vld [vmem:[%s3638 + $0x38] sm:$0xff]
        %v3648 = vrot.slane %v1836, 1
        %v3649 = vsel %vm1908, %v2004, %v3648
        %v3650 = vrot.slane %v1837, 1
        %v3651 = vsel %vm1908, %v3648, %v3650
        %v3652 = vrot.slane %v1838, 1
        %v3653 = vsel %vm1908, %v3650, %v3652
        %v3654 = vsel %vm500, %v3649, 0
        %v3656 = vsel %vm500, %v3651, 0
        %v3658 = vsel %vm500, %v3653, 0
        %3660 = vmatprep.subr.mxu0 0.0
        %3661 = vmatpush1.msra.mxu0 %v3639
        %3662 = vmatprep.subr.mxu0 0.0
        %3663 = vmatpush1.msra.mxu0 %v3640
        %3664 = vmatprep.subr.mxu0 0.0
        %3665 = vmatpush1.msra.mxu0 %v3641
        %3666 = vmatprep.subr.mxu0 0.0
        %3667 = vmatpush1.msra.mxu0 %v3642
        %3668 = vmatprep.subr.mxu0 0.0
        %3669 = vmatpush1.msra.mxu0 %v3643
        %3670 = vmatprep.subr.mxu0 0.0
        %3671 = vmatpush1.msra.mxu0 %v3644
        %3672 = vmatprep.subr.mxu0 0.0
        %3673 = vmatpush1.msra.mxu0 %v3645
        %3674 = vmatprep.subr.mxu0 0.0
        %3675 = vmatpush1.msra.mxu0 %v3646
        %3676 = vmatprep.subr.mxu0 0.0
        %3677 = vmatpush1.msra.mxu0 0.0
        %3678 = vmatprep.subr.mxu0 0.0
        %3679 = vmatpush1.msra.mxu0 0.0
        %3680 = vmatprep.subr.mxu0 0.0
        %3681 = vmatpush1.msra.mxu0 0.0
        %3682 = vmatprep.subr.mxu0 0.0
        %3683 = vmatpush1.msra.mxu0 0.0
        %3684 = vmatprep.subr.mxu0 0.0
        %3685 = vmatpush1.msra.mxu0 0.0
        %3686 = vmatprep.subr.mxu0 0.0
        %3687 = vmatpush1.msra.mxu0 0.0
        %3688 = vmatprep.subr.mxu0 0.0
        %3689 = vmatpush1.msra.mxu0 0.0
        %3690 = vmatprep.subr.mxu0 0.0
        %3691 = vmatpush1.msra.mxu0 0.0
        %3692 = vmatprep.subr.mxu0 0.0
        %3693 = vmatpush1.msra.mxu0 0.0
        %3694 = vmatprep.subr.mxu0 0.0
        %3695 = vmatpush1.msra.mxu0 0.0
        %3696 = vmatprep.subr.mxu0 0.0
        %3697 = vmatpush1.msra.mxu0 0.0
        %3698 = vmatprep.subr.mxu0 0.0
        %3699 = vmatpush1.msra.mxu0 0.0
        %3700 = vmatprep.subr.mxu0 0.0
        %3701 = vmatpush1.msra.mxu0 0.0
        %3702 = vmatprep.subr.mxu0 0.0
        %3703 = vmatpush1.msra.mxu0 0.0
        %3704 = vmatprep.subr.mxu0 0.0
        %3705 = vmatpush1.msra.mxu0 0.0
        %3706 = vmatprep.subr.mxu0 0.0
        %3707 = vmatpush1.msra.mxu0 0.0
        %3708 = vmatprep.subr.mxu0 0.0
        %3709 = vmatpush1.msra.mxu0 0.0
        %3710 = vmatprep.subr.mxu0 0.0
        %3711 = vmatpush1.msra.mxu0 0.0
        %3712 = vmatprep.subr.mxu0 0.0
        %3713 = vmatpush1.msra.mxu0 0.0
        %3714 = vmatprep.subr.mxu0 0.0
        %3715 = vmatpush1.msra.mxu0 0.0
        %3716 = vmatprep.subr.mxu0 0.0
        %3717 = vmatpush1.msra.mxu0 0.0
        %3718 = vmatprep.subr.mxu0 0.0
        %3719 = vmatpush1.msra.mxu0 0.0
        %3720 = vmatprep.subr.mxu0 0.0
        %3721 = vmatpush1.msra.mxu0 0.0
        %3722 = vmatprep.subr.mxu0 0.0
        %3723 = vmatpush1.msra.mxu0 0.0
        %3724 = vmatprep.mubr.f32.mxu0 0.0
        %3725 = vmatmul.mubr.f32.gmra.mrb[0].mxu0 %v2012
        %v3726 = vpop.f32.mrb[0].mxu0
        %v3727 = vadd.f32 0.0, %v3726
        %v3728 = vpop.f32.mrb[0].mxu0
        %3729 = vmatprep.mubr.f32.mxu0 0.0
        %3730 = vmatmul.mubr.f32.gmra.mrb[0].mxu0 %v2014
        %v3731 = vpop.f32.mrb[0].mxu0
        %v3732 = vadd.f32 0.0, %v3731
        %v3733 = vpop.f32.mrb[0].mxu0
        %3734 = vmatprep.mubr.f32.mxu0 0.0
        %3735 = vmatmul.mubr.f32.gmra.mrb[0].mxu0 %v2016
        %v3736 = vpop.f32.mrb[0].mxu0
        %v3737 = vpop.f32.mrb[0].mxu0
        %3738 = vmatprep.mubr.f32.mxu0 0.0
        %3739 = vmatmul.mubr.f32.gmra.mrb[0].mxu0 %v2018
        %v3740 = vpop.f32.mrb[0].mxu0
        %v3741 = vadd.f32 0.0, %v3740
        %v3742 = vpop.f32.mrb[0].mxu0
        %3743 = vmatprep.mubr.f32.mxu0 0.0
        %3744 = vmatmul.mubr.f32.gmra.mrb[0].mxu0 %v2020
        %v3745 = vpop.f32.mrb[0].mxu0
        %v3746 = vadd.f32 0.0, %v3745
        %v3747 = vpop.f32.mrb[0].mxu0
        %3748 = vmatprep.mubr.f32.mxu0 0.0
        %3749 = vmatmul.mubr.f32.gmra.mrb[0].mxu0 %v2022
        %v3750 = vpop.f32.mrb[0].mxu0
        %v3751 = vpop.f32.mrb[0].mxu0
        %3752 = vmatprep.mubr.f32.mxu0 0.0
        %3753 = vmatmul.mubr.f32.gmra.mrb[0].mxu0 %v2024
        %v3754 = vpop.f32.mrb[0].mxu0
        %v3755 = vadd.f32 0.0, %v3754
        %v3756 = vpop.f32.mrb[0].mxu0
        %3757 = vmatprep.mubr.f32.mxu0 0.0
        %3758 = vmatmul.mubr.f32.gmra.mrb[0].mxu0 %v2026
        %v3759 = vpop.f32.mrb[0].mxu0
        %v3760 = vadd.f32 0.0, %v3759
        %v3761 = vpop.f32.mrb[0].mxu0
        %3762 = vmatprep.mubr.f32.mxu0 0.0
        %3763 = vmatmul.mubr.f32.gmra.mrb[0].mxu0 %v2028
        %v3764 = vpop.f32.mrb[0].mxu0
        %v3765 = vpop.f32.mrb[0].mxu0
        %3766 = vmatprep.mubr.f32.mxu0 0.0
        %3767 = vmatmul.mubr.f32.gmra.mrb[0].mxu0 %v2030
        %v3768 = vpop.f32.mrb[0].mxu0
        %v3769 = vadd.f32 0.0, %v3768
        %v3770 = vpop.f32.mrb[0].mxu0
        %3771 = vmatprep.mubr.f32.mxu0 0.0
        %3772 = vmatmul.mubr.f32.gmra.mrb[0].mxu0 %v2032
        %v3773 = vpop.f32.mrb[0].mxu0
        %v3774 = vadd.f32 0.0, %v3773
        %v3775 = vpop.f32.mrb[0].mxu0
        %3776 = vmatprep.mubr.f32.mxu0 0.0
        %3777 = vmatmul.mubr.f32.gmra.mrb[0].mxu0 %v2034
        %v3778 = vpop.f32.mrb[0].mxu0
        %v3779 = vpop.f32.mrb[0].mxu0
        %3780 = vmatprep.mubr.f32.mxu0 0.0
        %3781 = vmatmul.mubr.f32.gmra.mrb[0].mxu0 %v2036
        %v3782 = vpop.f32.mrb[0].mxu0
        %v3783 = vadd.f32 0.0, %v3782
        %v3784 = vpop.f32.mrb[0].mxu0
        %3785 = vmatprep.mubr.f32.mxu0 0.0
        %3786 = vmatmul.mubr.f32.gmra.mrb[0].mxu0 %v2038
        %v3787 = vpop.f32.mrb[0].mxu0
        %v3788 = vadd.f32 0.0, %v3787
        %v3789 = vpop.f32.mrb[0].mxu0
        %3790 = vmatprep.mubr.f32.mxu0 0.0
        %3791 = vmatmul.mubr.f32.gmra.mrb[0].mxu0 %v2040
        %v3792 = vpop.f32.mrb[0].mxu0
        %v3793 = vpop.f32.mrb[0].mxu0
        %3794 = vmatprep.mubr.f32.mxu0 0.0
        %3795 = vmatmul.mubr.f32.gmra.mrb[0].mxu0 %v2042
        %v3796 = vpop.f32.mrb[0].mxu0
        %v3797 = vadd.f32 0.0, %v3796
        %v3798 = vpop.f32.mrb[0].mxu0
        %3799 = vmatprep.mubr.f32.mxu0 0.0
        %3800 = vmatmul.mubr.f32.gmra.mrb[0].mxu0 %v2044
        %v3801 = vpop.f32.mrb[0].mxu0
        %v3802 = vadd.f32 0.0, %v3801
        %v3803 = vpop.f32.mrb[0].mxu0
        %3804 = vmatprep.mubr.f32.mxu0 0.0
        %3805 = vmatmul.mubr.f32.gmra.mrb[0].mxu0 %v2046
        %v3806 = vpop.f32.mrb[0].mxu0
        %v3807 = vpop.f32.mrb[0].mxu0
        %3808 = vmatprep.mubr.f32.mxu0 0.0
        %3809 = vmatmul.mubr.f32.gmra.mrb[0].mxu0 %v2048
        %v3810 = vpop.f32.mrb[0].mxu0
        %v3811 = vadd.f32 0.0, %v3810
        %v3812 = vpop.f32.mrb[0].mxu0
        %3813 = vmatprep.mubr.f32.mxu0 0.0
        %3814 = vmatmul.mubr.f32.gmra.mrb[0].mxu0 %v2050
        %v3815 = vpop.f32.mrb[0].mxu0
        %v3816 = vadd.f32 0.0, %v3815
        %v3817 = vpop.f32.mrb[0].mxu0
        %3818 = vmatprep.mubr.f32.mxu0 0.0
        %3819 = vmatmul.mubr.f32.gmra.mrb[0].mxu0 %v2052
        %v3820 = vpop.f32.mrb[0].mxu0
        %v3821 = vpop.f32.mrb[0].mxu0
        %3822 = vmatprep.mubr.f32.mxu0 0.0
        %3823 = vmatmul.mubr.f32.gmra.mrb[0].mxu0 %v2054
        %v3824 = vpop.f32.mrb[0].mxu0
        %v3825 = vadd.f32 0.0, %v3824
        %v3826 = vpop.f32.mrb[0].mxu0
        %3827 = vmatprep.mubr.f32.mxu0 0.0
        %3828 = vmatmul.mubr.f32.gmra.mrb[0].mxu0 %v2056
        %v3829 = vpop.f32.mrb[0].mxu0
        %v3830 = vadd.f32 0.0, %v3829
        %v3831 = vpop.f32.mrb[0].mxu0
        %3832 = vmatprep.mubr.f32.mxu0 0.0
        %3833 = vmatmul.mubr.f32.gmra.mrb[0].mxu0 %v2058
        %v3834 = vpop.f32.mrb[0].mxu0
        %v3835 = vpop.f32.mrb[0].mxu0
        %3836 = vmatprep.mubr.f32.mxu0 0.0
        %3837 = vmatmul.mubr.f32.gmra.mrb[0].mxu0 %v2060
        %v3838 = vpop.f32.mrb[0].mxu0
        %v3839 = vadd.f32 0.0, %v3838
        %v3840 = vpop.f32.mrb[0].mxu0
        %3841 = vmatprep.mubr.f32.mxu0 0.0
        %3842 = vmatmul.mubr.f32.gmra.mrb[0].mxu0 %v2062
        %v3843 = vpop.f32.mrb[0].mxu0
        %v3844 = vadd.f32 0.0, %v3843
        %v3845 = vpop.f32.mrb[0].mxu0
        %3846 = vmatprep.mubr.f32.mxu0 0.0
        %3847 = vmatmul.mubr.f32.gmra.mrb[0].mxu0 %v2064
        %v3848 = vpop.f32.mrb[0].mxu0
        %v3849 = vpop.f32.mrb[0].mxu0
        %3850 = vmatprep.mubr.f32.mxu0 0.0
        %3851 = vmatmul.mubr.f32.gmra.mrb[0].mxu0 %v2066
        %v3852 = vpop.f32.mrb[0].mxu0
        %v3853 = vadd.f32 0.0, %v3852
        %v3854 = vpop.f32.mrb[0].mxu0
        %3855 = vmatprep.mubr.f32.mxu0 0.0
        %3856 = vmatmul.mubr.f32.gmra.mrb[0].mxu0 %v2068
        %v3857 = vpop.f32.mrb[0].mxu0
        %v3858 = vadd.f32 0.0, %v3857
        %v3859 = vpop.f32.mrb[0].mxu0
        %3860 = vmatprep.mubr.f32.mxu0 0.0
        %3861 = vmatmul.mubr.f32.gmra.mrb[0].mxu0 %v2070
        %v3862 = vpop.f32.mrb[0].mxu0
        %v3863 = vpop.f32.mrb[0].mxu0
        %3864 = vmatprep.mubr.f32.mxu0 0.0
        %3865 = vmatmul.mubr.f32.gmra.mrb[0].mxu0 %v2072
        %v3866 = vpop.f32.mrb[0].mxu0
        %v3867 = vadd.f32 0.0, %v3866
        %v3868 = vpop.f32.mrb[0].mxu0
        %3869 = vmatprep.mubr.f32.mxu0 0.0
        %3870 = vmatmul.mubr.f32.gmra.mrb[0].mxu0 %v2074
        %v3871 = vpop.f32.mrb[0].mxu0
        %v3872 = vadd.f32 0.0, %v3871
        %v3873 = vpop.f32.mrb[0].mxu0
        %3874 = vmatprep.mubr.f32.mxu0 0.0
        %3875 = vmatmul.mubr.f32.gmra.mrb[0].mxu0 %v2076
        %v3876 = vpop.f32.mrb[0].mxu0
        %v3877 = vpop.f32.mrb[0].mxu0
        %3878 = vmatprep.mubr.f32.mxu0 0.0
        %3879 = vmatmul.mubr.f32.gmra.mrb[0].mxu0 %v2078
        %v3880 = vpop.f32.mrb[0].mxu0
        %v3881 = vadd.f32 0.0, %v3880
        %v3882 = vpop.f32.mrb[0].mxu0
        %3883 = vmatprep.mubr.f32.mxu0 0.0
        %3884 = vmatmul.mubr.f32.gmra.mrb[0].mxu0 %v2080
        %v3885 = vpop.f32.mrb[0].mxu0
        %v3886 = vadd.f32 0.0, %v3885
        %v3887 = vpop.f32.mrb[0].mxu0
        %3888 = vmatprep.mubr.f32.mxu0 0.0
        %3889 = vmatmul.mubr.f32.gmra.mrb[0].mxu0 %v2082
        %v3890 = vpop.f32.mrb[0].mxu0
        %v3891 = vpop.f32.mrb[0].mxu0
        %3892 = vmatprep.mubr.f32.mxu0 0.0
        %3893 = vmatmul.mubr.f32.gmra.mrb[0].mxu0 %v2084
        %v3894 = vpop.f32.mrb[0].mxu0
        %v3895 = vadd.f32 0.0, %v3894
        %v3896 = vpop.f32.mrb[0].mxu0
        %3897 = vmatprep.mubr.f32.mxu0 0.0
        %3898 = vmatmul.mubr.f32.gmra.mrb[0].mxu0 %v2086
        %v3899 = vpop.f32.mrb[0].mxu0
        %v3900 = vadd.f32 0.0, %v3899
        %v3901 = vpop.f32.mrb[0].mxu0
        %3902 = vmatprep.mubr.f32.mxu0 0.0
        %3903 = vmatmul.mubr.f32.gmra.mrb[0].mxu0 %v2088
        %v3904 = vpop.f32.mrb[0].mxu0
        %v3905 = vpop.f32.mrb[0].mxu0
        %3906 = vmatprep.mubr.f32.mxu0 0.0
        %3907 = vmatmul.mubr.f32.gmra.mrb[0].mxu0 %v2090
        %v3908 = vpop.f32.mrb[0].mxu0
        %v3909 = vadd.f32 0.0, %v3908
        %v3910 = vpop.f32.mrb[0].mxu0
        %3911 = vmatprep.mubr.f32.mxu0 0.0
        %3912 = vmatmul.mubr.f32.gmra.mrb[0].mxu0 %v2092
        %v3913 = vpop.f32.mrb[0].mxu0
        %v3914 = vadd.f32 0.0, %v3913
        %v3915 = vpop.f32.mrb[0].mxu0
        %3916 = vmatprep.mubr.f32.mxu0 0.0
        %3917 = vmatmul.mubr.f32.gmra.mrb[0].mxu0 %v2094
        %v3918 = vpop.f32.mrb[0].mxu0
        %v3919 = vpop.f32.mrb[0].mxu0
        %3920 = vmatprep.mubr.f32.mxu0 0.0
        %3921 = vmatmul.mubr.f32.gmra.mrb[0].mxu0 %v2096
        %v3922 = vpop.f32.mrb[0].mxu0
        %v3923 = vadd.f32 0.0, %v3922
        %v3924 = vpop.f32.mrb[0].mxu0
        %3925 = vmatprep.mubr.f32.mxu0 0.0
        %3926 = vmatmul.mubr.f32.gmra.mrb[0].mxu0 %v2098
        %v3927 = vpop.f32.mrb[0].mxu0
        %v3928 = vadd.f32 0.0, %v3927
        %v3929 = vpop.f32.mrb[0].mxu0
        %3930 = vmatprep.mubr.f32.mxu0 0.0
        %3931 = vmatmul.mubr.f32.gmra.mrb[0].mxu0 %v2100
        %v3932 = vpop.f32.mrb[0].mxu0
        %v3933 = vpop.f32.mrb[0].mxu0
        %3934 = vmatprep.mubr.f32.mxu0 0.0
        %3935 = vmatmul.mubr.f32.gmra.mrb[0].mxu0 %v3654
        %v3936 = vpop.f32.mrb[0].mxu0
        %v3937 = vadd.f32 0.0, %v3936
        %v3938 = vpop.f32.mrb[0].mxu0
        %3939 = vmatprep.mubr.f32.mxu0 0.0
        %3940 = vmatmul.mubr.f32.gmra.mrb[0].mxu0 %v3656
        %v3941 = vpop.f32.mrb[0].mxu0
        %v3942 = vadd.f32 0.0, %v3941
        %v3943 = vpop.f32.mrb[0].mxu0
        %3944 = vmatprep.mubr.f32.mxu0 0.0
        %3945 = vmatmul.mubr.f32.gmra.mrb[0].mxu0 %v3658
        %v3946 = vpop.f32.mrb[0].mxu0
        %v3947 = vpop.f32.mrb[0].mxu0
        %3948 = vdwg.mxu0
        %v3949 = vadd.f32 %v3606, %v3727
        %v3950 = vadd.f32 %v3607, %v3732
        %v3951 = vadd.f32 %v3608, %v3741
        %v3952 = vadd.f32 %v3609, %v3746
        %v3953 = vadd.f32 %v3610, %v3755
        %v3954 = vadd.f32 %v3611, %v3760
        %v3955 = vadd.f32 %v3612, %v3769
        %v3956 = vadd.f32 %v3613, %v3774
        %v3957 = vadd.f32 %v3614, %v3783
        %v3958 = vadd.f32 %v3615, %v3788
        %v3959 = vadd.f32 %v3616, %v3797
        %v3960 = vadd.f32 %v3617, %v3802
        %v3961 = vadd.f32 %v3618, %v3811
        %v3962 = vadd.f32 %v3619, %v3816
        %v3963 = vadd.f32 %v3620, %v3825
        %v3964 = vadd.f32 %v3621, %v3830
        %v3965 = vadd.f32 %v3622, %v3839
        %v3966 = vadd.f32 %v3623, %v3844
        %v3967 = vadd.f32 %v3624, %v3853
        %v3968 = vadd.f32 %v3625, %v3858
        %v3969 = vadd.f32 %v3626, %v3867
        %v3970 = vadd.f32 %v3627, %v3872
        %v3971 = vadd.f32 %v3628, %v3881
        %v3972 = vadd.f32 %v3629, %v3886
        %v3973 = vadd.f32 %v3630, %v3895
        %v3974 = vadd.f32 %v3631, %v3900
        %v3975 = vadd.f32 %v3632, %v3909
        %v3976 = vadd.f32 %v3633, %v3914
        %v3977 = vadd.f32 %v3634, %v3923
        %v3978 = vadd.f32 %v3635, %v3928
        %v3979 = vadd.f32 %v3636, %v3937
        %v3980 = vadd.f32 %v3637, %v3942
        %s3981 = scalar_lea.vmem %s5, 320
        %v3982 = vld [vmem:[%s3981] sm:$0xff]
        %v3983 = vld [vmem:[%s3981 + $0x8] sm:$0xff]
        %v3984 = vld [vmem:[%s3981 + $0x10] sm:$0xff]
        %v3985 = vld [vmem:[%s3981 + $0x18] sm:$0xff]
        %v3986 = vld [vmem:[%s3981 + $0x20] sm:$0xff]
        %v3987 = vld [vmem:[%s3981 + $0x28] sm:$0xff]
        %v3988 = vld [vmem:[%s3981 + $0x30] sm:$0xff]
        %v3989 = vld [vmem:[%s3981 + $0x38] sm:$0xff]
        %v3990 = vrot.slane %v1836, 2
        %v3991 = vsel %vm2785, %v2881, %v3990
        %v3992 = vrot.slane %v1837, 2
        %v3993 = vsel %vm2785, %v3990, %v3992
        %v3994 = vrot.slane %v1838, 2
        %v3995 = vsel %vm2785, %v3992, %v3994
        %v3996 = vsel %vm500, %v3991, 0
        %v3998 = vsel %vm500, %v3993, 0
        %v4000 = vsel %vm500, %v3995, 0
        %4002 = vmatprep.subr.mxu0 0.0
        %4003 = vmatpush1.msra.mxu0 %v3982
        %4004 = vmatprep.subr.mxu0 0.0
        %4005 = vmatpush1.msra.mxu0 %v3983
        %4006 = vmatprep.subr.mxu0 0.0
        %4007 = vmatpush1.msra.mxu0 %v3984
        %4008 = vmatprep.subr.mxu0 0.0
        %4009 = vmatpush1.msra.mxu0 %v3985
        %4010 = vmatprep.subr.mxu0 0.0
        %4011 = vmatpush1.msra.mxu0 %v3986
        %4012 = vmatprep.subr.mxu0 0.0
        %4013 = vmatpush1.msra.mxu0 %v3987
        %4014 = vmatprep.subr.mxu0 0.0
        %4015 = vmatpush1.msra.mxu0 %v3988
        %4016 = vmatprep.subr.mxu0 0.0
        %4017 = vmatpush1.msra.mxu0 %v3989
        %4018 = vmatprep.subr.mxu0 0.0
        %4019 = vmatpush1.msra.mxu0 0.0
        %4020 = vmatprep.subr.mxu0 0.0
        %4021 = vmatpush1.msra.mxu0 0.0
        %4022 = vmatprep.subr.mxu0 0.0
        %4023 = vmatpush1.msra.mxu0 0.0
        %4024 = vmatprep.subr.mxu0 0.0
        %4025 = vmatpush1.msra.mxu0 0.0
        %4026 = vmatprep.subr.mxu0 0.0
        %4027 = vmatpush1.msra.mxu0 0.0
        %4028 = vmatprep.subr.mxu0 0.0
        %4029 = vmatpush1.msra.mxu0 0.0
        %4030 = vmatprep.subr.mxu0 0.0
        %4031 = vmatpush1.msra.mxu0 0.0
        %4032 = vmatprep.subr.mxu0 0.0
        %4033 = vmatpush1.msra.mxu0 0.0
        %4034 = vmatprep.subr.mxu0 0.0
        %4035 = vmatpush1.msra.mxu0 0.0
        %4036 = vmatprep.subr.mxu0 0.0
        %4037 = vmatpush1.msra.mxu0 0.0
        %4038 = vmatprep.subr.mxu0 0.0
        %4039 = vmatpush1.msra.mxu0 0.0
        %4040 = vmatprep.subr.mxu0 0.0
        %4041 = vmatpush1.msra.mxu0 0.0
        %4042 = vmatprep.subr.mxu0 0.0
        %4043 = vmatpush1.msra.mxu0 0.0
        %4044 = vmatprep.subr.mxu0 0.0
        %4045 = vmatpush1.msra.mxu0 0.0
        %4046 = vmatprep.subr.mxu0 0.0
        %4047 = vmatpush1.msra.mxu0 0.0
        %4048 = vmatprep.subr.mxu0 0.0
        %4049 = vmatpush1.msra.mxu0 0.0
        %4050 = vmatprep.subr.mxu0 0.0
        %4051 = vmatpush1.msra.mxu0 0.0
        %4052 = vmatprep.subr.mxu0 0.0
        %4053 = vmatpush1.msra.mxu0 0.0
        %4054 = vmatprep.subr.mxu0 0.0
        %4055 = vmatpush1.msra.mxu0 0.0
        %4056 = vmatprep.subr.mxu0 0.0
        %4057 = vmatpush1.msra.mxu0 0.0
        %4058 = vmatprep.subr.mxu0 0.0
        %4059 = vmatpush1.msra.mxu0 0.0
        %4060 = vmatprep.subr.mxu0 0.0
        %4061 = vmatpush1.msra.mxu0 0.0
        %4062 = vmatprep.subr.mxu0 0.0
        %4063 = vmatpush1.msra.mxu0 0.0
        %4064 = vmatprep.subr.mxu0 0.0
        %4065 = vmatpush1.msra.mxu0 0.0
        %4066 = vmatprep.mubr.f32.mxu0 0.0
        %4067 = vmatmul.mubr.f32.gmra.mrb[0].mxu0 %v2889
        %v4068 = vpop.f32.mrb[0].mxu0
        %v4069 = vadd.f32 0.0, %v4068
        %v4070 = vpop.f32.mrb[0].mxu0
        %4071 = vmatprep.mubr.f32.mxu0 0.0
        %4072 = vmatmul.mubr.f32.gmra.mrb[0].mxu0 %v2891
        %v4073 = vpop.f32.mrb[0].mxu0
        %v4074 = vadd.f32 0.0, %v4073
        %v4075 = vpop.f32.mrb[0].mxu0
        %4076 = vmatprep.mubr.f32.mxu0 0.0
        %4077 = vmatmul.mubr.f32.gmra.mrb[0].mxu0 %v2893
        %v4078 = vpop.f32.mrb[0].mxu0
        %v4079 = vpop.f32.mrb[0].mxu0
        %4080 = vmatprep.mubr.f32.mxu0 0.0
        %4081 = vmatmul.mubr.f32.gmra.mrb[0].mxu0 %v2895
        %v4082 = vpop.f32.mrb[0].mxu0
        %v4083 = vadd.f32 0.0, %v4082
        %v4084 = vpop.f32.mrb[0].mxu0
        %4085 = vmatprep.mubr.f32.mxu0 0.0
        %4086 = vmatmul.mubr.f32.gmra.mrb[0].mxu0 %v2897
        %v4087 = vpop.f32.mrb[0].mxu0
        %v4088 = vadd.f32 0.0, %v4087
        %v4089 = vpop.f32.mrb[0].mxu0
        %4090 = vmatprep.mubr.f32.mxu0 0.0
        %4091 = vmatmul.mubr.f32.gmra.mrb[0].mxu0 %v2899
        %v4092 = vpop.f32.mrb[0].mxu0
        %v4093 = vpop.f32.mrb[0].mxu0
        %4094 = vmatprep.mubr.f32.mxu0 0.0
        %4095 = vmatmul.mubr.f32.gmra.mrb[0].mxu0 %v2901
        %v4096 = vpop.f32.mrb[0].mxu0
        %v4097 = vadd.f32 0.0, %v4096
        %v4098 = vpop.f32.mrb[0].mxu0
        %4099 = vmatprep.mubr.f32.mxu0 0.0
        %4100 = vmatmul.mubr.f32.gmra.mrb[0].mxu0 %v2903
        %v4101 = vpop.f32.mrb[0].mxu0
        %v4102 = vadd.f32 0.0, %v4101
        %v4103 = vpop.f32.mrb[0].mxu0
        %4104 = vmatprep.mubr.f32.mxu0 0.0
        %4105 = vmatmul.mubr.f32.gmra.mrb[0].mxu0 %v2905
        %v4106 = vpop.f32.mrb[0].mxu0
        %v4107 = vpop.f32.mrb[0].mxu0
        %4108 = vmatprep.mubr.f32.mxu0 0.0
        %4109 = vmatmul.mubr.f32.gmra.mrb[0].mxu0 %v2907
        %v4110 = vpop.f32.mrb[0].mxu0
        %v4111 = vadd.f32 0.0, %v4110
        %v4112 = vpop.f32.mrb[0].mxu0
        %4113 = vmatprep.mubr.f32.mxu0 0.0
        %4114 = vmatmul.mubr.f32.gmra.mrb[0].mxu0 %v2909
        %v4115 = vpop.f32.mrb[0].mxu0
        %v4116 = vadd.f32 0.0, %v4115
        %v4117 = vpop.f32.mrb[0].mxu0
        %4118 = vmatprep.mubr.f32.mxu0 0.0
        %4119 = vmatmul.mubr.f32.gmra.mrb[0].mxu0 %v2911
        %v4120 = vpop.f32.mrb[0].mxu0
        %v4121 = vpop.f32.mrb[0].mxu0
        %4122 = vmatprep.mubr.f32.mxu0 0.0
        %4123 = vmatmul.mubr.f32.gmra.mrb[0].mxu0 %v2913
        %v4124 = vpop.f32.mrb[0].mxu0
        %v4125 = vadd.f32 0.0, %v4124
        %v4126 = vpop.f32.mrb[0].mxu0
        %4127 = vmatprep.mubr.f32.mxu0 0.0
        %4128 = vmatmul.mubr.f32.gmra.mrb[0].mxu0 %v2915
        %v4129 = vpop.f32.mrb[0].mxu0
        %v4130 = vadd.f32 0.0, %v4129
        %v4131 = vpop.f32.mrb[0].mxu0
        %4132 = vmatprep.mubr.f32.mxu0 0.0
        %4133 = vmatmul.mubr.f32.gmra.mrb[0].mxu0 %v2917
        %v4134 = vpop.f32.mrb[0].mxu0
        %v4135 = vpop.f32.mrb[0].mxu0
        %4136 = vmatprep.mubr.f32.mxu0 0.0
        %4137 = vmatmul.mubr.f32.gmra.mrb[0].mxu0 %v2919
        %v4138 = vpop.f32.mrb[0].mxu0
        %v4139 = vadd.f32 0.0, %v4138
        %v4140 = vpop.f32.mrb[0].mxu0
        %4141 = vmatprep.mubr.f32.mxu0 0.0
        %4142 = vmatmul.mubr.f32.gmra.mrb[0].mxu0 %v2921
        %v4143 = vpop.f32.mrb[0].mxu0
        %v4144 = vadd.f32 0.0, %v4143
        %v4145 = vpop.f32.mrb[0].mxu0
        %4146 = vmatprep.mubr.f32.mxu0 0.0
        %4147 = vmatmul.mubr.f32.gmra.mrb[0].mxu0 %v2923
        %v4148 = vpop.f32.mrb[0].mxu0
        %v4149 = vpop.f32.mrb[0].mxu0
        %4150 = vmatprep.mubr.f32.mxu0 0.0
        %4151 = vmatmul.mubr.f32.gmra.mrb[0].mxu0 %v2925
        %v4152 = vpop.f32.mrb[0].mxu0
        %v4153 = vadd.f32 0.0, %v4152
        %v4154 = vpop.f32.mrb[0].mxu0
        %4155 = vmatprep.mubr.f32.mxu0 0.0
        %4156 = vmatmul.mubr.f32.gmra.mrb[0].mxu0 %v2927
        %v4157 = vpop.f32.mrb[0].mxu0
        %v4158 = vadd.f32 0.0, %v4157
        %v4159 = vpop.f32.mrb[0].mxu0
        %4160 = vmatprep.mubr.f32.mxu0 0.0
        %4161 = vmatmul.mubr.f32.gmra.mrb[0].mxu0 %v2929
        %v4162 = vpop.f32.mrb[0].mxu0
        %v4163 = vpop.f32.mrb[0].mxu0
        %4164 = vmatprep.mubr.f32.mxu0 0.0
        %4165 = vmatmul.mubr.f32.gmra.mrb[0].mxu0 %v2931
        %v4166 = vpop.f32.mrb[0].mxu0
        %v4167 = vadd.f32 0.0, %v4166
        %v4168 = vpop.f32.mrb[0].mxu0
        %4169 = vmatprep.mubr.f32.mxu0 0.0
        %4170 = vmatmul.mubr.f32.gmra.mrb[0].mxu0 %v2933
        %v4171 = vpop.f32.mrb[0].mxu0
        %v4172 = vadd.f32 0.0, %v4171
        %v4173 = vpop.f32.mrb[0].mxu0
        %4174 = vmatprep.mubr.f32.mxu0 0.0
        %4175 = vmatmul.mubr.f32.gmra.mrb[0].mxu0 %v2935
        %v4176 = vpop.f32.mrb[0].mxu0
        %v4177 = vpop.f32.mrb[0].mxu0
        %4178 = vmatprep.mubr.f32.mxu0 0.0
        %4179 = vmatmul.mubr.f32.gmra.mrb[0].mxu0 %v2937
        %v4180 = vpop.f32.mrb[0].mxu0
        %v4181 = vadd.f32 0.0, %v4180
        %v4182 = vpop.f32.mrb[0].mxu0
        %4183 = vmatprep.mubr.f32.mxu0 0.0
        %4184 = vmatmul.mubr.f32.gmra.mrb[0].mxu0 %v2939
        %v4185 = vpop.f32.mrb[0].mxu0
        %v4186 = vadd.f32 0.0, %v4185
        %v4187 = vpop.f32.mrb[0].mxu0
        %4188 = vmatprep.mubr.f32.mxu0 0.0
        %4189 = vmatmul.mubr.f32.gmra.mrb[0].mxu0 %v2941
        %v4190 = vpop.f32.mrb[0].mxu0
        %v4191 = vpop.f32.mrb[0].mxu0
        %4192 = vmatprep.mubr.f32.mxu0 0.0
        %4193 = vmatmul.mubr.f32.gmra.mrb[0].mxu0 %v2943
        %v4194 = vpop.f32.mrb[0].mxu0
        %v4195 = vadd.f32 0.0, %v4194
        %v4196 = vpop.f32.mrb[0].mxu0
        %4197 = vmatprep.mubr.f32.mxu0 0.0
        %4198 = vmatmul.mubr.f32.gmra.mrb[0].mxu0 %v2945
        %v4199 = vpop.f32.mrb[0].mxu0
        %v4200 = vadd.f32 0.0, %v4199
        %v4201 = vpop.f32.mrb[0].mxu0
        %4202 = vmatprep.mubr.f32.mxu0 0.0
        %4203 = vmatmul.mubr.f32.gmra.mrb[0].mxu0 %v2947
        %v4204 = vpop.f32.mrb[0].mxu0
        %v4205 = vpop.f32.mrb[0].mxu0
        %4206 = vmatprep.mubr.f32.mxu0 0.0
        %4207 = vmatmul.mubr.f32.gmra.mrb[0].mxu0 %v2949
        %v4208 = vpop.f32.mrb[0].mxu0
        %v4209 = vadd.f32 0.0, %v4208
        %v4210 = vpop.f32.mrb[0].mxu0
        %4211 = vmatprep.mubr.f32.mxu0 0.0
        %4212 = vmatmul.mubr.f32.gmra.mrb[0].mxu0 %v2951
        %v4213 = vpop.f32.mrb[0].mxu0
        %v4214 = vadd.f32 0.0, %v4213
        %v4215 = vpop.f32.mrb[0].mxu0
        %4216 = vmatprep.mubr.f32.mxu0 0.0
        %4217 = vmatmul.mubr.f32.gmra.mrb[0].mxu0 %v2953
        %v4218 = vpop.f32.mrb[0].mxu0
        %v4219 = vpop.f32.mrb[0].mxu0
        %4220 = vmatprep.mubr.f32.mxu0 0.0
        %4221 = vmatmul.mubr.f32.gmra.mrb[0].mxu0 %v2955
        %v4222 = vpop.f32.mrb[0].mxu0
        %v4223 = vadd.f32 0.0, %v4222
        %v4224 = vpop.f32.mrb[0].mxu0
        %4225 = vmatprep.mubr.f32.mxu0 0.0
        %4226 = vmatmul.mubr.f32.gmra.mrb[0].mxu0 %v2957
        %v4227 = vpop.f32.mrb[0].mxu0
        %v4228 = vadd.f32 0.0, %v4227
        %v4229 = vpop.f32.mrb[0].mxu0
        %4230 = vmatprep.mubr.f32.mxu0 0.0
        %4231 = vmatmul.mubr.f32.gmra.mrb[0].mxu0 %v2959
        %v4232 = vpop.f32.mrb[0].mxu0
        %v4233 = vpop.f32.mrb[0].mxu0
        %4234 = vmatprep.mubr.f32.mxu0 0.0
        %4235 = vmatmul.mubr.f32.gmra.mrb[0].mxu0 %v2961
        %v4236 = vpop.f32.mrb[0].mxu0
        %v4237 = vadd.f32 0.0, %v4236
        %v4238 = vpop.f32.mrb[0].mxu0
        %4239 = vmatprep.mubr.f32.mxu0 0.0
        %4240 = vmatmul.mubr.f32.gmra.mrb[0].mxu0 %v2963
        %v4241 = vpop.f32.mrb[0].mxu0
        %v4242 = vadd.f32 0.0, %v4241
        %v4243 = vpop.f32.mrb[0].mxu0
        %4244 = vmatprep.mubr.f32.mxu0 0.0
        %4245 = vmatmul.mubr.f32.gmra.mrb[0].mxu0 %v2965
        %v4246 = vpop.f32.mrb[0].mxu0
        %v4247 = vpop.f32.mrb[0].mxu0
        %4248 = vmatprep.mubr.f32.mxu0 0.0
        %4249 = vmatmul.mubr.f32.gmra.mrb[0].mxu0 %v2967
        %v4250 = vpop.f32.mrb[0].mxu0
        %v4251 = vadd.f32 0.0, %v4250
        %v4252 = vpop.f32.mrb[0].mxu0
        %4253 = vmatprep.mubr.f32.mxu0 0.0
        %4254 = vmatmul.mubr.f32.gmra.mrb[0].mxu0 %v2969
        %v4255 = vpop.f32.mrb[0].mxu0
        %v4256 = vadd.f32 0.0, %v4255
        %v4257 = vpop.f32.mrb[0].mxu0
        %4258 = vmatprep.mubr.f32.mxu0 0.0
        %4259 = vmatmul.mubr.f32.gmra.mrb[0].mxu0 %v2971
        %v4260 = vpop.f32.mrb[0].mxu0
        %v4261 = vpop.f32.mrb[0].mxu0
        %4262 = vmatprep.mubr.f32.mxu0 0.0
        %4263 = vmatmul.mubr.f32.gmra.mrb[0].mxu0 %v2973
        %v4264 = vpop.f32.mrb[0].mxu0
        %v4265 = vadd.f32 0.0, %v4264
        %v4266 = vpop.f32.mrb[0].mxu0
        %4267 = vmatprep.mubr.f32.mxu0 0.0
        %4268 = vmatmul.mubr.f32.gmra.mrb[0].mxu0 %v2975
        %v4269 = vpop.f32.mrb[0].mxu0
        %v4270 = vadd.f32 0.0, %v4269
        %v4271 = vpop.f32.mrb[0].mxu0
        %4272 = vmatprep.mubr.f32.mxu0 0.0
        %4273 = vmatmul.mubr.f32.gmra.mrb[0].mxu0 %v2977
        %v4274 = vpop.f32.mrb[0].mxu0
        %v4275 = vpop.f32.mrb[0].mxu0
        %4276 = vmatprep.mubr.f32.mxu0 0.0
        %4277 = vmatmul.mubr.f32.gmra.mrb[0].mxu0 %v3996
        %v4278 = vpop.f32.mrb[0].mxu0
        %v4279 = vadd.f32 0.0, %v4278
        %v4280 = vpop.f32.mrb[0].mxu0
        %4281 = vmatprep.mubr.f32.mxu0 0.0
        %4282 = vmatmul.mubr.f32.gmra.mrb[0].mxu0 %v3998
        %v4283 = vpop.f32.mrb[0].mxu0
        %v4284 = vadd.f32 0.0, %v4283
        %v4285 = vpop.f32.mrb[0].mxu0
        %4286 = vmatprep.mubr.f32.mxu0 0.0
        %4287 = vmatmul.mubr.f32.gmra.mrb[0].mxu0 %v4000
        %v4288 = vpop.f32.mrb[0].mxu0
        %v4289 = vpop.f32.mrb[0].mxu0
        %4290 = vdwg.mxu0
        %v4291 = vadd.f32 %v3949, %v4069
        %v4292 = vadd.f32 %v3950, %v4074
        %v4293 = vadd.f32 %v3951, %v4083
        %v4294 = vadd.f32 %v3952, %v4088
        %v4295 = vadd.f32 %v3953, %v4097
        %v4296 = vadd.f32 %v3954, %v4102
        %v4297 = vadd.f32 %v3955, %v4111
        %v4298 = vadd.f32 %v3956, %v4116
        %v4299 = vadd.f32 %v3957, %v4125
        %v4300 = vadd.f32 %v3958, %v4130
        %v4301 = vadd.f32 %v3959, %v4139
        %v4302 = vadd.f32 %v3960, %v4144
        %v4303 = vadd.f32 %v3961, %v4153
        %v4304 = vadd.f32 %v3962, %v4158
        %v4305 = vadd.f32 %v3963, %v4167
        %v4306 = vadd.f32 %v3964, %v4172
        %v4307 = vadd.f32 %v3965, %v4181
        %v4308 = vadd.f32 %v3966, %v4186
        %v4309 = vadd.f32 %v3967, %v4195
        %v4310 = vadd.f32 %v3968, %v4200
        %v4311 = vadd.f32 %v3969, %v4209
        %v4312 = vadd.f32 %v3970, %v4214
        %v4313 = vadd.f32 %v3971, %v4223
        %v4314 = vadd.f32 %v3972, %v4228
        %v4315 = vadd.f32 %v3973, %v4237
        %v4316 = vadd.f32 %v3974, %v4242
        %v4317 = vadd.f32 %v3975, %v4251
        %v4318 = vadd.f32 %v3976, %v4256
        %v4319 = vadd.f32 %v3977, %v4265
        %v4320 = vadd.f32 %v3978, %v4270
        %v4321 = vadd.f32 %v3979, %v4279
        %v4322 = vadd.f32 %v3980, %v4284
        %s4323 = scalar_lea.vmem %s5, 384
        %v4324 = vld [vmem:[%s4323] sm:$0xff]
        %v4325 = vld [vmem:[%s4323 + $0x8] sm:$0xff]
        %v4326 = vld [vmem:[%s4323 + $0x10] sm:$0xff]
        %v4327 = vld [vmem:[%s4323 + $0x18] sm:$0xff]
        %v4328 = vld [vmem:[%s4323 + $0x20] sm:$0xff]
        %v4329 = vld [vmem:[%s4323 + $0x28] sm:$0xff]
        %v4330 = vld [vmem:[%s4323 + $0x30] sm:$0xff]
        %v4331 = vld [vmem:[%s4323 + $0x38] sm:$0xff]
        %v4332 = vsel %vm500, %v1838, 0
        %v4335 = vsel %vm500, %v1839, 0
        %v4338 = vsel %vm500, %v1840, 0
        %4340 = vmatprep.subr.mxu0 0.0
        %4341 = vmatpush1.msra.mxu0 %v4324
        %4342 = vmatprep.subr.mxu0 0.0
        %4343 = vmatpush1.msra.mxu0 %v4325
        %4344 = vmatprep.subr.mxu0 0.0
        %4345 = vmatpush1.msra.mxu0 %v4326
        %4346 = vmatprep.subr.mxu0 0.0
        %4347 = vmatpush1.msra.mxu0 %v4327
        %4348 = vmatprep.subr.mxu0 0.0
        %4349 = vmatpush1.msra.mxu0 %v4328
        %4350 = vmatprep.subr.mxu0 0.0
        %4351 = vmatpush1.msra.mxu0 %v4329
        %4352 = vmatprep.subr.mxu0 0.0
        %4353 = vmatpush1.msra.mxu0 %v4330
        %4354 = vmatprep.subr.mxu0 0.0
        %4355 = vmatpush1.msra.mxu0 %v4331
        %4356 = vmatprep.subr.mxu0 0.0
        %4357 = vmatpush1.msra.mxu0 0.0
        %4358 = vmatprep.subr.mxu0 0.0
        %4359 = vmatpush1.msra.mxu0 0.0
        %4360 = vmatprep.subr.mxu0 0.0
        %4361 = vmatpush1.msra.mxu0 0.0
        %4362 = vmatprep.subr.mxu0 0.0
        %4363 = vmatpush1.msra.mxu0 0.0
        %4364 = vmatprep.subr.mxu0 0.0
        %4365 = vmatpush1.msra.mxu0 0.0
        %4366 = vmatprep.subr.mxu0 0.0
        %4367 = vmatpush1.msra.mxu0 0.0
        %4368 = vmatprep.subr.mxu0 0.0
        %4369 = vmatpush1.msra.mxu0 0.0
        %4370 = vmatprep.subr.mxu0 0.0
        %4371 = vmatpush1.msra.mxu0 0.0
        %4372 = vmatprep.subr.mxu0 0.0
        %4373 = vmatpush1.msra.mxu0 0.0
        %4374 = vmatprep.subr.mxu0 0.0
        %4375 = vmatpush1.msra.mxu0 0.0
        %4376 = vmatprep.subr.mxu0 0.0
        %4377 = vmatpush1.msra.mxu0 0.0
        %4378 = vmatprep.subr.mxu0 0.0
        %4379 = vmatpush1.msra.mxu0 0.0
        %4380 = vmatprep.subr.mxu0 0.0
        %4381 = vmatpush1.msra.mxu0 0.0
        %4382 = vmatprep.subr.mxu0 0.0
        %4383 = vmatpush1.msra.mxu0 0.0
        %4384 = vmatprep.subr.mxu0 0.0
        %4385 = vmatpush1.msra.mxu0 0.0
        %4386 = vmatprep.subr.mxu0 0.0
        %4387 = vmatpush1.msra.mxu0 0.0
        %4388 = vmatprep.subr.mxu0 0.0
        %4389 = vmatpush1.msra.mxu0 0.0
        %4390 = vmatprep.subr.mxu0 0.0
        %4391 = vmatpush1.msra.mxu0 0.0
        %4392 = vmatprep.subr.mxu0 0.0
        %4393 = vmatpush1.msra.mxu0 0.0
        %4394 = vmatprep.subr.mxu0 0.0
        %4395 = vmatpush1.msra.mxu0 0.0
        %4396 = vmatprep.subr.mxu0 0.0
        %4397 = vmatpush1.msra.mxu0 0.0
        %4398 = vmatprep.subr.mxu0 0.0
        %4399 = vmatpush1.msra.mxu0 0.0
        %4400 = vmatprep.subr.mxu0 0.0
        %4401 = vmatpush1.msra.mxu0 0.0
        %4402 = vmatprep.subr.mxu0 0.0
        %4403 = vmatpush1.msra.mxu0 0.0
        %4404 = vmatprep.mubr.f32.mxu0 0.0
        %4405 = vmatmul.mubr.f32.gmra.mrb[0].mxu0 %v2403
        %v4406 = vpop.f32.mrb[0].mxu0
        %v4407 = vadd.f32 0.0, %v4406
        %v4408 = vpop.f32.mrb[0].mxu0
        %4409 = vmatprep.mubr.f32.mxu0 0.0
        %4410 = vmatmul.mubr.f32.gmra.mrb[0].mxu0 %v2405
        %v4411 = vpop.f32.mrb[0].mxu0
        %v4412 = vadd.f32 0.0, %v4411
        %v4413 = vpop.f32.mrb[0].mxu0
        %4414 = vmatprep.mubr.f32.mxu0 0.0
        %4415 = vmatmul.mubr.f32.gmra.mrb[0].mxu0 %v2407
        %v4416 = vpop.f32.mrb[0].mxu0
        %v4417 = vpop.f32.mrb[0].mxu0
        %4418 = vmatprep.mubr.f32.mxu0 0.0
        %4419 = vmatmul.mubr.f32.gmra.mrb[0].mxu0 %v2409
        %v4420 = vpop.f32.mrb[0].mxu0
        %v4421 = vadd.f32 0.0, %v4420
        %v4422 = vpop.f32.mrb[0].mxu0
        %4423 = vmatprep.mubr.f32.mxu0 0.0
        %4424 = vmatmul.mubr.f32.gmra.mrb[0].mxu0 %v2411
        %v4425 = vpop.f32.mrb[0].mxu0
        %v4426 = vadd.f32 0.0, %v4425
        %v4427 = vpop.f32.mrb[0].mxu0
        %4428 = vmatprep.mubr.f32.mxu0 0.0
        %4429 = vmatmul.mubr.f32.gmra.mrb[0].mxu0 %v2413
        %v4430 = vpop.f32.mrb[0].mxu0
        %v4431 = vpop.f32.mrb[0].mxu0
        %4432 = vmatprep.mubr.f32.mxu0 0.0
        %4433 = vmatmul.mubr.f32.gmra.mrb[0].mxu0 %v2415
        %v4434 = vpop.f32.mrb[0].mxu0
        %v4435 = vadd.f32 0.0, %v4434
        %v4436 = vpop.f32.mrb[0].mxu0
        %4437 = vmatprep.mubr.f32.mxu0 0.0
        %4438 = vmatmul.mubr.f32.gmra.mrb[0].mxu0 %v2417
        %v4439 = vpop.f32.mrb[0].mxu0
        %v4440 = vadd.f32 0.0, %v4439
        %v4441 = vpop.f32.mrb[0].mxu0
        %4442 = vmatprep.mubr.f32.mxu0 0.0
        %4443 = vmatmul.mubr.f32.gmra.mrb[0].mxu0 %v2419
        %v4444 = vpop.f32.mrb[0].mxu0
        %v4445 = vpop.f32.mrb[0].mxu0
        %4446 = vmatprep.mubr.f32.mxu0 0.0
        %4447 = vmatmul.mubr.f32.gmra.mrb[0].mxu0 %v2421
        %v4448 = vpop.f32.mrb[0].mxu0
        %v4449 = vadd.f32 0.0, %v4448
        %v4450 = vpop.f32.mrb[0].mxu0
        %4451 = vmatprep.mubr.f32.mxu0 0.0
        %4452 = vmatmul.mubr.f32.gmra.mrb[0].mxu0 %v2423
        %v4453 = vpop.f32.mrb[0].mxu0
        %v4454 = vadd.f32 0.0, %v4453
        %v4455 = vpop.f32.mrb[0].mxu0
        %4456 = vmatprep.mubr.f32.mxu0 0.0
        %4457 = vmatmul.mubr.f32.gmra.mrb[0].mxu0 %v2425
        %v4458 = vpop.f32.mrb[0].mxu0
        %v4459 = vpop.f32.mrb[0].mxu0
        %4460 = vmatprep.mubr.f32.mxu0 0.0
        %4461 = vmatmul.mubr.f32.gmra.mrb[0].mxu0 %v2427
        %v4462 = vpop.f32.mrb[0].mxu0
        %v4463 = vadd.f32 0.0, %v4462
        %v4464 = vpop.f32.mrb[0].mxu0
        %4465 = vmatprep.mubr.f32.mxu0 0.0
        %4466 = vmatmul.mubr.f32.gmra.mrb[0].mxu0 %v2429
        %v4467 = vpop.f32.mrb[0].mxu0
        %v4468 = vadd.f32 0.0, %v4467
        %v4469 = vpop.f32.mrb[0].mxu0
        %4470 = vmatprep.mubr.f32.mxu0 0.0
        %4471 = vmatmul.mubr.f32.gmra.mrb[0].mxu0 %v2431
        %v4472 = vpop.f32.mrb[0].mxu0
        %v4473 = vpop.f32.mrb[0].mxu0
        %4474 = vmatprep.mubr.f32.mxu0 0.0
        %4475 = vmatmul.mubr.f32.gmra.mrb[0].mxu0 %v2433
        %v4476 = vpop.f32.mrb[0].mxu0
        %v4477 = vadd.f32 0.0, %v4476
        %v4478 = vpop.f32.mrb[0].mxu0
        %4479 = vmatprep.mubr.f32.mxu0 0.0
        %4480 = vmatmul.mubr.f32.gmra.mrb[0].mxu0 %v2435
        %v4481 = vpop.f32.mrb[0].mxu0
        %v4482 = vadd.f32 0.0, %v4481
        %v4483 = vpop.f32.mrb[0].mxu0
        %4484 = vmatprep.mubr.f32.mxu0 0.0
        %4485 = vmatmul.mubr.f32.gmra.mrb[0].mxu0 %v2437
        %v4486 = vpop.f32.mrb[0].mxu0
        %v4487 = vpop.f32.mrb[0].mxu0
        %4488 = vmatprep.mubr.f32.mxu0 0.0
        %4489 = vmatmul.mubr.f32.gmra.mrb[0].mxu0 %v2439
        %v4490 = vpop.f32.mrb[0].mxu0
        %v4491 = vadd.f32 0.0, %v4490
        %v4492 = vpop.f32.mrb[0].mxu0
        %4493 = vmatprep.mubr.f32.mxu0 0.0
        %4494 = vmatmul.mubr.f32.gmra.mrb[0].mxu0 %v2441
        %v4495 = vpop.f32.mrb[0].mxu0
        %v4496 = vadd.f32 0.0, %v4495
        %v4497 = vpop.f32.mrb[0].mxu0
        %4498 = vmatprep.mubr.f32.mxu0 0.0
        %4499 = vmatmul.mubr.f32.gmra.mrb[0].mxu0 %v2443
        %v4500 = vpop.f32.mrb[0].mxu0
        %v4501 = vpop.f32.mrb[0].mxu0
        %4502 = vmatprep.mubr.f32.mxu0 0.0
        %4503 = vmatmul.mubr.f32.gmra.mrb[0].mxu0 %v2445
        %v4504 = vpop.f32.mrb[0].mxu0
        %v4505 = vadd.f32 0.0, %v4504
        %v4506 = vpop.f32.mrb[0].mxu0
        %4507 = vmatprep.mubr.f32.mxu0 0.0
        %4508 = vmatmul.mubr.f32.gmra.mrb[0].mxu0 %v2447
        %v4509 = vpop.f32.mrb[0].mxu0
        %v4510 = vadd.f32 0.0, %v4509
        %v4511 = vpop.f32.mrb[0].mxu0
        %4512 = vmatprep.mubr.f32.mxu0 0.0
        %4513 = vmatmul.mubr.f32.gmra.mrb[0].mxu0 %v2449
        %v4514 = vpop.f32.mrb[0].mxu0
        %v4515 = vpop.f32.mrb[0].mxu0
        %4516 = vmatprep.mubr.f32.mxu0 0.0
        %4517 = vmatmul.mubr.f32.gmra.mrb[0].mxu0 %v2451
        %v4518 = vpop.f32.mrb[0].mxu0
        %v4519 = vadd.f32 0.0, %v4518
        %v4520 = vpop.f32.mrb[0].mxu0
        %4521 = vmatprep.mubr.f32.mxu0 0.0
        %4522 = vmatmul.mubr.f32.gmra.mrb[0].mxu0 %v2453
        %v4523 = vpop.f32.mrb[0].mxu0
        %v4524 = vadd.f32 0.0, %v4523
        %v4525 = vpop.f32.mrb[0].mxu0
        %4526 = vmatprep.mubr.f32.mxu0 0.0
        %4527 = vmatmul.mubr.f32.gmra.mrb[0].mxu0 %v2455
        %v4528 = vpop.f32.mrb[0].mxu0
        %v4529 = vpop.f32.mrb[0].mxu0
        %4530 = vmatprep.mubr.f32.mxu0 0.0
        %4531 = vmatmul.mubr.f32.gmra.mrb[0].mxu0 %v2457
        %v4532 = vpop.f32.mrb[0].mxu0
        %v4533 = vadd.f32 0.0, %v4532
        %v4534 = vpop.f32.mrb[0].mxu0
        %4535 = vmatprep.mubr.f32.mxu0 0.0
        %4536 = vmatmul.mubr.f32.gmra.mrb[0].mxu0 %v2459
        %v4537 = vpop.f32.mrb[0].mxu0
        %v4538 = vadd.f32 0.0, %v4537
        %v4539 = vpop.f32.mrb[0].mxu0
        %4540 = vmatprep.mubr.f32.mxu0 0.0
        %4541 = vmatmul.mubr.f32.gmra.mrb[0].mxu0 %v2461
        %v4542 = vpop.f32.mrb[0].mxu0
        %v4543 = vpop.f32.mrb[0].mxu0
        %4544 = vmatprep.mubr.f32.mxu0 0.0
        %4545 = vmatmul.mubr.f32.gmra.mrb[0].mxu0 %v2463
        %v4546 = vpop.f32.mrb[0].mxu0
        %v4547 = vadd.f32 0.0, %v4546
        %v4548 = vpop.f32.mrb[0].mxu0
        %4549 = vmatprep.mubr.f32.mxu0 0.0
        %4550 = vmatmul.mubr.f32.gmra.mrb[0].mxu0 %v2465
        %v4551 = vpop.f32.mrb[0].mxu0
        %v4552 = vadd.f32 0.0, %v4551
        %v4553 = vpop.f32.mrb[0].mxu0
        %4554 = vmatprep.mubr.f32.mxu0 0.0
        %4555 = vmatmul.mubr.f32.gmra.mrb[0].mxu0 %v2467
        %v4556 = vpop.f32.mrb[0].mxu0
        %v4557 = vpop.f32.mrb[0].mxu0
        %4558 = vmatprep.mubr.f32.mxu0 0.0
        %4559 = vmatmul.mubr.f32.gmra.mrb[0].mxu0 %v2469
        %v4560 = vpop.f32.mrb[0].mxu0
        %v4561 = vadd.f32 0.0, %v4560
        %v4562 = vpop.f32.mrb[0].mxu0
        %4563 = vmatprep.mubr.f32.mxu0 0.0
        %4564 = vmatmul.mubr.f32.gmra.mrb[0].mxu0 %v2471
        %v4565 = vpop.f32.mrb[0].mxu0
        %v4566 = vadd.f32 0.0, %v4565
        %v4567 = vpop.f32.mrb[0].mxu0
        %4568 = vmatprep.mubr.f32.mxu0 0.0
        %4569 = vmatmul.mubr.f32.gmra.mrb[0].mxu0 %v2473
        %v4570 = vpop.f32.mrb[0].mxu0
        %v4571 = vpop.f32.mrb[0].mxu0
        %4572 = vmatprep.mubr.f32.mxu0 0.0
        %4573 = vmatmul.mubr.f32.gmra.mrb[0].mxu0 %v2475
        %v4574 = vpop.f32.mrb[0].mxu0
        %v4575 = vadd.f32 0.0, %v4574
        %v4576 = vpop.f32.mrb[0].mxu0
        %4577 = vmatprep.mubr.f32.mxu0 0.0
        %4578 = vmatmul.mubr.f32.gmra.mrb[0].mxu0 %v2477
        %v4579 = vpop.f32.mrb[0].mxu0
        %v4580 = vadd.f32 0.0, %v4579
        %v4581 = vpop.f32.mrb[0].mxu0
        %4582 = vmatprep.mubr.f32.mxu0 0.0
        %4583 = vmatmul.mubr.f32.gmra.mrb[0].mxu0 %v2479
        %v4584 = vpop.f32.mrb[0].mxu0
        %v4585 = vpop.f32.mrb[0].mxu0
        %4586 = vmatprep.mubr.f32.mxu0 0.0
        %4587 = vmatmul.mubr.f32.gmra.mrb[0].mxu0 %v2481
        %v4588 = vpop.f32.mrb[0].mxu0
        %v4589 = vadd.f32 0.0, %v4588
        %v4590 = vpop.f32.mrb[0].mxu0
        %4591 = vmatprep.mubr.f32.mxu0 0.0
        %4592 = vmatmul.mubr.f32.gmra.mrb[0].mxu0 %v2483
        %v4593 = vpop.f32.mrb[0].mxu0
        %v4594 = vadd.f32 0.0, %v4593
        %v4595 = vpop.f32.mrb[0].mxu0
        %4596 = vmatprep.mubr.f32.mxu0 0.0
        %4597 = vmatmul.mubr.f32.gmra.mrb[0].mxu0 %v2485
        %v4598 = vpop.f32.mrb[0].mxu0
        %v4599 = vpop.f32.mrb[0].mxu0
        %4600 = vmatprep.mubr.f32.mxu0 0.0
        %4601 = vmatmul.mubr.f32.gmra.mrb[0].mxu0 %v3309
        %v4602 = vpop.f32.mrb[0].mxu0
        %v4603 = vadd.f32 0.0, %v4602
        %v4604 = vpop.f32.mrb[0].mxu0
        %4605 = vmatprep.mubr.f32.mxu0 0.0
        %4606 = vmatmul.mubr.f32.gmra.mrb[0].mxu0 %v3312
        %v4607 = vpop.f32.mrb[0].mxu0
        %v4608 = vadd.f32 0.0, %v4607
        %v4609 = vpop.f32.mrb[0].mxu0
        %4610 = vmatprep.mubr.f32.mxu0 0.0
        %4611 = vmatmul.mubr.f32.gmra.mrb[0].mxu0 %v3315
        %v4612 = vpop.f32.mrb[0].mxu0
        %v4613 = vpop.f32.mrb[0].mxu0
        %4614 = vmatprep.mubr.f32.mxu0 0.0
        %4615 = vmatmul.mubr.f32.gmra.mrb[0].mxu0 %v4332
        %v4616 = vpop.f32.mrb[0].mxu0
        %v4617 = vadd.f32 0.0, %v4616
        %v4618 = vpop.f32.mrb[0].mxu0
        %4619 = vmatprep.mubr.f32.mxu0 0.0
        %4620 = vmatmul.mubr.f32.gmra.mrb[0].mxu0 %v4335
        %v4621 = vpop.f32.mrb[0].mxu0
        %v4622 = vadd.f32 0.0, %v4621
        %v4623 = vpop.f32.mrb[0].mxu0
        %4624 = vmatprep.mubr.f32.mxu0 0.0
        %4625 = vmatmul.mubr.f32.gmra.mrb[0].mxu0 %v4338
        %v4626 = vpop.f32.mrb[0].mxu0
        %v4627 = vpop.f32.mrb[0].mxu0
        %4628 = vdwg.mxu0
        %v4629 = vadd.f32 %v4291, %v4407
        %v4630 = vadd.f32 %v4292, %v4412
        %v4631 = vadd.f32 %v4293, %v4421
        %v4632 = vadd.f32 %v4294, %v4426
        %v4633 = vadd.f32 %v4295, %v4435
        %v4634 = vadd.f32 %v4296, %v4440
        %v4635 = vadd.f32 %v4297, %v4449
        %v4636 = vadd.f32 %v4298, %v4454
        %v4637 = vadd.f32 %v4299, %v4463
        %v4638 = vadd.f32 %v4300, %v4468
        %v4639 = vadd.f32 %v4301, %v4477
        %v4640 = vadd.f32 %v4302, %v4482
        %v4641 = vadd.f32 %v4303, %v4491
        %v4642 = vadd.f32 %v4304, %v4496
        %v4643 = vadd.f32 %v4305, %v4505
        %v4644 = vadd.f32 %v4306, %v4510
        %v4645 = vadd.f32 %v4307, %v4519
        %v4646 = vadd.f32 %v4308, %v4524
        %v4647 = vadd.f32 %v4309, %v4533
        %v4648 = vadd.f32 %v4310, %v4538
        %v4649 = vadd.f32 %v4311, %v4547
        %v4650 = vadd.f32 %v4312, %v4552
        %v4651 = vadd.f32 %v4313, %v4561
        %v4652 = vadd.f32 %v4314, %v4566
        %v4653 = vadd.f32 %v4315, %v4575
        %v4654 = vadd.f32 %v4316, %v4580
        %v4655 = vadd.f32 %v4317, %v4589
        %v4656 = vadd.f32 %v4318, %v4594
        %v4657 = vadd.f32 %v4319, %v4603
        %v4658 = vadd.f32 %v4320, %v4608
        %v4659 = vadd.f32 %v4321, %v4617
        %v4660 = vadd.f32 %v4322, %v4622
        %s4661 = scalar_lea.vmem %s5, 448
        %v4662 = vld [vmem:[%s4661] sm:$0xff]
        %v4663 = vld [vmem:[%s4661 + $0x8] sm:$0xff]
        %v4664 = vld [vmem:[%s4661 + $0x10] sm:$0xff]
        %v4665 = vld [vmem:[%s4661 + $0x18] sm:$0xff]
        %v4666 = vld [vmem:[%s4661 + $0x20] sm:$0xff]
        %v4667 = vld [vmem:[%s4661 + $0x28] sm:$0xff]
        %v4668 = vld [vmem:[%s4661 + $0x30] sm:$0xff]
        %v4669 = vld [vmem:[%s4661 + $0x38] sm:$0xff]
        %v4671 = vrot.slane %v1839, 1
        %v4672 = vsel %vm1908, %v3652, %v4671
        %v4673 = vrot.slane %v1840, 1
        %v4674 = vsel %vm1908, %v4671, %v4673
        %v4675 = vrot.slane %v1841, 1
        %v4676 = vsel %vm1908, %v4673, %v4675
        %v4677 = vsel %vm500, %v4672, 0
        %v4679 = vsel %vm500, %v4674, 0
        %v4681 = vsel %vm500, %v4676, 0
        %4683 = vmatprep.subr.mxu0 0.0
        %4684 = vmatpush1.msra.mxu0 %v4662
        %4685 = vmatprep.subr.mxu0 0.0
        %4686 = vmatpush1.msra.mxu0 %v4663
        %4687 = vmatprep.subr.mxu0 0.0
        %4688 = vmatpush1.msra.mxu0 %v4664
        %4689 = vmatprep.subr.mxu0 0.0
        %4690 = vmatpush1.msra.mxu0 %v4665
        %4691 = vmatprep.subr.mxu0 0.0
        %4692 = vmatpush1.msra.mxu0 %v4666
        %4693 = vmatprep.subr.mxu0 0.0
        %4694 = vmatpush1.msra.mxu0 %v4667
        %4695 = vmatprep.subr.mxu0 0.0
        %4696 = vmatpush1.msra.mxu0 %v4668
        %4697 = vmatprep.subr.mxu0 0.0
        %4698 = vmatpush1.msra.mxu0 %v4669
        %4699 = vmatprep.subr.mxu0 0.0
        %4700 = vmatpush1.msra.mxu0 0.0
        %4701 = vmatprep.subr.mxu0 0.0
        %4702 = vmatpush1.msra.mxu0 0.0
        %4703 = vmatprep.subr.mxu0 0.0
        %4704 = vmatpush1.msra.mxu0 0.0
        %4705 = vmatprep.subr.mxu0 0.0
        %4706 = vmatpush1.msra.mxu0 0.0
        %4707 = vmatprep.subr.mxu0 0.0
        %4708 = vmatpush1.msra.mxu0 0.0
        %4709 = vmatprep.subr.mxu0 0.0
        %4710 = vmatpush1.msra.mxu0 0.0
        %4711 = vmatprep.subr.mxu0 0.0
        %4712 = vmatpush1.msra.mxu0 0.0
        %4713 = vmatprep.subr.mxu0 0.0
        %4714 = vmatpush1.msra.mxu0 0.0
        %4715 = vmatprep.subr.mxu0 0.0
        %4716 = vmatpush1.msra.mxu0 0.0
        %4717 = vmatprep.subr.mxu0 0.0
        %4718 = vmatpush1.msra.mxu0 0.0
        %4719 = vmatprep.subr.mxu0 0.0
        %4720 = vmatpush1.msra.mxu0 0.0
        %4721 = vmatprep.subr.mxu0 0.0
        %4722 = vmatpush1.msra.mxu0 0.0
        %4723 = vmatprep.subr.mxu0 0.0
        %4724 = vmatpush1.msra.mxu0 0.0
        %4725 = vmatprep.subr.mxu0 0.0
        %4726 = vmatpush1.msra.mxu0 0.0
        %4727 = vmatprep.subr.mxu0 0.0
        %4728 = vmatpush1.msra.mxu0 0.0
        %4729 = vmatprep.subr.mxu0 0.0
        %4730 = vmatpush1.msra.mxu0 0.0
        %4731 = vmatprep.subr.mxu0 0.0
        %4732 = vmatpush1.msra.mxu0 0.0
        %4733 = vmatprep.subr.mxu0 0.0
        %4734 = vmatpush1.msra.mxu0 0.0
        %4735 = vmatprep.subr.mxu0 0.0
        %4736 = vmatpush1.msra.mxu0 0.0
        %4737 = vmatprep.subr.mxu0 0.0
        %4738 = vmatpush1.msra.mxu0 0.0
        %4739 = vmatprep.subr.mxu0 0.0
        %4740 = vmatpush1.msra.mxu0 0.0
        %4741 = vmatprep.subr.mxu0 0.0
        %4742 = vmatpush1.msra.mxu0 0.0
        %4743 = vmatprep.subr.mxu0 0.0
        %4744 = vmatpush1.msra.mxu0 0.0
        %4745 = vmatprep.subr.mxu0 0.0
        %4746 = vmatpush1.msra.mxu0 0.0
        %4747 = vmatprep.mubr.f32.mxu0 0.0
        %4748 = vmatmul.mubr.f32.gmra.mrb[0].mxu0 %v2018
        %v4749 = vpop.f32.mrb[0].mxu0
        %v4750 = vadd.f32 0.0, %v4749
        %v4751 = vpop.f32.mrb[0].mxu0
        %4752 = vmatprep.mubr.f32.mxu0 0.0
        %4753 = vmatmul.mubr.f32.gmra.mrb[0].mxu0 %v2020
        %v4754 = vpop.f32.mrb[0].mxu0
        %v4755 = vadd.f32 0.0, %v4754
        %v4756 = vpop.f32.mrb[0].mxu0
        %4757 = vmatprep.mubr.f32.mxu0 0.0
        %4758 = vmatmul.mubr.f32.gmra.mrb[0].mxu0 %v2022
        %v4759 = vpop.f32.mrb[0].mxu0
        %v4760 = vpop.f32.mrb[0].mxu0
        %4761 = vmatprep.mubr.f32.mxu0 0.0
        %4762 = vmatmul.mubr.f32.gmra.mrb[0].mxu0 %v2024
        %v4763 = vpop.f32.mrb[0].mxu0
        %v4764 = vadd.f32 0.0, %v4763
        %v4765 = vpop.f32.mrb[0].mxu0
        %4766 = vmatprep.mubr.f32.mxu0 0.0
        %4767 = vmatmul.mubr.f32.gmra.mrb[0].mxu0 %v2026
        %v4768 = vpop.f32.mrb[0].mxu0
        %v4769 = vadd.f32 0.0, %v4768
        %v4770 = vpop.f32.mrb[0].mxu0
        %4771 = vmatprep.mubr.f32.mxu0 0.0
        %4772 = vmatmul.mubr.f32.gmra.mrb[0].mxu0 %v2028
        %v4773 = vpop.f32.mrb[0].mxu0
        %v4774 = vpop.f32.mrb[0].mxu0
        %4775 = vmatprep.mubr.f32.mxu0 0.0
        %4776 = vmatmul.mubr.f32.gmra.mrb[0].mxu0 %v2030
        %v4777 = vpop.f32.mrb[0].mxu0
        %v4778 = vadd.f32 0.0, %v4777
        %v4779 = vpop.f32.mrb[0].mxu0
        %4780 = vmatprep.mubr.f32.mxu0 0.0
        %4781 = vmatmul.mubr.f32.gmra.mrb[0].mxu0 %v2032
        %v4782 = vpop.f32.mrb[0].mxu0
        %v4783 = vadd.f32 0.0, %v4782
        %v4784 = vpop.f32.mrb[0].mxu0
        %4785 = vmatprep.mubr.f32.mxu0 0.0
        %4786 = vmatmul.mubr.f32.gmra.mrb[0].mxu0 %v2034
        %v4787 = vpop.f32.mrb[0].mxu0
        %v4788 = vpop.f32.mrb[0].mxu0
        %4789 = vmatprep.mubr.f32.mxu0 0.0
        %4790 = vmatmul.mubr.f32.gmra.mrb[0].mxu0 %v2036
        %v4791 = vpop.f32.mrb[0].mxu0
        %v4792 = vadd.f32 0.0, %v4791
        %v4793 = vpop.f32.mrb[0].mxu0
        %4794 = vmatprep.mubr.f32.mxu0 0.0
        %4795 = vmatmul.mubr.f32.gmra.mrb[0].mxu0 %v2038
        %v4796 = vpop.f32.mrb[0].mxu0
        %v4797 = vadd.f32 0.0, %v4796
        %v4798 = vpop.f32.mrb[0].mxu0
        %4799 = vmatprep.mubr.f32.mxu0 0.0
        %4800 = vmatmul.mubr.f32.gmra.mrb[0].mxu0 %v2040
        %v4801 = vpop.f32.mrb[0].mxu0
        %v4802 = vpop.f32.mrb[0].mxu0
        %4803 = vmatprep.mubr.f32.mxu0 0.0
        %4804 = vmatmul.mubr.f32.gmra.mrb[0].mxu0 %v2042
        %v4805 = vpop.f32.mrb[0].mxu0
        %v4806 = vadd.f32 0.0, %v4805
        %v4807 = vpop.f32.mrb[0].mxu0
        %4808 = vmatprep.mubr.f32.mxu0 0.0
        %4809 = vmatmul.mubr.f32.gmra.mrb[0].mxu0 %v2044
        %v4810 = vpop.f32.mrb[0].mxu0
        %v4811 = vadd.f32 0.0, %v4810
        %v4812 = vpop.f32.mrb[0].mxu0
        %4813 = vmatprep.mubr.f32.mxu0 0.0
        %4814 = vmatmul.mubr.f32.gmra.mrb[0].mxu0 %v2046
        %v4815 = vpop.f32.mrb[0].mxu0
        %v4816 = vpop.f32.mrb[0].mxu0
        %4817 = vmatprep.mubr.f32.mxu0 0.0
        %4818 = vmatmul.mubr.f32.gmra.mrb[0].mxu0 %v2048
        %v4819 = vpop.f32.mrb[0].mxu0
        %v4820 = vadd.f32 0.0, %v4819
        %v4821 = vpop.f32.mrb[0].mxu0
        %4822 = vmatprep.mubr.f32.mxu0 0.0
        %4823 = vmatmul.mubr.f32.gmra.mrb[0].mxu0 %v2050
        %v4824 = vpop.f32.mrb[0].mxu0
        %v4825 = vadd.f32 0.0, %v4824
        %v4826 = vpop.f32.mrb[0].mxu0
        %4827 = vmatprep.mubr.f32.mxu0 0.0
        %4828 = vmatmul.mubr.f32.gmra.mrb[0].mxu0 %v2052
        %v4829 = vpop.f32.mrb[0].mxu0
        %v4830 = vpop.f32.mrb[0].mxu0
        %4831 = vmatprep.mubr.f32.mxu0 0.0
        %4832 = vmatmul.mubr.f32.gmra.mrb[0].mxu0 %v2054
        %v4833 = vpop.f32.mrb[0].mxu0
        %v4834 = vadd.f32 0.0, %v4833
        %v4835 = vpop.f32.mrb[0].mxu0
        %4836 = vmatprep.mubr.f32.mxu0 0.0
        %4837 = vmatmul.mubr.f32.gmra.mrb[0].mxu0 %v2056
        %v4838 = vpop.f32.mrb[0].mxu0
        %v4839 = vadd.f32 0.0, %v4838
        %v4840 = vpop.f32.mrb[0].mxu0
        %4841 = vmatprep.mubr.f32.mxu0 0.0
        %4842 = vmatmul.mubr.f32.gmra.mrb[0].mxu0 %v2058
        %v4843 = vpop.f32.mrb[0].mxu0
        %v4844 = vpop.f32.mrb[0].mxu0
        %4845 = vmatprep.mubr.f32.mxu0 0.0
        %4846 = vmatmul.mubr.f32.gmra.mrb[0].mxu0 %v2060
        %v4847 = vpop.f32.mrb[0].mxu0
        %v4848 = vadd.f32 0.0, %v4847
        %v4849 = vpop.f32.mrb[0].mxu0
        %4850 = vmatprep.mubr.f32.mxu0 0.0
        %4851 = vmatmul.mubr.f32.gmra.mrb[0].mxu0 %v2062
        %v4852 = vpop.f32.mrb[0].mxu0
        %v4853 = vadd.f32 0.0, %v4852
        %v4854 = vpop.f32.mrb[0].mxu0
        %4855 = vmatprep.mubr.f32.mxu0 0.0
        %4856 = vmatmul.mubr.f32.gmra.mrb[0].mxu0 %v2064
        %v4857 = vpop.f32.mrb[0].mxu0
        %v4858 = vpop.f32.mrb[0].mxu0
        %4859 = vmatprep.mubr.f32.mxu0 0.0
        %4860 = vmatmul.mubr.f32.gmra.mrb[0].mxu0 %v2066
        %v4861 = vpop.f32.mrb[0].mxu0
        %v4862 = vadd.f32 0.0, %v4861
        %v4863 = vpop.f32.mrb[0].mxu0
        %4864 = vmatprep.mubr.f32.mxu0 0.0
        %4865 = vmatmul.mubr.f32.gmra.mrb[0].mxu0 %v2068
        %v4866 = vpop.f32.mrb[0].mxu0
        %v4867 = vadd.f32 0.0, %v4866
        %v4868 = vpop.f32.mrb[0].mxu0
        %4869 = vmatprep.mubr.f32.mxu0 0.0
        %4870 = vmatmul.mubr.f32.gmra.mrb[0].mxu0 %v2070
        %v4871 = vpop.f32.mrb[0].mxu0
        %v4872 = vpop.f32.mrb[0].mxu0
        %4873 = vmatprep.mubr.f32.mxu0 0.0
        %4874 = vmatmul.mubr.f32.gmra.mrb[0].mxu0 %v2072
        %v4875 = vpop.f32.mrb[0].mxu0
        %v4876 = vadd.f32 0.0, %v4875
        %v4877 = vpop.f32.mrb[0].mxu0
        %4878 = vmatprep.mubr.f32.mxu0 0.0
        %4879 = vmatmul.mubr.f32.gmra.mrb[0].mxu0 %v2074
        %v4880 = vpop.f32.mrb[0].mxu0
        %v4881 = vadd.f32 0.0, %v4880
        %v4882 = vpop.f32.mrb[0].mxu0
        %4883 = vmatprep.mubr.f32.mxu0 0.0
        %4884 = vmatmul.mubr.f32.gmra.mrb[0].mxu0 %v2076
        %v4885 = vpop.f32.mrb[0].mxu0
        %v4886 = vpop.f32.mrb[0].mxu0
        %4887 = vmatprep.mubr.f32.mxu0 0.0
        %4888 = vmatmul.mubr.f32.gmra.mrb[0].mxu0 %v2078
        %v4889 = vpop.f32.mrb[0].mxu0
        %v4890 = vadd.f32 0.0, %v4889
        %v4891 = vpop.f32.mrb[0].mxu0
        %4892 = vmatprep.mubr.f32.mxu0 0.0
        %4893 = vmatmul.mubr.f32.gmra.mrb[0].mxu0 %v2080
        %v4894 = vpop.f32.mrb[0].mxu0
        %v4895 = vadd.f32 0.0, %v4894
        %v4896 = vpop.f32.mrb[0].mxu0
        %4897 = vmatprep.mubr.f32.mxu0 0.0
        %4898 = vmatmul.mubr.f32.gmra.mrb[0].mxu0 %v2082
        %v4899 = vpop.f32.mrb[0].mxu0
        %v4900 = vpop.f32.mrb[0].mxu0
        %4901 = vmatprep.mubr.f32.mxu0 0.0
        %4902 = vmatmul.mubr.f32.gmra.mrb[0].mxu0 %v2084
        %v4903 = vpop.f32.mrb[0].mxu0
        %v4904 = vadd.f32 0.0, %v4903
        %v4905 = vpop.f32.mrb[0].mxu0
        %4906 = vmatprep.mubr.f32.mxu0 0.0
        %4907 = vmatmul.mubr.f32.gmra.mrb[0].mxu0 %v2086
        %v4908 = vpop.f32.mrb[0].mxu0
        %v4909 = vadd.f32 0.0, %v4908
        %v4910 = vpop.f32.mrb[0].mxu0
        %4911 = vmatprep.mubr.f32.mxu0 0.0
        %4912 = vmatmul.mubr.f32.gmra.mrb[0].mxu0 %v2088
        %v4913 = vpop.f32.mrb[0].mxu0
        %v4914 = vpop.f32.mrb[0].mxu0
        %4915 = vmatprep.mubr.f32.mxu0 0.0
        %4916 = vmatmul.mubr.f32.gmra.mrb[0].mxu0 %v2090
        %v4917 = vpop.f32.mrb[0].mxu0
        %v4918 = vadd.f32 0.0, %v4917
        %v4919 = vpop.f32.mrb[0].mxu0
        %4920 = vmatprep.mubr.f32.mxu0 0.0
        %4921 = vmatmul.mubr.f32.gmra.mrb[0].mxu0 %v2092
        %v4922 = vpop.f32.mrb[0].mxu0
        %v4923 = vadd.f32 0.0, %v4922
        %v4924 = vpop.f32.mrb[0].mxu0
        %4925 = vmatprep.mubr.f32.mxu0 0.0
        %4926 = vmatmul.mubr.f32.gmra.mrb[0].mxu0 %v2094
        %v4927 = vpop.f32.mrb[0].mxu0
        %v4928 = vpop.f32.mrb[0].mxu0
        %4929 = vmatprep.mubr.f32.mxu0 0.0
        %4930 = vmatmul.mubr.f32.gmra.mrb[0].mxu0 %v2096
        %v4931 = vpop.f32.mrb[0].mxu0
        %v4932 = vadd.f32 0.0, %v4931
        %v4933 = vpop.f32.mrb[0].mxu0
        %4934 = vmatprep.mubr.f32.mxu0 0.0
        %4935 = vmatmul.mubr.f32.gmra.mrb[0].mxu0 %v2098
        %v4936 = vpop.f32.mrb[0].mxu0
        %v4937 = vadd.f32 0.0, %v4936
        %v4938 = vpop.f32.mrb[0].mxu0
        %4939 = vmatprep.mubr.f32.mxu0 0.0
        %4940 = vmatmul.mubr.f32.gmra.mrb[0].mxu0 %v2100
        %v4941 = vpop.f32.mrb[0].mxu0
        %v4942 = vpop.f32.mrb[0].mxu0
        %4943 = vmatprep.mubr.f32.mxu0 0.0
        %4944 = vmatmul.mubr.f32.gmra.mrb[0].mxu0 %v3654
        %v4945 = vpop.f32.mrb[0].mxu0
        %v4946 = vadd.f32 0.0, %v4945
        %v4947 = vpop.f32.mrb[0].mxu0
        %4948 = vmatprep.mubr.f32.mxu0 0.0
        %4949 = vmatmul.mubr.f32.gmra.mrb[0].mxu0 %v3656
        %v4950 = vpop.f32.mrb[0].mxu0
        %v4951 = vadd.f32 0.0, %v4950
        %v4952 = vpop.f32.mrb[0].mxu0
        %4953 = vmatprep.mubr.f32.mxu0 0.0
        %4954 = vmatmul.mubr.f32.gmra.mrb[0].mxu0 %v3658
        %v4955 = vpop.f32.mrb[0].mxu0
        %v4956 = vpop.f32.mrb[0].mxu0
        %4957 = vmatprep.mubr.f32.mxu0 0.0
        %4958 = vmatmul.mubr.f32.gmra.mrb[0].mxu0 %v4677
        %v4959 = vpop.f32.mrb[0].mxu0
        %v4960 = vadd.f32 0.0, %v4959
        %v4961 = vpop.f32.mrb[0].mxu0
        %4962 = vmatprep.mubr.f32.mxu0 0.0
        %4963 = vmatmul.mubr.f32.gmra.mrb[0].mxu0 %v4679
        %v4964 = vpop.f32.mrb[0].mxu0
        %v4965 = vadd.f32 0.0, %v4964
        %v4966 = vpop.f32.mrb[0].mxu0
        %4967 = vmatprep.mubr.f32.mxu0 0.0
        %4968 = vmatmul.mubr.f32.gmra.mrb[0].mxu0 %v4681
        %v4969 = vpop.f32.mrb[0].mxu0
        %v4970 = vpop.f32.mrb[0].mxu0
        %4971 = vdwg.mxu0
        %v4972 = vadd.f32 %v4629, %v4750
        %v4973 = vadd.f32 %v4630, %v4755
        %v4974 = vadd.f32 %v4631, %v4764
        %v4975 = vadd.f32 %v4632, %v4769
        %v4976 = vadd.f32 %v4633, %v4778
        %v4977 = vadd.f32 %v4634, %v4783
        %v4978 = vadd.f32 %v4635, %v4792
        %v4979 = vadd.f32 %v4636, %v4797
        %v4980 = vadd.f32 %v4637, %v4806
        %v4981 = vadd.f32 %v4638, %v4811
        %v4982 = vadd.f32 %v4639, %v4820
        %v4983 = vadd.f32 %v4640, %v4825
        %v4984 = vadd.f32 %v4641, %v4834
        %v4985 = vadd.f32 %v4642, %v4839
        %v4986 = vadd.f32 %v4643, %v4848
        %v4987 = vadd.f32 %v4644, %v4853
        %v4988 = vadd.f32 %v4645, %v4862
        %v4989 = vadd.f32 %v4646, %v4867
        %v4990 = vadd.f32 %v4647, %v4876
        %v4991 = vadd.f32 %v4648, %v4881
        %v4992 = vadd.f32 %v4649, %v4890
        %v4993 = vadd.f32 %v4650, %v4895
        %v4994 = vadd.f32 %v4651, %v4904
        %v4995 = vadd.f32 %v4652, %v4909
        %v4996 = vadd.f32 %v4653, %v4918
        %v4997 = vadd.f32 %v4654, %v4923
        %v4998 = vadd.f32 %v4655, %v4932
        %v4999 = vadd.f32 %v4656, %v4937
        %v5000 = vadd.f32 %v4657, %v4946
        %v5001 = vadd.f32 %v4658, %v4951
        %v5002 = vadd.f32 %v4659, %v4960
        %v5003 = vadd.f32 %v4660, %v4965
        %s5004 = scalar_lea.vmem %s5, 512
        %v5005 = vld [vmem:[%s5004] sm:$0xff]
        %v5006 = vld [vmem:[%s5004 + $0x8] sm:$0xff]
        %v5007 = vld [vmem:[%s5004 + $0x10] sm:$0xff]
        %v5008 = vld [vmem:[%s5004 + $0x18] sm:$0xff]
        %v5009 = vld [vmem:[%s5004 + $0x20] sm:$0xff]
        %v5010 = vld [vmem:[%s5004 + $0x28] sm:$0xff]
        %v5011 = vld [vmem:[%s5004 + $0x30] sm:$0xff]
        %v5012 = vld [vmem:[%s5004 + $0x38] sm:$0xff]
        %v5013 = vrot.slane %v1839, 2
        %v5014 = vsel %vm2785, %v3994, %v5013
        %v5015 = vrot.slane %v1840, 2
        %v5016 = vsel %vm2785, %v5013, %v5015
        %v5017 = vrot.slane %v1841, 2
        %v5018 = vsel %vm2785, %v5015, %v5017
        %v5019 = vsel %vm500, %v5014, 0
        %v5021 = vsel %vm500, %v5016, 0
        %v5023 = vsel %vm500, %v5018, 0
        %5025 = vmatprep.subr.mxu0 0.0
        %5026 = vmatpush1.msra.mxu0 %v5005
        %5027 = vmatprep.subr.mxu0 0.0
        %5028 = vmatpush1.msra.mxu0 %v5006
        %5029 = vmatprep.subr.mxu0 0.0
        %5030 = vmatpush1.msra.mxu0 %v5007
        %5031 = vmatprep.subr.mxu0 0.0
        %5032 = vmatpush1.msra.mxu0 %v5008
        %5033 = vmatprep.subr.mxu0 0.0
        %5034 = vmatpush1.msra.mxu0 %v5009
        %5035 = vmatprep.subr.mxu0 0.0
        %5036 = vmatpush1.msra.mxu0 %v5010
        %5037 = vmatprep.subr.mxu0 0.0
        %5038 = vmatpush1.msra.mxu0 %v5011
        %5039 = vmatprep.subr.mxu0 0.0
        %5040 = vmatpush1.msra.mxu0 %v5012
        %5041 = vmatprep.subr.mxu0 0.0
        %5042 = vmatpush1.msra.mxu0 0.0
        %5043 = vmatprep.subr.mxu0 0.0
        %5044 = vmatpush1.msra.mxu0 0.0
        %5045 = vmatprep.subr.mxu0 0.0
        %5046 = vmatpush1.msra.mxu0 0.0
        %5047 = vmatprep.subr.mxu0 0.0
        %5048 = vmatpush1.msra.mxu0 0.0
        %5049 = vmatprep.subr.mxu0 0.0
        %5050 = vmatpush1.msra.mxu0 0.0
        %5051 = vmatprep.subr.mxu0 0.0
        %5052 = vmatpush1.msra.mxu0 0.0
        %5053 = vmatprep.subr.mxu0 0.0
        %5054 = vmatpush1.msra.mxu0 0.0
        %5055 = vmatprep.subr.mxu0 0.0
        %5056 = vmatpush1.msra.mxu0 0.0
        %5057 = vmatprep.subr.mxu0 0.0
        %5058 = vmatpush1.msra.mxu0 0.0
        %5059 = vmatprep.subr.mxu0 0.0
        %5060 = vmatpush1.msra.mxu0 0.0
        %5061 = vmatprep.subr.mxu0 0.0
        %5062 = vmatpush1.msra.mxu0 0.0
        %5063 = vmatprep.subr.mxu0 0.0
        %5064 = vmatpush1.msra.mxu0 0.0
        %5065 = vmatprep.subr.mxu0 0.0
        %5066 = vmatpush1.msra.mxu0 0.0
        %5067 = vmatprep.subr.mxu0 0.0
        %5068 = vmatpush1.msra.mxu0 0.0
        %5069 = vmatprep.subr.mxu0 0.0
        %5070 = vmatpush1.msra.mxu0 0.0
        %5071 = vmatprep.subr.mxu0 0.0
        %5072 = vmatpush1.msra.mxu0 0.0
        %5073 = vmatprep.subr.mxu0 0.0
        %5074 = vmatpush1.msra.mxu0 0.0
        %5075 = vmatprep.subr.mxu0 0.0
        %5076 = vmatpush1.msra.mxu0 0.0
        %5077 = vmatprep.subr.mxu0 0.0
        %5078 = vmatpush1.msra.mxu0 0.0
        %5079 = vmatprep.subr.mxu0 0.0
        %5080 = vmatpush1.msra.mxu0 0.0
        %5081 = vmatprep.subr.mxu0 0.0
        %5082 = vmatpush1.msra.mxu0 0.0
        %5083 = vmatprep.subr.mxu0 0.0
        %5084 = vmatpush1.msra.mxu0 0.0
        %5085 = vmatprep.subr.mxu0 0.0
        %5086 = vmatpush1.msra.mxu0 0.0
        %5087 = vmatprep.subr.mxu0 0.0
        %5088 = vmatpush1.msra.mxu0 0.0
        %5089 = vmatprep.mubr.f32.mxu0 0.0
        %5090 = vmatmul.mubr.f32.gmra.mrb[0].mxu0 %v2895
        %v5091 = vpop.f32.mrb[0].mxu0
        %v5092 = vadd.f32 0.0, %v5091
        %v5093 = vpop.f32.mrb[0].mxu0
        %5094 = vmatprep.mubr.f32.mxu0 0.0
        %5095 = vmatmul.mubr.f32.gmra.mrb[0].mxu0 %v2897
        %v5096 = vpop.f32.mrb[0].mxu0
        %v5097 = vadd.f32 0.0, %v5096
        %v5098 = vpop.f32.mrb[0].mxu0
        %5099 = vmatprep.mubr.f32.mxu0 0.0
        %5100 = vmatmul.mubr.f32.gmra.mrb[0].mxu0 %v2899
        %v5101 = vpop.f32.mrb[0].mxu0
        %v5102 = vpop.f32.mrb[0].mxu0
        %5103 = vmatprep.mubr.f32.mxu0 0.0
        %5104 = vmatmul.mubr.f32.gmra.mrb[0].mxu0 %v2901
        %v5105 = vpop.f32.mrb[0].mxu0
        %v5106 = vadd.f32 0.0, %v5105
        %v5107 = vpop.f32.mrb[0].mxu0
        %5108 = vmatprep.mubr.f32.mxu0 0.0
        %5109 = vmatmul.mubr.f32.gmra.mrb[0].mxu0 %v2903
        %v5110 = vpop.f32.mrb[0].mxu0
        %v5111 = vadd.f32 0.0, %v5110
        %v5112 = vpop.f32.mrb[0].mxu0
        %5113 = vmatprep.mubr.f32.mxu0 0.0
        %5114 = vmatmul.mubr.f32.gmra.mrb[0].mxu0 %v2905
        %v5115 = vpop.f32.mrb[0].mxu0
        %v5116 = vpop.f32.mrb[0].mxu0
        %5117 = vmatprep.mubr.f32.mxu0 0.0
        %5118 = vmatmul.mubr.f32.gmra.mrb[0].mxu0 %v2907
        %v5119 = vpop.f32.mrb[0].mxu0
        %v5120 = vadd.f32 0.0, %v5119
        %v5121 = vpop.f32.mrb[0].mxu0
        %5122 = vmatprep.mubr.f32.mxu0 0.0
        %5123 = vmatmul.mubr.f32.gmra.mrb[0].mxu0 %v2909
        %v5124 = vpop.f32.mrb[0].mxu0
        %v5125 = vadd.f32 0.0, %v5124
        %v5126 = vpop.f32.mrb[0].mxu0
        %5127 = vmatprep.mubr.f32.mxu0 0.0
        %5128 = vmatmul.mubr.f32.gmra.mrb[0].mxu0 %v2911
        %v5129 = vpop.f32.mrb[0].mxu0
        %v5130 = vpop.f32.mrb[0].mxu0
        %5131 = vmatprep.mubr.f32.mxu0 0.0
        %5132 = vmatmul.mubr.f32.gmra.mrb[0].mxu0 %v2913
        %v5133 = vpop.f32.mrb[0].mxu0
        %v5134 = vadd.f32 0.0, %v5133
        %v5135 = vpop.f32.mrb[0].mxu0
        %5136 = vmatprep.mubr.f32.mxu0 0.0
        %5137 = vmatmul.mubr.f32.gmra.mrb[0].mxu0 %v2915
        %v5138 = vpop.f32.mrb[0].mxu0
        %v5139 = vadd.f32 0.0, %v5138
        %v5140 = vpop.f32.mrb[0].mxu0
        %5141 = vmatprep.mubr.f32.mxu0 0.0
        %5142 = vmatmul.mubr.f32.gmra.mrb[0].mxu0 %v2917
        %v5143 = vpop.f32.mrb[0].mxu0
        %v5144 = vpop.f32.mrb[0].mxu0
        %5145 = vmatprep.mubr.f32.mxu0 0.0
        %5146 = vmatmul.mubr.f32.gmra.mrb[0].mxu0 %v2919
        %v5147 = vpop.f32.mrb[0].mxu0
        %v5148 = vadd.f32 0.0, %v5147
        %v5149 = vpop.f32.mrb[0].mxu0
        %5150 = vmatprep.mubr.f32.mxu0 0.0
        %5151 = vmatmul.mubr.f32.gmra.mrb[0].mxu0 %v2921
        %v5152 = vpop.f32.mrb[0].mxu0
        %v5153 = vadd.f32 0.0, %v5152
        %v5154 = vpop.f32.mrb[0].mxu0
        %5155 = vmatprep.mubr.f32.mxu0 0.0
        %5156 = vmatmul.mubr.f32.gmra.mrb[0].mxu0 %v2923
        %v5157 = vpop.f32.mrb[0].mxu0
        %v5158 = vpop.f32.mrb[0].mxu0
        %5159 = vmatprep.mubr.f32.mxu0 0.0
        %5160 = vmatmul.mubr.f32.gmra.mrb[0].mxu0 %v2925
        %v5161 = vpop.f32.mrb[0].mxu0
        %v5162 = vadd.f32 0.0, %v5161
        %v5163 = vpop.f32.mrb[0].mxu0
        %5164 = vmatprep.mubr.f32.mxu0 0.0
        %5165 = vmatmul.mubr.f32.gmra.mrb[0].mxu0 %v2927
        %v5166 = vpop.f32.mrb[0].mxu0
        %v5167 = vadd.f32 0.0, %v5166
        %v5168 = vpop.f32.mrb[0].mxu0
        %5169 = vmatprep.mubr.f32.mxu0 0.0
        %5170 = vmatmul.mubr.f32.gmra.mrb[0].mxu0 %v2929
        %v5171 = vpop.f32.mrb[0].mxu0
        %v5172 = vpop.f32.mrb[0].mxu0
        %5173 = vmatprep.mubr.f32.mxu0 0.0
        %5174 = vmatmul.mubr.f32.gmra.mrb[0].mxu0 %v2931
        %v5175 = vpop.f32.mrb[0].mxu0
        %v5176 = vadd.f32 0.0, %v5175
        %v5177 = vpop.f32.mrb[0].mxu0
        %5178 = vmatprep.mubr.f32.mxu0 0.0
        %5179 = vmatmul.mubr.f32.gmra.mrb[0].mxu0 %v2933
        %v5180 = vpop.f32.mrb[0].mxu0
        %v5181 = vadd.f32 0.0, %v5180
        %v5182 = vpop.f32.mrb[0].mxu0
        %5183 = vmatprep.mubr.f32.mxu0 0.0
        %5184 = vmatmul.mubr.f32.gmra.mrb[0].mxu0 %v2935
        %v5185 = vpop.f32.mrb[0].mxu0
        %v5186 = vpop.f32.mrb[0].mxu0
        %5187 = vmatprep.mubr.f32.mxu0 0.0
        %5188 = vmatmul.mubr.f32.gmra.mrb[0].mxu0 %v2937
        %v5189 = vpop.f32.mrb[0].mxu0
        %v5190 = vadd.f32 0.0, %v5189
        %v5191 = vpop.f32.mrb[0].mxu0
        %5192 = vmatprep.mubr.f32.mxu0 0.0
        %5193 = vmatmul.mubr.f32.gmra.mrb[0].mxu0 %v2939
        %v5194 = vpop.f32.mrb[0].mxu0
        %v5195 = vadd.f32 0.0, %v5194
        %v5196 = vpop.f32.mrb[0].mxu0
        %5197 = vmatprep.mubr.f32.mxu0 0.0
        %5198 = vmatmul.mubr.f32.gmra.mrb[0].mxu0 %v2941
        %v5199 = vpop.f32.mrb[0].mxu0
        %v5200 = vpop.f32.mrb[0].mxu0
        %5201 = vmatprep.mubr.f32.mxu0 0.0
        %5202 = vmatmul.mubr.f32.gmra.mrb[0].mxu0 %v2943
        %v5203 = vpop.f32.mrb[0].mxu0
        %v5204 = vadd.f32 0.0, %v5203
        %v5205 = vpop.f32.mrb[0].mxu0
        %5206 = vmatprep.mubr.f32.mxu0 0.0
        %5207 = vmatmul.mubr.f32.gmra.mrb[0].mxu0 %v2945
        %v5208 = vpop.f32.mrb[0].mxu0
        %v5209 = vadd.f32 0.0, %v5208
        %v5210 = vpop.f32.mrb[0].mxu0
        %5211 = vmatprep.mubr.f32.mxu0 0.0
        %5212 = vmatmul.mubr.f32.gmra.mrb[0].mxu0 %v2947
        %v5213 = vpop.f32.mrb[0].mxu0
        %v5214 = vpop.f32.mrb[0].mxu0
        %5215 = vmatprep.mubr.f32.mxu0 0.0
        %5216 = vmatmul.mubr.f32.gmra.mrb[0].mxu0 %v2949
        %v5217 = vpop.f32.mrb[0].mxu0
        %v5218 = vadd.f32 0.0, %v5217
        %v5219 = vpop.f32.mrb[0].mxu0
        %5220 = vmatprep.mubr.f32.mxu0 0.0
        %5221 = vmatmul.mubr.f32.gmra.mrb[0].mxu0 %v2951
        %v5222 = vpop.f32.mrb[0].mxu0
        %v5223 = vadd.f32 0.0, %v5222
        %v5224 = vpop.f32.mrb[0].mxu0
        %5225 = vmatprep.mubr.f32.mxu0 0.0
        %5226 = vmatmul.mubr.f32.gmra.mrb[0].mxu0 %v2953
        %v5227 = vpop.f32.mrb[0].mxu0
        %v5228 = vpop.f32.mrb[0].mxu0
        %5229 = vmatprep.mubr.f32.mxu0 0.0
        %5230 = vmatmul.mubr.f32.gmra.mrb[0].mxu0 %v2955
        %v5231 = vpop.f32.mrb[0].mxu0
        %v5232 = vadd.f32 0.0, %v5231
        %v5233 = vpop.f32.mrb[0].mxu0
        %5234 = vmatprep.mubr.f32.mxu0 0.0
        %5235 = vmatmul.mubr.f32.gmra.mrb[0].mxu0 %v2957
        %v5236 = vpop.f32.mrb[0].mxu0
        %v5237 = vadd.f32 0.0, %v5236
        %v5238 = vpop.f32.mrb[0].mxu0
        %5239 = vmatprep.mubr.f32.mxu0 0.0
        %5240 = vmatmul.mubr.f32.gmra.mrb[0].mxu0 %v2959
        %v5241 = vpop.f32.mrb[0].mxu0
        %v5242 = vpop.f32.mrb[0].mxu0
        %5243 = vmatprep.mubr.f32.mxu0 0.0
        %5244 = vmatmul.mubr.f32.gmra.mrb[0].mxu0 %v2961
        %v5245 = vpop.f32.mrb[0].mxu0
        %v5246 = vadd.f32 0.0, %v5245
        %v5247 = vpop.f32.mrb[0].mxu0
        %5248 = vmatprep.mubr.f32.mxu0 0.0
        %5249 = vmatmul.mubr.f32.gmra.mrb[0].mxu0 %v2963
        %v5250 = vpop.f32.mrb[0].mxu0
        %v5251 = vadd.f32 0.0, %v5250
        %v5252 = vpop.f32.mrb[0].mxu0
        %5253 = vmatprep.mubr.f32.mxu0 0.0
        %5254 = vmatmul.mubr.f32.gmra.mrb[0].mxu0 %v2965
        %v5255 = vpop.f32.mrb[0].mxu0
        %v5256 = vpop.f32.mrb[0].mxu0
        %5257 = vmatprep.mubr.f32.mxu0 0.0
        %5258 = vmatmul.mubr.f32.gmra.mrb[0].mxu0 %v2967
        %v5259 = vpop.f32.mrb[0].mxu0
        %v5260 = vadd.f32 0.0, %v5259
        %v5261 = vpop.f32.mrb[0].mxu0
        %5262 = vmatprep.mubr.f32.mxu0 0.0
        %5263 = vmatmul.mubr.f32.gmra.mrb[0].mxu0 %v2969
        %v5264 = vpop.f32.mrb[0].mxu0
        %v5265 = vadd.f32 0.0, %v5264
        %v5266 = vpop.f32.mrb[0].mxu0
        %5267 = vmatprep.mubr.f32.mxu0 0.0
        %5268 = vmatmul.mubr.f32.gmra.mrb[0].mxu0 %v2971
        %v5269 = vpop.f32.mrb[0].mxu0
        %v5270 = vpop.f32.mrb[0].mxu0
        %5271 = vmatprep.mubr.f32.mxu0 0.0
        %5272 = vmatmul.mubr.f32.gmra.mrb[0].mxu0 %v2973
        %v5273 = vpop.f32.mrb[0].mxu0
        %v5274 = vadd.f32 0.0, %v5273
        %v5275 = vpop.f32.mrb[0].mxu0
        %5276 = vmatprep.mubr.f32.mxu0 0.0
        %5277 = vmatmul.mubr.f32.gmra.mrb[0].mxu0 %v2975
        %v5278 = vpop.f32.mrb[0].mxu0
        %v5279 = vadd.f32 0.0, %v5278
        %v5280 = vpop.f32.mrb[0].mxu0
        %5281 = vmatprep.mubr.f32.mxu0 0.0
        %5282 = vmatmul.mubr.f32.gmra.mrb[0].mxu0 %v2977
        %v5283 = vpop.f32.mrb[0].mxu0
        %v5284 = vpop.f32.mrb[0].mxu0
        %5285 = vmatprep.mubr.f32.mxu0 0.0
        %5286 = vmatmul.mubr.f32.gmra.mrb[0].mxu0 %v3996
        %v5287 = vpop.f32.mrb[0].mxu0
        %v5288 = vadd.f32 0.0, %v5287
        %v5289 = vpop.f32.mrb[0].mxu0
        %5290 = vmatprep.mubr.f32.mxu0 0.0
        %5291 = vmatmul.mubr.f32.gmra.mrb[0].mxu0 %v3998
        %v5292 = vpop.f32.mrb[0].mxu0
        %v5293 = vadd.f32 0.0, %v5292
        %v5294 = vpop.f32.mrb[0].mxu0
        %5295 = vmatprep.mubr.f32.mxu0 0.0
        %5296 = vmatmul.mubr.f32.gmra.mrb[0].mxu0 %v4000
        %v5297 = vpop.f32.mrb[0].mxu0
        %v5298 = vpop.f32.mrb[0].mxu0
        %5299 = vmatprep.mubr.f32.mxu0 0.0
        %5300 = vmatmul.mubr.f32.gmra.mrb[0].mxu0 %v5019
        %v5301 = vpop.f32.mrb[0].mxu0
        %v5302 = vadd.f32 0.0, %v5301
        %v5303 = vpop.f32.mrb[0].mxu0
        %5304 = vmatprep.mubr.f32.mxu0 0.0
        %5305 = vmatmul.mubr.f32.gmra.mrb[0].mxu0 %v5021
        %v5306 = vpop.f32.mrb[0].mxu0
        %v5307 = vadd.f32 0.0, %v5306
        %v5308 = vpop.f32.mrb[0].mxu0
        %5309 = vmatprep.mubr.f32.mxu0 0.0
        %5310 = vmatmul.mubr.f32.gmra.mrb[0].mxu0 %v5023
        %v5311 = vpop.f32.mrb[0].mxu0
        %v5312 = vpop.f32.mrb[0].mxu0
        %5313 = vdwg.mxu0
        %v5314 = vadd.f32 %v4972, %v5092
        %v5315 = vadd.f32 %v4973, %v5097
        %v5316 = vadd.f32 %v4974, %v5106
        %v5317 = vadd.f32 %v4975, %v5111
        %v5318 = vadd.f32 %v4976, %v5120
        %v5319 = vadd.f32 %v4977, %v5125
        %v5320 = vadd.f32 %v4978, %v5134
        %v5321 = vadd.f32 %v4979, %v5139
        %v5322 = vadd.f32 %v4980, %v5148
        %v5323 = vadd.f32 %v4981, %v5153
        %v5324 = vadd.f32 %v4982, %v5162
        %v5325 = vadd.f32 %v4983, %v5167
        %v5326 = vadd.f32 %v4984, %v5176
        %v5327 = vadd.f32 %v4985, %v5181
        %v5328 = vadd.f32 %v4986, %v5190
        %v5329 = vadd.f32 %v4987, %v5195
        %v5330 = vadd.f32 %v4988, %v5204
        %v5331 = vadd.f32 %v4989, %v5209
        %v5332 = vadd.f32 %v4990, %v5218
        %v5333 = vadd.f32 %v4991, %v5223
        %v5334 = vadd.f32 %v4992, %v5232
        %v5335 = vadd.f32 %v4993, %v5237
        %v5336 = vadd.f32 %v4994, %v5246
        %v5337 = vadd.f32 %v4995, %v5251
        %v5338 = vadd.f32 %v4996, %v5260
        %v5339 = vadd.f32 %v4997, %v5265
        %v5340 = vadd.f32 %v4998, %v5274
        %v5341 = vadd.f32 %v4999, %v5279
        %v5342 = vadd.f32 %v5000, %v5288
        %v5343 = vadd.f32 %v5001, %v5293
        %v5344 = vadd.f32 %v5002, %v5302
        %v5345 = vadd.f32 %v5003, %v5307
        %v5346 = vld [vmem:[%s377] sm:$0xff]
        %v5347 = vld [vmem:[%s377 + $0x8] sm:$0xff]
        %v5348 = vld [vmem:[%s377 + $0x10] sm:$0xff]
        %v5349 = vld [vmem:[%s377 + $0x18] sm:$0xff]
        %v5350 = vld [vmem:[%s377 + $0x20] sm:$0xff]
        %v5351 = vld [vmem:[%s377 + $0x28] sm:$0xff]
        %v5352 = vld [vmem:[%s377 + $0x30] sm:$0xff]
        %v5353 = vld [vmem:[%s377 + $0x38] sm:$0xff]
        %v5354 = vld [vmem:[%s377 + $0x40] sm:$0xff]
        %v5355 = vld [vmem:[%s377 + $0x48] sm:$0xff]
        %v5356 = vld [vmem:[%s377 + $0x50] sm:$0xff]
        %v5357 = vld [vmem:[%s377 + $0x58] sm:$0xff]
        %v5358 = vld [vmem:[%s377 + $0x60] sm:$0xff]
        %v5359 = vld [vmem:[%s377 + $0x68] sm:$0xff]
        %v5360 = vld [vmem:[%s377 + $0x70] sm:$0xff]
        %v5361 = vld [vmem:[%s377 + $0x78] sm:$0xff]
        %v5362 = vld [vmem:[%s377 + $0x80] sm:$0xff]
        %v5363 = vld [vmem:[%s377 + $0x88] sm:$0xff]
        %v5364 = vld [vmem:[%s377 + $0x90] sm:$0xff]
        %v5365 = vld [vmem:[%s377 + $0x98] sm:$0xff]
        %v5366 = vld [vmem:[%s377 + $0xa0] sm:$0xff]
        %v5367 = vld [vmem:[%s377 + $0xa8] sm:$0xff]
        %v5368 = vld [vmem:[%s377 + $0xb0] sm:$0xff]
        %v5369 = vld [vmem:[%s377 + $0xb8] sm:$0xff]
        %v5370 = vld [vmem:[%s377 + $0xc0] sm:$0xff]
        %v5371 = vld [vmem:[%s377 + $0xc8] sm:$0xff]
        %v5372 = vld [vmem:[%s377 + $0xd0] sm:$0xff]
        %v5373 = vld [vmem:[%s377 + $0xd8] sm:$0xff]
        %v5374 = vld [vmem:[%s377 + $0xe0] sm:$0xff]
        %v5375 = vld [vmem:[%s377 + $0xe8] sm:$0xff]
        %v5376 = vld [vmem:[%s377 + $0xf0] sm:$0xff]
        %v5377 = vld [vmem:[%s377 + $0xf8] sm:$0xff]
        %v5378 = vld [vmem:[%s8] sm:$0xff]
        %v5379 = vld [vmem:[%s8 + $0x8] sm:$0xff]
        %v5380 = vld [vmem:[%s8 + $0x10] sm:$0xff]
        %v5381 = vld [vmem:[%s8 + $0x18] sm:$0xff]
        %v5382 = vld [vmem:[%s9] sm:$0x1]
        %v5384 = vlaneseq
        %v5385 = vshrl.u32 %v5384, 7
        %v5386 = vsub.s32 0, %v5385
        %v5387 = vrot.slane %v5382, %v5386
        %vm5389 = vcmask 261120
        %v5391 = vsel %vm5389, %v5346, 0
        %v5394 = vsel %vm5389, %v5347, 0
        %v5397 = vsel %vm5389, %v5348, 0
        %v5400 = vsel %vm5389, %v5349, 0
        %v5403 = vsel %vm5389, %v5350, 0
        %v5406 = vsel %vm5389, %v5351, 0
        %v5409 = vsel %vm5389, %v5352, 0
        %v5412 = vsel %vm5389, %v5353, 0
        %v5415 = vsel %vm5389, %v5354, 0
        %v5418 = vsel %vm5389, %v5355, 0
        %v5421 = vsel %vm5389, %v5356, 0
        %v5424 = vsel %vm5389, %v5357, 0
        %v5427 = vsel %vm5389, %v5358, 0
        %v5430 = vsel %vm5389, %v5359, 0
        %v5433 = vsel %vm5389, %v5360, 0
        %v5436 = vsel %vm5389, %v5361, 0
        %v5439 = vsel %vm5389, %v5362, 0
        %v5442 = vsel %vm5389, %v5363, 0
        %v5445 = vsel %vm5389, %v5364, 0
        %v5448 = vsel %vm5389, %v5365, 0
        %v5451 = vsel %vm5389, %v5366, 0
        %v5454 = vsel %vm5389, %v5367, 0
        %v5457 = vsel %vm5389, %v5368, 0
        %v5460 = vsel %vm5389, %v5369, 0
        %v5463 = vsel %vm5389, %v5370, 0
        %v5466 = vsel %vm5389, %v5371, 0
        %v5469 = vsel %vm5389, %v5372, 0
        %v5472 = vsel %vm5389, %v5373, 0
        %v5475 = vsel %vm5389, %v5374, 0
        %v5478 = vsel %vm5389, %v5375, 0
        %v5481 = vsel %vm5389, %v5376, 0
        %v5484 = vsel %vm5389, %v5377, 0
        %5486 = vmatprep.subr.mxu0 0.0
        %5487 = vmatpush1.msra.mxu0 %v5378
        %5488 = vmatprep.subr.mxu0 0.0
        %5489 = vmatpush1.msra.mxu0 %v5379
        %5490 = vmatprep.subr.mxu0 0.0
        %5491 = vmatpush1.msra.mxu0 %v5380
        %5492 = vmatprep.subr.mxu0 0.0
        %5493 = vmatpush1.msra.mxu0 %v5381
        %5494 = vmatprep.subr.mxu0 0.0
        %5495 = vmatpush1.msra.mxu0 0.0
        %5496 = vmatprep.subr.mxu0 0.0
        %5497 = vmatpush1.msra.mxu0 0.0
        %5498 = vmatprep.subr.mxu0 0.0
        %5499 = vmatpush1.msra.mxu0 0.0
        %5500 = vmatprep.subr.mxu0 0.0
        %5501 = vmatpush1.msra.mxu0 0.0
        %5502 = vmatprep.subr.mxu0 0.0
        %5503 = vmatpush1.msra.mxu0 0.0
        %5504 = vmatprep.subr.mxu0 0.0
        %5505 = vmatpush1.msra.mxu0 0.0
        %5506 = vmatprep.subr.mxu0 0.0
        %5507 = vmatpush1.msra.mxu0 0.0
        %5508 = vmatprep.subr.mxu0 0.0
        %5509 = vmatpush1.msra.mxu0 0.0
        %5510 = vmatprep.subr.mxu0 0.0
        %5511 = vmatpush1.msra.mxu0 0.0
        %5512 = vmatprep.subr.mxu0 0.0
        %5513 = vmatpush1.msra.mxu0 0.0
        %5514 = vmatprep.subr.mxu0 0.0
        %5515 = vmatpush1.msra.mxu0 0.0
        %5516 = vmatprep.subr.mxu0 0.0
        %5517 = vmatpush1.msra.mxu0 0.0
        %5518 = vmatprep.subr.mxu0 0.0
        %5519 = vmatpush1.msra.mxu0 0.0
        %5520 = vmatprep.subr.mxu0 0.0
        %5521 = vmatpush1.msra.mxu0 0.0
        %5522 = vmatprep.subr.mxu0 0.0
        %5523 = vmatpush1.msra.mxu0 0.0
        %5524 = vmatprep.subr.mxu0 0.0
        %5525 = vmatpush1.msra.mxu0 0.0
        %5526 = vmatprep.subr.mxu0 0.0
        %5527 = vmatpush1.msra.mxu0 0.0
        %5528 = vmatprep.subr.mxu0 0.0
        %5529 = vmatpush1.msra.mxu0 0.0
        %5530 = vmatprep.subr.mxu0 0.0
        %5531 = vmatpush1.msra.mxu0 0.0
        %5532 = vmatprep.subr.mxu0 0.0
        %5533 = vmatpush1.msra.mxu0 0.0
        %5534 = vmatprep.subr.mxu0 0.0
        %5535 = vmatpush1.msra.mxu0 0.0
        %5536 = vmatprep.subr.mxu0 0.0
        %5537 = vmatpush1.msra.mxu0 0.0
        %5538 = vmatprep.subr.mxu0 0.0
        %5539 = vmatpush1.msra.mxu0 0.0
        %5540 = vmatprep.subr.mxu0 0.0
        %5541 = vmatpush1.msra.mxu0 0.0
        %5542 = vmatprep.subr.mxu0 0.0
        %5543 = vmatpush1.msra.mxu0 0.0
        %5544 = vmatprep.subr.mxu0 0.0
        %5545 = vmatpush1.msra.mxu0 0.0
        %5546 = vmatprep.subr.mxu0 0.0
        %5547 = vmatpush1.msra.mxu0 0.0
        %5548 = vmatprep.subr.mxu0 0.0
        %5549 = vmatpush1.msra.mxu0 0.0
        %5550 = vmatprep.mubr.f32.mxu0 0.0
        %5551 = vmatmul.mubr.f32.gmra.mrb[0].mxu0 %v5391
        %v5552 = vpop.f32.mrb[0].mxu0
        %v5553 = vadd.f32 %v5387, %v5552
        %v5554 = vpop.f32.mrb[0].mxu0
        %5555 = vmatprep.mubr.f32.mxu0 0.0
        %5556 = vmatmul.mubr.f32.gmra.mrb[0].mxu0 %v5394
        %v5557 = vpop.f32.mrb[0].mxu0
        %v5558 = vadd.f32 %v5387, %v5557
        %v5559 = vpop.f32.mrb[0].mxu0
        %5560 = vmatprep.mubr.f32.mxu0 0.0
        %5561 = vmatmul.mubr.f32.gmra.mrb[0].mxu0 %v5397
        %v5562 = vpop.f32.mrb[0].mxu0
        %v5563 = vadd.f32 %v5387, %v5562
        %v5564 = vpop.f32.mrb[0].mxu0
        %5565 = vmatprep.mubr.f32.mxu0 0.0
        %5566 = vmatmul.mubr.f32.gmra.mrb[0].mxu0 %v5400
        %v5567 = vpop.f32.mrb[0].mxu0
        %v5568 = vadd.f32 %v5387, %v5567
        %v5569 = vpop.f32.mrb[0].mxu0
        %5570 = vmatprep.mubr.f32.mxu0 0.0
        %5571 = vmatmul.mubr.f32.gmra.mrb[0].mxu0 %v5403
        %v5572 = vpop.f32.mrb[0].mxu0
        %v5573 = vadd.f32 %v5387, %v5572
        %v5574 = vpop.f32.mrb[0].mxu0
        %5575 = vmatprep.mubr.f32.mxu0 0.0
        %5576 = vmatmul.mubr.f32.gmra.mrb[0].mxu0 %v5406
        %v5577 = vpop.f32.mrb[0].mxu0
        %v5578 = vadd.f32 %v5387, %v5577
        %v5579 = vpop.f32.mrb[0].mxu0
        %5580 = vmatprep.mubr.f32.mxu0 0.0
        %5581 = vmatmul.mubr.f32.gmra.mrb[0].mxu0 %v5409
        %v5582 = vpop.f32.mrb[0].mxu0
        %v5583 = vadd.f32 %v5387, %v5582
        %v5584 = vpop.f32.mrb[0].mxu0
        %5585 = vmatprep.mubr.f32.mxu0 0.0
        %5586 = vmatmul.mubr.f32.gmra.mrb[0].mxu0 %v5412
        %v5587 = vpop.f32.mrb[0].mxu0
        %v5588 = vadd.f32 %v5387, %v5587
        %v5589 = vpop.f32.mrb[0].mxu0
        %5590 = vmatprep.mubr.f32.mxu0 0.0
        %5591 = vmatmul.mubr.f32.gmra.mrb[0].mxu0 %v5415
        %v5592 = vpop.f32.mrb[0].mxu0
        %v5593 = vadd.f32 %v5387, %v5592
        %v5594 = vpop.f32.mrb[0].mxu0
        %5595 = vmatprep.mubr.f32.mxu0 0.0
        %5596 = vmatmul.mubr.f32.gmra.mrb[0].mxu0 %v5418
        %v5597 = vpop.f32.mrb[0].mxu0
        %v5598 = vadd.f32 %v5387, %v5597
        %v5599 = vpop.f32.mrb[0].mxu0
        %5600 = vmatprep.mubr.f32.mxu0 0.0
        %5601 = vmatmul.mubr.f32.gmra.mrb[0].mxu0 %v5421
        %v5602 = vpop.f32.mrb[0].mxu0
        %v5603 = vadd.f32 %v5387, %v5602
        %v5604 = vpop.f32.mrb[0].mxu0
        %5605 = vmatprep.mubr.f32.mxu0 0.0
        %5606 = vmatmul.mubr.f32.gmra.mrb[0].mxu0 %v5424
        %v5607 = vpop.f32.mrb[0].mxu0
        %v5608 = vadd.f32 %v5387, %v5607
        %v5609 = vpop.f32.mrb[0].mxu0
        %5610 = vmatprep.mubr.f32.mxu0 0.0
        %5611 = vmatmul.mubr.f32.gmra.mrb[0].mxu0 %v5427
        %v5612 = vpop.f32.mrb[0].mxu0
        %v5613 = vadd.f32 %v5387, %v5612
        %v5614 = vpop.f32.mrb[0].mxu0
        %5615 = vmatprep.mubr.f32.mxu0 0.0
        %5616 = vmatmul.mubr.f32.gmra.mrb[0].mxu0 %v5430
        %v5617 = vpop.f32.mrb[0].mxu0
        %v5618 = vadd.f32 %v5387, %v5617
        %v5619 = vpop.f32.mrb[0].mxu0
        %5620 = vmatprep.mubr.f32.mxu0 0.0
        %5621 = vmatmul.mubr.f32.gmra.mrb[0].mxu0 %v5433
        %v5622 = vpop.f32.mrb[0].mxu0
        %v5623 = vadd.f32 %v5387, %v5622
        %v5624 = vpop.f32.mrb[0].mxu0
        %5625 = vmatprep.mubr.f32.mxu0 0.0
        %5626 = vmatmul.mubr.f32.gmra.mrb[0].mxu0 %v5436
        %v5627 = vpop.f32.mrb[0].mxu0
        %v5628 = vadd.f32 %v5387, %v5627
        %v5629 = vpop.f32.mrb[0].mxu0
        %5630 = vmatprep.mubr.f32.mxu0 0.0
        %5631 = vmatmul.mubr.f32.gmra.mrb[0].mxu0 %v5439
        %v5632 = vpop.f32.mrb[0].mxu0
        %v5633 = vadd.f32 %v5387, %v5632
        %v5634 = vpop.f32.mrb[0].mxu0
        %5635 = vmatprep.mubr.f32.mxu0 0.0
        %5636 = vmatmul.mubr.f32.gmra.mrb[0].mxu0 %v5442
        %v5637 = vpop.f32.mrb[0].mxu0
        %v5638 = vadd.f32 %v5387, %v5637
        %v5639 = vpop.f32.mrb[0].mxu0
        %5640 = vmatprep.mubr.f32.mxu0 0.0
        %5641 = vmatmul.mubr.f32.gmra.mrb[0].mxu0 %v5445
        %v5642 = vpop.f32.mrb[0].mxu0
        %v5643 = vadd.f32 %v5387, %v5642
        %v5644 = vpop.f32.mrb[0].mxu0
        %5645 = vmatprep.mubr.f32.mxu0 0.0
        %5646 = vmatmul.mubr.f32.gmra.mrb[0].mxu0 %v5448
        %v5647 = vpop.f32.mrb[0].mxu0
        %v5648 = vadd.f32 %v5387, %v5647
        %v5649 = vpop.f32.mrb[0].mxu0
        %5650 = vmatprep.mubr.f32.mxu0 0.0
        %5651 = vmatmul.mubr.f32.gmra.mrb[0].mxu0 %v5451
        %v5652 = vpop.f32.mrb[0].mxu0
        %v5653 = vadd.f32 %v5387, %v5652
        %v5654 = vpop.f32.mrb[0].mxu0
        %5655 = vmatprep.mubr.f32.mxu0 0.0
        %5656 = vmatmul.mubr.f32.gmra.mrb[0].mxu0 %v5454
        %v5657 = vpop.f32.mrb[0].mxu0
        %v5658 = vadd.f32 %v5387, %v5657
        %v5659 = vpop.f32.mrb[0].mxu0
        %5660 = vmatprep.mubr.f32.mxu0 0.0
        %5661 = vmatmul.mubr.f32.gmra.mrb[0].mxu0 %v5457
        %v5662 = vpop.f32.mrb[0].mxu0
        %v5663 = vadd.f32 %v5387, %v5662
        %v5664 = vpop.f32.mrb[0].mxu0
        %5665 = vmatprep.mubr.f32.mxu0 0.0
        %5666 = vmatmul.mubr.f32.gmra.mrb[0].mxu0 %v5460
        %v5667 = vpop.f32.mrb[0].mxu0
        %v5668 = vadd.f32 %v5387, %v5667
        %v5669 = vpop.f32.mrb[0].mxu0
        %5670 = vmatprep.mubr.f32.mxu0 0.0
        %5671 = vmatmul.mubr.f32.gmra.mrb[0].mxu0 %v5463
        %v5672 = vpop.f32.mrb[0].mxu0
        %v5673 = vadd.f32 %v5387, %v5672
        %v5674 = vpop.f32.mrb[0].mxu0
        %5675 = vmatprep.mubr.f32.mxu0 0.0
        %5676 = vmatmul.mubr.f32.gmra.mrb[0].mxu0 %v5466
        %v5677 = vpop.f32.mrb[0].mxu0
        %v5678 = vadd.f32 %v5387, %v5677
        %v5679 = vpop.f32.mrb[0].mxu0
        %5680 = vmatprep.mubr.f32.mxu0 0.0
        %5681 = vmatmul.mubr.f32.gmra.mrb[0].mxu0 %v5469
        %v5682 = vpop.f32.mrb[0].mxu0
        %v5683 = vadd.f32 %v5387, %v5682
        %v5684 = vpop.f32.mrb[0].mxu0
        %5685 = vmatprep.mubr.f32.mxu0 0.0
        %5686 = vmatmul.mubr.f32.gmra.mrb[0].mxu0 %v5472
        %v5687 = vpop.f32.mrb[0].mxu0
        %v5688 = vadd.f32 %v5387, %v5687
        %v5689 = vpop.f32.mrb[0].mxu0
        %5690 = vmatprep.mubr.f32.mxu0 0.0
        %5691 = vmatmul.mubr.f32.gmra.mrb[0].mxu0 %v5475
        %v5692 = vpop.f32.mrb[0].mxu0
        %v5693 = vadd.f32 %v5387, %v5692
        %v5694 = vpop.f32.mrb[0].mxu0
        %5695 = vmatprep.mubr.f32.mxu0 0.0
        %5696 = vmatmul.mubr.f32.gmra.mrb[0].mxu0 %v5478
        %v5697 = vpop.f32.mrb[0].mxu0
        %v5698 = vadd.f32 %v5387, %v5697
        %v5699 = vpop.f32.mrb[0].mxu0
        %5700 = vmatprep.mubr.f32.mxu0 0.0
        %5701 = vmatmul.mubr.f32.gmra.mrb[0].mxu0 %v5481
        %v5702 = vpop.f32.mrb[0].mxu0
        %v5703 = vadd.f32 %v5387, %v5702
        %v5704 = vpop.f32.mrb[0].mxu0
        %5705 = vmatprep.mubr.f32.mxu0 0.0
        %5706 = vmatmul.mubr.f32.gmra.mrb[0].mxu0 %v5484
        %v5707 = vpop.f32.mrb[0].mxu0
        %v5708 = vadd.f32 %v5387, %v5707
        %v5709 = vpop.f32.mrb[0].mxu0
        %5710 = vdwg.mxu0
        %v5711 = vld [vmem:[%s6] sm:$0x1]
        %v5713 = vlaneseq
        %v5714 = vshrl.u32 %v5713, 7
        %v5715 = vsub.s32 0, %v5714
        %v5716 = vrot.slane %v5711, %v5715
        %v5718 = vadd.f32 %v5314, %v5716
        %v5719 = vadd.f32 %v5315, %v5716
        %v5720 = vadd.f32 %v5316, %v5716
        %v5721 = vadd.f32 %v5317, %v5716
        %v5722 = vadd.f32 %v5318, %v5716
        %v5723 = vadd.f32 %v5319, %v5716
        %v5724 = vadd.f32 %v5320, %v5716
        %v5725 = vadd.f32 %v5321, %v5716
        %v5726 = vadd.f32 %v5322, %v5716
        %v5727 = vadd.f32 %v5323, %v5716
        %v5728 = vadd.f32 %v5324, %v5716
        %v5729 = vadd.f32 %v5325, %v5716
        %v5730 = vadd.f32 %v5326, %v5716
        %v5731 = vadd.f32 %v5327, %v5716
        %v5732 = vadd.f32 %v5328, %v5716
        %v5733 = vadd.f32 %v5329, %v5716
        %v5734 = vadd.f32 %v5330, %v5716
        %v5735 = vadd.f32 %v5331, %v5716
        %v5736 = vadd.f32 %v5332, %v5716
        %v5737 = vadd.f32 %v5333, %v5716
        %v5738 = vadd.f32 %v5334, %v5716
        %v5739 = vadd.f32 %v5335, %v5716
        %v5740 = vadd.f32 %v5336, %v5716
        %v5741 = vadd.f32 %v5337, %v5716
        %v5742 = vadd.f32 %v5338, %v5716
        %v5743 = vadd.f32 %v5339, %v5716
        %v5744 = vadd.f32 %v5340, %v5716
        %v5745 = vadd.f32 %v5341, %v5716
        %v5746 = vadd.f32 %v5342, %v5716
        %v5747 = vadd.f32 %v5343, %v5716
        %v5748 = vadd.f32 %v5344, %v5716
        %v5749 = vadd.f32 %v5345, %v5716
        %v5750 = vadd.f32 %v5718, %v5553
        %v5751 = vadd.f32 %v5719, %v5558
        %v5752 = vadd.f32 %v5720, %v5563
        %v5753 = vadd.f32 %v5721, %v5568
        %v5754 = vadd.f32 %v5722, %v5573
        %v5755 = vadd.f32 %v5723, %v5578
        %v5756 = vadd.f32 %v5724, %v5583
        %v5757 = vadd.f32 %v5725, %v5588
        %v5758 = vadd.f32 %v5726, %v5593
        %v5759 = vadd.f32 %v5727, %v5598
        %v5760 = vadd.f32 %v5728, %v5603
        %v5761 = vadd.f32 %v5729, %v5608
        %v5762 = vadd.f32 %v5730, %v5613
        %v5763 = vadd.f32 %v5731, %v5618
        %v5764 = vadd.f32 %v5732, %v5623
        %v5765 = vadd.f32 %v5733, %v5628
        %v5766 = vadd.f32 %v5734, %v5633
        %v5767 = vadd.f32 %v5735, %v5638
        %v5768 = vadd.f32 %v5736, %v5643
        %v5769 = vadd.f32 %v5737, %v5648
        %v5770 = vadd.f32 %v5738, %v5653
        %v5771 = vadd.f32 %v5739, %v5658
        %v5772 = vadd.f32 %v5740, %v5663
        %v5773 = vadd.f32 %v5741, %v5668
        %v5774 = vadd.f32 %v5742, %v5673
        %v5775 = vadd.f32 %v5743, %v5678
        %v5776 = vadd.f32 %v5744, %v5683
        %v5777 = vadd.f32 %v5745, %v5688
        %v5778 = vadd.f32 %v5746, %v5693
        %v5779 = vadd.f32 %v5747, %v5698
        %v5780 = vadd.f32 %v5748, %v5703
        %v5781 = vadd.f32 %v5749, %v5708
        %5782 = vst.msk [vmem:[%s367] sm:$0xff] %vm500, %v5750
        %5783 = vst.msk [vmem:[%s367 + $0x8] sm:$0xff] %vm500, %v5751
        %5784 = vst.msk [vmem:[%s367 + $0x10] sm:$0xff] %vm500, %v5752
        %5785 = vst.msk [vmem:[%s367 + $0x18] sm:$0xff] %vm500, %v5753
        %5786 = vst.msk [vmem:[%s367 + $0x20] sm:$0xff] %vm500, %v5754
        %5787 = vst.msk [vmem:[%s367 + $0x28] sm:$0xff] %vm500, %v5755
        %5788 = vst.msk [vmem:[%s367 + $0x30] sm:$0xff] %vm500, %v5756
        %5789 = vst.msk [vmem:[%s367 + $0x38] sm:$0xff] %vm500, %v5757
        %5790 = vst.msk [vmem:[%s367 + $0x40] sm:$0xff] %vm500, %v5758
        %5791 = vst.msk [vmem:[%s367 + $0x48] sm:$0xff] %vm500, %v5759
        %5792 = vst.msk [vmem:[%s367 + $0x50] sm:$0xff] %vm500, %v5760
        %5793 = vst.msk [vmem:[%s367 + $0x58] sm:$0xff] %vm500, %v5761
        %5794 = vst.msk [vmem:[%s367 + $0x60] sm:$0xff] %vm500, %v5762
        %5795 = vst.msk [vmem:[%s367 + $0x68] sm:$0xff] %vm500, %v5763
        %5796 = vst.msk [vmem:[%s367 + $0x70] sm:$0xff] %vm500, %v5764
        %5797 = vst.msk [vmem:[%s367 + $0x78] sm:$0xff] %vm500, %v5765
        %5798 = vst.msk [vmem:[%s367 + $0x80] sm:$0xff] %vm500, %v5766
        %5799 = vst.msk [vmem:[%s367 + $0x88] sm:$0xff] %vm500, %v5767
        %5800 = vst.msk [vmem:[%s367 + $0x90] sm:$0xff] %vm500, %v5768
        %5801 = vst.msk [vmem:[%s367 + $0x98] sm:$0xff] %vm500, %v5769
        %5802 = vst.msk [vmem:[%s367 + $0xa0] sm:$0xff] %vm500, %v5770
        %5803 = vst.msk [vmem:[%s367 + $0xa8] sm:$0xff] %vm500, %v5771
        %5804 = vst.msk [vmem:[%s367 + $0xb0] sm:$0xff] %vm500, %v5772
        %5805 = vst.msk [vmem:[%s367 + $0xb8] sm:$0xff] %vm500, %v5773
        %5806 = vst.msk [vmem:[%s367 + $0xc0] sm:$0xff] %vm500, %v5774
        %5807 = vst.msk [vmem:[%s367 + $0xc8] sm:$0xff] %vm500, %v5775
        %5808 = vst.msk [vmem:[%s367 + $0xd0] sm:$0xff] %vm500, %v5776
        %5809 = vst.msk [vmem:[%s367 + $0xd8] sm:$0xff] %vm500, %v5777
        %5810 = vst.msk [vmem:[%s367 + $0xe0] sm:$0xff] %vm500, %v5778
        %5811 = vst.msk [vmem:[%s367 + $0xe8] sm:$0xff] %vm500, %v5779
        %5812 = vst.msk [vmem:[%s367 + $0xf0] sm:$0xff] %vm500, %v5780
        %5813 = vst.msk [vmem:[%s367 + $0xf8] sm:$0xff] %vm500, %v5781
        %s5814 = sand.u32 %s252, 1
        %s5815 = scalar_lea.sflag [#allocation3], %s5814
        %s5816 = sand.u32 %s252, 1
        %s5817 = smul.addr %s5816, 256
        %s5818 = scalar_lea.vmem [#allocation2], %s5817
        // Predicated region
        $region61: #{unet_residual_block.3} parent=59 // pred_check
          %p5819 = pneg %p262
        $region62: #{unet_residual_block.3} parent=59 // pred_check_branch
          %5821 = sbr.rel (%p5819) target = $region64
        $region63: #{unet_residual_block.3} parent=59 // pred_region
          %s5823 = ssub.s32 4096, 4096
          %5824 = vsyncadd %s5815, %s5823
          %s5825 = smul.addr %s24, 32
          %s5826 = smul.addr %s5825, 128
          %s5827 = scalar_lea.hbm %s10, %s5826
          %s5828 = sshll.u32 %s5818, 4
          %s5829 = int_to_ptr.vmem [resolvable:$true] %s5828
          %5834 = dma.vmem_to_hbm [thread:$0]  %s5829, 4096, %s5827, %s5815, 128, 128, 8
        $region64: #{unet_residual_block.3} parent=59 // pred_fallthru
          _
      $region60: #{unet_residual_block.3} parent=5 // pred_fallthru
        _
      %p5835 = scmp.le.s32.totalorder 2, %s19
      // Predicated region
      $region65: #{unet_residual_block.3} parent=5 // pred_check
        %p5836 = pneg %p5835
      $region66: #{unet_residual_block.3} parent=5 // pred_check_branch
        %5838 = sbr.rel (%p5836) target = $region68
      $region67: #{unet_residual_block.3} parent=5 // pred_region
        %s5839 = ssub.s32 %s19, 2
        // Predicated region
        $region69: #{unet_residual_block.3} parent=67 // pred_check
          %p5840 = pneg %p268
        $region70: #{unet_residual_block.3} parent=67 // pred_check_branch
          %5842 = sbr.rel (%p5840) target = $region72
        $region71: #{unet_residual_block.3} parent=67 // pred_region
          %s5843 = sand.u32 %s253, 1
          %s5844 = scalar_lea.sflag [#allocation3], %s5843
          %s5845 = sand.u32 %s253, 1
          %s5846 = smul.addr %s5845, 256
          %s5847 = scalar_lea.vmem [#allocation2], %s5846
          %5848 = dma.done %s5844, 4096
        $region72: #{unet_residual_block.3} parent=67 // pred_fallthru
          _
      $region68: #{unet_residual_block.3} parent=5 // pred_fallthru
        _
    $region6: #{unet_residual_block.3} parent=1 // loop_footer
      %s23 = sadd.s32 1, %s19
    $region7: #{unet_residual_block.3} parent=1 // loop_footer_branch
      %18 = sbr.rel target = $region3
    $region8: #{unet_residual_block.3} parent=1 // loop_exit
      _
    %5849 = vsyncpa [#allocation3], 1
    %s5850 = scalar_lea.sflag [#allocation3], 1
    %5851 = vsyncpa %s5850, 1

// kernel: unet_residual_block.2
$region0: #{unet_residual_block.2}
  #allocation0 [shape = 'u32[]', space=smem, size = 0x4, offset = 0x4, fixed_abs, tag = 'smem constant byte address 0x4 - core index']
  #allocation1 [shape = 'u32[144,128]{1,0:T(1,128)}', space=vmem, size = 0x12000, scoped, tag = 'internal scratch']
  %s0 = inlined_call_operand.vmem [shape: f32[2,456,32], index: 0, kind: input, shape index: {}]
  %s1 = inlined_call_operand.vmem [shape: f32[32,32], index: 1, kind: input, shape index: {}]
  %s2 = inlined_call_operand.vmem [shape: f32[1,32], index: 2, kind: input, shape index: {}]
  %s3 = inlined_call_operand.vmem [shape: f32[1,32], index: 3, kind: input, shape index: {}]
  %s4 = inlined_call_operand.vmem [shape: f32[456,1], index: 4, kind: input, shape index: {}]
  %s5 = inlined_call_operand.vmem [shape: f32[9,32,64], index: 5, kind: input, shape index: {}]
  %s6 = inlined_call_operand.vmem [shape: f32[1,64], index: 6, kind: input, shape index: {}]
  %s7 = inlined_call_operand.vmem [shape: f32[2,1,128], index: 7, kind: input, shape index: {}]
  %s8 = inlined_call_operand.vmem [shape: f32[128,64], index: 8, kind: input, shape index: {}]
  %s9 = inlined_call_operand.vmem [shape: f32[1,64], index: 9, kind: input, shape index: {}]
  %s10 = inlined_call_operand.vmem [shape: f32[2,256,64], index: 10, kind: output, shape index: {}]
  %s11 = sld [smem:[#allocation0]]
  $region73: #{unet_residual_block.2} parent=0
    _
  %s13 = ssub.s32 1, %s11
  %s14 = scalar_select 0, %s13, %s11
  loop: start=0, step=1, limit=4
  $region2: #{unet_residual_block.2} parent=0 // loop_pre_header
    _
  $region3: #{unet_residual_block.2} parent=0 // loop_header
    %s16 = sphi 0, %s20
    %p17 = scmp.ge.s32.totalorder %s16, 4
    %s26 = sphi 0, %s28
    %s29 = sphi 0, %s26
    %s30 = sphi 0, %s29
    %s46 = sphi 0, %s30
    %s50 = sphi 0, %s50
    %s52 = sphi 0, %s50
    %s53 = sphi 0, %s52
    %s67 = sphi 0, %s53
    %s71 = sphi 0, %s71
    %s73 = sphi 0, %s71
    %s74 = sphi 0, %s73
    %s88 = sphi 0, %s74
    %s92 = sphi 0, %s92
    %s94 = sphi 0, %s92
    %s95 = sphi 0, %s94
    %s109 = sphi 0, %s95
    %s113 = sphi 0, %s113
    %s115 = sphi 0, %s113
    %s116 = sphi 0, %s115
    %s130 = sphi 0, %s116
    %s134 = sphi 0, %s134
    %s136 = sphi 0, %s134
    %s137 = sphi 0, %s136
    %s151 = sphi 0, %s137
    %s155 = sphi 0, %s155
    %s157 = sphi 0, %s155
    %s158 = sphi 0, %s157
    %s172 = sphi 0, %s158
    %s178 = sphi 0, %s180
    %s181 = sphi 0, %s178
    %s182 = sphi 0, %s181
    %s198 = sphi 0, %s182
    %s202 = sphi 0, %s202
    %s204 = sphi 0, %s202
    %s205 = sphi 0, %s204
    %s219 = sphi 0, %s205
    %s223 = sphi 0, %s223
    %s225 = sphi 0, %s223
    %s226 = sphi 0, %s225
    %s240 = sphi 0, %s226
    %s246 = sphi 0, %s248
    %s249 = sphi 0, %s246
    %s250 = sphi 0, %s249
    %s266 = sphi 0, %s250
  $region4: #{unet_residual_block.2} parent=0 // loop_header_branch
    %19 = sbr.rel (%p17) target = $region8
  $region5: #{unet_residual_block.2} parent=0 // loop_body
    %s21 = ssub.s32 %s16, 1
    %s22 = ssub.s32 %s16, 2
    %s23 = sadd.s32 %s16, 1
    %s24 = ssub.s32 %s16, %s23
    %p25 = scmp.eq.s32.totalorder %s24, 0
    %s27 = sadd.s32 %s26, 1
    %s28 = scalar_select %p25, %s26, %s27
    %p31 = pneg %p25
    %p32 = scmp.eq.s32.totalorder %s16, 1
    %p33 = por %p31, %p32
    %p34 = scmp.ne.s32.totalorder %s26, %s29
    %p35 = scmp.eq.s32.totalorder %s16, 0
    %p36 = por %p34, %p35
    %p37 = scmp.ne.s32.totalorder %s26, %s29
    %p38 = scmp.eq.s32.totalorder %s21, 1
    %p39 = por %p37, %p38
    %p40 = scmp.ne.s32.totalorder %s29, %s30
    %p41 = scmp.eq.s32.totalorder %s21, 0
    %p42 = por %p40, %p41
    %p43 = scmp.ne.s32.totalorder %s29, %s30
    %p44 = scmp.eq.s32.totalorder %s22, 1
    %p45 = por %p43, %p44
    %p47 = scmp.ne.s32.totalorder %s30, %s46
    %p48 = scmp.eq.s32.totalorder %s22, 0
    %p49 = por %p47, %p48
    %s51 = sadd.s32 %s50, 1
    %p54 = scmp.eq.s32.totalorder %s16, 1
    %p55 = scmp.ne.s32.totalorder %s50, %s52
    %p56 = scmp.eq.s32.totalorder %s16, 0
    %p57 = por %p55, %p56
    %p58 = scmp.ne.s32.totalorder %s50, %s52
    %p59 = scmp.eq.s32.totalorder %s21, 1
    %p60 = por %p58, %p59
    %p61 = scmp.ne.s32.totalorder %s52, %s53
    %p62 = scmp.eq.s32.totalorder %s21, 0
    %p63 = por %p61, %p62
    %p64 = scmp.ne.s32.totalorder %s52, %s53
    %p65 = scmp.eq.s32.totalorder %s22, 1
    %p66 = por %p64, %p65
    %p68 = scmp.ne.s32.totalorder %s53, %s67
    %p69 = scmp.eq.s32.totalorder %s22, 0
    %p70 = por %p68, %p69
    %s72 = sadd.s32 %s71, 1
    %p75 = scmp.eq.s32.totalorder %s16, 1
    %p76 = scmp.ne.s32.totalorder %s71, %s73
    %p77 = scmp.eq.s32.totalorder %s16, 0
    %p78 = por %p76, %p77
    %p79 = scmp.ne.s32.totalorder %s71, %s73
    %p80 = scmp.eq.s32.totalorder %s21, 1
    %p81 = por %p79, %p80
    %p82 = scmp.ne.s32.totalorder %s73, %s74
    %p83 = scmp.eq.s32.totalorder %s21, 0
    %p84 = por %p82, %p83
    %p85 = scmp.ne.s32.totalorder %s73, %s74
    %p86 = scmp.eq.s32.totalorder %s22, 1
    %p87 = por %p85, %p86
    %p89 = scmp.ne.s32.totalorder %s74, %s88
    %p90 = scmp.eq.s32.totalorder %s22, 0
    %p91 = por %p89, %p90
    %s93 = sadd.s32 %s92, 1
    %p96 = scmp.eq.s32.totalorder %s16, 1
    %p97 = scmp.ne.s32.totalorder %s92, %s94
    %p98 = scmp.eq.s32.totalorder %s16, 0
    %p99 = por %p97, %p98
    %p100 = scmp.ne.s32.totalorder %s92, %s94
    %p101 = scmp.eq.s32.totalorder %s21, 1
    %p102 = por %p100, %p101
    %p103 = scmp.ne.s32.totalorder %s94, %s95
    %p104 = scmp.eq.s32.totalorder %s21, 0
    %p105 = por %p103, %p104
    %p106 = scmp.ne.s32.totalorder %s94, %s95
    %p107 = scmp.eq.s32.totalorder %s22, 1
    %p108 = por %p106, %p107
    %p110 = scmp.ne.s32.totalorder %s95, %s109
    %p111 = scmp.eq.s32.totalorder %s22, 0
    %p112 = por %p110, %p111
    %s114 = sadd.s32 %s113, 1
    %p117 = scmp.eq.s32.totalorder %s16, 1
    %p118 = scmp.ne.s32.totalorder %s113, %s115
    %p119 = scmp.eq.s32.totalorder %s16, 0
    %p120 = por %p118, %p119
    %p121 = scmp.ne.s32.totalorder %s113, %s115
    %p122 = scmp.eq.s32.totalorder %s21, 1
    %p123 = por %p121, %p122
    %p124 = scmp.ne.s32.totalorder %s115, %s116
    %p125 = scmp.eq.s32.totalorder %s21, 0
    %p126 = por %p124, %p125
    %p127 = scmp.ne.s32.totalorder %s115, %s116
    %p128 = scmp.eq.s32.totalorder %s22, 1
    %p129 = por %p127, %p128
    %p131 = scmp.ne.s32.totalorder %s116, %s130
    %p132 = scmp.eq.s32.totalorder %s22, 0
    %p133 = por %p131, %p132
    %s135 = sadd.s32 %s134, 1
    %p138 = scmp.eq.s32.totalorder %s16, 1
    %p139 = scmp.ne.s32.totalorder %s134, %s136
    %p140 = scmp.eq.s32.totalorder %s16, 0
    %p141 = por %p139, %p140
    %p142 = scmp.ne.s32.totalorder %s134, %s136
    %p143 = scmp.eq.s32.totalorder %s21, 1
    %p144 = por %p142, %p143
    %p145 = scmp.ne.s32.totalorder %s136, %s137
    %p146 = scmp.eq.s32.totalorder %s21, 0
    %p147 = por %p145, %p146
    %p148 = scmp.ne.s32.totalorder %s136, %s137
    %p149 = scmp.eq.s32.totalorder %s22, 1
    %p150 = por %p148, %p149
    %p152 = scmp.ne.s32.totalorder %s137, %s151
    %p153 = scmp.eq.s32.totalorder %s22, 0
    %p154 = por %p152, %p153
    %s156 = sadd.s32 %s155, 1
    %p159 = scmp.eq.s32.totalorder %s16, 1
    %p160 = scmp.ne.s32.totalorder %s155, %s157
    %p161 = scmp.eq.s32.totalorder %s16, 0
    %p162 = por %p160, %p161
    %p163 = scmp.ne.s32.totalorder %s155, %s157
    %p164 = scmp.eq.s32.totalorder %s21, 1
    %p165 = por %p163, %p164
    %p166 = scmp.ne.s32.totalorder %s157, %s158
    %p167 = scmp.eq.s32.totalorder %s21, 0
    %p168 = por %p166, %p167
    %p169 = scmp.ne.s32.totalorder %s157, %s158
    %p170 = scmp.eq.s32.totalorder %s22, 1
    %p171 = por %p169, %p170
    %p173 = scmp.ne.s32.totalorder %s158, %s172
    %p174 = scmp.eq.s32.totalorder %s22, 0
    %p175 = por %p173, %p174
    %s176 = ssub.s32 %s16, %s23
    %p177 = scmp.eq.s32.totalorder %s176, 0
    %s179 = sadd.s32 %s178, 1
    %s180 = scalar_select %p177, %s178, %s179
    %p183 = pneg %p177
    %p184 = scmp.eq.s32.totalorder %s16, 1
    %p185 = por %p183, %p184
    %p186 = scmp.ne.s32.totalorder %s178, %s181
    %p187 = scmp.eq.s32.totalorder %s16, 0
    %p188 = por %p186, %p187
    %p189 = scmp.ne.s32.totalorder %s178, %s181
    %p190 = scmp.eq.s32.totalorder %s21, 1
    %p191 = por %p189, %p190
    %p192 = scmp.ne.s32.totalorder %s181, %s182
    %p193 = scmp.eq.s32.totalorder %s21, 0
    %p194 = por %p192, %p193
    %p195 = scmp.ne.s32.totalorder %s181, %s182
    %p196 = scmp.eq.s32.totalorder %s22, 1
    %p197 = por %p195, %p196
    %p199 = scmp.ne.s32.totalorder %s182, %s198
    %p200 = scmp.eq.s32.totalorder %s22, 0
    %p201 = por %p199, %p200
    %s203 = sadd.s32 %s202, 1
    %p206 = scmp.eq.s32.totalorder %s16, 1
    %p207 = scmp.ne.s32.totalorder %s202, %s204
    %p208 = scmp.eq.s32.totalorder %s16, 0
    %p209 = por %p207, %p208
    %p210 = scmp.ne.s32.totalorder %s202, %s204
    %p211 = scmp.eq.s32.totalorder %s21, 1
    %p212 = por %p210, %p211
    %p213 = scmp.ne.s32.totalorder %s204, %s205
    %p214 = scmp.eq.s32.totalorder %s21, 0
    %p215 = por %p213, %p214
    %p216 = scmp.ne.s32.totalorder %s204, %s205
    %p217 = scmp.eq.s32.totalorder %s22, 1
    %p218 = por %p216, %p217
    %p220 = scmp.ne.s32.totalorder %s205, %s219
    %p221 = scmp.eq.s32.totalorder %s22, 0
    %p222 = por %p220, %p221
    %s224 = sadd.s32 %s223, 1
    %p227 = scmp.eq.s32.totalorder %s16, 1
    %p228 = scmp.ne.s32.totalorder %s223, %s225
    %p229 = scmp.eq.s32.totalorder %s16, 0
    %p230 = por %p228, %p229
    %p231 = scmp.ne.s32.totalorder %s223, %s225
    %p232 = scmp.eq.s32.totalorder %s21, 1
    %p233 = por %p231, %p232
    %p234 = scmp.ne.s32.totalorder %s225, %s226
    %p235 = scmp.eq.s32.totalorder %s21, 0
    %p236 = por %p234, %p235
    %p237 = scmp.ne.s32.totalorder %s225, %s226
    %p238 = scmp.eq.s32.totalorder %s22, 1
    %p239 = por %p237, %p238
    %p241 = scmp.ne.s32.totalorder %s226, %s240
    %p242 = scmp.eq.s32.totalorder %s22, 0
    %p243 = por %p241, %p242
    %s244 = ssub.s32 %s16, %s23
    %p245 = scmp.eq.s32.totalorder %s244, 0
    %s247 = sadd.s32 %s246, 1
    %s248 = scalar_select %p245, %s246, %s247
    %p251 = pneg %p245
    %p252 = scmp.eq.s32.totalorder %s16, 1
    %p253 = por %p251, %p252
    %p254 = scmp.ne.s32.totalorder %s246, %s249
    %p255 = scmp.eq.s32.totalorder %s16, 0
    %p256 = por %p254, %p255
    %p257 = scmp.ne.s32.totalorder %s246, %s249
    %p258 = scmp.eq.s32.totalorder %s21, 1
    %p259 = por %p257, %p258
    %p260 = scmp.ne.s32.totalorder %s249, %s250
    %p261 = scmp.eq.s32.totalorder %s21, 0
    %p262 = por %p260, %p261
    %p263 = scmp.ne.s32.totalorder %s249, %s250
    %p264 = scmp.eq.s32.totalorder %s22, 1
    %p265 = por %p263, %p264
    %p267 = scmp.ne.s32.totalorder %s250, %s266
    %p268 = scmp.eq.s32.totalorder %s22, 0
    %p269 = por %p267, %p268
    %p270 = scmp.le.s32.totalorder 1, %s16
    %p271 = scmp.lt.s32.totalorder %s16, 3
    %p272 = pnand %p270, %p271
    %p273 = pneg %p272
    // Predicated region
    $region9: #{unet_residual_block.2} parent=5 // pred_check
      _
    $region10: #{unet_residual_block.2} parent=5 // pred_check_branch
      %275 = sbr.rel (%p272) target = $region12
    $region11: #{unet_residual_block.2} parent=5 // pred_region
      %s276 = ssub.s32 %s16, 1
      // Predicated region
      $region13: #{unet_residual_block.2} parent=11 // pred_check
        %p277 = pneg %p63
      $region14: #{unet_residual_block.2} parent=11 // pred_check_branch
        %279 = sbr.rel (%p277) target = $region16
      $region15: #{unet_residual_block.2} parent=11 // pred_region
        _
      $region16: #{unet_residual_block.2} parent=11 // pred_fallthru
        _
      // Predicated region
      $region17: #{unet_residual_block.2} parent=11 // pred_check
        %p280 = pneg %p84
      $region18: #{unet_residual_block.2} parent=11 // pred_check_branch
        %282 = sbr.rel (%p280) target = $region20
      $region19: #{unet_residual_block.2} parent=11 // pred_region
        _
      $region20: #{unet_residual_block.2} parent=11 // pred_fallthru
        _
      // Predicated region
      $region21: #{unet_residual_block.2} parent=11 // pred_check
        %p283 = pneg %p105
      $region22: #{unet_residual_block.2} parent=11 // pred_check_branch
        %285 = sbr.rel (%p283) target = $region24
      $region23: #{unet_residual_block.2} parent=11 // pred_region
        _
      $region24: #{unet_residual_block.2} parent=11 // pred_fallthru
        _
      // Predicated region
      $region25: #{unet_residual_block.2} parent=11 // pred_check
        %p286 = pneg %p126
      $region26: #{unet_residual_block.2} parent=11 // pred_check_branch
        %288 = sbr.rel (%p286) target = $region28
      $region27: #{unet_residual_block.2} parent=11 // pred_region
        _
      $region28: #{unet_residual_block.2} parent=11 // pred_fallthru
        _
      // Predicated region
      $region29: #{unet_residual_block.2} parent=11 // pred_check
        %p289 = pneg %p147
      $region30: #{unet_residual_block.2} parent=11 // pred_check_branch
        %291 = sbr.rel (%p289) target = $region32
      $region31: #{unet_residual_block.2} parent=11 // pred_region
        _
      $region32: #{unet_residual_block.2} parent=11 // pred_fallthru
        _
      // Predicated region
      $region33: #{unet_residual_block.2} parent=11 // pred_check
        %p292 = pneg %p168
      $region34: #{unet_residual_block.2} parent=11 // pred_check_branch
        %294 = sbr.rel (%p292) target = $region36
      $region35: #{unet_residual_block.2} parent=11 // pred_region
        _
      $region36: #{unet_residual_block.2} parent=11 // pred_fallthru
        _
      // Predicated region
      $region37: #{unet_residual_block.2} parent=11 // pred_check
        %p295 = pneg %p215
      $region38: #{unet_residual_block.2} parent=11 // pred_check_branch
        %297 = sbr.rel (%p295) target = $region40
      $region39: #{unet_residual_block.2} parent=11 // pred_region
        _
      $region40: #{unet_residual_block.2} parent=11 // pred_fallthru
        _
      // Predicated region
      $region41: #{unet_residual_block.2} parent=11 // pred_check
        %p298 = pneg %p236
      $region42: #{unet_residual_block.2} parent=11 // pred_check_branch
        %300 = sbr.rel (%p298) target = $region44
      $region43: #{unet_residual_block.2} parent=11 // pred_region
        _
      $region44: #{unet_residual_block.2} parent=11 // pred_fallthru
        _
    $region12: #{unet_residual_block.2} parent=5 // pred_fallthru
      _
    %p301 = scmp.lt.s32.totalorder %s16, 2
    // Predicated region
    $region45: #{unet_residual_block.2} parent=5 // pred_check
      %p302 = pneg %p301
    $region46: #{unet_residual_block.2} parent=5 // pred_check_branch
      %304 = sbr.rel (%p302) target = $region48
    $region47: #{unet_residual_block.2} parent=5 // pred_region
      // Predicated region
      $region49: #{unet_residual_block.2} parent=47 // pred_check
        %p305 = pneg %p36
      $region50: #{unet_residual_block.2} parent=47 // pred_check_branch
        %307 = sbr.rel (%p305) target = $region52
      $region51: #{unet_residual_block.2} parent=47 // pred_region
        %p308 = scmp.lt.s32.totalorder %s16, 1
        %s309 = scalar_select %p308, %s16, 1
        %s310 = smul.addr %s309, 57
        %s311 = smul.addr %s310, 8
        %s312 = scalar_lea.vmem %s0, %s311
      $region52: #{unet_residual_block.2} parent=47 // pred_fallthru
        _
      // Predicated region
      $region53: #{unet_residual_block.2} parent=47 // pred_check
        %p313 = pneg %p188
      $region54: #{unet_residual_block.2} parent=47 // pred_check_branch
        %315 = sbr.rel (%p313) target = $region56
      $region55: #{unet_residual_block.2} parent=47 // pred_region
        %p316 = scmp.lt.s32.totalorder %s16, 1
        %s317 = scalar_select %p316, %s16, 1
        %s318 = scalar_lea.vmem %s7, %s317
      $region56: #{unet_residual_block.2} parent=47 // pred_fallthru
        _
    $region48: #{unet_residual_block.2} parent=5 // pred_fallthru
      _
    %p319 = scmp.le.s32.totalorder 1, %s16
    %p320 = scmp.lt.s32.totalorder %s16, 3
    %p321 = pnand %p319, %p320
    %p322 = pneg %p321
    // Predicated region
    $region57: #{unet_residual_block.2} parent=5 // pred_check
      _
    $region58: #{unet_residual_block.2} parent=5 // pred_check_branch
      %324 = sbr.rel (%p321) target = $region60
    $region59: #{unet_residual_block.2} parent=5 // pred_region
      %s325 = ssub.s32 %s16, 1
      %p326 = scmp.lt.s32.totalorder %s21, 1
      %s327 = scalar_select %p326, %s21, 1
      %s328 = smul.addr %s327, 57
      %s329 = smul.addr %s328, 8
      %s330 = scalar_lea.vmem %s0, %s329
      %p331 = pneg %p42
      %p332 = pneg %p39
      %p333 = pneg %p63
      %p334 = pneg %p60
      %p335 = pneg %p84
      %p336 = pneg %p81
      %p337 = pneg %p105
      %p338 = pneg %p102
      %p339 = pneg %p126
      %p340 = pneg %p123
      %p341 = pneg %p147
      %p342 = pneg %p144
      %p343 = pneg %p168
      %p344 = pneg %p165
      %p345 = scmp.lt.s32.totalorder %s21, 1
      %s346 = scalar_select %p345, %s21, 1
      %s347 = scalar_lea.vmem %s7, %s346
      %p348 = pneg %p194
      %p349 = pneg %p191
      %p350 = pneg %p215
      %p351 = pneg %p212
      %p352 = pneg %p236
      %p353 = pneg %p233
      %p354 = pneg %p262
      %p355 = pneg %p259
      %p356 = scmp.lt.s32.totalorder %s21, 1
      %s357 = scalar_select %p356, %s21, 1
      %s358 = smul.addr %s357, 32
      %s359 = smul.addr %s358, 8
      %s360 = scalar_lea.vmem %s10, %s359
      %p361 = scmp.lt.s32.totalorder %s21, 1
      %s362 = scalar_select %p361, %s21, 1
      %s363 = smul.addr %s362, 57
      %s364 = smul.addr %s363, 8
      %s365 = scalar_lea.vmem %s0, %s364
      %p366 = scmp.lt.s32.totalorder %s21, 1
      %s367 = scalar_select %p366, %s21, 1
      %s368 = scalar_lea.vmem %s7, %s367
      %p369 = scmp.lt.s32.totalorder %s21, 1
      %s370 = scalar_select %p369, %s21, 1
      %s371 = smul.addr %s370, 32
      %s372 = smul.addr %s371, 8
      %s373 = scalar_lea.vmem %s10, %s372
      %v374 = vld [vmem:[%s365] sm:$0xff]
      %v375 = vld [vmem:[%s365 + $0x8] sm:$0xff]
      %v376 = vld [vmem:[%s365 + $0x10] sm:$0xff]
      %v377 = vld [vmem:[%s365 + $0x18] sm:$0xff]
      %v378 = vld [vmem:[%s365 + $0x20] sm:$0xff]
      %v379 = vld [vmem:[%s365 + $0x28] sm:$0xff]
      %v380 = vld [vmem:[%s365 + $0x30] sm:$0xff]
      %v381 = vld [vmem:[%s365 + $0x38] sm:$0xff]
      %v382 = vld [vmem:[%s365 + $0x40] sm:$0xff]
      %v383 = vld [vmem:[%s365 + $0x48] sm:$0xff]
      %v384 = vld [vmem:[%s365 + $0x50] sm:$0xff]
      %v385 = vld [vmem:[%s365 + $0x58] sm:$0xff]
      %v386 = vld [vmem:[%s365 + $0x60] sm:$0xff]
      %v387 = vld [vmem:[%s365 + $0x68] sm:$0xff]
      %v388 = vld [vmem:[%s365 + $0x70] sm:$0xff]
      %v389 = vld [vmem:[%s365 + $0x78] sm:$0xff]
      %v390 = vld [vmem:[%s365 + $0x80] sm:$0xff]
      %v391 = vld [vmem:[%s365 + $0x88] sm:$0xff]
      %v392 = vld [vmem:[%s365 + $0x90] sm:$0xff]
      %v393 = vld [vmem:[%s365 + $0x98] sm:$0xff]
      %v394 = vld [vmem:[%s365 + $0xa0] sm:$0xff]
      %v395 = vld [vmem:[%s365 + $0xa8] sm:$0xff]
      %v396 = vld [vmem:[%s365 + $0xb0] sm:$0xff]
      %v397 = vld [vmem:[%s365 + $0xb8] sm:$0xff]
      %v398 = vld [vmem:[%s365 + $0xc0] sm:$0xff]
      %v399 = vld [vmem:[%s365 + $0xc8] sm:$0xff]
      %v400 = vld [vmem:[%s365 + $0xd0] sm:$0xff]
      %v401 = vld [vmem:[%s365 + $0xd8] sm:$0xff]
      %v402 = vld [vmem:[%s365 + $0xe0] sm:$0xff]
      %v403 = vld [vmem:[%s365 + $0xe8] sm:$0xff]
      %v404 = vld [vmem:[%s365 + $0xf0] sm:$0xff]
      %v405 = vld [vmem:[%s365 + $0xf8] sm:$0xff]
      %v406 = vld [vmem:[%s365 + $0x100] sm:$0xff]
      %v407 = vld [vmem:[%s365 + $0x108] sm:$0xff]
      %v408 = vld [vmem:[%s365 + $0x110] sm:$0xff]
      %v409 = vld [vmem:[%s365 + $0x118] sm:$0xff]
      %v410 = vld [vmem:[%s365 + $0x120] sm:$0xff]
      %v411 = vld [vmem:[%s365 + $0x128] sm:$0xff]
      %v412 = vld [vmem:[%s365 + $0x130] sm:$0xff]
      %v413 = vld [vmem:[%s365 + $0x138] sm:$0xff]
      %v414 = vld [vmem:[%s365 + $0x140] sm:$0xff]
      %v415 = vld [vmem:[%s365 + $0x148] sm:$0xff]
      %v416 = vld [vmem:[%s365 + $0x150] sm:$0xff]
      %v417 = vld [vmem:[%s365 + $0x158] sm:$0xff]
      %v418 = vld [vmem:[%s365 + $0x160] sm:$0xff]
      %v419 = vld [vmem:[%s365 + $0x168] sm:$0xff]
      %v420 = vld [vmem:[%s365 + $0x170] sm:$0xff]
      %v421 = vld [vmem:[%s365 + $0x178] sm:$0xff]
      %v422 = vld [vmem:[%s365 + $0x180] sm:$0xff]
      %v423 = vld [vmem:[%s365 + $0x188] sm:$0xff]
      %v424 = vld [vmem:[%s365 + $0x190] sm:$0xff]
      %v425 = vld [vmem:[%s365 + $0x198] sm:$0xff]
      %v426 = vld [vmem:[%s365 + $0x1a0] sm:$0xff]
      %v427 = vld [vmem:[%s365 + $0x1a8] sm:$0xff]
      %v428 = vld [vmem:[%s365 + $0x1b0] sm:$0xff]
      %v429 = vld [vmem:[%s365 + $0x1b8] sm:$0xff]
      %v430 = vld [vmem:[%s365 + $0x1c0] sm:$0xff]
      %v431 = vld [vmem:[%s1] sm:$0xff]
      %v432 = vld [vmem:[%s1 + $0x8] sm:$0xff]
      %v433 = vld [vmem:[%s1 + $0x10] sm:$0xff]
      %v434 = vld [vmem:[%s1 + $0x18] sm:$0xff]
      %v435 = vld [vmem:[%s2] sm:$0x1]
      %v436 = vld [vmem:[%s3] sm:$0x1]
      %v437 = vld [vmem:[%s4] sm:$0xff]
      %v438 = vld [vmem:[%s4 + $0x8] sm:$0xff]
      %v439 = vld [vmem:[%s4 + $0x10] sm:$0xff]
      %v440 = vld [vmem:[%s4 + $0x18] sm:$0xff]
      %v441 = vld [vmem:[%s4 + $0x20] sm:$0xff]
      %v442 = vld [vmem:[%s4 + $0x28] sm:$0xff]
      %v443 = vld [vmem:[%s4 + $0x30] sm:$0xff]
      %v444 = vld [vmem:[%s4 + $0x38] sm:$0xff]
      %v445 = vld [vmem:[%s4 + $0x40] sm:$0xff]
      %v446 = vld [vmem:[%s4 + $0x48] sm:$0xff]
      %v447 = vld [vmem:[%s4 + $0x50] sm:$0xff]
      %v448 = vld [vmem:[%s4 + $0x58] sm:$0xff]
      %v449 = vld [vmem:[%s4 + $0x60] sm:$0xff]
      %v450 = vld [vmem:[%s4 + $0x68] sm:$0xff]
      %v451 = vld [vmem:[%s4 + $0x70] sm:$0xff]
      %v452 = vld [vmem:[%s4 + $0x78] sm:$0xff]
      %v453 = vld [vmem:[%s4 + $0x80] sm:$0xff]
      %v454 = vld [vmem:[%s4 + $0x88] sm:$0xff]
      %v455 = vld [vmem:[%s4 + $0x90] sm:$0xff]
      %v456 = vld [vmem:[%s4 + $0x98] sm:$0xff]
      %v457 = vld [vmem:[%s4 + $0xa0] sm:$0xff]
      %v458 = vld [vmem:[%s4 + $0xa8] sm:$0xff]
      %v459 = vld [vmem:[%s4 + $0xb0] sm:$0xff]
      %v460 = vld [vmem:[%s4 + $0xb8] sm:$0xff]
      %v461 = vld [vmem:[%s4 + $0xc0] sm:$0xff]
      %v462 = vld [vmem:[%s4 + $0xc8] sm:$0xff]
      %v463 = vld [vmem:[%s4 + $0xd0] sm:$0xff]
      %v464 = vld [vmem:[%s4 + $0xd8] sm:$0xff]
      %v465 = vld [vmem:[%s4 + $0xe0] sm:$0xff]
      %v466 = vld [vmem:[%s4 + $0xe8] sm:$0xff]
      %v467 = vld [vmem:[%s4 + $0xf0] sm:$0xff]
      %v468 = vld [vmem:[%s4 + $0xf8] sm:$0xff]
      %v469 = vld [vmem:[%s4 + $0x100] sm:$0xff]
      %v470 = vld [vmem:[%s4 + $0x108] sm:$0xff]
      %v471 = vld [vmem:[%s4 + $0x110] sm:$0xff]
      %v472 = vld [vmem:[%s4 + $0x118] sm:$0xff]
      %v473 = vld [vmem:[%s4 + $0x120] sm:$0xff]
      %v474 = vld [vmem:[%s4 + $0x128] sm:$0xff]
      %v475 = vld [vmem:[%s4 + $0x130] sm:$0xff]
      %v476 = vld [vmem:[%s4 + $0x138] sm:$0xff]
      %v477 = vld [vmem:[%s4 + $0x140] sm:$0xff]
      %v478 = vld [vmem:[%s4 + $0x148] sm:$0xff]
      %v479 = vld [vmem:[%s4 + $0x150] sm:$0xff]
      %v480 = vld [vmem:[%s4 + $0x158] sm:$0xff]
      %v481 = vld [vmem:[%s4 + $0x160] sm:$0xff]
      %v482 = vld [vmem:[%s4 + $0x168] sm:$0xff]
      %v483 = vld [vmem:[%s4 + $0x170] sm:$0xff]
      %v484 = vld [vmem:[%s4 + $0x178] sm:$0xff]
      %v485 = vld [vmem:[%s4 + $0x180] sm:$0xff]
      %v486 = vld [vmem:[%s4 + $0x188] sm:$0xff]
      %v487 = vld [vmem:[%s4 + $0x190] sm:$0xff]
      %v488 = vld [vmem:[%s4 + $0x198] sm:$0xff]
      %v489 = vld [vmem:[%s4 + $0x1a0] sm:$0xff]
      %v490 = vld [vmem:[%s4 + $0x1a8] sm:$0xff]
      %v491 = vld [vmem:[%s4 + $0x1b0] sm:$0xff]
      %vm492 = vcmask 261120
      %v493 = vsel %vm492, %v374, 0.0
      %v494 = vsel %vm492, %v375, 0.0
      %v495 = vadd.f32 %v493, %v494
      %v496 = vsel %vm492, %v376, 0.0
      %v497 = vadd.f32 %v495, %v496
      %v498 = vsel %vm492, %v377, 0.0
      %v499 = vadd.f32 %v497, %v498
      %v500 = vsel %vm492, %v378, 0.0
      %v501 = vadd.f32 %v499, %v500
      %v502 = vsel %vm492, %v379, 0.0
      %v503 = vadd.f32 %v501, %v502
      %v504 = vsel %vm492, %v380, 0.0
      %v505 = vadd.f32 %v503, %v504
      %v506 = vsel %vm492, %v381, 0.0
      %v507 = vadd.f32 %v505, %v506
      %v508 = vsel %vm492, %v382, 0.0
      %v509 = vadd.f32 %v507, %v508
      %v510 = vsel %vm492, %v383, 0.0
      %v511 = vadd.f32 %v509, %v510
      %v512 = vsel %vm492, %v384, 0.0
      %v513 = vadd.f32 %v511, %v512
      %v514 = vsel %vm492, %v385, 0.0
      %v515 = vadd.f32 %v513, %v514
      %v516 = vsel %vm492, %v386, 0.0
      %v517 = vadd.f32 %v515, %v516
      %v518 = vsel %vm492, %v387, 0.0
      %v519 = vadd.f32 %v517, %v518
      %v520 = vsel %vm492, %v388, 0.0
      %v521 = vadd.f32 %v519, %v520
      %v522 = vsel %vm492, %v389, 0.0
      %v523 = vadd.f32 %v521, %v522
      %v524 = vsel %vm492, %v390, 0.0
      %v525 = vadd.f32 %v523, %v524
      %v526 = vsel %vm492, %v391, 0.0
      %v527 = vadd.f32 %v525, %v526
      %v528 = vsel %vm492, %v392, 0.0
      %v529 = vadd.f32 %v527, %v528
      %v530 = vsel %vm492, %v393, 0.0
      %v531 = vadd.f32 %v529, %v530
      %v532 = vsel %vm492, %v394, 0.0
      %v533 = vadd.f32 %v531, %v532
      %v534 = vsel %vm492, %v395, 0.0
      %v535 = vadd.f32 %v533, %v534
      %v536 = vsel %vm492, %v396, 0.0
      %v537 = vadd.f32 %v535, %v536
      %v538 = vsel %vm492, %v397, 0.0
      %v539 = vadd.f32 %v537, %v538
      %v540 = vsel %vm492, %v398, 0.0
      %v541 = vadd.f32 %v539, %v540
      %v542 = vsel %vm492, %v399, 0.0
      %v543 = vadd.f32 %v541, %v542
      %v544 = vsel %vm492, %v400, 0.0
      %v545 = vadd.f32 %v543, %v544
      %v546 = vsel %vm492, %v401, 0.0
      %v547 = vadd.f32 %v545, %v546
      %v548 = vsel %vm492, %v402, 0.0
      %v549 = vadd.f32 %v547, %v548
      %v550 = vsel %vm492, %v403, 0.0
      %v551 = vadd.f32 %v549, %v550
      %v552 = vsel %vm492, %v404, 0.0
      %v553 = vadd.f32 %v551, %v552
      %v554 = vsel %vm492, %v405, 0.0
      %v555 = vadd.f32 %v553, %v554
      %v556 = vsel %vm492, %v406, 0.0
      %v557 = vadd.f32 %v555, %v556
      %v558 = vsel %vm492, %v407, 0.0
      %v559 = vadd.f32 %v557, %v558
      %v560 = vsel %vm492, %v408, 0.0
      %v561 = vadd.f32 %v559, %v560
      %v562 = vsel %vm492, %v409, 0.0
      %v563 = vadd.f32 %v561, %v562
      %v564 = vsel %vm492, %v410, 0.0
      %v565 = vadd.f32 %v563, %v564
      %v566 = vsel %vm492, %v411, 0.0
      %v567 = vadd.f32 %v565, %v566
      %v568 = vsel %vm492, %v412, 0.0
      %v569 = vadd.f32 %v567, %v568
      %v570 = vsel %vm492, %v413, 0.0
      %v571 = vadd.f32 %v569, %v570
      %v572 = vsel %vm492, %v414, 0.0
      %v573 = vadd.f32 %v571, %v572
      %v574 = vsel %vm492, %v415, 0.0
      %v575 = vadd.f32 %v573, %v574
      %v576 = vsel %vm492, %v416, 0.0
      %v577 = vadd.f32 %v575, %v576
      %v578 = vsel %vm492, %v417, 0.0
      %v579 = vadd.f32 %v577, %v578
      %v580 = vsel %vm492, %v418, 0.0
      %v581 = vadd.f32 %v579, %v580
      %v582 = vsel %vm492, %v419, 0.0
      %v583 = vadd.f32 %v581, %v582
      %v584 = vsel %vm492, %v420, 0.0
      %v585 = vadd.f32 %v583, %v584
      %v586 = vsel %vm492, %v421, 0.0
      %v587 = vadd.f32 %v585, %v586
      %v588 = vsel %vm492, %v422, 0.0
      %v589 = vadd.f32 %v587, %v588
      %v590 = vsel %vm492, %v423, 0.0
      %v591 = vadd.f32 %v589, %v590
      %v592 = vsel %vm492, %v424, 0.0
      %v593 = vadd.f32 %v591, %v592
      %v594 = vsel %vm492, %v425, 0.0
      %v595 = vadd.f32 %v593, %v594
      %v596 = vsel %vm492, %v426, 0.0
      %v597 = vadd.f32 %v595, %v596
      %v598 = vsel %vm492, %v427, 0.0
      %v599 = vadd.f32 %v597, %v598
      %v600 = vsel %vm492, %v428, 0.0
      %v601 = vadd.f32 %v599, %v600
      %v602 = vsel %vm492, %v429, 0.0
      %v603 = vadd.f32 %v601, %v602
      %v604 = vsel %vm492, %v430, 0.0
      %v605 = vadd.f32 %v603, %v604
      %v606 = vrot.slane %v605, 4
      %v607 = vadd.f32 %v605, %v606
      %v608 = vrot.slane %v607, 2
      %v609 = vadd.f32 %v607, %v608
      %v610 = vrot.slane %v609, 1
      %v611 = vadd.f32 %v609, %v610
      %v612 = vmul.f32 %v374, %v374
      %v613 = vmul.f32 %v375, %v375
      %v614 = vmul.f32 %v376, %v376
      %v615 = vmul.f32 %v377, %v377
      %v616 = vmul.f32 %v378, %v378
      %v617 = vmul.f32 %v379, %v379
      %v618 = vmul.f32 %v380, %v380
      %v619 = vmul.f32 %v381, %v381
      %v620 = vmul.f32 %v382, %v382
      %v621 = vmul.f32 %v383, %v383
      %v622 = vmul.f32 %v384, %v384
      %v623 = vmul.f32 %v385, %v385
      %v624 = vmul.f32 %v386, %v386
      %v625 = vmul.f32 %v387, %v387
      %v626 = vmul.f32 %v388, %v388
      %v627 = vmul.f32 %v389, %v389
      %v628 = vmul.f32 %v390, %v390
      %v629 = vmul.f32 %v391, %v391
      %v630 = vmul.f32 %v392, %v392
      %v631 = vmul.f32 %v393, %v393
      %v632 = vmul.f32 %v394, %v394
      %v633 = vmul.f32 %v395, %v395
      %v634 = vmul.f32 %v396, %v396
      %v635 = vmul.f32 %v397, %v397
      %v636 = vmul.f32 %v398, %v398
      %v637 = vmul.f32 %v399, %v399
      %v638 = vmul.f32 %v400, %v400
      %v639 = vmul.f32 %v401, %v401
      %v640 = vmul.f32 %v402, %v402
      %v641 = vmul.f32 %v403, %v403
      %v642 = vmul.f32 %v404, %v404
      %v643 = vmul.f32 %v405, %v405
      %v644 = vmul.f32 %v406, %v406
      %v645 = vmul.f32 %v407, %v407
      %v646 = vmul.f32 %v408, %v408
      %v647 = vmul.f32 %v409, %v409
      %v648 = vmul.f32 %v410, %v410
      %v649 = vmul.f32 %v411, %v411
      %v650 = vmul.f32 %v412, %v412
      %v651 = vmul.f32 %v413, %v413
      %v652 = vmul.f32 %v414, %v414
      %v653 = vmul.f32 %v415, %v415
      %v654 = vmul.f32 %v416, %v416
      %v655 = vmul.f32 %v417, %v417
      %v656 = vmul.f32 %v418, %v418
      %v657 = vmul.f32 %v419, %v419
      %v658 = vmul.f32 %v420, %v420
      %v659 = vmul.f32 %v421, %v421
      %v660 = vmul.f32 %v422, %v422
      %v661 = vmul.f32 %v423, %v423
      %v662 = vmul.f32 %v424, %v424
      %v663 = vmul.f32 %v425, %v425
      %v664 = vmul.f32 %v426, %v426
      %v665 = vmul.f32 %v427, %v427
      %v666 = vmul.f32 %v428, %v428
      %v667 = vmul.f32 %v429, %v429
      %v668 = vmul.f32 %v430, %v430
      %v669 = vsel %vm492, %v612, 0.0
      %v670 = vsel %vm492, %v613, 0.0
      %v671 = vadd.f32 %v669, %v670
      %v672 = vsel %vm492, %v614, 0.0
      %v673 = vadd.f32 %v671, %v672
      %v674 = vsel %vm492, %v615, 0.0
      %v675 = vadd.f32 %v673, %v674
      %v676 = vsel %vm492, %v616, 0.0
      %v677 = vadd.f32 %v675, %v676
      %v678 = vsel %vm492, %v617, 0.0
      %v679 = vadd.f32 %v677, %v678
      %v680 = vsel %vm492, %v618, 0.0
      %v681 = vadd.f32 %v679, %v680
      %v682 = vsel %vm492, %v619, 0.0
      %v683 = vadd.f32 %v681, %v682
      %v684 = vsel %vm492, %v620, 0.0
      %v685 = vadd.f32 %v683, %v684
      %v686 = vsel %vm492, %v621, 0.0
      %v687 = vadd.f32 %v685, %v686
      %v688 = vsel %vm492, %v622, 0.0
      %v689 = vadd.f32 %v687, %v688
      %v690 = vsel %vm492, %v623, 0.0
      %v691 = vadd.f32 %v689, %v690
      %v692 = vsel %vm492, %v624, 0.0
      %v693 = vadd.f32 %v691, %v692
      %v694 = vsel %vm492, %v625, 0.0
      %v695 = vadd.f32 %v693, %v694
      %v696 = vsel %vm492, %v626, 0.0
      %v697 = vadd.f32 %v695, %v696
      %v698 = vsel %vm492, %v627, 0.0
      %v699 = vadd.f32 %v697, %v698
      %v700 = vsel %vm492, %v628, 0.0
      %v701 = vadd.f32 %v699, %v700
      %v702 = vsel %vm492, %v629, 0.0
      %v703 = vadd.f32 %v701, %v702
      %v704 = vsel %vm492, %v630, 0.0
      %v705 = vadd.f32 %v703, %v704
      %v706 = vsel %vm492, %v631, 0.0
      %v707 = vadd.f32 %v705, %v706
      %v708 = vsel %vm492, %v632, 0.0
      %v709 = vadd.f32 %v707, %v708
      %v710 = vsel %vm492, %v633, 0.0
      %v711 = vadd.f32 %v709, %v710
      %v712 = vsel %vm492, %v634, 0.0
      %v713 = vadd.f32 %v711, %v712
      %v714 = vsel %vm492, %v635, 0.0
      %v715 = vadd.f32 %v713, %v714
      %v716 = vsel %vm492, %v636, 0.0
      %v717 = vadd.f32 %v715, %v716
      %v718 = vsel %vm492, %v637, 0.0
      %v719 = vadd.f32 %v717, %v718
      %v720 = vsel %vm492, %v638, 0.0
      %v721 = vadd.f32 %v719, %v720
      %v722 = vsel %vm492, %v639, 0.0
      %v723 = vadd.f32 %v721, %v722
      %v724 = vsel %vm492, %v640, 0.0
      %v725 = vadd.f32 %v723, %v724
      %v726 = vsel %vm492, %v641, 0.0
      %v727 = vadd.f32 %v725, %v726
      %v728 = vsel %vm492, %v642, 0.0
      %v729 = vadd.f32 %v727, %v728
      %v730 = vsel %vm492, %v643, 0.0
      %v731 = vadd.f32 %v729, %v730
      %v732 = vsel %vm492, %v644, 0.0
      %v733 = vadd.f32 %v731, %v732
      %v734 = vsel %vm492, %v645, 0.0
      %v735 = vadd.f32 %v733, %v734
      %v736 = vsel %vm492, %v646, 0.0
      %v737 = vadd.f32 %v735, %v736
      %v738 = vsel %vm492, %v647, 0.0
      %v739 = vadd.f32 %v737, %v738
      %v740 = vsel %vm492, %v648, 0.0
      %v741 = vadd.f32 %v739, %v740
      %v742 = vsel %vm492, %v649, 0.0
      %v743 = vadd.f32 %v741, %v742
      %v744 = vsel %vm492, %v650, 0.0
      %v745 = vadd.f32 %v743, %v744
      %v746 = vsel %vm492, %v651, 0.0
      %v747 = vadd.f32 %v745, %v746
      %v748 = vsel %vm492, %v652, 0.0
      %v749 = vadd.f32 %v747, %v748
      %v750 = vsel %vm492, %v653, 0.0
      %v751 = vadd.f32 %v749, %v750
      %v752 = vsel %vm492, %v654, 0.0
      %v753 = vadd.f32 %v751, %v752
      %v754 = vsel %vm492, %v655, 0.0
      %v755 = vadd.f32 %v753, %v754
      %v756 = vsel %vm492, %v656, 0.0
      %v757 = vadd.f32 %v755, %v756
      %v758 = vsel %vm492, %v657, 0.0
      %v759 = vadd.f32 %v757, %v758
      %v760 = vsel %vm492, %v658, 0.0
      %v761 = vadd.f32 %v759, %v760
      %v762 = vsel %vm492, %v659, 0.0
      %v763 = vadd.f32 %v761, %v762
      %v764 = vsel %vm492, %v660, 0.0
      %v765 = vadd.f32 %v763, %v764
      %v766 = vsel %vm492, %v661, 0.0
      %v767 = vadd.f32 %v765, %v766
      %v768 = vsel %vm492, %v662, 0.0
      %v769 = vadd.f32 %v767, %v768
      %v770 = vsel %vm492, %v663, 0.0
      %v771 = vadd.f32 %v769, %v770
      %v772 = vsel %vm492, %v664, 0.0
      %v773 = vadd.f32 %v771, %v772
      %v774 = vsel %vm492, %v665, 0.0
      %v775 = vadd.f32 %v773, %v774
      %v776 = vsel %vm492, %v666, 0.0
      %v777 = vadd.f32 %v775, %v776
      %v778 = vsel %vm492, %v667, 0.0
      %v779 = vadd.f32 %v777, %v778
      %v780 = vsel %vm492, %v668, 0.0
      %v781 = vadd.f32 %v779, %v780
      %v782 = vrot.slane %v781, 4
      %v783 = vadd.f32 %v781, %v782
      %v784 = vrot.slane %v783, 2
      %v785 = vadd.f32 %v783, %v784
      %v786 = vrot.slane %v785, 1
      %v787 = vadd.f32 %v785, %v786
      %v789 = vsel %vm492, %v611, 0
      %791 = vmatprep.subr.mxu0 0.0
      %792 = vmatpush1.msra.mxu0 %v431
      %793 = vmatprep.subr.mxu0 0.0
      %794 = vmatpush1.msra.mxu0 %v432
      %795 = vmatprep.subr.mxu0 0.0
      %796 = vmatpush1.msra.mxu0 %v433
      %797 = vmatprep.subr.mxu0 0.0
      %798 = vmatpush1.msra.mxu0 %v434
      %799 = vmatprep.subr.mxu0 0.0
      %800 = vmatpush1.msra.mxu0 0.0
      %801 = vmatprep.subr.mxu0 0.0
      %802 = vmatpush1.msra.mxu0 0.0
      %803 = vmatprep.subr.mxu0 0.0
      %804 = vmatpush1.msra.mxu0 0.0
      %805 = vmatprep.subr.mxu0 0.0
      %806 = vmatpush1.msra.mxu0 0.0
      %807 = vmatprep.subr.mxu0 0.0
      %808 = vmatpush1.msra.mxu0 0.0
      %809 = vmatprep.subr.mxu0 0.0
      %810 = vmatpush1.msra.mxu0 0.0
      %811 = vmatprep.subr.mxu0 0.0
      %812 = vmatpush1.msra.mxu0 0.0
      %813 = vmatprep.subr.mxu0 0.0
      %814 = vmatpush1.msra.mxu0 0.0
      %815 = vmatprep.subr.mxu0 0.0
      %816 = vmatpush1.msra.mxu0 0.0
      %817 = vmatprep.subr.mxu0 0.0
      %818 = vmatpush1.msra.mxu0 0.0
      %819 = vmatprep.subr.mxu0 0.0
      %820 = vmatpush1.msra.mxu0 0.0
      %821 = vmatprep.subr.mxu0 0.0
      %822 = vmatpush1.msra.mxu0 0.0
      %823 = vmatprep.subr.mxu0 0.0
      %824 = vmatpush1.msra.mxu0 0.0
      %825 = vmatprep.subr.mxu0 0.0
      %826 = vmatpush1.msra.mxu0 0.0
      %827 = vmatprep.subr.mxu0 0.0
      %828 = vmatpush1.msra.mxu0 0.0
      %829 = vmatprep.subr.mxu0 0.0
      %830 = vmatpush1.msra.mxu0 0.0
      %831 = vmatprep.subr.mxu0 0.0
      %832 = vmatpush1.msra.mxu0 0.0
      %833 = vmatprep.subr.mxu0 0.0
      %834 = vmatpush1.msra.mxu0 0.0
      %835 = vmatprep.subr.mxu0 0.0
      %836 = vmatpush1.msra.mxu0 0.0
      %837 = vmatprep.subr.mxu0 0.0
      %838 = vmatpush1.msra.mxu0 0.0
      %839 = vmatprep.subr.mxu0 0.0
      %840 = vmatpush1.msra.mxu0 0.0
      %841 = vmatprep.subr.mxu0 0.0
      %842 = vmatpush1.msra.mxu0 0.0
      %843 = vmatprep.subr.mxu0 0.0
      %844 = vmatpush1.msra.mxu0 0.0
      %845 = vmatprep.subr.mxu0 0.0
      %846 = vmatpush1.msra.mxu0 0.0
      %847 = vmatprep.subr.mxu0 0.0
      %848 = vmatpush1.msra.mxu0 0.0
      %849 = vmatprep.subr.mxu0 0.0
      %850 = vmatpush1.msra.mxu0 0.0
      %851 = vmatprep.subr.mxu0 0.0
      %852 = vmatpush1.msra.mxu0 0.0
      %853 = vmatprep.subr.mxu0 0.0
      %854 = vmatpush1.msra.mxu0 0.0
      %855 = vmatprep.mubr.f32.mxu0 0.0
      %856 = vmatmul.mubr.f32.gmra.mrb[0].mxu0 %v789
      %v857 = vpop.f32.mrb[0].mxu0
      %v858 = vadd.f32 0.0, %v857
      %v859 = vpop.f32.mrb[0].mxu0
      %860 = vdwg.mxu0
      %v862 = vsel %vm492, %v787, 0
      %864 = vmatprep.subr.mxu0 0.0
      %865 = vmatpush1.msra.mxu0 %v431
      %866 = vmatprep.subr.mxu0 0.0
      %867 = vmatpush1.msra.mxu0 %v432
      %868 = vmatprep.subr.mxu0 0.0
      %869 = vmatpush1.msra.mxu0 %v433
      %870 = vmatprep.subr.mxu0 0.0
      %871 = vmatpush1.msra.mxu0 %v434
      %872 = vmatprep.subr.mxu0 0.0
      %873 = vmatpush1.msra.mxu0 0.0
      %874 = vmatprep.subr.mxu0 0.0
      %875 = vmatpush1.msra.mxu0 0.0
      %876 = vmatprep.subr.mxu0 0.0
      %877 = vmatpush1.msra.mxu0 0.0
      %878 = vmatprep.subr.mxu0 0.0
      %879 = vmatpush1.msra.mxu0 0.0
      %880 = vmatprep.subr.mxu0 0.0
      %881 = vmatpush1.msra.mxu0 0.0
      %882 = vmatprep.subr.mxu0 0.0
      %883 = vmatpush1.msra.mxu0 0.0
      %884 = vmatprep.subr.mxu0 0.0
      %885 = vmatpush1.msra.mxu0 0.0
      %886 = vmatprep.subr.mxu0 0.0
      %887 = vmatpush1.msra.mxu0 0.0
      %888 = vmatprep.subr.mxu0 0.0
      %889 = vmatpush1.msra.mxu0 0.0
      %890 = vmatprep.subr.mxu0 0.0
      %891 = vmatpush1.msra.mxu0 0.0
      %892 = vmatprep.subr.mxu0 0.0
      %893 = vmatpush1.msra.mxu0 0.0
      %894 = vmatprep.subr.mxu0 0.0
      %895 = vmatpush1.msra.mxu0 0.0
      %896 = vmatprep.subr.mxu0 0.0
      %897 = vmatpush1.msra.mxu0 0.0
      %898 = vmatprep.subr.mxu0 0.0
      %899 = vmatpush1.msra.mxu0 0.0
      %900 = vmatprep.subr.mxu0 0.0
      %901 = vmatpush1.msra.mxu0 0.0
      %902 = vmatprep.subr.mxu0 0.0
      %903 = vmatpush1.msra.mxu0 0.0
      %904 = vmatprep.subr.mxu0 0.0
      %905 = vmatpush1.msra.mxu0 0.0
      %906 = vmatprep.subr.mxu0 0.0
      %907 = vmatpush1.msra.mxu0 0.0
      %908 = vmatprep.subr.mxu0 0.0
      %909 = vmatpush1.msra.mxu0 0.0
      %910 = vmatprep.subr.mxu0 0.0
      %911 = vmatpush1.msra.mxu0 0.0
      %912 = vmatprep.subr.mxu0 0.0
      %913 = vmatpush1.msra.mxu0 0.0
      %914 = vmatprep.subr.mxu0 0.0
      %915 = vmatpush1.msra.mxu0 0.0
      %916 = vmatprep.subr.mxu0 0.0
      %917 = vmatpush1.msra.mxu0 0.0
      %918 = vmatprep.subr.mxu0 0.0
      %919 = vmatpush1.msra.mxu0 0.0
      %920 = vmatprep.subr.mxu0 0.0
      %921 = vmatpush1.msra.mxu0 0.0
      %922 = vmatprep.subr.mxu0 0.0
      %923 = vmatpush1.msra.mxu0 0.0
      %924 = vmatprep.subr.mxu0 0.0
      %925 = vmatpush1.msra.mxu0 0.0
      %926 = vmatprep.subr.mxu0 0.0
      %927 = vmatpush1.msra.mxu0 0.0
      %928 = vmatprep.mubr.f32.mxu0 0.0
      %929 = vmatmul.mubr.f32.gmra.mrb[0].mxu0 %v862
      %v930 = vpop.f32.mrb[0].mxu0
      %v931 = vadd.f32 0.0, %v930
      %v932 = vpop.f32.mrb[0].mxu0
      %933 = vdwg.mxu0
      %v934 = vmul.f32 %v858, %v858
      %v935 = vsub.f32 %v931, %v934
      %v936 = vmax.f32 %v935, 0.0
      %v937 = vadd.f32 %v936, 1e-05
      %v938 = vrsqrt.pop %v937
      %v939 = vlaneseq
      %v940 = vshrl.u32 %v939, 7
      %v941 = vsub.s32 0, %v940
      %v942 = vrot.slane %v858, %v941
      %v943 = vsub.f32 %v374, %v942
      %v944 = vsub.f32 %v375, %v942
      %v945 = vsub.f32 %v376, %v942
      %v946 = vsub.f32 %v377, %v942
      %v947 = vsub.f32 %v378, %v942
      %v948 = vsub.f32 %v379, %v942
      %v949 = vsub.f32 %v380, %v942
      %v950 = vsub.f32 %v381, %v942
      %v951 = vsub.f32 %v382, %v942
      %v952 = vsub.f32 %v383, %v942
      %v953 = vsub.f32 %v384, %v942
      %v954 = vsub.f32 %v385, %v942
      %v955 = vsub.f32 %v386, %v942
      %v956 = vsub.f32 %v387, %v942
      %v957 = vsub.f32 %v388, %v942
      %v958 = vsub.f32 %v389, %v942
      %v959 = vsub.f32 %v390, %v942
      %v960 = vsub.f32 %v391, %v942
      %v961 = vsub.f32 %v392, %v942
      %v962 = vsub.f32 %v393, %v942
      %v963 = vsub.f32 %v394, %v942
      %v964 = vsub.f32 %v395, %v942
      %v965 = vsub.f32 %v396, %v942
      %v966 = vsub.f32 %v397, %v942
      %v967 = vsub.f32 %v398, %v942
      %v968 = vsub.f32 %v399, %v942
      %v969 = vsub.f32 %v400, %v942
      %v970 = vsub.f32 %v401, %v942
      %v971 = vsub.f32 %v402, %v942
      %v972 = vsub.f32 %v403, %v942
      %v973 = vsub.f32 %v404, %v942
      %v974 = vsub.f32 %v405, %v942
      %v975 = vsub.f32 %v406, %v942
      %v976 = vsub.f32 %v407, %v942
      %v977 = vsub.f32 %v408, %v942
      %v978 = vsub.f32 %v409, %v942
      %v979 = vsub.f32 %v410, %v942
      %v980 = vsub.f32 %v411, %v942
      %v981 = vsub.f32 %v412, %v942
      %v982 = vsub.f32 %v413, %v942
      %v983 = vsub.f32 %v414, %v942
      %v984 = vsub.f32 %v415, %v942
      %v985 = vsub.f32 %v416, %v942
      %v986 = vsub.f32 %v417, %v942
      %v987 = vsub.f32 %v418, %v942
      %v988 = vsub.f32 %v419, %v942
      %v989 = vsub.f32 %v420, %v942
      %v990 = vsub.f32 %v421, %v942
      %v991 = vsub.f32 %v422, %v942
      %v992 = vsub.f32 %v423, %v942
      %v993 = vsub.f32 %v424, %v942
      %v994 = vsub.f32 %v425, %v942
      %v995 = vsub.f32 %v426, %v942
      %v996 = vsub.f32 %v427, %v942
      %v997 = vsub.f32 %v428, %v942
      %v998 = vmul.f32 %v938, %v435
      %v999 = vlaneseq
      %v1000 = vshrl.u32 %v999, 7
      %v1001 = vsub.s32 0, %v1000
      %v1002 = vrot.slane %v998, %v1001
      %v1003 = vmul.f32 %v943, %v1002
      %v1004 = vmul.f32 %v944, %v1002
      %v1005 = vmul.f32 %v945, %v1002
      %v1006 = vmul.f32 %v946, %v1002
      %v1007 = vmul.f32 %v947, %v1002
      %v1008 = vmul.f32 %v948, %v1002
      %v1009 = vmul.f32 %v949, %v1002
      %v1010 = vmul.f32 %v950, %v1002
      %v1011 = vmul.f32 %v951, %v1002
      %v1012 = vmul.f32 %v952, %v1002
      %v1013 = vmul.f32 %v953, %v1002
      %v1014 = vmul.f32 %v954, %v1002
      %v1015 = vmul.f32 %v955, %v1002
      %v1016 = vmul.f32 %v956, %v1002
      %v1017 = vmul.f32 %v957, %v1002
      %v1018 = vmul.f32 %v958, %v1002
      %v1019 = vmul.f32 %v959, %v1002
      %v1020 = vmul.f32 %v960, %v1002
      %v1021 = vmul.f32 %v961, %v1002
      %v1022 = vmul.f32 %v962, %v1002
      %v1023 = vmul.f32 %v963, %v1002
      %v1024 = vmul.f32 %v964, %v1002
      %v1025 = vmul.f32 %v965, %v1002
      %v1026 = vmul.f32 %v966, %v1002
      %v1027 = vmul.f32 %v967, %v1002
      %v1028 = vmul.f32 %v968, %v1002
      %v1029 = vmul.f32 %v969, %v1002
      %v1030 = vmul.f32 %v970, %v1002
      %v1031 = vmul.f32 %v971, %v1002
      %v1032 = vmul.f32 %v972, %v1002
      %v1033 = vmul.f32 %v973, %v1002
      %v1034 = vmul.f32 %v974, %v1002
      %v1035 = vmul.f32 %v975, %v1002
      %v1036 = vmul.f32 %v976, %v1002
      %v1037 = vmul.f32 %v977, %v1002
      %v1038 = vmul.f32 %v978, %v1002
      %v1039 = vmul.f32 %v979, %v1002
      %v1040 = vmul.f32 %v980, %v1002
      %v1041 = vmul.f32 %v981, %v1002
      %v1042 = vmul.f32 %v982, %v1002
      %v1043 = vmul.f32 %v983, %v1002
      %v1044 = vmul.f32 %v984, %v1002
      %v1045 = vmul.f32 %v985, %v1002
      %v1046 = vmul.f32 %v986, %v1002
      %v1047 = vmul.f32 %v987, %v1002
      %v1048 = vmul.f32 %v988, %v1002
      %v1049 = vmul.f32 %v989, %v1002
      %v1050 = vmul.f32 %v990, %v1002
      %v1051 = vmul.f32 %v991, %v1002
      %v1052 = vmul.f32 %v992, %v1002
      %v1053 = vmul.f32 %v993, %v1002
      %v1054 = vmul.f32 %v994, %v1002
      %v1055 = vmul.f32 %v995, %v1002
      %v1056 = vmul.f32 %v996, %v1002
      %v1057 = vmul.f32 %v997, %v1002
      %v1059 = vlaneseq
      %v1060 = vshrl.u32 %v1059, 7
      %v1061 = vsub.s32 0, %v1060
      %v1062 = vrot.slane %v436, %v1061
      %v1064 = vadd.f32 %v1003, %v1062
      %v1065 = vadd.f32 %v1004, %v1062
      %v1066 = vadd.f32 %v1005, %v1062
      %v1067 = vadd.f32 %v1006, %v1062
      %v1068 = vadd.f32 %v1007, %v1062
      %v1069 = vadd.f32 %v1008, %v1062
      %v1070 = vadd.f32 %v1009, %v1062
      %v1071 = vadd.f32 %v1010, %v1062
      %v1072 = vadd.f32 %v1011, %v1062
      %v1073 = vadd.f32 %v1012, %v1062
      %v1074 = vadd.f32 %v1013, %v1062
      %v1075 = vadd.f32 %v1014, %v1062
      %v1076 = vadd.f32 %v1015, %v1062
      %v1077 = vadd.f32 %v1016, %v1062
      %v1078 = vadd.f32 %v1017, %v1062
      %v1079 = vadd.f32 %v1018, %v1062
      %v1080 = vadd.f32 %v1019, %v1062
      %v1081 = vadd.f32 %v1020, %v1062
      %v1082 = vadd.f32 %v1021, %v1062
      %v1083 = vadd.f32 %v1022, %v1062
      %v1084 = vadd.f32 %v1023, %v1062
      %v1085 = vadd.f32 %v1024, %v1062
      %v1086 = vadd.f32 %v1025, %v1062
      %v1087 = vadd.f32 %v1026, %v1062
      %v1088 = vadd.f32 %v1027, %v1062
      %v1089 = vadd.f32 %v1028, %v1062
      %v1090 = vadd.f32 %v1029, %v1062
      %v1091 = vadd.f32 %v1030, %v1062
      %v1092 = vadd.f32 %v1031, %v1062
      %v1093 = vadd.f32 %v1032, %v1062
      %v1094 = vadd.f32 %v1033, %v1062
      %v1095 = vadd.f32 %v1034, %v1062
      %v1096 = vadd.f32 %v1035, %v1062
      %v1097 = vadd.f32 %v1036, %v1062
      %v1098 = vadd.f32 %v1037, %v1062
      %v1099 = vadd.f32 %v1038, %v1062
      %v1100 = vadd.f32 %v1039, %v1062
      %v1101 = vadd.f32 %v1040, %v1062
      %v1102 = vadd.f32 %v1041, %v1062
      %v1103 = vadd.f32 %v1042, %v1062
      %v1104 = vadd.f32 %v1043, %v1062
      %v1105 = vadd.f32 %v1044, %v1062
      %v1106 = vadd.f32 %v1045, %v1062
      %v1107 = vadd.f32 %v1046, %v1062
      %v1108 = vadd.f32 %v1047, %v1062
      %v1109 = vadd.f32 %v1048, %v1062
      %v1110 = vadd.f32 %v1049, %v1062
      %v1111 = vadd.f32 %v1050, %v1062
      %v1112 = vadd.f32 %v1051, %v1062
      %v1113 = vadd.f32 %v1052, %v1062
      %v1114 = vadd.f32 %v1053, %v1062
      %v1115 = vadd.f32 %v1054, %v1062
      %v1116 = vadd.f32 %v1055, %v1062
      %v1117 = vadd.f32 %v1056, %v1062
      %v1118 = vadd.f32 %v1057, %v1062
      %v1119 = vxor.u32 %v1064, 2147483648
      %v1120 = vxor.u32 %v1065, 2147483648
      %v1121 = vxor.u32 %v1066, 2147483648
      %v1122 = vxor.u32 %v1067, 2147483648
      %v1123 = vxor.u32 %v1068, 2147483648
      %v1124 = vxor.u32 %v1069, 2147483648
      %v1125 = vxor.u32 %v1070, 2147483648
      %v1126 = vxor.u32 %v1071, 2147483648
      %v1127 = vxor.u32 %v1072, 2147483648
      %v1128 = vxor.u32 %v1073, 2147483648
      %v1129 = vxor.u32 %v1074, 2147483648
      %v1130 = vxor.u32 %v1075, 2147483648
      %v1131 = vxor.u32 %v1076, 2147483648
      %v1132 = vxor.u32 %v1077, 2147483648
      %v1133 = vxor.u32 %v1078, 2147483648
      %v1134 = vxor.u32 %v1079, 2147483648
      %v1135 = vxor.u32 %v1080, 2147483648
      %v1136 = vxor.u32 %v1081, 2147483648
      %v1137 = vxor.u32 %v1082, 2147483648
      %v1138 = vxor.u32 %v1083, 2147483648
      %v1139 = vxor.u32 %v1084, 2147483648
      %v1140 = vxor.u32 %v1085, 2147483648
      %v1141 = vxor.u32 %v1086, 2147483648
      %v1142 = vxor.u32 %v1087, 2147483648
      %v1143 = vxor.u32 %v1088, 2147483648
      %v1144 = vxor.u32 %v1089, 2147483648
      %v1145 = vxor.u32 %v1090, 2147483648
      %v1146 = vxor.u32 %v1091, 2147483648
      %v1147 = vxor.u32 %v1092, 2147483648
      %v1148 = vxor.u32 %v1093, 2147483648
      %v1149 = vxor.u32 %v1094, 2147483648
      %v1150 = vxor.u32 %v1095, 2147483648
      %v1151 = vxor.u32 %v1096, 2147483648
      %v1152 = vxor.u32 %v1097, 2147483648
      %v1153 = vxor.u32 %v1098, 2147483648
      %v1154 = vxor.u32 %v1099, 2147483648
      %v1155 = vxor.u32 %v1100, 2147483648
      %v1156 = vxor.u32 %v1101, 2147483648
      %v1157 = vxor.u32 %v1102, 2147483648
      %v1158 = vxor.u32 %v1103, 2147483648
      %v1159 = vxor.u32 %v1104, 2147483648
      %v1160 = vxor.u32 %v1105, 2147483648
      %v1161 = vxor.u32 %v1106, 2147483648
      %v1162 = vxor.u32 %v1107, 2147483648
      %v1163 = vxor.u32 %v1108, 2147483648
      %v1164 = vxor.u32 %v1109, 2147483648
      %v1165 = vxor.u32 %v1110, 2147483648
      %v1166 = vxor.u32 %v1111, 2147483648
      %v1167 = vxor.u32 %v1112, 2147483648
      %v1168 = vxor.u32 %v1113, 2147483648
      %v1169 = vxor.u32 %v1114, 2147483648
      %v1170 = vxor.u32 %v1115, 2147483648
      %v1171 = vxor.u32 %v1116, 2147483648
      %v1172 = vxor.u32 %v1117, 2147483648
      %v1173 = vxor.u32 %v1118, 2147483648
      %v1174 = vmul.f32 %v1119, 1.442695
      %v1175 = vpow.pop %v1174
      %v1176 = vmul.f32 %v1120, 1.442695
      %v1177 = vpow.pop %v1176
      %v1178 = vmul.f32 %v1121, 1.442695
      %v1179 = vpow.pop %v1178
      %v1180 = vmul.f32 %v1122, 1.442695
      %v1181 = vpow.pop %v1180
      %v1182 = vmul.f32 %v1123, 1.442695
      %v1183 = vpow.pop %v1182
      %v1184 = vmul.f32 %v1124, 1.442695
      %v1185 = vpow.pop %v1184
      %v1186 = vmul.f32 %v1125, 1.442695
      %v1187 = vpow.pop %v1186
      %v1188 = vmul.f32 %v1126, 1.442695
      %v1189 = vpow.pop %v1188
      %v1190 = vmul.f32 %v1127, 1.442695
      %v1191 = vpow.pop %v1190
      %v1192 = vmul.f32 %v1128, 1.442695
      %v1193 = vpow.pop %v1192
      %v1194 = vmul.f32 %v1129, 1.442695
      %v1195 = vpow.pop %v1194
      %v1196 = vmul.f32 %v1130, 1.442695
      %v1197 = vpow.pop %v1196
      %v1198 = vmul.f32 %v1131, 1.442695
      %v1199 = vpow.pop %v1198
      %v1200 = vmul.f32 %v1132, 1.442695
      %v1201 = vpow.pop %v1200
      %v1202 = vmul.f32 %v1133, 1.442695
      %v1203 = vpow.pop %v1202
      %v1204 = vmul.f32 %v1134, 1.442695
      %v1205 = vpow.pop %v1204
      %v1206 = vmul.f32 %v1135, 1.442695
      %v1207 = vpow.pop %v1206
      %v1208 = vmul.f32 %v1136, 1.442695
      %v1209 = vpow.pop %v1208
      %v1210 = vmul.f32 %v1137, 1.442695
      %v1211 = vpow.pop %v1210
      %v1212 = vmul.f32 %v1138, 1.442695
      %v1213 = vpow.pop %v1212
      %v1214 = vmul.f32 %v1139, 1.442695
      %v1215 = vpow.pop %v1214
      %v1216 = vmul.f32 %v1140, 1.442695
      %v1217 = vpow.pop %v1216
      %v1218 = vmul.f32 %v1141, 1.442695
      %v1219 = vpow.pop %v1218
      %v1220 = vmul.f32 %v1142, 1.442695
      %v1221 = vpow.pop %v1220
      %v1222 = vmul.f32 %v1143, 1.442695
      %v1223 = vpow.pop %v1222
      %v1224 = vmul.f32 %v1144, 1.442695
      %v1225 = vpow.pop %v1224
      %v1226 = vmul.f32 %v1145, 1.442695
      %v1227 = vpow.pop %v1226
      %v1228 = vmul.f32 %v1146, 1.442695
      %v1229 = vpow.pop %v1228
      %v1230 = vmul.f32 %v1147, 1.442695
      %v1231 = vpow.pop %v1230
      %v1232 = vmul.f32 %v1148, 1.442695
      %v1233 = vpow.pop %v1232
      %v1234 = vmul.f32 %v1149, 1.442695
      %v1235 = vpow.pop %v1234
      %v1236 = vmul.f32 %v1150, 1.442695
      %v1237 = vpow.pop %v1236
      %v1238 = vmul.f32 %v1151, 1.442695
      %v1239 = vpow.pop %v1238
      %v1240 = vmul.f32 %v1152, 1.442695
      %v1241 = vpow.pop %v1240
      %v1242 = vmul.f32 %v1153, 1.442695
      %v1243 = vpow.pop %v1242
      %v1244 = vmul.f32 %v1154, 1.442695
      %v1245 = vpow.pop %v1244
      %v1246 = vmul.f32 %v1155, 1.442695
      %v1247 = vpow.pop %v1246
      %v1248 = vmul.f32 %v1156, 1.442695
      %v1249 = vpow.pop %v1248
      %v1250 = vmul.f32 %v1157, 1.442695
      %v1251 = vpow.pop %v1250
      %v1252 = vmul.f32 %v1158, 1.442695
      %v1253 = vpow.pop %v1252
      %v1254 = vmul.f32 %v1159, 1.442695
      %v1255 = vpow.pop %v1254
      %v1256 = vmul.f32 %v1160, 1.442695
      %v1257 = vpow.pop %v1256
      %v1258 = vmul.f32 %v1161, 1.442695
      %v1259 = vpow.pop %v1258
      %v1260 = vmul.f32 %v1162, 1.442695
      %v1261 = vpow.pop %v1260
      %v1262 = vmul.f32 %v1163, 1.442695
      %v1263 = vpow.pop %v1262
      %v1264 = vmul.f32 %v1164, 1.442695
      %v1265 = vpow.pop %v1264
      %v1266 = vmul.f32 %v1165, 1.442695
      %v1267 = vpow.pop %v1266
      %v1268 = vmul.f32 %v1166, 1.442695
      %v1269 = vpow.pop %v1268
      %v1270 = vmul.f32 %v1167, 1.442695
      %v1271 = vpow.pop %v1270
      %v1272 = vmul.f32 %v1168, 1.442695
      %v1273 = vpow.pop %v1272
      %v1274 = vmul.f32 %v1169, 1.442695
      %v1275 = vpow.pop %v1274
      %v1276 = vmul.f32 %v1170, 1.442695
      %v1277 = vpow.pop %v1276
      %v1278 = vmul.f32 %v1171, 1.442695
      %v1279 = vpow.pop %v1278
      %v1280 = vmul.f32 %v1172, 1.442695
      %v1281 = vpow.pop %v1280
      %v1282 = vmul.f32 %v1173, 1.442695
      %v1283 = vpow.pop %v1282
      %v1284 = vadd.f32 %v1175, 1.0
      %v1285 = vadd.f32 %v1177, 1.0
      %v1286 = vadd.f32 %v1179, 1.0
      %v1287 = vadd.f32 %v1181, 1.0
      %v1288 = vadd.f32 %v1183, 1.0
      %v1289 = vadd.f32 %v1185, 1.0
      %v1290 = vadd.f32 %v1187, 1.0
      %v1291 = vadd.f32 %v1189, 1.0
      %v1292 = vadd.f32 %v1191, 1.0
      %v1293 = vadd.f32 %v1193, 1.0
      %v1294 = vadd.f32 %v1195, 1.0
      %v1295 = vadd.f32 %v1197, 1.0
      %v1296 = vadd.f32 %v1199, 1.0
      %v1297 = vadd.f32 %v1201, 1.0
      %v1298 = vadd.f32 %v1203, 1.0
      %v1299 = vadd.f32 %v1205, 1.0
      %v1300 = vadd.f32 %v1207, 1.0
      %v1301 = vadd.f32 %v1209, 1.0
      %v1302 = vadd.f32 %v1211, 1.0
      %v1303 = vadd.f32 %v1213, 1.0
      %v1304 = vadd.f32 %v1215, 1.0
      %v1305 = vadd.f32 %v1217, 1.0
      %v1306 = vadd.f32 %v1219, 1.0
      %v1307 = vadd.f32 %v1221, 1.0
      %v1308 = vadd.f32 %v1223, 1.0
      %v1309 = vadd.f32 %v1225, 1.0
      %v1310 = vadd.f32 %v1227, 1.0
      %v1311 = vadd.f32 %v1229, 1.0
      %v1312 = vadd.f32 %v1231, 1.0
      %v1313 = vadd.f32 %v1233, 1.0
      %v1314 = vadd.f32 %v1235, 1.0
      %v1315 = vadd.f32 %v1237, 1.0
      %v1316 = vadd.f32 %v1239, 1.0
      %v1317 = vadd.f32 %v1241, 1.0
      %v1318 = vadd.f32 %v1243, 1.0
      %v1319 = vadd.f32 %v1245, 1.0
      %v1320 = vadd.f32 %v1247, 1.0
      %v1321 = vadd.f32 %v1249, 1.0
      %v1322 = vadd.f32 %v1251, 1.0
      %v1323 = vadd.f32 %v1253, 1.0
      %v1324 = vadd.f32 %v1255, 1.0
      %v1325 = vadd.f32 %v1257, 1.0
      %v1326 = vadd.f32 %v1259, 1.0
      %v1327 = vadd.f32 %v1261, 1.0
      %v1328 = vadd.f32 %v1263, 1.0
      %v1329 = vadd.f32 %v1265, 1.0
      %v1330 = vadd.f32 %v1267, 1.0
      %v1331 = vadd.f32 %v1269, 1.0
      %v1332 = vadd.f32 %v1271, 1.0
      %v1333 = vadd.f32 %v1273, 1.0
      %v1334 = vadd.f32 %v1275, 1.0
      %v1335 = vadd.f32 %v1277, 1.0
      %v1336 = vadd.f32 %v1279, 1.0
      %v1337 = vadd.f32 %v1281, 1.0
      %v1338 = vadd.f32 %v1283, 1.0
      %v1339 = vrcp.pop %v1284
      %v1340 = vmul.f32 1.0, %v1339
      %v1341 = vrcp.pop %v1285
      %v1342 = vmul.f32 1.0, %v1341
      %v1343 = vrcp.pop %v1286
      %v1344 = vmul.f32 1.0, %v1343
      %v1345 = vrcp.pop %v1287
      %v1346 = vmul.f32 1.0, %v1345
      %v1347 = vrcp.pop %v1288
      %v1348 = vmul.f32 1.0, %v1347
      %v1349 = vrcp.pop %v1289
      %v1350 = vmul.f32 1.0, %v1349
      %v1351 = vrcp.pop %v1290
      %v1352 = vmul.f32 1.0, %v1351
      %v1353 = vrcp.pop %v1291
      %v1354 = vmul.f32 1.0, %v1353
      %v1355 = vrcp.pop %v1292
      %v1356 = vmul.f32 1.0, %v1355
      %v1357 = vrcp.pop %v1293
      %v1358 = vmul.f32 1.0, %v1357
      %v1359 = vrcp.pop %v1294
      %v1360 = vmul.f32 1.0, %v1359
      %v1361 = vrcp.pop %v1295
      %v1362 = vmul.f32 1.0, %v1361
      %v1363 = vrcp.pop %v1296
      %v1364 = vmul.f32 1.0, %v1363
      %v1365 = vrcp.pop %v1297
      %v1366 = vmul.f32 1.0, %v1365
      %v1367 = vrcp.pop %v1298
      %v1368 = vmul.f32 1.0, %v1367
      %v1369 = vrcp.pop %v1299
      %v1370 = vmul.f32 1.0, %v1369
      %v1371 = vrcp.pop %v1300
      %v1372 = vmul.f32 1.0, %v1371
      %v1373 = vrcp.pop %v1301
      %v1374 = vmul.f32 1.0, %v1373
      %v1375 = vrcp.pop %v1302
      %v1376 = vmul.f32 1.0, %v1375
      %v1377 = vrcp.pop %v1303
      %v1378 = vmul.f32 1.0, %v1377
      %v1379 = vrcp.pop %v1304
      %v1380 = vmul.f32 1.0, %v1379
      %v1381 = vrcp.pop %v1305
      %v1382 = vmul.f32 1.0, %v1381
      %v1383 = vrcp.pop %v1306
      %v1384 = vmul.f32 1.0, %v1383
      %v1385 = vrcp.pop %v1307
      %v1386 = vmul.f32 1.0, %v1385
      %v1387 = vrcp.pop %v1308
      %v1388 = vmul.f32 1.0, %v1387
      %v1389 = vrcp.pop %v1309
      %v1390 = vmul.f32 1.0, %v1389
      %v1391 = vrcp.pop %v1310
      %v1392 = vmul.f32 1.0, %v1391
      %v1393 = vrcp.pop %v1311
      %v1394 = vmul.f32 1.0, %v1393
      %v1395 = vrcp.pop %v1312
      %v1396 = vmul.f32 1.0, %v1395
      %v1397 = vrcp.pop %v1313
      %v1398 = vmul.f32 1.0, %v1397
      %v1399 = vrcp.pop %v1314
      %v1400 = vmul.f32 1.0, %v1399
      %v1401 = vrcp.pop %v1315
      %v1402 = vmul.f32 1.0, %v1401
      %v1403 = vrcp.pop %v1316
      %v1404 = vmul.f32 1.0, %v1403
      %v1405 = vrcp.pop %v1317
      %v1406 = vmul.f32 1.0, %v1405
      %v1407 = vrcp.pop %v1318
      %v1408 = vmul.f32 1.0, %v1407
      %v1409 = vrcp.pop %v1319
      %v1410 = vmul.f32 1.0, %v1409
      %v1411 = vrcp.pop %v1320
      %v1412 = vmul.f32 1.0, %v1411
      %v1413 = vrcp.pop %v1321
      %v1414 = vmul.f32 1.0, %v1413
      %v1415 = vrcp.pop %v1322
      %v1416 = vmul.f32 1.0, %v1415
      %v1417 = vrcp.pop %v1323
      %v1418 = vmul.f32 1.0, %v1417
      %v1419 = vrcp.pop %v1324
      %v1420 = vmul.f32 1.0, %v1419
      %v1421 = vrcp.pop %v1325
      %v1422 = vmul.f32 1.0, %v1421
      %v1423 = vrcp.pop %v1326
      %v1424 = vmul.f32 1.0, %v1423
      %v1425 = vrcp.pop %v1327
      %v1426 = vmul.f32 1.0, %v1425
      %v1427 = vrcp.pop %v1328
      %v1428 = vmul.f32 1.0, %v1427
      %v1429 = vrcp.pop %v1329
      %v1430 = vmul.f32 1.0, %v1429
      %v1431 = vrcp.pop %v1330
      %v1432 = vmul.f32 1.0, %v1431
      %v1433 = vrcp.pop %v1331
      %v1434 = vmul.f32 1.0, %v1433
      %v1435 = vrcp.pop %v1332
      %v1436 = vmul.f32 1.0, %v1435
      %v1437 = vrcp.pop %v1333
      %v1438 = vmul.f32 1.0, %v1437
      %v1439 = vrcp.pop %v1334
      %v1440 = vmul.f32 1.0, %v1439
      %v1441 = vrcp.pop %v1335
      %v1442 = vmul.f32 1.0, %v1441
      %v1443 = vrcp.pop %v1336
      %v1444 = vmul.f32 1.0, %v1443
      %v1445 = vrcp.pop %v1337
      %v1446 = vmul.f32 1.0, %v1445
      %v1447 = vrcp.pop %v1338
      %v1448 = vmul.f32 1.0, %v1447
      %v1449 = vmul.f32 %v1064, %v1340
      %v1450 = vmul.f32 %v1065, %v1342
      %v1451 = vmul.f32 %v1066, %v1344
      %v1452 = vmul.f32 %v1067, %v1346
      %v1453 = vmul.f32 %v1068, %v1348
      %v1454 = vmul.f32 %v1069, %v1350
      %v1455 = vmul.f32 %v1070, %v1352
      %v1456 = vmul.f32 %v1071, %v1354
      %v1457 = vmul.f32 %v1072, %v1356
      %v1458 = vmul.f32 %v1073, %v1358
      %v1459 = vmul.f32 %v1074, %v1360
      %v1460 = vmul.f32 %v1075, %v1362
      %v1461 = vmul.f32 %v1076, %v1364
      %v1462 = vmul.f32 %v1077, %v1366
      %v1463 = vmul.f32 %v1078, %v1368
      %v1464 = vmul.f32 %v1079, %v1370
      %v1465 = vmul.f32 %v1080, %v1372
      %v1466 = vmul.f32 %v1081, %v1374
      %v1467 = vmul.f32 %v1082, %v1376
      %v1468 = vmul.f32 %v1083, %v1378
      %v1469 = vmul.f32 %v1084, %v1380
      %v1470 = vmul.f32 %v1085, %v1382
      %v1471 = vmul.f32 %v1086, %v1384
      %v1472 = vmul.f32 %v1087, %v1386
      %v1473 = vmul.f32 %v1088, %v1388
      %v1474 = vmul.f32 %v1089, %v1390
      %v1475 = vmul.f32 %v1090, %v1392
      %v1476 = vmul.f32 %v1091, %v1394
      %v1477 = vmul.f32 %v1092, %v1396
      %v1478 = vmul.f32 %v1093, %v1398
      %v1479 = vmul.f32 %v1094, %v1400
      %v1480 = vmul.f32 %v1095, %v1402
      %v1481 = vmul.f32 %v1096, %v1404
      %v1482 = vmul.f32 %v1097, %v1406
      %v1483 = vmul.f32 %v1098, %v1408
      %v1484 = vmul.f32 %v1099, %v1410
      %v1485 = vmul.f32 %v1100, %v1412
      %v1486 = vmul.f32 %v1101, %v1414
      %v1487 = vmul.f32 %v1102, %v1416
      %v1488 = vmul.f32 %v1103, %v1418
      %v1489 = vmul.f32 %v1104, %v1420
      %v1490 = vmul.f32 %v1105, %v1422
      %v1491 = vmul.f32 %v1106, %v1424
      %v1492 = vmul.f32 %v1107, %v1426
      %v1493 = vmul.f32 %v1108, %v1428
      %v1494 = vmul.f32 %v1109, %v1430
      %v1495 = vmul.f32 %v1110, %v1432
      %v1496 = vmul.f32 %v1111, %v1434
      %v1497 = vmul.f32 %v1112, %v1436
      %v1498 = vmul.f32 %v1113, %v1438
      %v1499 = vmul.f32 %v1114, %v1440
      %v1500 = vmul.f32 %v1115, %v1442
      %v1501 = vmul.f32 %v1116, %v1444
      %v1502 = vmul.f32 %v1117, %v1446
      %v1503 = vmul.f32 %v1118, %v1448
      %1505 = vset.pattern.permute.xlu0 0
      %1506 = vperm.xlu0 %1505, %v437
      %v1507 = vpop.permute.xlu0 %1506
      %1510 = vset.pattern.permute.xlu0 0
      %1511 = vperm.xlu0 %1510, %v438
      %v1512 = vpop.permute.xlu0 %1511
      %1515 = vset.pattern.permute.xlu0 0
      %1516 = vperm.xlu0 %1515, %v439
      %v1517 = vpop.permute.xlu0 %1516
      %1520 = vset.pattern.permute.xlu0 0
      %1521 = vperm.xlu0 %1520, %v440
      %v1522 = vpop.permute.xlu0 %1521
      %1525 = vset.pattern.permute.xlu0 0
      %1526 = vperm.xlu0 %1525, %v441
      %v1527 = vpop.permute.xlu0 %1526
      %1530 = vset.pattern.permute.xlu0 0
      %1531 = vperm.xlu0 %1530, %v442
      %v1532 = vpop.permute.xlu0 %1531
      %1535 = vset.pattern.permute.xlu0 0
      %1536 = vperm.xlu0 %1535, %v443
      %v1537 = vpop.permute.xlu0 %1536
      %1540 = vset.pattern.permute.xlu0 0
      %1541 = vperm.xlu0 %1540, %v444
      %v1542 = vpop.permute.xlu0 %1541
      %1545 = vset.pattern.permute.xlu0 0
      %1546 = vperm.xlu0 %1545, %v445
      %v1547 = vpop.permute.xlu0 %1546
      %1550 = vset.pattern.permute.xlu0 0
      %1551 = vperm.xlu0 %1550, %v446
      %v1552 = vpop.permute.xlu0 %1551
      %1555 = vset.pattern.permute.xlu0 0
      %1556 = vperm.xlu0 %1555, %v447
      %v1557 = vpop.permute.xlu0 %1556
      %1560 = vset.pattern.permute.xlu0 0
      %1561 = vperm.xlu0 %1560, %v448
      %v1562 = vpop.permute.xlu0 %1561
      %1565 = vset.pattern.permute.xlu0 0
      %1566 = vperm.xlu0 %1565, %v449
      %v1567 = vpop.permute.xlu0 %1566
      %1570 = vset.pattern.permute.xlu0 0
      %1571 = vperm.xlu0 %1570, %v450
      %v1572 = vpop.permute.xlu0 %1571
      %1575 = vset.pattern.permute.xlu0 0
      %1576 = vperm.xlu0 %1575, %v451
      %v1577 = vpop.permute.xlu0 %1576
      %1580 = vset.pattern.permute.xlu0 0
      %1581 = vperm.xlu0 %1580, %v452
      %v1582 = vpop.permute.xlu0 %1581
      %1585 = vset.pattern.permute.xlu0 0
      %1586 = vperm.xlu0 %1585, %v453
      %v1587 = vpop.permute.xlu0 %1586
      %1590 = vset.pattern.permute.xlu0 0
      %1591 = vperm.xlu0 %1590, %v454
      %v1592 = vpop.permute.xlu0 %1591
      %1595 = vset.pattern.permute.xlu0 0
      %1596 = vperm.xlu0 %1595, %v455
      %v1597 = vpop.permute.xlu0 %1596
      %1600 = vset.pattern.permute.xlu0 0
      %1601 = vperm.xlu0 %1600, %v456
      %v1602 = vpop.permute.xlu0 %1601
      %1605 = vset.pattern.permute.xlu0 0
      %1606 = vperm.xlu0 %1605, %v457
      %v1607 = vpop.permute.xlu0 %1606
      %1610 = vset.pattern.permute.xlu0 0
      %1611 = vperm.xlu0 %1610, %v458
      %v1612 = vpop.permute.xlu0 %1611
      %1615 = vset.pattern.permute.xlu0 0
      %1616 = vperm.xlu0 %1615, %v459
      %v1617 = vpop.permute.xlu0 %1616
      %1620 = vset.pattern.permute.xlu0 0
      %1621 = vperm.xlu0 %1620, %v460
      %v1622 = vpop.permute.xlu0 %1621
      %1625 = vset.pattern.permute.xlu0 0
      %1626 = vperm.xlu0 %1625, %v461
      %v1627 = vpop.permute.xlu0 %1626
      %1630 = vset.pattern.permute.xlu0 0
      %1631 = vperm.xlu0 %1630, %v462
      %v1632 = vpop.permute.xlu0 %1631
      %1635 = vset.pattern.permute.xlu0 0
      %1636 = vperm.xlu0 %1635, %v463
      %v1637 = vpop.permute.xlu0 %1636
      %1640 = vset.pattern.permute.xlu0 0
      %1641 = vperm.xlu0 %1640, %v464
      %v1642 = vpop.permute.xlu0 %1641
      %1645 = vset.pattern.permute.xlu0 0
      %1646 = vperm.xlu0 %1645, %v465
      %v1647 = vpop.permute.xlu0 %1646
      %1650 = vset.pattern.permute.xlu0 0
      %1651 = vperm.xlu0 %1650, %v466
      %v1652 = vpop.permute.xlu0 %1651
      %1655 = vset.pattern.permute.xlu0 0
      %1656 = vperm.xlu0 %1655, %v467
      %v1657 = vpop.permute.xlu0 %1656
      %1660 = vset.pattern.permute.xlu0 0
      %1661 = vperm.xlu0 %1660, %v468
      %v1662 = vpop.permute.xlu0 %1661
      %1665 = vset.pattern.permute.xlu0 0
      %1666 = vperm.xlu0 %1665, %v469
      %v1667 = vpop.permute.xlu0 %1666
      %1670 = vset.pattern.permute.xlu0 0
      %1671 = vperm.xlu0 %1670, %v470
      %v1672 = vpop.permute.xlu0 %1671
      %1675 = vset.pattern.permute.xlu0 0
      %1676 = vperm.xlu0 %1675, %v471
      %v1677 = vpop.permute.xlu0 %1676
      %1680 = vset.pattern.permute.xlu0 0
      %1681 = vperm.xlu0 %1680, %v472
      %v1682 = vpop.permute.xlu0 %1681
      %1685 = vset.pattern.permute.xlu0 0
      %1686 = vperm.xlu0 %1685, %v473
      %v1687 = vpop.permute.xlu0 %1686
      %1690 = vset.pattern.permute.xlu0 0
      %1691 = vperm.xlu0 %1690, %v474
      %v1692 = vpop.permute.xlu0 %1691
      %1695 = vset.pattern.permute.xlu0 0
      %1696 = vperm.xlu0 %1695, %v475
      %v1697 = vpop.permute.xlu0 %1696
      %1700 = vset.pattern.permute.xlu0 0
      %1701 = vperm.xlu0 %1700, %v476
      %v1702 = vpop.permute.xlu0 %1701
      %1705 = vset.pattern.permute.xlu0 0
      %1706 = vperm.xlu0 %1705, %v477
      %v1707 = vpop.permute.xlu0 %1706
      %1710 = vset.pattern.permute.xlu0 0
      %1711 = vperm.xlu0 %1710, %v478
      %v1712 = vpop.permute.xlu0 %1711
      %1715 = vset.pattern.permute.xlu0 0
      %1716 = vperm.xlu0 %1715, %v479
      %v1717 = vpop.permute.xlu0 %1716
      %1720 = vset.pattern.permute.xlu0 0
      %1721 = vperm.xlu0 %1720, %v480
      %v1722 = vpop.permute.xlu0 %1721
      %1725 = vset.pattern.permute.xlu0 0
      %1726 = vperm.xlu0 %1725, %v481
      %v1727 = vpop.permute.xlu0 %1726
      %1730 = vset.pattern.permute.xlu0 0
      %1731 = vperm.xlu0 %1730, %v482
      %v1732 = vpop.permute.xlu0 %1731
      %1735 = vset.pattern.permute.xlu0 0
      %1736 = vperm.xlu0 %1735, %v483
      %v1737 = vpop.permute.xlu0 %1736
      %1740 = vset.pattern.permute.xlu0 0
      %1741 = vperm.xlu0 %1740, %v484
      %v1742 = vpop.permute.xlu0 %1741
      %1745 = vset.pattern.permute.xlu0 0
      %1746 = vperm.xlu0 %1745, %v485
      %v1747 = vpop.permute.xlu0 %1746
      %1750 = vset.pattern.permute.xlu0 0
      %1751 = vperm.xlu0 %1750, %v486
      %v1752 = vpop.permute.xlu0 %1751
      %1755 = vset.pattern.permute.xlu0 0
      %1756 = vperm.xlu0 %1755, %v487
      %v1757 = vpop.permute.xlu0 %1756
      %1760 = vset.pattern.permute.xlu0 0
      %1761 = vperm.xlu0 %1760, %v488
      %v1762 = vpop.permute.xlu0 %1761
      %1765 = vset.pattern.permute.xlu0 0
      %1766 = vperm.xlu0 %1765, %v489
      %v1767 = vpop.permute.xlu0 %1766
      %1770 = vset.pattern.permute.xlu0 0
      %1771 = vperm.xlu0 %1770, %v490
      %v1772 = vpop.permute.xlu0 %1771
      %1775 = vset.pattern.permute.xlu0 0
      %1776 = vperm.xlu0 %1775, %v491
      %v1777 = vpop.permute.xlu0 %1776
      %v1779 = vmul.f32 %v1449, %v1507
      %v1780 = vmul.f32 %v1450, %v1512
      %v1781 = vmul.f32 %v1451, %v1517
      %v1782 = vmul.f32 %v1452, %v1522
      %v1783 = vmul.f32 %v1453, %v1527
      %v1784 = vmul.f32 %v1454, %v1532
      %v1785 = vmul.f32 %v1455, %v1537
      %v1786 = vmul.f32 %v1456, %v1542
      %v1787 = vmul.f32 %v1457, %v1547
      %v1788 = vmul.f32 %v1458, %v1552
      %v1789 = vmul.f32 %v1459, %v1557
      %v1790 = vmul.f32 %v1460, %v1562
      %v1791 = vmul.f32 %v1461, %v1567
      %v1792 = vmul.f32 %v1462, %v1572
      %v1793 = vmul.f32 %v1463, %v1577
      %v1794 = vmul.f32 %v1464, %v1582
      %v1795 = vmul.f32 %v1465, %v1587
      %v1796 = vmul.f32 %v1466, %v1592
      %v1797 = vmul.f32 %v1467, %v1597
      %v1798 = vmul.f32 %v1468, %v1602
      %v1799 = vmul.f32 %v1469, %v1607
      %v1800 = vmul.f32 %v1470, %v1612
      %v1801 = vmul.f32 %v1471, %v1617
      %v1802 = vmul.f32 %v1472, %v1622
      %v1803 = vmul.f32 %v1473, %v1627
      %v1804 = vmul.f32 %v1474, %v1632
      %v1805 = vmul.f32 %v1475, %v1637
      %v1806 = vmul.f32 %v1476, %v1642
      %v1807 = vmul.f32 %v1477, %v1647
      %v1808 = vmul.f32 %v1478, %v1652
      %v1809 = vmul.f32 %v1479, %v1657
      %v1810 = vmul.f32 %v1480, %v1662
      %v1811 = vmul.f32 %v1481, %v1667
      %v1812 = vmul.f32 %v1482, %v1672
      %v1813 = vmul.f32 %v1483, %v1677
      %v1814 = vmul.f32 %v1484, %v1682
      %v1815 = vmul.f32 %v1485, %v1687
      %v1816 = vmul.f32 %v1486, %v1692
      %v1817 = vmul.f32 %v1487, %v1697
      %v1818 = vmul.f32 %v1488, %v1702
      %v1819 = vmul.f32 %v1489, %v1707
      %v1820 = vmul.f32 %v1490, %v1712
      %v1821 = vmul.f32 %v1491, %v1717
      %v1822 = vmul.f32 %v1492, %v1722
      %v1823 = vmul.f32 %v1493, %v1727
      %v1824 = vmul.f32 %v1494, %v1732
      %v1825 = vmul.f32 %v1495, %v1737
      %v1826 = vmul.f32 %v1496, %v1742
      %v1827 = vmul.f32 %v1497, %v1747
      %v1828 = vmul.f32 %v1498, %v1752
      %v1829 = vmul.f32 %v1499, %v1757
      %v1830 = vmul.f32 %v1500, %v1762
      %v1831 = vmul.f32 %v1501, %v1767
      %v1832 = vmul.f32 %v1502, %v1772
      %v1833 = vmul.f32 %v1503, %v1777
      %v1834 = vld [vmem:[%s5] sm:$0xff]
      %v1835 = vld [vmem:[%s5 + $0x8] sm:$0xff]
      %v1836 = vld [vmem:[%s5 + $0x10] sm:$0xff]
      %v1837 = vld [vmem:[%s5 + $0x18] sm:$0xff]
      %s1838 = scalar_lea.vmem %s5, 32
      %v1839 = vld [vmem:[%s1838] sm:$0xff]
      %v1840 = vld [vmem:[%s1838 + $0x8] sm:$0xff]
      %v1841 = vld [vmem:[%s1838 + $0x10] sm:$0xff]
      %v1842 = vld [vmem:[%s1838 + $0x18] sm:$0xff]
      %vm1892 = vcmask 1046528
      %v1893 = vrot.slane %v1779, 1
      %v1894 = vrot.slane %v1780, 1
      %v1895 = vsel %vm1892, %v1893, %v1894
      %v1896 = vrot.slane %v1781, 1
      %v1897 = vsel %vm1892, %v1894, %v1896
      %v1898 = vrot.slane %v1782, 1
      %v1899 = vsel %vm1892, %v1896, %v1898
      %v1900 = vrot.slane %v1783, 1
      %v1901 = vsel %vm1892, %v1898, %v1900
      %v1902 = vrot.slane %v1784, 1
      %v1903 = vsel %vm1892, %v1900, %v1902
      %v1904 = vrot.slane %v1785, 1
      %v1905 = vsel %vm1892, %v1902, %v1904
      %v1906 = vrot.slane %v1786, 1
      %v1907 = vsel %vm1892, %v1904, %v1906
      %v1908 = vrot.slane %v1787, 1
      %v1909 = vsel %vm1892, %v1906, %v1908
      %v1910 = vrot.slane %v1788, 1
      %v1911 = vsel %vm1892, %v1908, %v1910
      %v1912 = vrot.slane %v1789, 1
      %v1913 = vsel %vm1892, %v1910, %v1912
      %v1914 = vrot.slane %v1790, 1
      %v1915 = vsel %vm1892, %v1912, %v1914
      %v1916 = vrot.slane %v1791, 1
      %v1917 = vsel %vm1892, %v1914, %v1916
      %v1918 = vrot.slane %v1792, 1
      %v1919 = vsel %vm1892, %v1916, %v1918
      %v1920 = vrot.slane %v1793, 1
      %v1921 = vsel %vm1892, %v1918, %v1920
      %v1922 = vrot.slane %v1794, 1
      %v1923 = vsel %vm1892, %v1920, %v1922
      %v1924 = vrot.slane %v1795, 1
      %v1925 = vsel %vm1892, %v1922, %v1924
      %v1926 = vrot.slane %v1796, 1
      %v1927 = vsel %vm1892, %v1924, %v1926
      %v1928 = vrot.slane %v1797, 1
      %v1929 = vsel %vm1892, %v1926, %v1928
      %v1930 = vrot.slane %v1798, 1
      %v1931 = vsel %vm1892, %v1928, %v1930
      %v1932 = vrot.slane %v1799, 1
      %v1933 = vsel %vm1892, %v1930, %v1932
      %v1934 = vrot.slane %v1800, 1
      %v1935 = vsel %vm1892, %v1932, %v1934
      %v1936 = vrot.slane %v1801, 1
      %v1937 = vsel %vm1892, %v1934, %v1936
      %v1938 = vrot.slane %v1802, 1
      %v1939 = vsel %vm1892, %v1936, %v1938
      %v1940 = vrot.slane %v1803, 1
      %v1941 = vsel %vm1892, %v1938, %v1940
      %v1942 = vrot.slane %v1804, 1
      %v1943 = vsel %vm1892, %v1940, %v1942
      %v1944 = vrot.slane %v1805, 1
      %v1945 = vsel %vm1892, %v1942, %v1944
      %v1946 = vrot.slane %v1806, 1
      %v1947 = vsel %vm1892, %v1944, %v1946
      %v1948 = vrot.slane %v1807, 1
      %v1949 = vsel %vm1892, %v1946, %v1948
      %v1950 = vrot.slane %v1808, 1
      %v1951 = vsel %vm1892, %v1948, %v1950
      %v1952 = vrot.slane %v1809, 1
      %v1953 = vsel %vm1892, %v1950, %v1952
      %v1954 = vrot.slane %v1810, 1
      %v1955 = vsel %vm1892, %v1952, %v1954
      %v1956 = vrot.slane %v1811, 1
      %v1957 = vsel %vm1892, %v1954, %v1956
      %v1958 = vrot.slane %v1812, 1
      %v1959 = vsel %vm1892, %v1956, %v1958
      %v1960 = vrot.slane %v1813, 1
      %v1961 = vsel %vm1892, %v1958, %v1960
      %v1962 = vrot.slane %v1814, 1
      %v1963 = vsel %vm1892, %v1960, %v1962
      %v1964 = vrot.slane %v1815, 1
      %v1965 = vsel %vm1892, %v1962, %v1964
      %v1966 = vrot.slane %v1816, 1
      %v1967 = vsel %vm1892, %v1964, %v1966
      %v1968 = vrot.slane %v1817, 1
      %v1969 = vsel %vm1892, %v1966, %v1968
      %v1970 = vrot.slane %v1818, 1
      %v1971 = vsel %vm1892, %v1968, %v1970
      %v1972 = vrot.slane %v1819, 1
      %v1973 = vsel %vm1892, %v1970, %v1972
      %v1974 = vrot.slane %v1820, 1
      %v1975 = vsel %vm1892, %v1972, %v1974
      %v1976 = vrot.slane %v1821, 1
      %v1977 = vsel %vm1892, %v1974, %v1976
      %v1978 = vrot.slane %v1822, 1
      %v1979 = vsel %vm1892, %v1976, %v1978
      %v1980 = vrot.slane %v1823, 1
      %v1981 = vsel %vm1892, %v1978, %v1980
      %v1982 = vrot.slane %v1824, 1
      %v1983 = vsel %vm1892, %v1980, %v1982
      %v1984 = vrot.slane %v1825, 1
      %v1985 = vsel %vm1892, %v1982, %v1984
      %v1986 = vrot.slane %v1826, 1
      %v1987 = vsel %vm1892, %v1984, %v1986
      %v1988 = vrot.slane %v1827, 1
      %v1989 = vsel %vm1892, %v1986, %v1988
      %v1990 = vsel %vm492, %v1895, 0
      %v1992 = vsel %vm492, %v1897, 0
      %v1994 = vsel %vm492, %v1899, 0
      %v1996 = vsel %vm492, %v1901, 0
      %v1998 = vsel %vm492, %v1903, 0
      %v2000 = vsel %vm492, %v1905, 0
      %v2002 = vsel %vm492, %v1907, 0
      %v2004 = vsel %vm492, %v1909, 0
      %v2006 = vsel %vm492, %v1911, 0
      %v2008 = vsel %vm492, %v1913, 0
      %v2010 = vsel %vm492, %v1915, 0
      %v2012 = vsel %vm492, %v1917, 0
      %v2014 = vsel %vm492, %v1919, 0
      %v2016 = vsel %vm492, %v1921, 0
      %v2018 = vsel %vm492, %v1923, 0
      %v2020 = vsel %vm492, %v1925, 0
      %v2022 = vsel %vm492, %v1927, 0
      %v2024 = vsel %vm492, %v1929, 0
      %v2026 = vsel %vm492, %v1931, 0
      %v2028 = vsel %vm492, %v1933, 0
      %v2030 = vsel %vm492, %v1935, 0
      %v2032 = vsel %vm492, %v1937, 0
      %v2034 = vsel %vm492, %v1939, 0
      %v2036 = vsel %vm492, %v1941, 0
      %v2038 = vsel %vm492, %v1943, 0
      %v2040 = vsel %vm492, %v1945, 0
      %v2042 = vsel %vm492, %v1947, 0
      %v2044 = vsel %vm492, %v1949, 0
      %v2046 = vsel %vm492, %v1951, 0
      %v2048 = vsel %vm492, %v1953, 0
      %v2050 = vsel %vm492, %v1955, 0
      %v2052 = vsel %vm492, %v1957, 0
      %v2054 = vsel %vm492, %v1959, 0
      %v2056 = vsel %vm492, %v1961, 0
      %v2058 = vsel %vm492, %v1963, 0
      %v2060 = vsel %vm492, %v1965, 0
      %v2062 = vsel %vm492, %v1967, 0
      %v2064 = vsel %vm492, %v1969, 0
      %v2066 = vsel %vm492, %v1971, 0
      %v2068 = vsel %vm492, %v1973, 0
      %v2070 = vsel %vm492, %v1975, 0
      %v2072 = vsel %vm492, %v1977, 0
      %v2074 = vsel %vm492, %v1979, 0
      %v2076 = vsel %vm492, %v1981, 0
      %v2078 = vsel %vm492, %v1983, 0
      %v2080 = vsel %vm492, %v1985, 0
      %v2082 = vsel %vm492, %v1987, 0
      %v2084 = vsel %vm492, %v1989, 0
      %2086 = vmatprep.subr.mxu0 0.0
      %2087 = vmatpush1.msra.mxu0 %v1839
      %2088 = vmatprep.subr.mxu0 0.0
      %2089 = vmatpush1.msra.mxu0 %v1840
      %2090 = vmatprep.subr.mxu0 0.0
      %2091 = vmatpush1.msra.mxu0 %v1841
      %2092 = vmatprep.subr.mxu0 0.0
      %2093 = vmatpush1.msra.mxu0 %v1842
      %2094 = vmatprep.subr.mxu0 0.0
      %2095 = vmatpush1.msra.mxu0 0.0
      %2096 = vmatprep.subr.mxu0 0.0
      %2097 = vmatpush1.msra.mxu0 0.0
      %2098 = vmatprep.subr.mxu0 0.0
      %2099 = vmatpush1.msra.mxu0 0.0
      %2100 = vmatprep.subr.mxu0 0.0
      %2101 = vmatpush1.msra.mxu0 0.0
      %2102 = vmatprep.subr.mxu0 0.0
      %2103 = vmatpush1.msra.mxu0 0.0
      %2104 = vmatprep.subr.mxu0 0.0
      %2105 = vmatpush1.msra.mxu0 0.0
      %2106 = vmatprep.subr.mxu0 0.0
      %2107 = vmatpush1.msra.mxu0 0.0
      %2108 = vmatprep.subr.mxu0 0.0
      %2109 = vmatpush1.msra.mxu0 0.0
      %2110 = vmatprep.subr.mxu0 0.0
      %2111 = vmatpush1.msra.mxu0 0.0
      %2112 = vmatprep.subr.mxu0 0.0
      %2113 = vmatpush1.msra.mxu0 0.0
      %2114 = vmatprep.subr.mxu0 0.0
      %2115 = vmatpush1.msra.mxu0 0.0
      %2116 = vmatprep.subr.mxu0 0.0
      %2117 = vmatpush1.msra.mxu0 0.0
      %2118 = vmatprep.subr.mxu0 0.0
      %2119 = vmatpush1.msra.mxu0 0.0
      %2120 = vmatprep.subr.mxu0 0.0
      %2121 = vmatpush1.msra.mxu0 0.0
      %2122 = vmatprep.subr.mxu0 0.0
      %2123 = vmatpush1.msra.mxu0 0.0
      %2124 = vmatprep.subr.mxu0 0.0
      %2125 = vmatpush1.msra.mxu0 0.0
      %2126 = vmatprep.subr.mxu0 0.0
      %2127 = vmatpush1.msra.mxu0 0.0
      %2128 = vmatprep.subr.mxu0 0.0
      %2129 = vmatpush1.msra.mxu0 0.0
      %2130 = vmatprep.subr.mxu0 0.0
      %2131 = vmatpush1.msra.mxu0 0.0
      %2132 = vmatprep.subr.mxu0 0.0
      %2133 = vmatpush1.msra.mxu0 0.0
      %2134 = vmatprep.subr.mxu0 0.0
      %2135 = vmatpush1.msra.mxu0 0.0
      %2136 = vmatprep.subr.mxu0 0.0
      %2137 = vmatpush1.msra.mxu0 0.0
      %2138 = vmatprep.subr.mxu0 0.0
      %2139 = vmatpush1.msra.mxu0 0.0
      %2140 = vmatprep.subr.mxu0 0.0
      %2141 = vmatpush1.msra.mxu0 0.0
      %2142 = vmatprep.subr.mxu0 0.0
      %2143 = vmatpush1.msra.mxu0 0.0
      %2144 = vmatprep.subr.mxu0 0.0
      %2145 = vmatpush1.msra.mxu0 0.0
      %2146 = vmatprep.subr.mxu0 0.0
      %2147 = vmatpush1.msra.mxu0 0.0
      %2148 = vmatprep.subr.mxu0 0.0
      %2149 = vmatpush1.msra.mxu0 0.0
      %2150 = vmatprep.mubr.f32.mxu0 0.0
      %2151 = vmatmul.mubr.f32.gmra.mrb[0].mxu0 %v1990
      %v2152 = vpop.f32.mrb[0].mxu0
      %v2153 = vadd.f32 0.0, %v2152
      %v2154 = vpop.f32.mrb[0].mxu0
      %2155 = vmatprep.mubr.f32.mxu0 0.0
      %2156 = vmatmul.mubr.f32.gmra.mrb[0].mxu0 %v1992
      %v2157 = vpop.f32.mrb[0].mxu0
      %v2158 = vadd.f32 0.0, %v2157
      %v2159 = vpop.f32.mrb[0].mxu0
      %2160 = vmatprep.mubr.f32.mxu0 0.0
      %2161 = vmatmul.mubr.f32.gmra.mrb[0].mxu0 %v1994
      %v2162 = vpop.f32.mrb[0].mxu0
      %v2163 = vpop.f32.mrb[0].mxu0
      %2164 = vmatprep.mubr.f32.mxu0 0.0
      %2165 = vmatmul.mubr.f32.gmra.mrb[0].mxu0 %v1996
      %v2166 = vpop.f32.mrb[0].mxu0
      %v2167 = vadd.f32 0.0, %v2166
      %v2168 = vpop.f32.mrb[0].mxu0
      %2169 = vmatprep.mubr.f32.mxu0 0.0
      %2170 = vmatmul.mubr.f32.gmra.mrb[0].mxu0 %v1998
      %v2171 = vpop.f32.mrb[0].mxu0
      %v2172 = vadd.f32 0.0, %v2171
      %v2173 = vpop.f32.mrb[0].mxu0
      %2174 = vmatprep.mubr.f32.mxu0 0.0
      %2175 = vmatmul.mubr.f32.gmra.mrb[0].mxu0 %v2000
      %v2176 = vpop.f32.mrb[0].mxu0
      %v2177 = vpop.f32.mrb[0].mxu0
      %2178 = vmatprep.mubr.f32.mxu0 0.0
      %2179 = vmatmul.mubr.f32.gmra.mrb[0].mxu0 %v2002
      %v2180 = vpop.f32.mrb[0].mxu0
      %v2181 = vadd.f32 0.0, %v2180
      %v2182 = vpop.f32.mrb[0].mxu0
      %2183 = vmatprep.mubr.f32.mxu0 0.0
      %2184 = vmatmul.mubr.f32.gmra.mrb[0].mxu0 %v2004
      %v2185 = vpop.f32.mrb[0].mxu0
      %v2186 = vadd.f32 0.0, %v2185
      %v2187 = vpop.f32.mrb[0].mxu0
      %2188 = vmatprep.mubr.f32.mxu0 0.0
      %2189 = vmatmul.mubr.f32.gmra.mrb[0].mxu0 %v2006
      %v2190 = vpop.f32.mrb[0].mxu0
      %v2191 = vpop.f32.mrb[0].mxu0
      %2192 = vmatprep.mubr.f32.mxu0 0.0
      %2193 = vmatmul.mubr.f32.gmra.mrb[0].mxu0 %v2008
      %v2194 = vpop.f32.mrb[0].mxu0
      %v2195 = vadd.f32 0.0, %v2194
      %v2196 = vpop.f32.mrb[0].mxu0
      %2197 = vmatprep.mubr.f32.mxu0 0.0
      %2198 = vmatmul.mubr.f32.gmra.mrb[0].mxu0 %v2010
      %v2199 = vpop.f32.mrb[0].mxu0
      %v2200 = vadd.f32 0.0, %v2199
      %v2201 = vpop.f32.mrb[0].mxu0
      %2202 = vmatprep.mubr.f32.mxu0 0.0
      %2203 = vmatmul.mubr.f32.gmra.mrb[0].mxu0 %v2012
      %v2204 = vpop.f32.mrb[0].mxu0
      %v2205 = vpop.f32.mrb[0].mxu0
      %2206 = vmatprep.mubr.f32.mxu0 0.0
      %2207 = vmatmul.mubr.f32.gmra.mrb[0].mxu0 %v2014
      %v2208 = vpop.f32.mrb[0].mxu0
      %v2209 = vadd.f32 0.0, %v2208
      %v2210 = vpop.f32.mrb[0].mxu0
      %2211 = vmatprep.mubr.f32.mxu0 0.0
      %2212 = vmatmul.mubr.f32.gmra.mrb[0].mxu0 %v2016
      %v2213 = vpop.f32.mrb[0].mxu0
      %v2214 = vadd.f32 0.0, %v2213
      %v2215 = vpop.f32.mrb[0].mxu0
      %2216 = vmatprep.mubr.f32.mxu0 0.0
      %2217 = vmatmul.mubr.f32.gmra.mrb[0].mxu0 %v2018
      %v2218 = vpop.f32.mrb[0].mxu0
      %v2219 = vpop.f32.mrb[0].mxu0
      %2220 = vmatprep.mubr.f32.mxu0 0.0
      %2221 = vmatmul.mubr.f32.gmra.mrb[0].mxu0 %v2020
      %v2222 = vpop.f32.mrb[0].mxu0
      %v2223 = vadd.f32 0.0, %v2222
      %v2224 = vpop.f32.mrb[0].mxu0
      %2225 = vmatprep.mubr.f32.mxu0 0.0
      %2226 = vmatmul.mubr.f32.gmra.mrb[0].mxu0 %v2022
      %v2227 = vpop.f32.mrb[0].mxu0
      %v2228 = vadd.f32 0.0, %v2227
      %v2229 = vpop.f32.mrb[0].mxu0
      %2230 = vmatprep.mubr.f32.mxu0 0.0
      %2231 = vmatmul.mubr.f32.gmra.mrb[0].mxu0 %v2024
      %v2232 = vpop.f32.mrb[0].mxu0
      %v2233 = vpop.f32.mrb[0].mxu0
      %2234 = vmatprep.mubr.f32.mxu0 0.0
      %2235 = vmatmul.mubr.f32.gmra.mrb[0].mxu0 %v2026
      %v2236 = vpop.f32.mrb[0].mxu0
      %v2237 = vadd.f32 0.0, %v2236
      %v2238 = vpop.f32.mrb[0].mxu0
      %2239 = vmatprep.mubr.f32.mxu0 0.0
      %2240 = vmatmul.mubr.f32.gmra.mrb[0].mxu0 %v2028
      %v2241 = vpop.f32.mrb[0].mxu0
      %v2242 = vadd.f32 0.0, %v2241
      %v2243 = vpop.f32.mrb[0].mxu0
      %2244 = vmatprep.mubr.f32.mxu0 0.0
      %2245 = vmatmul.mubr.f32.gmra.mrb[0].mxu0 %v2030
      %v2246 = vpop.f32.mrb[0].mxu0
      %v2247 = vpop.f32.mrb[0].mxu0
      %2248 = vmatprep.mubr.f32.mxu0 0.0
      %2249 = vmatmul.mubr.f32.gmra.mrb[0].mxu0 %v2032
      %v2250 = vpop.f32.mrb[0].mxu0
      %v2251 = vadd.f32 0.0, %v2250
      %v2252 = vpop.f32.mrb[0].mxu0
      %2253 = vmatprep.mubr.f32.mxu0 0.0
      %2254 = vmatmul.mubr.f32.gmra.mrb[0].mxu0 %v2034
      %v2255 = vpop.f32.mrb[0].mxu0
      %v2256 = vadd.f32 0.0, %v2255
      %v2257 = vpop.f32.mrb[0].mxu0
      %2258 = vmatprep.mubr.f32.mxu0 0.0
      %2259 = vmatmul.mubr.f32.gmra.mrb[0].mxu0 %v2036
      %v2260 = vpop.f32.mrb[0].mxu0
      %v2261 = vpop.f32.mrb[0].mxu0
      %2262 = vmatprep.mubr.f32.mxu0 0.0
      %2263 = vmatmul.mubr.f32.gmra.mrb[0].mxu0 %v2038
      %v2264 = vpop.f32.mrb[0].mxu0
      %v2265 = vadd.f32 0.0, %v2264
      %v2266 = vpop.f32.mrb[0].mxu0
      %2267 = vmatprep.mubr.f32.mxu0 0.0
      %2268 = vmatmul.mubr.f32.gmra.mrb[0].mxu0 %v2040
      %v2269 = vpop.f32.mrb[0].mxu0
      %v2270 = vadd.f32 0.0, %v2269
      %v2271 = vpop.f32.mrb[0].mxu0
      %2272 = vmatprep.mubr.f32.mxu0 0.0
      %2273 = vmatmul.mubr.f32.gmra.mrb[0].mxu0 %v2042
      %v2274 = vpop.f32.mrb[0].mxu0
      %v2275 = vpop.f32.mrb[0].mxu0
      %2276 = vmatprep.mubr.f32.mxu0 0.0
      %2277 = vmatmul.mubr.f32.gmra.mrb[0].mxu0 %v2044
      %v2278 = vpop.f32.mrb[0].mxu0
      %v2279 = vadd.f32 0.0, %v2278
      %v2280 = vpop.f32.mrb[0].mxu0
      %2281 = vmatprep.mubr.f32.mxu0 0.0
      %2282 = vmatmul.mubr.f32.gmra.mrb[0].mxu0 %v2046
      %v2283 = vpop.f32.mrb[0].mxu0
      %v2284 = vadd.f32 0.0, %v2283
      %v2285 = vpop.f32.mrb[0].mxu0
      %2286 = vmatprep.mubr.f32.mxu0 0.0
      %2287 = vmatmul.mubr.f32.gmra.mrb[0].mxu0 %v2048
      %v2288 = vpop.f32.mrb[0].mxu0
      %v2289 = vpop.f32.mrb[0].mxu0
      %2290 = vmatprep.mubr.f32.mxu0 0.0
      %2291 = vmatmul.mubr.f32.gmra.mrb[0].mxu0 %v2050
      %v2292 = vpop.f32.mrb[0].mxu0
      %v2293 = vadd.f32 0.0, %v2292
      %v2294 = vpop.f32.mrb[0].mxu0
      %2295 = vmatprep.mubr.f32.mxu0 0.0
      %2296 = vmatmul.mubr.f32.gmra.mrb[0].mxu0 %v2052
      %v2297 = vpop.f32.mrb[0].mxu0
      %v2298 = vadd.f32 0.0, %v2297
      %v2299 = vpop.f32.mrb[0].mxu0
      %2300 = vmatprep.mubr.f32.mxu0 0.0
      %2301 = vmatmul.mubr.f32.gmra.mrb[0].mxu0 %v2054
      %v2302 = vpop.f32.mrb[0].mxu0
      %v2303 = vpop.f32.mrb[0].mxu0
      %2304 = vmatprep.mubr.f32.mxu0 0.0
      %2305 = vmatmul.mubr.f32.gmra.mrb[0].mxu0 %v2056
      %v2306 = vpop.f32.mrb[0].mxu0
      %v2307 = vadd.f32 0.0, %v2306
      %v2308 = vpop.f32.mrb[0].mxu0
      %2309 = vmatprep.mubr.f32.mxu0 0.0
      %2310 = vmatmul.mubr.f32.gmra.mrb[0].mxu0 %v2058
      %v2311 = vpop.f32.mrb[0].mxu0
      %v2312 = vadd.f32 0.0, %v2311
      %v2313 = vpop.f32.mrb[0].mxu0
      %2314 = vmatprep.mubr.f32.mxu0 0.0
      %2315 = vmatmul.mubr.f32.gmra.mrb[0].mxu0 %v2060
      %v2316 = vpop.f32.mrb[0].mxu0
      %v2317 = vpop.f32.mrb[0].mxu0
      %2318 = vmatprep.mubr.f32.mxu0 0.0
      %2319 = vmatmul.mubr.f32.gmra.mrb[0].mxu0 %v2062
      %v2320 = vpop.f32.mrb[0].mxu0
      %v2321 = vadd.f32 0.0, %v2320
      %v2322 = vpop.f32.mrb[0].mxu0
      %2323 = vmatprep.mubr.f32.mxu0 0.0
      %2324 = vmatmul.mubr.f32.gmra.mrb[0].mxu0 %v2064
      %v2325 = vpop.f32.mrb[0].mxu0
      %v2326 = vadd.f32 0.0, %v2325
      %v2327 = vpop.f32.mrb[0].mxu0
      %2328 = vmatprep.mubr.f32.mxu0 0.0
      %2329 = vmatmul.mubr.f32.gmra.mrb[0].mxu0 %v2066
      %v2330 = vpop.f32.mrb[0].mxu0
      %v2331 = vpop.f32.mrb[0].mxu0
      %2332 = vmatprep.mubr.f32.mxu0 0.0
      %2333 = vmatmul.mubr.f32.gmra.mrb[0].mxu0 %v2068
      %v2334 = vpop.f32.mrb[0].mxu0
      %v2335 = vadd.f32 0.0, %v2334
      %v2336 = vpop.f32.mrb[0].mxu0
      %2337 = vmatprep.mubr.f32.mxu0 0.0
      %2338 = vmatmul.mubr.f32.gmra.mrb[0].mxu0 %v2070
      %v2339 = vpop.f32.mrb[0].mxu0
      %v2340 = vadd.f32 0.0, %v2339
      %v2341 = vpop.f32.mrb[0].mxu0
      %2342 = vmatprep.mubr.f32.mxu0 0.0
      %2343 = vmatmul.mubr.f32.gmra.mrb[0].mxu0 %v2072
      %v2344 = vpop.f32.mrb[0].mxu0
      %v2345 = vpop.f32.mrb[0].mxu0
      %2346 = vmatprep.mubr.f32.mxu0 0.0
      %2347 = vmatmul.mubr.f32.gmra.mrb[0].mxu0 %v2074
      %v2348 = vpop.f32.mrb[0].mxu0
      %v2349 = vadd.f32 0.0, %v2348
      %v2350 = vpop.f32.mrb[0].mxu0
      %2351 = vmatprep.mubr.f32.mxu0 0.0
      %2352 = vmatmul.mubr.f32.gmra.mrb[0].mxu0 %v2076
      %v2353 = vpop.f32.mrb[0].mxu0
      %v2354 = vadd.f32 0.0, %v2353
      %v2355 = vpop.f32.mrb[0].mxu0
      %2356 = vmatprep.mubr.f32.mxu0 0.0
      %2357 = vmatmul.mubr.f32.gmra.mrb[0].mxu0 %v2078
      %v2358 = vpop.f32.mrb[0].mxu0
      %v2359 = vpop.f32.mrb[0].mxu0
      %2360 = vmatprep.mubr.f32.mxu0 0.0
      %2361 = vmatmul.mubr.f32.gmra.mrb[0].mxu0 %v2080
      %v2362 = vpop.f32.mrb[0].mxu0
      %v2363 = vadd.f32 0.0, %v2362
      %v2364 = vpop.f32.mrb[0].mxu0
      %2365 = vmatprep.mubr.f32.mxu0 0.0
      %2366 = vmatmul.mubr.f32.gmra.mrb[0].mxu0 %v2082
      %v2367 = vpop.f32.mrb[0].mxu0
      %v2368 = vadd.f32 0.0, %v2367
      %v2369 = vpop.f32.mrb[0].mxu0
      %2370 = vmatprep.mubr.f32.mxu0 0.0
      %2371 = vmatmul.mubr.f32.gmra.mrb[0].mxu0 %v2084
      %v2372 = vpop.f32.mrb[0].mxu0
      %v2373 = vpop.f32.mrb[0].mxu0
      %2374 = vdwg.mxu0
      %v2375 = vsel %vm492, %v1779, 0
      %v2377 = vsel %vm492, %v1780, 0
      %v2379 = vsel %vm492, %v1781, 0
      %v2381 = vsel %vm492, %v1782, 0
      %v2383 = vsel %vm492, %v1783, 0
      %v2385 = vsel %vm492, %v1784, 0
      %v2387 = vsel %vm492, %v1785, 0
      %v2389 = vsel %vm492, %v1786, 0
      %v2391 = vsel %vm492, %v1787, 0
      %v2393 = vsel %vm492, %v1788, 0
      %v2395 = vsel %vm492, %v1789, 0
      %v2397 = vsel %vm492, %v1790, 0
      %v2399 = vsel %vm492, %v1791, 0
      %v2401 = vsel %vm492, %v1792, 0
      %v2403 = vsel %vm492, %v1793, 0
      %v2405 = vsel %vm492, %v1794, 0
      %v2407 = vsel %vm492, %v1795, 0
      %v2409 = vsel %vm492, %v1796, 0
      %v2411 = vsel %vm492, %v1797, 0
      %v2413 = vsel %vm492, %v1798, 0
      %v2415 = vsel %vm492, %v1799, 0
      %v2417 = vsel %vm492, %v1800, 0
      %v2419 = vsel %vm492, %v1801, 0
      %v2421 = vsel %vm492, %v1802, 0
      %v2423 = vsel %vm492, %v1803, 0
      %v2425 = vsel %vm492, %v1804, 0
      %v2427 = vsel %vm492, %v1805, 0
      %v2429 = vsel %vm492, %v1806, 0
      %v2431 = vsel %vm492, %v1807, 0
      %v2433 = vsel %vm492, %v1808, 0
      %v2435 = vsel %vm492, %v1809, 0
      %v2437 = vsel %vm492, %v1810, 0
      %v2439 = vsel %vm492, %v1811, 0
      %v2441 = vsel %vm492, %v1812, 0
      %v2443 = vsel %vm492, %v1813, 0
      %v2445 = vsel %vm492, %v1814, 0
      %v2447 = vsel %vm492, %v1815, 0
      %v2449 = vsel %vm492, %v1816, 0
      %v2451 = vsel %vm492, %v1817, 0
      %v2453 = vsel %vm492, %v1818, 0
      %v2455 = vsel %vm492, %v1819, 0
      %v2457 = vsel %vm492, %v1820, 0
      %v2459 = vsel %vm492, %v1821, 0
      %v2461 = vsel %vm492, %v1822, 0
      %v2463 = vsel %vm492, %v1823, 0
      %v2465 = vsel %vm492, %v1824, 0
      %v2467 = vsel %vm492, %v1825, 0
      %v2469 = vsel %vm492, %v1826, 0
      %2471 = vmatprep.subr.mxu0 0.0
      %2472 = vmatpush1.msra.mxu0 %v1834
      %2473 = vmatprep.subr.mxu0 0.0
      %2474 = vmatpush1.msra.mxu0 %v1835
      %2475 = vmatprep.subr.mxu0 0.0
      %2476 = vmatpush1.msra.mxu0 %v1836
      %2477 = vmatprep.subr.mxu0 0.0
      %2478 = vmatpush1.msra.mxu0 %v1837
      %2479 = vmatprep.subr.mxu0 0.0
      %2480 = vmatpush1.msra.mxu0 0.0
      %2481 = vmatprep.subr.mxu0 0.0
      %2482 = vmatpush1.msra.mxu0 0.0
      %2483 = vmatprep.subr.mxu0 0.0
      %2484 = vmatpush1.msra.mxu0 0.0
      %2485 = vmatprep.subr.mxu0 0.0
      %2486 = vmatpush1.msra.mxu0 0.0
      %2487 = vmatprep.subr.mxu0 0.0
      %2488 = vmatpush1.msra.mxu0 0.0
      %2489 = vmatprep.subr.mxu0 0.0
      %2490 = vmatpush1.msra.mxu0 0.0
      %2491 = vmatprep.subr.mxu0 0.0
      %2492 = vmatpush1.msra.mxu0 0.0
      %2493 = vmatprep.subr.mxu0 0.0
      %2494 = vmatpush1.msra.mxu0 0.0
      %2495 = vmatprep.subr.mxu0 0.0
      %2496 = vmatpush1.msra.mxu0 0.0
      %2497 = vmatprep.subr.mxu0 0.0
      %2498 = vmatpush1.msra.mxu0 0.0
      %2499 = vmatprep.subr.mxu0 0.0
      %2500 = vmatpush1.msra.mxu0 0.0
      %2501 = vmatprep.subr.mxu0 0.0
      %2502 = vmatpush1.msra.mxu0 0.0
      %2503 = vmatprep.subr.mxu0 0.0
      %2504 = vmatpush1.msra.mxu0 0.0
      %2505 = vmatprep.subr.mxu0 0.0
      %2506 = vmatpush1.msra.mxu0 0.0
      %2507 = vmatprep.subr.mxu0 0.0
      %2508 = vmatpush1.msra.mxu0 0.0
      %2509 = vmatprep.subr.mxu0 0.0
      %2510 = vmatpush1.msra.mxu0 0.0
      %2511 = vmatprep.subr.mxu0 0.0
      %2512 = vmatpush1.msra.mxu0 0.0
      %2513 = vmatprep.subr.mxu0 0.0
      %2514 = vmatpush1.msra.mxu0 0.0
      %2515 = vmatprep.subr.mxu0 0.0
      %2516 = vmatpush1.msra.mxu0 0.0
      %2517 = vmatprep.subr.mxu0 0.0
      %2518 = vmatpush1.msra.mxu0 0.0
      %2519 = vmatprep.subr.mxu0 0.0
      %2520 = vmatpush1.msra.mxu0 0.0
      %2521 = vmatprep.subr.mxu0 0.0
      %2522 = vmatpush1.msra.mxu0 0.0
      %2523 = vmatprep.subr.mxu0 0.0
      %2524 = vmatpush1.msra.mxu0 0.0
      %2525 = vmatprep.subr.mxu0 0.0
      %2526 = vmatpush1.msra.mxu0 0.0
      %2527 = vmatprep.subr.mxu0 0.0
      %2528 = vmatpush1.msra.mxu0 0.0
      %2529 = vmatprep.subr.mxu0 0.0
      %2530 = vmatpush1.msra.mxu0 0.0
      %2531 = vmatprep.subr.mxu0 0.0
      %2532 = vmatpush1.msra.mxu0 0.0
      %2533 = vmatprep.subr.mxu0 0.0
      %2534 = vmatpush1.msra.mxu0 0.0
      %2535 = vmatprep.mubr.f32.mxu0 0.0
      %2536 = vmatmul.mubr.f32.gmra.mrb[0].mxu0 %v2375
      %v2537 = vpop.f32.mrb[0].mxu0
      %v2538 = vadd.f32 %v2153, %v2537
      %v2539 = vpop.f32.mrb[0].mxu0
      %2540 = vmatprep.mubr.f32.mxu0 0.0
      %2541 = vmatmul.mubr.f32.gmra.mrb[0].mxu0 %v2377
      %v2542 = vpop.f32.mrb[0].mxu0
      %v2543 = vadd.f32 %v2158, %v2542
      %v2544 = vpop.f32.mrb[0].mxu0
      %2545 = vmatprep.mubr.f32.mxu0 0.0
      %2546 = vmatmul.mubr.f32.gmra.mrb[0].mxu0 %v2379
      %v2547 = vpop.f32.mrb[0].mxu0
      %v2548 = vpop.f32.mrb[0].mxu0
      %2549 = vmatprep.mubr.f32.mxu0 0.0
      %2550 = vmatmul.mubr.f32.gmra.mrb[0].mxu0 %v2381
      %v2551 = vpop.f32.mrb[0].mxu0
      %v2552 = vadd.f32 %v2167, %v2551
      %v2553 = vpop.f32.mrb[0].mxu0
      %2554 = vmatprep.mubr.f32.mxu0 0.0
      %2555 = vmatmul.mubr.f32.gmra.mrb[0].mxu0 %v2383
      %v2556 = vpop.f32.mrb[0].mxu0
      %v2557 = vadd.f32 %v2172, %v2556
      %v2558 = vpop.f32.mrb[0].mxu0
      %2559 = vmatprep.mubr.f32.mxu0 0.0
      %2560 = vmatmul.mubr.f32.gmra.mrb[0].mxu0 %v2385
      %v2561 = vpop.f32.mrb[0].mxu0
      %v2562 = vpop.f32.mrb[0].mxu0
      %2563 = vmatprep.mubr.f32.mxu0 0.0
      %2564 = vmatmul.mubr.f32.gmra.mrb[0].mxu0 %v2387
      %v2565 = vpop.f32.mrb[0].mxu0
      %v2566 = vadd.f32 %v2181, %v2565
      %v2567 = vpop.f32.mrb[0].mxu0
      %2568 = vmatprep.mubr.f32.mxu0 0.0
      %2569 = vmatmul.mubr.f32.gmra.mrb[0].mxu0 %v2389
      %v2570 = vpop.f32.mrb[0].mxu0
      %v2571 = vadd.f32 %v2186, %v2570
      %v2572 = vpop.f32.mrb[0].mxu0
      %2573 = vmatprep.mubr.f32.mxu0 0.0
      %2574 = vmatmul.mubr.f32.gmra.mrb[0].mxu0 %v2391
      %v2575 = vpop.f32.mrb[0].mxu0
      %v2576 = vpop.f32.mrb[0].mxu0
      %2577 = vmatprep.mubr.f32.mxu0 0.0
      %2578 = vmatmul.mubr.f32.gmra.mrb[0].mxu0 %v2393
      %v2579 = vpop.f32.mrb[0].mxu0
      %v2580 = vadd.f32 %v2195, %v2579
      %v2581 = vpop.f32.mrb[0].mxu0
      %2582 = vmatprep.mubr.f32.mxu0 0.0
      %2583 = vmatmul.mubr.f32.gmra.mrb[0].mxu0 %v2395
      %v2584 = vpop.f32.mrb[0].mxu0
      %v2585 = vadd.f32 %v2200, %v2584
      %v2586 = vpop.f32.mrb[0].mxu0
      %2587 = vmatprep.mubr.f32.mxu0 0.0
      %2588 = vmatmul.mubr.f32.gmra.mrb[0].mxu0 %v2397
      %v2589 = vpop.f32.mrb[0].mxu0
      %v2590 = vpop.f32.mrb[0].mxu0
      %2591 = vmatprep.mubr.f32.mxu0 0.0
      %2592 = vmatmul.mubr.f32.gmra.mrb[0].mxu0 %v2399
      %v2593 = vpop.f32.mrb[0].mxu0
      %v2594 = vadd.f32 %v2209, %v2593
      %v2595 = vpop.f32.mrb[0].mxu0
      %2596 = vmatprep.mubr.f32.mxu0 0.0
      %2597 = vmatmul.mubr.f32.gmra.mrb[0].mxu0 %v2401
      %v2598 = vpop.f32.mrb[0].mxu0
      %v2599 = vadd.f32 %v2214, %v2598
      %v2600 = vpop.f32.mrb[0].mxu0
      %2601 = vmatprep.mubr.f32.mxu0 0.0
      %2602 = vmatmul.mubr.f32.gmra.mrb[0].mxu0 %v2403
      %v2603 = vpop.f32.mrb[0].mxu0
      %v2604 = vpop.f32.mrb[0].mxu0
      %2605 = vmatprep.mubr.f32.mxu0 0.0
      %2606 = vmatmul.mubr.f32.gmra.mrb[0].mxu0 %v2405
      %v2607 = vpop.f32.mrb[0].mxu0
      %v2608 = vadd.f32 %v2223, %v2607
      %v2609 = vpop.f32.mrb[0].mxu0
      %2610 = vmatprep.mubr.f32.mxu0 0.0
      %2611 = vmatmul.mubr.f32.gmra.mrb[0].mxu0 %v2407
      %v2612 = vpop.f32.mrb[0].mxu0
      %v2613 = vadd.f32 %v2228, %v2612
      %v2614 = vpop.f32.mrb[0].mxu0
      %2615 = vmatprep.mubr.f32.mxu0 0.0
      %2616 = vmatmul.mubr.f32.gmra.mrb[0].mxu0 %v2409
      %v2617 = vpop.f32.mrb[0].mxu0
      %v2618 = vpop.f32.mrb[0].mxu0
      %2619 = vmatprep.mubr.f32.mxu0 0.0
      %2620 = vmatmul.mubr.f32.gmra.mrb[0].mxu0 %v2411
      %v2621 = vpop.f32.mrb[0].mxu0
      %v2622 = vadd.f32 %v2237, %v2621
      %v2623 = vpop.f32.mrb[0].mxu0
      %2624 = vmatprep.mubr.f32.mxu0 0.0
      %2625 = vmatmul.mubr.f32.gmra.mrb[0].mxu0 %v2413
      %v2626 = vpop.f32.mrb[0].mxu0
      %v2627 = vadd.f32 %v2242, %v2626
      %v2628 = vpop.f32.mrb[0].mxu0
      %2629 = vmatprep.mubr.f32.mxu0 0.0
      %2630 = vmatmul.mubr.f32.gmra.mrb[0].mxu0 %v2415
      %v2631 = vpop.f32.mrb[0].mxu0
      %v2632 = vpop.f32.mrb[0].mxu0
      %2633 = vmatprep.mubr.f32.mxu0 0.0
      %2634 = vmatmul.mubr.f32.gmra.mrb[0].mxu0 %v2417
      %v2635 = vpop.f32.mrb[0].mxu0
      %v2636 = vadd.f32 %v2251, %v2635
      %v2637 = vpop.f32.mrb[0].mxu0
      %2638 = vmatprep.mubr.f32.mxu0 0.0
      %2639 = vmatmul.mubr.f32.gmra.mrb[0].mxu0 %v2419
      %v2640 = vpop.f32.mrb[0].mxu0
      %v2641 = vadd.f32 %v2256, %v2640
      %v2642 = vpop.f32.mrb[0].mxu0
      %2643 = vmatprep.mubr.f32.mxu0 0.0
      %2644 = vmatmul.mubr.f32.gmra.mrb[0].mxu0 %v2421
      %v2645 = vpop.f32.mrb[0].mxu0
      %v2646 = vpop.f32.mrb[0].mxu0
      %2647 = vmatprep.mubr.f32.mxu0 0.0
      %2648 = vmatmul.mubr.f32.gmra.mrb[0].mxu0 %v2423
      %v2649 = vpop.f32.mrb[0].mxu0
      %v2650 = vadd.f32 %v2265, %v2649
      %v2651 = vpop.f32.mrb[0].mxu0
      %2652 = vmatprep.mubr.f32.mxu0 0.0
      %2653 = vmatmul.mubr.f32.gmra.mrb[0].mxu0 %v2425
      %v2654 = vpop.f32.mrb[0].mxu0
      %v2655 = vadd.f32 %v2270, %v2654
      %v2656 = vpop.f32.mrb[0].mxu0
      %2657 = vmatprep.mubr.f32.mxu0 0.0
      %2658 = vmatmul.mubr.f32.gmra.mrb[0].mxu0 %v2427
      %v2659 = vpop.f32.mrb[0].mxu0
      %v2660 = vpop.f32.mrb[0].mxu0
      %2661 = vmatprep.mubr.f32.mxu0 0.0
      %2662 = vmatmul.mubr.f32.gmra.mrb[0].mxu0 %v2429
      %v2663 = vpop.f32.mrb[0].mxu0
      %v2664 = vadd.f32 %v2279, %v2663
      %v2665 = vpop.f32.mrb[0].mxu0
      %2666 = vmatprep.mubr.f32.mxu0 0.0
      %2667 = vmatmul.mubr.f32.gmra.mrb[0].mxu0 %v2431
      %v2668 = vpop.f32.mrb[0].mxu0
      %v2669 = vadd.f32 %v2284, %v2668
      %v2670 = vpop.f32.mrb[0].mxu0
      %2671 = vmatprep.mubr.f32.mxu0 0.0
      %2672 = vmatmul.mubr.f32.gmra.mrb[0].mxu0 %v2433
      %v2673 = vpop.f32.mrb[0].mxu0
      %v2674 = vpop.f32.mrb[0].mxu0
      %2675 = vmatprep.mubr.f32.mxu0 0.0
      %2676 = vmatmul.mubr.f32.gmra.mrb[0].mxu0 %v2435
      %v2677 = vpop.f32.mrb[0].mxu0
      %v2678 = vadd.f32 %v2293, %v2677
      %v2679 = vpop.f32.mrb[0].mxu0
      %2680 = vmatprep.mubr.f32.mxu0 0.0
      %2681 = vmatmul.mubr.f32.gmra.mrb[0].mxu0 %v2437
      %v2682 = vpop.f32.mrb[0].mxu0
      %v2683 = vadd.f32 %v2298, %v2682
      %v2684 = vpop.f32.mrb[0].mxu0
      %2685 = vmatprep.mubr.f32.mxu0 0.0
      %2686 = vmatmul.mubr.f32.gmra.mrb[0].mxu0 %v2439
      %v2687 = vpop.f32.mrb[0].mxu0
      %v2688 = vpop.f32.mrb[0].mxu0
      %2689 = vmatprep.mubr.f32.mxu0 0.0
      %2690 = vmatmul.mubr.f32.gmra.mrb[0].mxu0 %v2441
      %v2691 = vpop.f32.mrb[0].mxu0
      %v2692 = vadd.f32 %v2307, %v2691
      %v2693 = vpop.f32.mrb[0].mxu0
      %2694 = vmatprep.mubr.f32.mxu0 0.0
      %2695 = vmatmul.mubr.f32.gmra.mrb[0].mxu0 %v2443
      %v2696 = vpop.f32.mrb[0].mxu0
      %v2697 = vadd.f32 %v2312, %v2696
      %v2698 = vpop.f32.mrb[0].mxu0
      %2699 = vmatprep.mubr.f32.mxu0 0.0
      %2700 = vmatmul.mubr.f32.gmra.mrb[0].mxu0 %v2445
      %v2701 = vpop.f32.mrb[0].mxu0
      %v2702 = vpop.f32.mrb[0].mxu0
      %2703 = vmatprep.mubr.f32.mxu0 0.0
      %2704 = vmatmul.mubr.f32.gmra.mrb[0].mxu0 %v2447
      %v2705 = vpop.f32.mrb[0].mxu0
      %v2706 = vadd.f32 %v2321, %v2705
      %v2707 = vpop.f32.mrb[0].mxu0
      %2708 = vmatprep.mubr.f32.mxu0 0.0
      %2709 = vmatmul.mubr.f32.gmra.mrb[0].mxu0 %v2449
      %v2710 = vpop.f32.mrb[0].mxu0
      %v2711 = vadd.f32 %v2326, %v2710
      %v2712 = vpop.f32.mrb[0].mxu0
      %2713 = vmatprep.mubr.f32.mxu0 0.0
      %2714 = vmatmul.mubr.f32.gmra.mrb[0].mxu0 %v2451
      %v2715 = vpop.f32.mrb[0].mxu0
      %v2716 = vpop.f32.mrb[0].mxu0
      %2717 = vmatprep.mubr.f32.mxu0 0.0
      %2718 = vmatmul.mubr.f32.gmra.mrb[0].mxu0 %v2453
      %v2719 = vpop.f32.mrb[0].mxu0
      %v2720 = vadd.f32 %v2335, %v2719
      %v2721 = vpop.f32.mrb[0].mxu0
      %2722 = vmatprep.mubr.f32.mxu0 0.0
      %2723 = vmatmul.mubr.f32.gmra.mrb[0].mxu0 %v2455
      %v2724 = vpop.f32.mrb[0].mxu0
      %v2725 = vadd.f32 %v2340, %v2724
      %v2726 = vpop.f32.mrb[0].mxu0
      %2727 = vmatprep.mubr.f32.mxu0 0.0
      %2728 = vmatmul.mubr.f32.gmra.mrb[0].mxu0 %v2457
      %v2729 = vpop.f32.mrb[0].mxu0
      %v2730 = vpop.f32.mrb[0].mxu0
      %2731 = vmatprep.mubr.f32.mxu0 0.0
      %2732 = vmatmul.mubr.f32.gmra.mrb[0].mxu0 %v2459
      %v2733 = vpop.f32.mrb[0].mxu0
      %v2734 = vadd.f32 %v2349, %v2733
      %v2735 = vpop.f32.mrb[0].mxu0
      %2736 = vmatprep.mubr.f32.mxu0 0.0
      %2737 = vmatmul.mubr.f32.gmra.mrb[0].mxu0 %v2461
      %v2738 = vpop.f32.mrb[0].mxu0
      %v2739 = vadd.f32 %v2354, %v2738
      %v2740 = vpop.f32.mrb[0].mxu0
      %2741 = vmatprep.mubr.f32.mxu0 0.0
      %2742 = vmatmul.mubr.f32.gmra.mrb[0].mxu0 %v2463
      %v2743 = vpop.f32.mrb[0].mxu0
      %v2744 = vpop.f32.mrb[0].mxu0
      %2745 = vmatprep.mubr.f32.mxu0 0.0
      %2746 = vmatmul.mubr.f32.gmra.mrb[0].mxu0 %v2465
      %v2747 = vpop.f32.mrb[0].mxu0
      %v2748 = vadd.f32 %v2363, %v2747
      %v2749 = vpop.f32.mrb[0].mxu0
      %2750 = vmatprep.mubr.f32.mxu0 0.0
      %2751 = vmatmul.mubr.f32.gmra.mrb[0].mxu0 %v2467
      %v2752 = vpop.f32.mrb[0].mxu0
      %v2753 = vadd.f32 %v2368, %v2752
      %v2754 = vpop.f32.mrb[0].mxu0
      %2755 = vmatprep.mubr.f32.mxu0 0.0
      %2756 = vmatmul.mubr.f32.gmra.mrb[0].mxu0 %v2469
      %v2757 = vpop.f32.mrb[0].mxu0
      %v2758 = vpop.f32.mrb[0].mxu0
      %2759 = vdwg.mxu0
      %s2760 = scalar_lea.vmem %s5, 64
      %v2761 = vld [vmem:[%s2760] sm:$0xff]
      %v2762 = vld [vmem:[%s2760 + $0x8] sm:$0xff]
      %v2763 = vld [vmem:[%s2760 + $0x10] sm:$0xff]
      %v2764 = vld [vmem:[%s2760 + $0x18] sm:$0xff]
      %vm2765 = vcmask 1045504
      %v2766 = vrot.slane %v1779, 2
      %v2767 = vrot.slane %v1780, 2
      %v2768 = vsel %vm2765, %v2766, %v2767
      %v2769 = vrot.slane %v1781, 2
      %v2770 = vsel %vm2765, %v2767, %v2769
      %v2771 = vrot.slane %v1782, 2
      %v2772 = vsel %vm2765, %v2769, %v2771
      %v2773 = vrot.slane %v1783, 2
      %v2774 = vsel %vm2765, %v2771, %v2773
      %v2775 = vrot.slane %v1784, 2
      %v2776 = vsel %vm2765, %v2773, %v2775
      %v2777 = vrot.slane %v1785, 2
      %v2778 = vsel %vm2765, %v2775, %v2777
      %v2779 = vrot.slane %v1786, 2
      %v2780 = vsel %vm2765, %v2777, %v2779
      %v2781 = vrot.slane %v1787, 2
      %v2782 = vsel %vm2765, %v2779, %v2781
      %v2783 = vrot.slane %v1788, 2
      %v2784 = vsel %vm2765, %v2781, %v2783
      %v2785 = vrot.slane %v1789, 2
      %v2786 = vsel %vm2765, %v2783, %v2785
      %v2787 = vrot.slane %v1790, 2
      %v2788 = vsel %vm2765, %v2785, %v2787
      %v2789 = vrot.slane %v1791, 2
      %v2790 = vsel %vm2765, %v2787, %v2789
      %v2791 = vrot.slane %v1792, 2
      %v2792 = vsel %vm2765, %v2789, %v2791
      %v2793 = vrot.slane %v1793, 2
      %v2794 = vsel %vm2765, %v2791, %v2793
      %v2795 = vrot.slane %v1794, 2
      %v2796 = vsel %vm2765, %v2793, %v2795
      %v2797 = vrot.slane %v1795, 2
      %v2798 = vsel %vm2765, %v2795, %v2797
      %v2799 = vrot.slane %v1796, 2
      %v2800 = vsel %vm2765, %v2797, %v2799
      %v2801 = vrot.slane %v1797, 2
      %v2802 = vsel %vm2765, %v2799, %v2801
      %v2803 = vrot.slane %v1798, 2
      %v2804 = vsel %vm2765, %v2801, %v2803
      %v2805 = vrot.slane %v1799, 2
      %v2806 = vsel %vm2765, %v2803, %v2805
      %v2807 = vrot.slane %v1800, 2
      %v2808 = vsel %vm2765, %v2805, %v2807
      %v2809 = vrot.slane %v1801, 2
      %v2810 = vsel %vm2765, %v2807, %v2809
      %v2811 = vrot.slane %v1802, 2
      %v2812 = vsel %vm2765, %v2809, %v2811
      %v2813 = vrot.slane %v1803, 2
      %v2814 = vsel %vm2765, %v2811, %v2813
      %v2815 = vrot.slane %v1804, 2
      %v2816 = vsel %vm2765, %v2813, %v2815
      %v2817 = vrot.slane %v1805, 2
      %v2818 = vsel %vm2765, %v2815, %v2817
      %v2819 = vrot.slane %v1806, 2
      %v2820 = vsel %vm2765, %v2817, %v2819
      %v2821 = vrot.slane %v1807, 2
      %v2822 = vsel %vm2765, %v2819, %v2821
      %v2823 = vrot.slane %v1808, 2
      %v2824 = vsel %vm2765, %v2821, %v2823
      %v2825 = vrot.slane %v1809, 2
      %v2826 = vsel %vm2765, %v2823, %v2825
      %v2827 = vrot.slane %v1810, 2
      %v2828 = vsel %vm2765, %v2825, %v2827
      %v2829 = vrot.slane %v1811, 2
      %v2830 = vsel %vm2765, %v2827, %v2829
      %v2831 = vrot.slane %v1812, 2
      %v2832 = vsel %vm2765, %v2829, %v2831
      %v2833 = vrot.slane %v1813, 2
      %v2834 = vsel %vm2765, %v2831, %v2833
      %v2835 = vrot.slane %v1814, 2
      %v2836 = vsel %vm2765, %v2833, %v2835
      %v2837 = vrot.slane %v1815, 2
      %v2838 = vsel %vm2765, %v2835, %v2837
      %v2839 = vrot.slane %v1816, 2
      %v2840 = vsel %vm2765, %v2837, %v2839
      %v2841 = vrot.slane %v1817, 2
      %v2842 = vsel %vm2765, %v2839, %v2841
      %v2843 = vrot.slane %v1818, 2
      %v2844 = vsel %vm2765, %v2841, %v2843
      %v2845 = vrot.slane %v1819, 2
      %v2846 = vsel %vm2765, %v2843, %v2845
      %v2847 = vrot.slane %v1820, 2
      %v2848 = vsel %vm2765, %v2845, %v2847
      %v2849 = vrot.slane %v1821, 2
      %v2850 = vsel %vm2765, %v2847, %v2849
      %v2851 = vrot.slane %v1822, 2
      %v2852 = vsel %vm2765, %v2849, %v2851
      %v2853 = vrot.slane %v1823, 2
      %v2854 = vsel %vm2765, %v2851, %v2853
      %v2855 = vrot.slane %v1824, 2
      %v2856 = vsel %vm2765, %v2853, %v2855
      %v2857 = vrot.slane %v1825, 2
      %v2858 = vsel %vm2765, %v2855, %v2857
      %v2859 = vrot.slane %v1826, 2
      %v2860 = vsel %vm2765, %v2857, %v2859
      %v2861 = vrot.slane %v1827, 2
      %v2862 = vsel %vm2765, %v2859, %v2861
      %v2863 = vsel %vm492, %v2768, 0
      %v2865 = vsel %vm492, %v2770, 0
      %v2867 = vsel %vm492, %v2772, 0
      %v2869 = vsel %vm492, %v2774, 0
      %v2871 = vsel %vm492, %v2776, 0
      %v2873 = vsel %vm492, %v2778, 0
      %v2875 = vsel %vm492, %v2780, 0
      %v2877 = vsel %vm492, %v2782, 0
      %v2879 = vsel %vm492, %v2784, 0
      %v2881 = vsel %vm492, %v2786, 0
      %v2883 = vsel %vm492, %v2788, 0
      %v2885 = vsel %vm492, %v2790, 0
      %v2887 = vsel %vm492, %v2792, 0
      %v2889 = vsel %vm492, %v2794, 0
      %v2891 = vsel %vm492, %v2796, 0
      %v2893 = vsel %vm492, %v2798, 0
      %v2895 = vsel %vm492, %v2800, 0
      %v2897 = vsel %vm492, %v2802, 0
      %v2899 = vsel %vm492, %v2804, 0
      %v2901 = vsel %vm492, %v2806, 0
      %v2903 = vsel %vm492, %v2808, 0
      %v2905 = vsel %vm492, %v2810, 0
      %v2907 = vsel %vm492, %v2812, 0
      %v2909 = vsel %vm492, %v2814, 0
      %v2911 = vsel %vm492, %v2816, 0
      %v2913 = vsel %vm492, %v2818, 0
      %v2915 = vsel %vm492, %v2820, 0
      %v2917 = vsel %vm492, %v2822, 0
      %v2919 = vsel %vm492, %v2824, 0
      %v2921 = vsel %vm492, %v2826, 0
      %v2923 = vsel %vm492, %v2828, 0
      %v2925 = vsel %vm492, %v2830, 0
      %v2927 = vsel %vm492, %v2832, 0
      %v2929 = vsel %vm492, %v2834, 0
      %v2931 = vsel %vm492, %v2836, 0
      %v2933 = vsel %vm492, %v2838, 0
      %v2935 = vsel %vm492, %v2840, 0
      %v2937 = vsel %vm492, %v2842, 0
      %v2939 = vsel %vm492, %v2844, 0
      %v2941 = vsel %vm492, %v2846, 0
      %v2943 = vsel %vm492, %v2848, 0
      %v2945 = vsel %vm492, %v2850, 0
      %v2947 = vsel %vm492, %v2852, 0
      %v2949 = vsel %vm492, %v2854, 0
      %v2951 = vsel %vm492, %v2856, 0
      %v2953 = vsel %vm492, %v2858, 0
      %v2955 = vsel %vm492, %v2860, 0
      %v2957 = vsel %vm492, %v2862, 0
      %2959 = vmatprep.subr.mxu0 0.0
      %2960 = vmatpush1.msra.mxu0 %v2761
      %2961 = vmatprep.subr.mxu0 0.0
      %2962 = vmatpush1.msra.mxu0 %v2762
      %2963 = vmatprep.subr.mxu0 0.0
      %2964 = vmatpush1.msra.mxu0 %v2763
      %2965 = vmatprep.subr.mxu0 0.0
      %2966 = vmatpush1.msra.mxu0 %v2764
      %2967 = vmatprep.subr.mxu0 0.0
      %2968 = vmatpush1.msra.mxu0 0.0
      %2969 = vmatprep.subr.mxu0 0.0
      %2970 = vmatpush1.msra.mxu0 0.0
      %2971 = vmatprep.subr.mxu0 0.0
      %2972 = vmatpush1.msra.mxu0 0.0
      %2973 = vmatprep.subr.mxu0 0.0
      %2974 = vmatpush1.msra.mxu0 0.0
      %2975 = vmatprep.subr.mxu0 0.0
      %2976 = vmatpush1.msra.mxu0 0.0
      %2977 = vmatprep.subr.mxu0 0.0
      %2978 = vmatpush1.msra.mxu0 0.0
      %2979 = vmatprep.subr.mxu0 0.0
      %2980 = vmatpush1.msra.mxu0 0.0
      %2981 = vmatprep.subr.mxu0 0.0
      %2982 = vmatpush1.msra.mxu0 0.0
      %2983 = vmatprep.subr.mxu0 0.0
      %2984 = vmatpush1.msra.mxu0 0.0
      %2985 = vmatprep.subr.mxu0 0.0
      %2986 = vmatpush1.msra.mxu0 0.0
      %2987 = vmatprep.subr.mxu0 0.0
      %2988 = vmatpush1.msra.mxu0 0.0
      %2989 = vmatprep.subr.mxu0 0.0
      %2990 = vmatpush1.msra.mxu0 0.0
      %2991 = vmatprep.subr.mxu0 0.0
      %2992 = vmatpush1.msra.mxu0 0.0
      %2993 = vmatprep.subr.mxu0 0.0
      %2994 = vmatpush1.msra.mxu0 0.0
      %2995 = vmatprep.subr.mxu0 0.0
      %2996 = vmatpush1.msra.mxu0 0.0
      %2997 = vmatprep.subr.mxu0 0.0
      %2998 = vmatpush1.msra.mxu0 0.0
      %2999 = vmatprep.subr.mxu0 0.0
      %3000 = vmatpush1.msra.mxu0 0.0
      %3001 = vmatprep.subr.mxu0 0.0
      %3002 = vmatpush1.msra.mxu0 0.0
      %3003 = vmatprep.subr.mxu0 0.0
      %3004 = vmatpush1.msra.mxu0 0.0
      %3005 = vmatprep.subr.mxu0 0.0
      %3006 = vmatpush1.msra.mxu0 0.0
      %3007 = vmatprep.subr.mxu0 0.0
      %3008 = vmatpush1.msra.mxu0 0.0
      %3009 = vmatprep.subr.mxu0 0.0
      %3010 = vmatpush1.msra.mxu0 0.0
      %3011 = vmatprep.subr.mxu0 0.0
      %3012 = vmatpush1.msra.mxu0 0.0
      %3013 = vmatprep.subr.mxu0 0.0
      %3014 = vmatpush1.msra.mxu0 0.0
      %3015 = vmatprep.subr.mxu0 0.0
      %3016 = vmatpush1.msra.mxu0 0.0
      %3017 = vmatprep.subr.mxu0 0.0
      %3018 = vmatpush1.msra.mxu0 0.0
      %3019 = vmatprep.subr.mxu0 0.0
      %3020 = vmatpush1.msra.mxu0 0.0
      %3021 = vmatprep.subr.mxu0 0.0
      %3022 = vmatpush1.msra.mxu0 0.0
      %3023 = vmatprep.mubr.f32.mxu0 0.0
      %3024 = vmatmul.mubr.f32.gmra.mrb[0].mxu0 %v2863
      %v3025 = vpop.f32.mrb[0].mxu0
      %v3026 = vadd.f32 0.0, %v3025
      %v3027 = vpop.f32.mrb[0].mxu0
      %3028 = vmatprep.mubr.f32.mxu0 0.0
      %3029 = vmatmul.mubr.f32.gmra.mrb[0].mxu0 %v2865
      %v3030 = vpop.f32.mrb[0].mxu0
      %v3031 = vadd.f32 0.0, %v3030
      %v3032 = vpop.f32.mrb[0].mxu0
      %3033 = vmatprep.mubr.f32.mxu0 0.0
      %3034 = vmatmul.mubr.f32.gmra.mrb[0].mxu0 %v2867
      %v3035 = vpop.f32.mrb[0].mxu0
      %v3036 = vpop.f32.mrb[0].mxu0
      %3037 = vmatprep.mubr.f32.mxu0 0.0
      %3038 = vmatmul.mubr.f32.gmra.mrb[0].mxu0 %v2869
      %v3039 = vpop.f32.mrb[0].mxu0
      %v3040 = vadd.f32 0.0, %v3039
      %v3041 = vpop.f32.mrb[0].mxu0
      %3042 = vmatprep.mubr.f32.mxu0 0.0
      %3043 = vmatmul.mubr.f32.gmra.mrb[0].mxu0 %v2871
      %v3044 = vpop.f32.mrb[0].mxu0
      %v3045 = vadd.f32 0.0, %v3044
      %v3046 = vpop.f32.mrb[0].mxu0
      %3047 = vmatprep.mubr.f32.mxu0 0.0
      %3048 = vmatmul.mubr.f32.gmra.mrb[0].mxu0 %v2873
      %v3049 = vpop.f32.mrb[0].mxu0
      %v3050 = vpop.f32.mrb[0].mxu0
      %3051 = vmatprep.mubr.f32.mxu0 0.0
      %3052 = vmatmul.mubr.f32.gmra.mrb[0].mxu0 %v2875
      %v3053 = vpop.f32.mrb[0].mxu0
      %v3054 = vadd.f32 0.0, %v3053
      %v3055 = vpop.f32.mrb[0].mxu0
      %3056 = vmatprep.mubr.f32.mxu0 0.0
      %3057 = vmatmul.mubr.f32.gmra.mrb[0].mxu0 %v2877
      %v3058 = vpop.f32.mrb[0].mxu0
      %v3059 = vadd.f32 0.0, %v3058
      %v3060 = vpop.f32.mrb[0].mxu0
      %3061 = vmatprep.mubr.f32.mxu0 0.0
      %3062 = vmatmul.mubr.f32.gmra.mrb[0].mxu0 %v2879
      %v3063 = vpop.f32.mrb[0].mxu0
      %v3064 = vpop.f32.mrb[0].mxu0
      %3065 = vmatprep.mubr.f32.mxu0 0.0
      %3066 = vmatmul.mubr.f32.gmra.mrb[0].mxu0 %v2881
      %v3067 = vpop.f32.mrb[0].mxu0
      %v3068 = vadd.f32 0.0, %v3067
      %v3069 = vpop.f32.mrb[0].mxu0
      %3070 = vmatprep.mubr.f32.mxu0 0.0
      %3071 = vmatmul.mubr.f32.gmra.mrb[0].mxu0 %v2883
      %v3072 = vpop.f32.mrb[0].mxu0
      %v3073 = vadd.f32 0.0, %v3072
      %v3074 = vpop.f32.mrb[0].mxu0
      %3075 = vmatprep.mubr.f32.mxu0 0.0
      %3076 = vmatmul.mubr.f32.gmra.mrb[0].mxu0 %v2885
      %v3077 = vpop.f32.mrb[0].mxu0
      %v3078 = vpop.f32.mrb[0].mxu0
      %3079 = vmatprep.mubr.f32.mxu0 0.0
      %3080 = vmatmul.mubr.f32.gmra.mrb[0].mxu0 %v2887
      %v3081 = vpop.f32.mrb[0].mxu0
      %v3082 = vadd.f32 0.0, %v3081
      %v3083 = vpop.f32.mrb[0].mxu0
      %3084 = vmatprep.mubr.f32.mxu0 0.0
      %3085 = vmatmul.mubr.f32.gmra.mrb[0].mxu0 %v2889
      %v3086 = vpop.f32.mrb[0].mxu0
      %v3087 = vadd.f32 0.0, %v3086
      %v3088 = vpop.f32.mrb[0].mxu0
      %3089 = vmatprep.mubr.f32.mxu0 0.0
      %3090 = vmatmul.mubr.f32.gmra.mrb[0].mxu0 %v2891
      %v3091 = vpop.f32.mrb[0].mxu0
      %v3092 = vpop.f32.mrb[0].mxu0
      %3093 = vmatprep.mubr.f32.mxu0 0.0
      %3094 = vmatmul.mubr.f32.gmra.mrb[0].mxu0 %v2893
      %v3095 = vpop.f32.mrb[0].mxu0
      %v3096 = vadd.f32 0.0, %v3095
      %v3097 = vpop.f32.mrb[0].mxu0
      %3098 = vmatprep.mubr.f32.mxu0 0.0
      %3099 = vmatmul.mubr.f32.gmra.mrb[0].mxu0 %v2895
      %v3100 = vpop.f32.mrb[0].mxu0
      %v3101 = vadd.f32 0.0, %v3100
      %v3102 = vpop.f32.mrb[0].mxu0
      %3103 = vmatprep.mubr.f32.mxu0 0.0
      %3104 = vmatmul.mubr.f32.gmra.mrb[0].mxu0 %v2897
      %v3105 = vpop.f32.mrb[0].mxu0
      %v3106 = vpop.f32.mrb[0].mxu0
      %3107 = vmatprep.mubr.f32.mxu0 0.0
      %3108 = vmatmul.mubr.f32.gmra.mrb[0].mxu0 %v2899
      %v3109 = vpop.f32.mrb[0].mxu0
      %v3110 = vadd.f32 0.0, %v3109
      %v3111 = vpop.f32.mrb[0].mxu0
      %3112 = vmatprep.mubr.f32.mxu0 0.0
      %3113 = vmatmul.mubr.f32.gmra.mrb[0].mxu0 %v2901
      %v3114 = vpop.f32.mrb[0].mxu0
      %v3115 = vadd.f32 0.0, %v3114
      %v3116 = vpop.f32.mrb[0].mxu0
      %3117 = vmatprep.mubr.f32.mxu0 0.0
      %3118 = vmatmul.mubr.f32.gmra.mrb[0].mxu0 %v2903
      %v3119 = vpop.f32.mrb[0].mxu0
      %v3120 = vpop.f32.mrb[0].mxu0
      %3121 = vmatprep.mubr.f32.mxu0 0.0
      %3122 = vmatmul.mubr.f32.gmra.mrb[0].mxu0 %v2905
      %v3123 = vpop.f32.mrb[0].mxu0
      %v3124 = vadd.f32 0.0, %v3123
      %v3125 = vpop.f32.mrb[0].mxu0
      %3126 = vmatprep.mubr.f32.mxu0 0.0
      %3127 = vmatmul.mubr.f32.gmra.mrb[0].mxu0 %v2907
      %v3128 = vpop.f32.mrb[0].mxu0
      %v3129 = vadd.f32 0.0, %v3128
      %v3130 = vpop.f32.mrb[0].mxu0
      %3131 = vmatprep.mubr.f32.mxu0 0.0
      %3132 = vmatmul.mubr.f32.gmra.mrb[0].mxu0 %v2909
      %v3133 = vpop.f32.mrb[0].mxu0
      %v3134 = vpop.f32.mrb[0].mxu0
      %3135 = vmatprep.mubr.f32.mxu0 0.0
      %3136 = vmatmul.mubr.f32.gmra.mrb[0].mxu0 %v2911
      %v3137 = vpop.f32.mrb[0].mxu0
      %v3138 = vadd.f32 0.0, %v3137
      %v3139 = vpop.f32.mrb[0].mxu0
      %3140 = vmatprep.mubr.f32.mxu0 0.0
      %3141 = vmatmul.mubr.f32.gmra.mrb[0].mxu0 %v2913
      %v3142 = vpop.f32.mrb[0].mxu0
      %v3143 = vadd.f32 0.0, %v3142
      %v3144 = vpop.f32.mrb[0].mxu0
      %3145 = vmatprep.mubr.f32.mxu0 0.0
      %3146 = vmatmul.mubr.f32.gmra.mrb[0].mxu0 %v2915
      %v3147 = vpop.f32.mrb[0].mxu0
      %v3148 = vpop.f32.mrb[0].mxu0
      %3149 = vmatprep.mubr.f32.mxu0 0.0
      %3150 = vmatmul.mubr.f32.gmra.mrb[0].mxu0 %v2917
      %v3151 = vpop.f32.mrb[0].mxu0
      %v3152 = vadd.f32 0.0, %v3151
      %v3153 = vpop.f32.mrb[0].mxu0
      %3154 = vmatprep.mubr.f32.mxu0 0.0
      %3155 = vmatmul.mubr.f32.gmra.mrb[0].mxu0 %v2919
      %v3156 = vpop.f32.mrb[0].mxu0
      %v3157 = vadd.f32 0.0, %v3156
      %v3158 = vpop.f32.mrb[0].mxu0
      %3159 = vmatprep.mubr.f32.mxu0 0.0
      %3160 = vmatmul.mubr.f32.gmra.mrb[0].mxu0 %v2921
      %v3161 = vpop.f32.mrb[0].mxu0
      %v3162 = vpop.f32.mrb[0].mxu0
      %3163 = vmatprep.mubr.f32.mxu0 0.0
      %3164 = vmatmul.mubr.f32.gmra.mrb[0].mxu0 %v2923
      %v3165 = vpop.f32.mrb[0].mxu0
      %v3166 = vadd.f32 0.0, %v3165
      %v3167 = vpop.f32.mrb[0].mxu0
      %3168 = vmatprep.mubr.f32.mxu0 0.0
      %3169 = vmatmul.mubr.f32.gmra.mrb[0].mxu0 %v2925
      %v3170 = vpop.f32.mrb[0].mxu0
      %v3171 = vadd.f32 0.0, %v3170
      %v3172 = vpop.f32.mrb[0].mxu0
      %3173 = vmatprep.mubr.f32.mxu0 0.0
      %3174 = vmatmul.mubr.f32.gmra.mrb[0].mxu0 %v2927
      %v3175 = vpop.f32.mrb[0].mxu0
      %v3176 = vpop.f32.mrb[0].mxu0
      %3177 = vmatprep.mubr.f32.mxu0 0.0
      %3178 = vmatmul.mubr.f32.gmra.mrb[0].mxu0 %v2929
      %v3179 = vpop.f32.mrb[0].mxu0
      %v3180 = vadd.f32 0.0, %v3179
      %v3181 = vpop.f32.mrb[0].mxu0
      %3182 = vmatprep.mubr.f32.mxu0 0.0
      %3183 = vmatmul.mubr.f32.gmra.mrb[0].mxu0 %v2931
      %v3184 = vpop.f32.mrb[0].mxu0
      %v3185 = vadd.f32 0.0, %v3184
      %v3186 = vpop.f32.mrb[0].mxu0
      %3187 = vmatprep.mubr.f32.mxu0 0.0
      %3188 = vmatmul.mubr.f32.gmra.mrb[0].mxu0 %v2933
      %v3189 = vpop.f32.mrb[0].mxu0
      %v3190 = vpop.f32.mrb[0].mxu0
      %3191 = vmatprep.mubr.f32.mxu0 0.0
      %3192 = vmatmul.mubr.f32.gmra.mrb[0].mxu0 %v2935
      %v3193 = vpop.f32.mrb[0].mxu0
      %v3194 = vadd.f32 0.0, %v3193
      %v3195 = vpop.f32.mrb[0].mxu0
      %3196 = vmatprep.mubr.f32.mxu0 0.0
      %3197 = vmatmul.mubr.f32.gmra.mrb[0].mxu0 %v2937
      %v3198 = vpop.f32.mrb[0].mxu0
      %v3199 = vadd.f32 0.0, %v3198
      %v3200 = vpop.f32.mrb[0].mxu0
      %3201 = vmatprep.mubr.f32.mxu0 0.0
      %3202 = vmatmul.mubr.f32.gmra.mrb[0].mxu0 %v2939
      %v3203 = vpop.f32.mrb[0].mxu0
      %v3204 = vpop.f32.mrb[0].mxu0
      %3205 = vmatprep.mubr.f32.mxu0 0.0
      %3206 = vmatmul.mubr.f32.gmra.mrb[0].mxu0 %v2941
      %v3207 = vpop.f32.mrb[0].mxu0
      %v3208 = vadd.f32 0.0, %v3207
      %v3209 = vpop.f32.mrb[0].mxu0
      %3210 = vmatprep.mubr.f32.mxu0 0.0
      %3211 = vmatmul.mubr.f32.gmra.mrb[0].mxu0 %v2943
      %v3212 = vpop.f32.mrb[0].mxu0
      %v3213 = vadd.f32 0.0, %v3212
      %v3214 = vpop.f32.mrb[0].mxu0
      %3215 = vmatprep.mubr.f32.mxu0 0.0
      %3216 = vmatmul.mubr.f32.gmra.mrb[0].mxu0 %v2945
      %v3217 = vpop.f32.mrb[0].mxu0
      %v3218 = vpop.f32.mrb[0].mxu0
      %3219 = vmatprep.mubr.f32.mxu0 0.0
      %3220 = vmatmul.mubr.f32.gmra.mrb[0].mxu0 %v2947
      %v3221 = vpop.f32.mrb[0].mxu0
      %v3222 = vadd.f32 0.0, %v3221
      %v3223 = vpop.f32.mrb[0].mxu0
      %3224 = vmatprep.mubr.f32.mxu0 0.0
      %3225 = vmatmul.mubr.f32.gmra.mrb[0].mxu0 %v2949
      %v3226 = vpop.f32.mrb[0].mxu0
      %v3227 = vadd.f32 0.0, %v3226
      %v3228 = vpop.f32.mrb[0].mxu0
      %3229 = vmatprep.mubr.f32.mxu0 0.0
      %3230 = vmatmul.mubr.f32.gmra.mrb[0].mxu0 %v2951
      %v3231 = vpop.f32.mrb[0].mxu0
      %v3232 = vpop.f32.mrb[0].mxu0
      %3233 = vmatprep.mubr.f32.mxu0 0.0
      %3234 = vmatmul.mubr.f32.gmra.mrb[0].mxu0 %v2953
      %v3235 = vpop.f32.mrb[0].mxu0
      %v3236 = vadd.f32 0.0, %v3235
      %v3237 = vpop.f32.mrb[0].mxu0
      %3238 = vmatprep.mubr.f32.mxu0 0.0
      %3239 = vmatmul.mubr.f32.gmra.mrb[0].mxu0 %v2955
      %v3240 = vpop.f32.mrb[0].mxu0
      %v3241 = vadd.f32 0.0, %v3240
      %v3242 = vpop.f32.mrb[0].mxu0
      %3243 = vmatprep.mubr.f32.mxu0 0.0
      %3244 = vmatmul.mubr.f32.gmra.mrb[0].mxu0 %v2957
      %v3245 = vpop.f32.mrb[0].mxu0
      %v3246 = vpop.f32.mrb[0].mxu0
      %3247 = vdwg.mxu0
      %v3248 = vadd.f32 %v2538, %v3026
      %v3249 = vadd.f32 %v2543, %v3031
      %v3250 = vadd.f32 %v2552, %v3040
      %v3251 = vadd.f32 %v2557, %v3045
      %v3252 = vadd.f32 %v2566, %v3054
      %v3253 = vadd.f32 %v2571, %v3059
      %v3254 = vadd.f32 %v2580, %v3068
      %v3255 = vadd.f32 %v2585, %v3073
      %v3256 = vadd.f32 %v2594, %v3082
      %v3257 = vadd.f32 %v2599, %v3087
      %v3258 = vadd.f32 %v2608, %v3096
      %v3259 = vadd.f32 %v2613, %v3101
      %v3260 = vadd.f32 %v2622, %v3110
      %v3261 = vadd.f32 %v2627, %v3115
      %v3262 = vadd.f32 %v2636, %v3124
      %v3263 = vadd.f32 %v2641, %v3129
      %v3264 = vadd.f32 %v2650, %v3138
      %v3265 = vadd.f32 %v2655, %v3143
      %v3266 = vadd.f32 %v2664, %v3152
      %v3267 = vadd.f32 %v2669, %v3157
      %v3268 = vadd.f32 %v2678, %v3166
      %v3269 = vadd.f32 %v2683, %v3171
      %v3270 = vadd.f32 %v2692, %v3180
      %v3271 = vadd.f32 %v2697, %v3185
      %v3272 = vadd.f32 %v2706, %v3194
      %v3273 = vadd.f32 %v2711, %v3199
      %v3274 = vadd.f32 %v2720, %v3208
      %v3275 = vadd.f32 %v2725, %v3213
      %v3276 = vadd.f32 %v2734, %v3222
      %v3277 = vadd.f32 %v2739, %v3227
      %v3278 = vadd.f32 %v2748, %v3236
      %v3279 = vadd.f32 %v2753, %v3241
      %s3280 = scalar_lea.vmem %s5, 96
      %v3281 = vld [vmem:[%s3280] sm:$0xff]
      %v3282 = vld [vmem:[%s3280 + $0x8] sm:$0xff]
      %v3283 = vld [vmem:[%s3280 + $0x10] sm:$0xff]
      %v3284 = vld [vmem:[%s3280 + $0x18] sm:$0xff]
      %v3285 = vsel %vm492, %v1827, 0
      %v3288 = vsel %vm492, %v1828, 0
      %v3291 = vsel %vm492, %v1829, 0
      %3293 = vmatprep.subr.mxu0 0.0
      %3294 = vmatpush1.msra.mxu0 %v3281
      %3295 = vmatprep.subr.mxu0 0.0
      %3296 = vmatpush1.msra.mxu0 %v3282
      %3297 = vmatprep.subr.mxu0 0.0
      %3298 = vmatpush1.msra.mxu0 %v3283
      %3299 = vmatprep.subr.mxu0 0.0
      %3300 = vmatpush1.msra.mxu0 %v3284
      %3301 = vmatprep.subr.mxu0 0.0
      %3302 = vmatpush1.msra.mxu0 0.0
      %3303 = vmatprep.subr.mxu0 0.0
      %3304 = vmatpush1.msra.mxu0 0.0
      %3305 = vmatprep.subr.mxu0 0.0
      %3306 = vmatpush1.msra.mxu0 0.0
      %3307 = vmatprep.subr.mxu0 0.0
      %3308 = vmatpush1.msra.mxu0 0.0
      %3309 = vmatprep.subr.mxu0 0.0
      %3310 = vmatpush1.msra.mxu0 0.0
      %3311 = vmatprep.subr.mxu0 0.0
      %3312 = vmatpush1.msra.mxu0 0.0
      %3313 = vmatprep.subr.mxu0 0.0
      %3314 = vmatpush1.msra.mxu0 0.0
      %3315 = vmatprep.subr.mxu0 0.0
      %3316 = vmatpush1.msra.mxu0 0.0
      %3317 = vmatprep.subr.mxu0 0.0
      %3318 = vmatpush1.msra.mxu0 0.0
      %3319 = vmatprep.subr.mxu0 0.0
      %3320 = vmatpush1.msra.mxu0 0.0
      %3321 = vmatprep.subr.mxu0 0.0
      %3322 = vmatpush1.msra.mxu0 0.0
      %3323 = vmatprep.subr.mxu0 0.0
      %3324 = vmatpush1.msra.mxu0 0.0
      %3325 = vmatprep.subr.mxu0 0.0
      %3326 = vmatpush1.msra.mxu0 0.0
      %3327 = vmatprep.subr.mxu0 0.0
      %3328 = vmatpush1.msra.mxu0 0.0
      %3329 = vmatprep.subr.mxu0 0.0
      %3330 = vmatpush1.msra.mxu0 0.0
      %3331 = vmatprep.subr.mxu0 0.0
      %3332 = vmatpush1.msra.mxu0 0.0
      %3333 = vmatprep.subr.mxu0 0.0
      %3334 = vmatpush1.msra.mxu0 0.0
      %3335 = vmatprep.subr.mxu0 0.0
      %3336 = vmatpush1.msra.mxu0 0.0
      %3337 = vmatprep.subr.mxu0 0.0
      %3338 = vmatpush1.msra.mxu0 0.0
      %3339 = vmatprep.subr.mxu0 0.0
      %3340 = vmatpush1.msra.mxu0 0.0
      %3341 = vmatprep.subr.mxu0 0.0
      %3342 = vmatpush1.msra.mxu0 0.0
      %3343 = vmatprep.subr.mxu0 0.0
      %3344 = vmatpush1.msra.mxu0 0.0
      %3345 = vmatprep.subr.mxu0 0.0
      %3346 = vmatpush1.msra.mxu0 0.0
      %3347 = vmatprep.subr.mxu0 0.0
      %3348 = vmatpush1.msra.mxu0 0.0
      %3349 = vmatprep.subr.mxu0 0.0
      %3350 = vmatpush1.msra.mxu0 0.0
      %3351 = vmatprep.subr.mxu0 0.0
      %3352 = vmatpush1.msra.mxu0 0.0
      %3353 = vmatprep.subr.mxu0 0.0
      %3354 = vmatpush1.msra.mxu0 0.0
      %3355 = vmatprep.subr.mxu0 0.0
      %3356 = vmatpush1.msra.mxu0 0.0
      %3357 = vmatprep.mubr.f32.mxu0 0.0
      %3358 = vmatmul.mubr.f32.gmra.mrb[0].mxu0 %v2381
      %v3359 = vpop.f32.mrb[0].mxu0
      %v3360 = vadd.f32 0.0, %v3359
      %v3361 = vpop.f32.mrb[0].mxu0
      %3362 = vmatprep.mubr.f32.mxu0 0.0
      %3363 = vmatmul.mubr.f32.gmra.mrb[0].mxu0 %v2383
      %v3364 = vpop.f32.mrb[0].mxu0
      %v3365 = vadd.f32 0.0, %v3364
      %v3366 = vpop.f32.mrb[0].mxu0
      %3367 = vmatprep.mubr.f32.mxu0 0.0
      %3368 = vmatmul.mubr.f32.gmra.mrb[0].mxu0 %v2385
      %v3369 = vpop.f32.mrb[0].mxu0
      %v3370 = vpop.f32.mrb[0].mxu0
      %3371 = vmatprep.mubr.f32.mxu0 0.0
      %3372 = vmatmul.mubr.f32.gmra.mrb[0].mxu0 %v2387
      %v3373 = vpop.f32.mrb[0].mxu0
      %v3374 = vadd.f32 0.0, %v3373
      %v3375 = vpop.f32.mrb[0].mxu0
      %3376 = vmatprep.mubr.f32.mxu0 0.0
      %3377 = vmatmul.mubr.f32.gmra.mrb[0].mxu0 %v2389
      %v3378 = vpop.f32.mrb[0].mxu0
      %v3379 = vadd.f32 0.0, %v3378
      %v3380 = vpop.f32.mrb[0].mxu0
      %3381 = vmatprep.mubr.f32.mxu0 0.0
      %3382 = vmatmul.mubr.f32.gmra.mrb[0].mxu0 %v2391
      %v3383 = vpop.f32.mrb[0].mxu0
      %v3384 = vpop.f32.mrb[0].mxu0
      %3385 = vmatprep.mubr.f32.mxu0 0.0
      %3386 = vmatmul.mubr.f32.gmra.mrb[0].mxu0 %v2393
      %v3387 = vpop.f32.mrb[0].mxu0
      %v3388 = vadd.f32 0.0, %v3387
      %v3389 = vpop.f32.mrb[0].mxu0
      %3390 = vmatprep.mubr.f32.mxu0 0.0
      %3391 = vmatmul.mubr.f32.gmra.mrb[0].mxu0 %v2395
      %v3392 = vpop.f32.mrb[0].mxu0
      %v3393 = vadd.f32 0.0, %v3392
      %v3394 = vpop.f32.mrb[0].mxu0
      %3395 = vmatprep.mubr.f32.mxu0 0.0
      %3396 = vmatmul.mubr.f32.gmra.mrb[0].mxu0 %v2397
      %v3397 = vpop.f32.mrb[0].mxu0
      %v3398 = vpop.f32.mrb[0].mxu0
      %3399 = vmatprep.mubr.f32.mxu0 0.0
      %3400 = vmatmul.mubr.f32.gmra.mrb[0].mxu0 %v2399
      %v3401 = vpop.f32.mrb[0].mxu0
      %v3402 = vadd.f32 0.0, %v3401
      %v3403 = vpop.f32.mrb[0].mxu0
      %3404 = vmatprep.mubr.f32.mxu0 0.0
      %3405 = vmatmul.mubr.f32.gmra.mrb[0].mxu0 %v2401
      %v3406 = vpop.f32.mrb[0].mxu0
      %v3407 = vadd.f32 0.0, %v3406
      %v3408 = vpop.f32.mrb[0].mxu0
      %3409 = vmatprep.mubr.f32.mxu0 0.0
      %3410 = vmatmul.mubr.f32.gmra.mrb[0].mxu0 %v2403
      %v3411 = vpop.f32.mrb[0].mxu0
      %v3412 = vpop.f32.mrb[0].mxu0
      %3413 = vmatprep.mubr.f32.mxu0 0.0
      %3414 = vmatmul.mubr.f32.gmra.mrb[0].mxu0 %v2405
      %v3415 = vpop.f32.mrb[0].mxu0
      %v3416 = vadd.f32 0.0, %v3415
      %v3417 = vpop.f32.mrb[0].mxu0
      %3418 = vmatprep.mubr.f32.mxu0 0.0
      %3419 = vmatmul.mubr.f32.gmra.mrb[0].mxu0 %v2407
      %v3420 = vpop.f32.mrb[0].mxu0
      %v3421 = vadd.f32 0.0, %v3420
      %v3422 = vpop.f32.mrb[0].mxu0
      %3423 = vmatprep.mubr.f32.mxu0 0.0
      %3424 = vmatmul.mubr.f32.gmra.mrb[0].mxu0 %v2409
      %v3425 = vpop.f32.mrb[0].mxu0
      %v3426 = vpop.f32.mrb[0].mxu0
      %3427 = vmatprep.mubr.f32.mxu0 0.0
      %3428 = vmatmul.mubr.f32.gmra.mrb[0].mxu0 %v2411
      %v3429 = vpop.f32.mrb[0].mxu0
      %v3430 = vadd.f32 0.0, %v3429
      %v3431 = vpop.f32.mrb[0].mxu0
      %3432 = vmatprep.mubr.f32.mxu0 0.0
      %3433 = vmatmul.mubr.f32.gmra.mrb[0].mxu0 %v2413
      %v3434 = vpop.f32.mrb[0].mxu0
      %v3435 = vadd.f32 0.0, %v3434
      %v3436 = vpop.f32.mrb[0].mxu0
      %3437 = vmatprep.mubr.f32.mxu0 0.0
      %3438 = vmatmul.mubr.f32.gmra.mrb[0].mxu0 %v2415
      %v3439 = vpop.f32.mrb[0].mxu0
      %v3440 = vpop.f32.mrb[0].mxu0
      %3441 = vmatprep.mubr.f32.mxu0 0.0
      %3442 = vmatmul.mubr.f32.gmra.mrb[0].mxu0 %v2417
      %v3443 = vpop.f32.mrb[0].mxu0
      %v3444 = vadd.f32 0.0, %v3443
      %v3445 = vpop.f32.mrb[0].mxu0
      %3446 = vmatprep.mubr.f32.mxu0 0.0
      %3447 = vmatmul.mubr.f32.gmra.mrb[0].mxu0 %v2419
      %v3448 = vpop.f32.mrb[0].mxu0
      %v3449 = vadd.f32 0.0, %v3448
      %v3450 = vpop.f32.mrb[0].mxu0
      %3451 = vmatprep.mubr.f32.mxu0 0.0
      %3452 = vmatmul.mubr.f32.gmra.mrb[0].mxu0 %v2421
      %v3453 = vpop.f32.mrb[0].mxu0
      %v3454 = vpop.f32.mrb[0].mxu0
      %3455 = vmatprep.mubr.f32.mxu0 0.0
      %3456 = vmatmul.mubr.f32.gmra.mrb[0].mxu0 %v2423
      %v3457 = vpop.f32.mrb[0].mxu0
      %v3458 = vadd.f32 0.0, %v3457
      %v3459 = vpop.f32.mrb[0].mxu0
      %3460 = vmatprep.mubr.f32.mxu0 0.0
      %3461 = vmatmul.mubr.f32.gmra.mrb[0].mxu0 %v2425
      %v3462 = vpop.f32.mrb[0].mxu0
      %v3463 = vadd.f32 0.0, %v3462
      %v3464 = vpop.f32.mrb[0].mxu0
      %3465 = vmatprep.mubr.f32.mxu0 0.0
      %3466 = vmatmul.mubr.f32.gmra.mrb[0].mxu0 %v2427
      %v3467 = vpop.f32.mrb[0].mxu0
      %v3468 = vpop.f32.mrb[0].mxu0
      %3469 = vmatprep.mubr.f32.mxu0 0.0
      %3470 = vmatmul.mubr.f32.gmra.mrb[0].mxu0 %v2429
      %v3471 = vpop.f32.mrb[0].mxu0
      %v3472 = vadd.f32 0.0, %v3471
      %v3473 = vpop.f32.mrb[0].mxu0
      %3474 = vmatprep.mubr.f32.mxu0 0.0
      %3475 = vmatmul.mubr.f32.gmra.mrb[0].mxu0 %v2431
      %v3476 = vpop.f32.mrb[0].mxu0
      %v3477 = vadd.f32 0.0, %v3476
      %v3478 = vpop.f32.mrb[0].mxu0
      %3479 = vmatprep.mubr.f32.mxu0 0.0
      %3480 = vmatmul.mubr.f32.gmra.mrb[0].mxu0 %v2433
      %v3481 = vpop.f32.mrb[0].mxu0
      %v3482 = vpop.f32.mrb[0].mxu0
      %3483 = vmatprep.mubr.f32.mxu0 0.0
      %3484 = vmatmul.mubr.f32.gmra.mrb[0].mxu0 %v2435
      %v3485 = vpop.f32.mrb[0].mxu0
      %v3486 = vadd.f32 0.0, %v3485
      %v3487 = vpop.f32.mrb[0].mxu0
      %3488 = vmatprep.mubr.f32.mxu0 0.0
      %3489 = vmatmul.mubr.f32.gmra.mrb[0].mxu0 %v2437
      %v3490 = vpop.f32.mrb[0].mxu0
      %v3491 = vadd.f32 0.0, %v3490
      %v3492 = vpop.f32.mrb[0].mxu0
      %3493 = vmatprep.mubr.f32.mxu0 0.0
      %3494 = vmatmul.mubr.f32.gmra.mrb[0].mxu0 %v2439
      %v3495 = vpop.f32.mrb[0].mxu0
      %v3496 = vpop.f32.mrb[0].mxu0
      %3497 = vmatprep.mubr.f32.mxu0 0.0
      %3498 = vmatmul.mubr.f32.gmra.mrb[0].mxu0 %v2441
      %v3499 = vpop.f32.mrb[0].mxu0
      %v3500 = vadd.f32 0.0, %v3499
      %v3501 = vpop.f32.mrb[0].mxu0
      %3502 = vmatprep.mubr.f32.mxu0 0.0
      %3503 = vmatmul.mubr.f32.gmra.mrb[0].mxu0 %v2443
      %v3504 = vpop.f32.mrb[0].mxu0
      %v3505 = vadd.f32 0.0, %v3504
      %v3506 = vpop.f32.mrb[0].mxu0
      %3507 = vmatprep.mubr.f32.mxu0 0.0
      %3508 = vmatmul.mubr.f32.gmra.mrb[0].mxu0 %v2445
      %v3509 = vpop.f32.mrb[0].mxu0
      %v3510 = vpop.f32.mrb[0].mxu0
      %3511 = vmatprep.mubr.f32.mxu0 0.0
      %3512 = vmatmul.mubr.f32.gmra.mrb[0].mxu0 %v2447
      %v3513 = vpop.f32.mrb[0].mxu0
      %v3514 = vadd.f32 0.0, %v3513
      %v3515 = vpop.f32.mrb[0].mxu0
      %3516 = vmatprep.mubr.f32.mxu0 0.0
      %3517 = vmatmul.mubr.f32.gmra.mrb[0].mxu0 %v2449
      %v3518 = vpop.f32.mrb[0].mxu0
      %v3519 = vadd.f32 0.0, %v3518
      %v3520 = vpop.f32.mrb[0].mxu0
      %3521 = vmatprep.mubr.f32.mxu0 0.0
      %3522 = vmatmul.mubr.f32.gmra.mrb[0].mxu0 %v2451
      %v3523 = vpop.f32.mrb[0].mxu0
      %v3524 = vpop.f32.mrb[0].mxu0
      %3525 = vmatprep.mubr.f32.mxu0 0.0
      %3526 = vmatmul.mubr.f32.gmra.mrb[0].mxu0 %v2453
      %v3527 = vpop.f32.mrb[0].mxu0
      %v3528 = vadd.f32 0.0, %v3527
      %v3529 = vpop.f32.mrb[0].mxu0
      %3530 = vmatprep.mubr.f32.mxu0 0.0
      %3531 = vmatmul.mubr.f32.gmra.mrb[0].mxu0 %v2455
      %v3532 = vpop.f32.mrb[0].mxu0
      %v3533 = vadd.f32 0.0, %v3532
      %v3534 = vpop.f32.mrb[0].mxu0
      %3535 = vmatprep.mubr.f32.mxu0 0.0
      %3536 = vmatmul.mubr.f32.gmra.mrb[0].mxu0 %v2457
      %v3537 = vpop.f32.mrb[0].mxu0
      %v3538 = vpop.f32.mrb[0].mxu0
      %3539 = vmatprep.mubr.f32.mxu0 0.0
      %3540 = vmatmul.mubr.f32.gmra.mrb[0].mxu0 %v2459
      %v3541 = vpop.f32.mrb[0].mxu0
      %v3542 = vadd.f32 0.0, %v3541
      %v3543 = vpop.f32.mrb[0].mxu0
      %3544 = vmatprep.mubr.f32.mxu0 0.0
      %3545 = vmatmul.mubr.f32.gmra.mrb[0].mxu0 %v2461
      %v3546 = vpop.f32.mrb[0].mxu0
      %v3547 = vadd.f32 0.0, %v3546
      %v3548 = vpop.f32.mrb[0].mxu0
      %3549 = vmatprep.mubr.f32.mxu0 0.0
      %3550 = vmatmul.mubr.f32.gmra.mrb[0].mxu0 %v2463
      %v3551 = vpop.f32.mrb[0].mxu0
      %v3552 = vpop.f32.mrb[0].mxu0
      %3553 = vmatprep.mubr.f32.mxu0 0.0
      %3554 = vmatmul.mubr.f32.gmra.mrb[0].mxu0 %v2465
      %v3555 = vpop.f32.mrb[0].mxu0
      %v3556 = vadd.f32 0.0, %v3555
      %v3557 = vpop.f32.mrb[0].mxu0
      %3558 = vmatprep.mubr.f32.mxu0 0.0
      %3559 = vmatmul.mubr.f32.gmra.mrb[0].mxu0 %v2467
      %v3560 = vpop.f32.mrb[0].mxu0
      %v3561 = vadd.f32 0.0, %v3560
      %v3562 = vpop.f32.mrb[0].mxu0
      %3563 = vmatprep.mubr.f32.mxu0 0.0
      %3564 = vmatmul.mubr.f32.gmra.mrb[0].mxu0 %v2469
      %v3565 = vpop.f32.mrb[0].mxu0
      %v3566 = vpop.f32.mrb[0].mxu0
      %3567 = vmatprep.mubr.f32.mxu0 0.0
      %3568 = vmatmul.mubr.f32.gmra.mrb[0].mxu0 %v3285
      %v3569 = vpop.f32.mrb[0].mxu0
      %v3570 = vadd.f32 0.0, %v3569
      %v3571 = vpop.f32.mrb[0].mxu0
      %3572 = vmatprep.mubr.f32.mxu0 0.0
      %3573 = vmatmul.mubr.f32.gmra.mrb[0].mxu0 %v3288
      %v3574 = vpop.f32.mrb[0].mxu0
      %v3575 = vadd.f32 0.0, %v3574
      %v3576 = vpop.f32.mrb[0].mxu0
      %3577 = vmatprep.mubr.f32.mxu0 0.0
      %3578 = vmatmul.mubr.f32.gmra.mrb[0].mxu0 %v3291
      %v3579 = vpop.f32.mrb[0].mxu0
      %v3580 = vpop.f32.mrb[0].mxu0
      %3581 = vdwg.mxu0
      %v3582 = vadd.f32 %v3248, %v3360
      %v3583 = vadd.f32 %v3249, %v3365
      %v3584 = vadd.f32 %v3250, %v3374
      %v3585 = vadd.f32 %v3251, %v3379
      %v3586 = vadd.f32 %v3252, %v3388
      %v3587 = vadd.f32 %v3253, %v3393
      %v3588 = vadd.f32 %v3254, %v3402
      %v3589 = vadd.f32 %v3255, %v3407
      %v3590 = vadd.f32 %v3256, %v3416
      %v3591 = vadd.f32 %v3257, %v3421
      %v3592 = vadd.f32 %v3258, %v3430
      %v3593 = vadd.f32 %v3259, %v3435
      %v3594 = vadd.f32 %v3260, %v3444
      %v3595 = vadd.f32 %v3261, %v3449
      %v3596 = vadd.f32 %v3262, %v3458
      %v3597 = vadd.f32 %v3263, %v3463
      %v3598 = vadd.f32 %v3264, %v3472
      %v3599 = vadd.f32 %v3265, %v3477
      %v3600 = vadd.f32 %v3266, %v3486
      %v3601 = vadd.f32 %v3267, %v3491
      %v3602 = vadd.f32 %v3268, %v3500
      %v3603 = vadd.f32 %v3269, %v3505
      %v3604 = vadd.f32 %v3270, %v3514
      %v3605 = vadd.f32 %v3271, %v3519
      %v3606 = vadd.f32 %v3272, %v3528
      %v3607 = vadd.f32 %v3273, %v3533
      %v3608 = vadd.f32 %v3274, %v3542
      %v3609 = vadd.f32 %v3275, %v3547
      %v3610 = vadd.f32 %v3276, %v3556
      %v3611 = vadd.f32 %v3277, %v3561
      %v3612 = vadd.f32 %v3278, %v3570
      %v3613 = vadd.f32 %v3279, %v3575
      %s3614 = scalar_lea.vmem %s5, 128
      %v3615 = vld [vmem:[%s3614] sm:$0xff]
      %v3616 = vld [vmem:[%s3614 + $0x8] sm:$0xff]
      %v3617 = vld [vmem:[%s3614 + $0x10] sm:$0xff]
      %v3618 = vld [vmem:[%s3614 + $0x18] sm:$0xff]
      %v3620 = vrot.slane %v1828, 1
      %v3621 = vsel %vm1892, %v1988, %v3620
      %v3622 = vrot.slane %v1829, 1
      %v3623 = vsel %vm1892, %v3620, %v3622
      %v3624 = vrot.slane %v1830, 1
      %v3625 = vsel %vm1892, %v3622, %v3624
      %v3626 = vsel %vm492, %v3621, 0
      %v3628 = vsel %vm492, %v3623, 0
      %v3630 = vsel %vm492, %v3625, 0
      %3632 = vmatprep.subr.mxu0 0.0
      %3633 = vmatpush1.msra.mxu0 %v3615
      %3634 = vmatprep.subr.mxu0 0.0
      %3635 = vmatpush1.msra.mxu0 %v3616
      %3636 = vmatprep.subr.mxu0 0.0
      %3637 = vmatpush1.msra.mxu0 %v3617
      %3638 = vmatprep.subr.mxu0 0.0
      %3639 = vmatpush1.msra.mxu0 %v3618
      %3640 = vmatprep.subr.mxu0 0.0
      %3641 = vmatpush1.msra.mxu0 0.0
      %3642 = vmatprep.subr.mxu0 0.0
      %3643 = vmatpush1.msra.mxu0 0.0
      %3644 = vmatprep.subr.mxu0 0.0
      %3645 = vmatpush1.msra.mxu0 0.0
      %3646 = vmatprep.subr.mxu0 0.0
      %3647 = vmatpush1.msra.mxu0 0.0
      %3648 = vmatprep.subr.mxu0 0.0
      %3649 = vmatpush1.msra.mxu0 0.0
      %3650 = vmatprep.subr.mxu0 0.0
      %3651 = vmatpush1.msra.mxu0 0.0
      %3652 = vmatprep.subr.mxu0 0.0
      %3653 = vmatpush1.msra.mxu0 0.0
      %3654 = vmatprep.subr.mxu0 0.0
      %3655 = vmatpush1.msra.mxu0 0.0
      %3656 = vmatprep.subr.mxu0 0.0
      %3657 = vmatpush1.msra.mxu0 0.0
      %3658 = vmatprep.subr.mxu0 0.0
      %3659 = vmatpush1.msra.mxu0 0.0
      %3660 = vmatprep.subr.mxu0 0.0
      %3661 = vmatpush1.msra.mxu0 0.0
      %3662 = vmatprep.subr.mxu0 0.0
      %3663 = vmatpush1.msra.mxu0 0.0
      %3664 = vmatprep.subr.mxu0 0.0
      %3665 = vmatpush1.msra.mxu0 0.0
      %3666 = vmatprep.subr.mxu0 0.0
      %3667 = vmatpush1.msra.mxu0 0.0
      %3668 = vmatprep.subr.mxu0 0.0
      %3669 = vmatpush1.msra.mxu0 0.0
      %3670 = vmatprep.subr.mxu0 0.0
      %3671 = vmatpush1.msra.mxu0 0.0
      %3672 = vmatprep.subr.mxu0 0.0
      %3673 = vmatpush1.msra.mxu0 0.0
      %3674 = vmatprep.subr.mxu0 0.0
      %3675 = vmatpush1.msra.mxu0 0.0
      %3676 = vmatprep.subr.mxu0 0.0
      %3677 = vmatpush1.msra.mxu0 0.0
      %3678 = vmatprep.subr.mxu0 0.0
      %3679 = vmatpush1.msra.mxu0 0.0
      %3680 = vmatprep.subr.mxu0 0.0
      %3681 = vmatpush1.msra.mxu0 0.0
      %3682 = vmatprep.subr.mxu0 0.0
      %3683 = vmatpush1.msra.mxu0 0.0
      %3684 = vmatprep.subr.mxu0 0.0
      %3685 = vmatpush1.msra.mxu0 0.0
      %3686 = vmatprep.subr.mxu0 0.0
      %3687 = vmatpush1.msra.mxu0 0.0
      %3688 = vmatprep.subr.mxu0 0.0
      %3689 = vmatpush1.msra.mxu0 0.0
      %3690 = vmatprep.subr.mxu0 0.0
      %3691 = vmatpush1.msra.mxu0 0.0
      %3692 = vmatprep.subr.mxu0 0.0
      %3693 = vmatpush1.msra.mxu0 0.0
      %3694 = vmatprep.subr.mxu0 0.0
      %3695 = vmatpush1.msra.mxu0 0.0
      %3696 = vmatprep.mubr.f32.mxu0 0.0
      %3697 = vmatmul.mubr.f32.gmra.mrb[0].mxu0 %v1996
      %v3698 = vpop.f32.mrb[0].mxu0
      %v3699 = vadd.f32 0.0, %v3698
      %v3700 = vpop.f32.mrb[0].mxu0
      %3701 = vmatprep.mubr.f32.mxu0 0.0
      %3702 = vmatmul.mubr.f32.gmra.mrb[0].mxu0 %v1998
      %v3703 = vpop.f32.mrb[0].mxu0
      %v3704 = vadd.f32 0.0, %v3703
      %v3705 = vpop.f32.mrb[0].mxu0
      %3706 = vmatprep.mubr.f32.mxu0 0.0
      %3707 = vmatmul.mubr.f32.gmra.mrb[0].mxu0 %v2000
      %v3708 = vpop.f32.mrb[0].mxu0
      %v3709 = vpop.f32.mrb[0].mxu0
      %3710 = vmatprep.mubr.f32.mxu0 0.0
      %3711 = vmatmul.mubr.f32.gmra.mrb[0].mxu0 %v2002
      %v3712 = vpop.f32.mrb[0].mxu0
      %v3713 = vadd.f32 0.0, %v3712
      %v3714 = vpop.f32.mrb[0].mxu0
      %3715 = vmatprep.mubr.f32.mxu0 0.0
      %3716 = vmatmul.mubr.f32.gmra.mrb[0].mxu0 %v2004
      %v3717 = vpop.f32.mrb[0].mxu0
      %v3718 = vadd.f32 0.0, %v3717
      %v3719 = vpop.f32.mrb[0].mxu0
      %3720 = vmatprep.mubr.f32.mxu0 0.0
      %3721 = vmatmul.mubr.f32.gmra.mrb[0].mxu0 %v2006
      %v3722 = vpop.f32.mrb[0].mxu0
      %v3723 = vpop.f32.mrb[0].mxu0
      %3724 = vmatprep.mubr.f32.mxu0 0.0
      %3725 = vmatmul.mubr.f32.gmra.mrb[0].mxu0 %v2008
      %v3726 = vpop.f32.mrb[0].mxu0
      %v3727 = vadd.f32 0.0, %v3726
      %v3728 = vpop.f32.mrb[0].mxu0
      %3729 = vmatprep.mubr.f32.mxu0 0.0
      %3730 = vmatmul.mubr.f32.gmra.mrb[0].mxu0 %v2010
      %v3731 = vpop.f32.mrb[0].mxu0
      %v3732 = vadd.f32 0.0, %v3731
      %v3733 = vpop.f32.mrb[0].mxu0
      %3734 = vmatprep.mubr.f32.mxu0 0.0
      %3735 = vmatmul.mubr.f32.gmra.mrb[0].mxu0 %v2012
      %v3736 = vpop.f32.mrb[0].mxu0
      %v3737 = vpop.f32.mrb[0].mxu0
      %3738 = vmatprep.mubr.f32.mxu0 0.0
      %3739 = vmatmul.mubr.f32.gmra.mrb[0].mxu0 %v2014
      %v3740 = vpop.f32.mrb[0].mxu0
      %v3741 = vadd.f32 0.0, %v3740
      %v3742 = vpop.f32.mrb[0].mxu0
      %3743 = vmatprep.mubr.f32.mxu0 0.0
      %3744 = vmatmul.mubr.f32.gmra.mrb[0].mxu0 %v2016
      %v3745 = vpop.f32.mrb[0].mxu0
      %v3746 = vadd.f32 0.0, %v3745
      %v3747 = vpop.f32.mrb[0].mxu0
      %3748 = vmatprep.mubr.f32.mxu0 0.0
      %3749 = vmatmul.mubr.f32.gmra.mrb[0].mxu0 %v2018
      %v3750 = vpop.f32.mrb[0].mxu0
      %v3751 = vpop.f32.mrb[0].mxu0
      %3752 = vmatprep.mubr.f32.mxu0 0.0
      %3753 = vmatmul.mubr.f32.gmra.mrb[0].mxu0 %v2020
      %v3754 = vpop.f32.mrb[0].mxu0
      %v3755 = vadd.f32 0.0, %v3754
      %v3756 = vpop.f32.mrb[0].mxu0
      %3757 = vmatprep.mubr.f32.mxu0 0.0
      %3758 = vmatmul.mubr.f32.gmra.mrb[0].mxu0 %v2022
      %v3759 = vpop.f32.mrb[0].mxu0
      %v3760 = vadd.f32 0.0, %v3759
      %v3761 = vpop.f32.mrb[0].mxu0
      %3762 = vmatprep.mubr.f32.mxu0 0.0
      %3763 = vmatmul.mubr.f32.gmra.mrb[0].mxu0 %v2024
      %v3764 = vpop.f32.mrb[0].mxu0
      %v3765 = vpop.f32.mrb[0].mxu0
      %3766 = vmatprep.mubr.f32.mxu0 0.0
      %3767 = vmatmul.mubr.f32.gmra.mrb[0].mxu0 %v2026
      %v3768 = vpop.f32.mrb[0].mxu0
      %v3769 = vadd.f32 0.0, %v3768
      %v3770 = vpop.f32.mrb[0].mxu0
      %3771 = vmatprep.mubr.f32.mxu0 0.0
      %3772 = vmatmul.mubr.f32.gmra.mrb[0].mxu0 %v2028
      %v3773 = vpop.f32.mrb[0].mxu0
      %v3774 = vadd.f32 0.0, %v3773
      %v3775 = vpop.f32.mrb[0].mxu0
      %3776 = vmatprep.mubr.f32.mxu0 0.0
      %3777 = vmatmul.mubr.f32.gmra.mrb[0].mxu0 %v2030
      %v3778 = vpop.f32.mrb[0].mxu0
      %v3779 = vpop.f32.mrb[0].mxu0
      %3780 = vmatprep.mubr.f32.mxu0 0.0
      %3781 = vmatmul.mubr.f32.gmra.mrb[0].mxu0 %v2032
      %v3782 = vpop.f32.mrb[0].mxu0
      %v3783 = vadd.f32 0.0, %v3782
      %v3784 = vpop.f32.mrb[0].mxu0
      %3785 = vmatprep.mubr.f32.mxu0 0.0
      %3786 = vmatmul.mubr.f32.gmra.mrb[0].mxu0 %v2034
      %v3787 = vpop.f32.mrb[0].mxu0
      %v3788 = vadd.f32 0.0, %v3787
      %v3789 = vpop.f32.mrb[0].mxu0
      %3790 = vmatprep.mubr.f32.mxu0 0.0
      %3791 = vmatmul.mubr.f32.gmra.mrb[0].mxu0 %v2036
      %v3792 = vpop.f32.mrb[0].mxu0
      %v3793 = vpop.f32.mrb[0].mxu0
      %3794 = vmatprep.mubr.f32.mxu0 0.0
      %3795 = vmatmul.mubr.f32.gmra.mrb[0].mxu0 %v2038
      %v3796 = vpop.f32.mrb[0].mxu0
      %v3797 = vadd.f32 0.0, %v3796
      %v3798 = vpop.f32.mrb[0].mxu0
      %3799 = vmatprep.mubr.f32.mxu0 0.0
      %3800 = vmatmul.mubr.f32.gmra.mrb[0].mxu0 %v2040
      %v3801 = vpop.f32.mrb[0].mxu0
      %v3802 = vadd.f32 0.0, %v3801
      %v3803 = vpop.f32.mrb[0].mxu0
      %3804 = vmatprep.mubr.f32.mxu0 0.0
      %3805 = vmatmul.mubr.f32.gmra.mrb[0].mxu0 %v2042
      %v3806 = vpop.f32.mrb[0].mxu0
      %v3807 = vpop.f32.mrb[0].mxu0
      %3808 = vmatprep.mubr.f32.mxu0 0.0
      %3809 = vmatmul.mubr.f32.gmra.mrb[0].mxu0 %v2044
      %v3810 = vpop.f32.mrb[0].mxu0
      %v3811 = vadd.f32 0.0, %v3810
      %v3812 = vpop.f32.mrb[0].mxu0
      %3813 = vmatprep.mubr.f32.mxu0 0.0
      %3814 = vmatmul.mubr.f32.gmra.mrb[0].mxu0 %v2046
      %v3815 = vpop.f32.mrb[0].mxu0
      %v3816 = vadd.f32 0.0, %v3815
      %v3817 = vpop.f32.mrb[0].mxu0
      %3818 = vmatprep.mubr.f32.mxu0 0.0
      %3819 = vmatmul.mubr.f32.gmra.mrb[0].mxu0 %v2048
      %v3820 = vpop.f32.mrb[0].mxu0
      %v3821 = vpop.f32.mrb[0].mxu0
      %3822 = vmatprep.mubr.f32.mxu0 0.0
      %3823 = vmatmul.mubr.f32.gmra.mrb[0].mxu0 %v2050
      %v3824 = vpop.f32.mrb[0].mxu0
      %v3825 = vadd.f32 0.0, %v3824
      %v3826 = vpop.f32.mrb[0].mxu0
      %3827 = vmatprep.mubr.f32.mxu0 0.0
      %3828 = vmatmul.mubr.f32.gmra.mrb[0].mxu0 %v2052
      %v3829 = vpop.f32.mrb[0].mxu0
      %v3830 = vadd.f32 0.0, %v3829
      %v3831 = vpop.f32.mrb[0].mxu0
      %3832 = vmatprep.mubr.f32.mxu0 0.0
      %3833 = vmatmul.mubr.f32.gmra.mrb[0].mxu0 %v2054
      %v3834 = vpop.f32.mrb[0].mxu0
      %v3835 = vpop.f32.mrb[0].mxu0
      %3836 = vmatprep.mubr.f32.mxu0 0.0
      %3837 = vmatmul.mubr.f32.gmra.mrb[0].mxu0 %v2056
      %v3838 = vpop.f32.mrb[0].mxu0
      %v3839 = vadd.f32 0.0, %v3838
      %v3840 = vpop.f32.mrb[0].mxu0
      %3841 = vmatprep.mubr.f32.mxu0 0.0
      %3842 = vmatmul.mubr.f32.gmra.mrb[0].mxu0 %v2058
      %v3843 = vpop.f32.mrb[0].mxu0
      %v3844 = vadd.f32 0.0, %v3843
      %v3845 = vpop.f32.mrb[0].mxu0
      %3846 = vmatprep.mubr.f32.mxu0 0.0
      %3847 = vmatmul.mubr.f32.gmra.mrb[0].mxu0 %v2060
      %v3848 = vpop.f32.mrb[0].mxu0
      %v3849 = vpop.f32.mrb[0].mxu0
      %3850 = vmatprep.mubr.f32.mxu0 0.0
      %3851 = vmatmul.mubr.f32.gmra.mrb[0].mxu0 %v2062
      %v3852 = vpop.f32.mrb[0].mxu0
      %v3853 = vadd.f32 0.0, %v3852
      %v3854 = vpop.f32.mrb[0].mxu0
      %3855 = vmatprep.mubr.f32.mxu0 0.0
      %3856 = vmatmul.mubr.f32.gmra.mrb[0].mxu0 %v2064
      %v3857 = vpop.f32.mrb[0].mxu0
      %v3858 = vadd.f32 0.0, %v3857
      %v3859 = vpop.f32.mrb[0].mxu0
      %3860 = vmatprep.mubr.f32.mxu0 0.0
      %3861 = vmatmul.mubr.f32.gmra.mrb[0].mxu0 %v2066
      %v3862 = vpop.f32.mrb[0].mxu0
      %v3863 = vpop.f32.mrb[0].mxu0
      %3864 = vmatprep.mubr.f32.mxu0 0.0
      %3865 = vmatmul.mubr.f32.gmra.mrb[0].mxu0 %v2068
      %v3866 = vpop.f32.mrb[0].mxu0
      %v3867 = vadd.f32 0.0, %v3866
      %v3868 = vpop.f32.mrb[0].mxu0
      %3869 = vmatprep.mubr.f32.mxu0 0.0
      %3870 = vmatmul.mubr.f32.gmra.mrb[0].mxu0 %v2070
      %v3871 = vpop.f32.mrb[0].mxu0
      %v3872 = vadd.f32 0.0, %v3871
      %v3873 = vpop.f32.mrb[0].mxu0
      %3874 = vmatprep.mubr.f32.mxu0 0.0
      %3875 = vmatmul.mubr.f32.gmra.mrb[0].mxu0 %v2072
      %v3876 = vpop.f32.mrb[0].mxu0
      %v3877 = vpop.f32.mrb[0].mxu0
      %3878 = vmatprep.mubr.f32.mxu0 0.0
      %3879 = vmatmul.mubr.f32.gmra.mrb[0].mxu0 %v2074
      %v3880 = vpop.f32.mrb[0].mxu0
      %v3881 = vadd.f32 0.0, %v3880
      %v3882 = vpop.f32.mrb[0].mxu0
      %3883 = vmatprep.mubr.f32.mxu0 0.0
      %3884 = vmatmul.mubr.f32.gmra.mrb[0].mxu0 %v2076
      %v3885 = vpop.f32.mrb[0].mxu0
      %v3886 = vadd.f32 0.0, %v3885
      %v3887 = vpop.f32.mrb[0].mxu0
      %3888 = vmatprep.mubr.f32.mxu0 0.0
      %3889 = vmatmul.mubr.f32.gmra.mrb[0].mxu0 %v2078
      %v3890 = vpop.f32.mrb[0].mxu0
      %v3891 = vpop.f32.mrb[0].mxu0
      %3892 = vmatprep.mubr.f32.mxu0 0.0
      %3893 = vmatmul.mubr.f32.gmra.mrb[0].mxu0 %v2080
      %v3894 = vpop.f32.mrb[0].mxu0
      %v3895 = vadd.f32 0.0, %v3894
      %v3896 = vpop.f32.mrb[0].mxu0
      %3897 = vmatprep.mubr.f32.mxu0 0.0
      %3898 = vmatmul.mubr.f32.gmra.mrb[0].mxu0 %v2082
      %v3899 = vpop.f32.mrb[0].mxu0
      %v3900 = vadd.f32 0.0, %v3899
      %v3901 = vpop.f32.mrb[0].mxu0
      %3902 = vmatprep.mubr.f32.mxu0 0.0
      %3903 = vmatmul.mubr.f32.gmra.mrb[0].mxu0 %v2084
      %v3904 = vpop.f32.mrb[0].mxu0
      %v3905 = vpop.f32.mrb[0].mxu0
      %3906 = vmatprep.mubr.f32.mxu0 0.0
      %3907 = vmatmul.mubr.f32.gmra.mrb[0].mxu0 %v3626
      %v3908 = vpop.f32.mrb[0].mxu0
      %v3909 = vadd.f32 0.0, %v3908
      %v3910 = vpop.f32.mrb[0].mxu0
      %3911 = vmatprep.mubr.f32.mxu0 0.0
      %3912 = vmatmul.mubr.f32.gmra.mrb[0].mxu0 %v3628
      %v3913 = vpop.f32.mrb[0].mxu0
      %v3914 = vadd.f32 0.0, %v3913
      %v3915 = vpop.f32.mrb[0].mxu0
      %3916 = vmatprep.mubr.f32.mxu0 0.0
      %3917 = vmatmul.mubr.f32.gmra.mrb[0].mxu0 %v3630
      %v3918 = vpop.f32.mrb[0].mxu0
      %v3919 = vpop.f32.mrb[0].mxu0
      %3920 = vdwg.mxu0
      %v3921 = vadd.f32 %v3582, %v3699
      %v3922 = vadd.f32 %v3583, %v3704
      %v3923 = vadd.f32 %v3584, %v3713
      %v3924 = vadd.f32 %v3585, %v3718
      %v3925 = vadd.f32 %v3586, %v3727
      %v3926 = vadd.f32 %v3587, %v3732
      %v3927 = vadd.f32 %v3588, %v3741
      %v3928 = vadd.f32 %v3589, %v3746
      %v3929 = vadd.f32 %v3590, %v3755
      %v3930 = vadd.f32 %v3591, %v3760
      %v3931 = vadd.f32 %v3592, %v3769
      %v3932 = vadd.f32 %v3593, %v3774
      %v3933 = vadd.f32 %v3594, %v3783
      %v3934 = vadd.f32 %v3595, %v3788
      %v3935 = vadd.f32 %v3596, %v3797
      %v3936 = vadd.f32 %v3597, %v3802
      %v3937 = vadd.f32 %v3598, %v3811
      %v3938 = vadd.f32 %v3599, %v3816
      %v3939 = vadd.f32 %v3600, %v3825
      %v3940 = vadd.f32 %v3601, %v3830
      %v3941 = vadd.f32 %v3602, %v3839
      %v3942 = vadd.f32 %v3603, %v3844
      %v3943 = vadd.f32 %v3604, %v3853
      %v3944 = vadd.f32 %v3605, %v3858
      %v3945 = vadd.f32 %v3606, %v3867
      %v3946 = vadd.f32 %v3607, %v3872
      %v3947 = vadd.f32 %v3608, %v3881
      %v3948 = vadd.f32 %v3609, %v3886
      %v3949 = vadd.f32 %v3610, %v3895
      %v3950 = vadd.f32 %v3611, %v3900
      %v3951 = vadd.f32 %v3612, %v3909
      %v3952 = vadd.f32 %v3613, %v3914
      %s3953 = scalar_lea.vmem %s5, 160
      %v3954 = vld [vmem:[%s3953] sm:$0xff]
      %v3955 = vld [vmem:[%s3953 + $0x8] sm:$0xff]
      %v3956 = vld [vmem:[%s3953 + $0x10] sm:$0xff]
      %v3957 = vld [vmem:[%s3953 + $0x18] sm:$0xff]
      %v3958 = vrot.slane %v1828, 2
      %v3959 = vsel %vm2765, %v2861, %v3958
      %v3960 = vrot.slane %v1829, 2
      %v3961 = vsel %vm2765, %v3958, %v3960
      %v3962 = vrot.slane %v1830, 2
      %v3963 = vsel %vm2765, %v3960, %v3962
      %v3964 = vsel %vm492, %v3959, 0
      %v3966 = vsel %vm492, %v3961, 0
      %v3968 = vsel %vm492, %v3963, 0
      %3970 = vmatprep.subr.mxu0 0.0
      %3971 = vmatpush1.msra.mxu0 %v3954
      %3972 = vmatprep.subr.mxu0 0.0
      %3973 = vmatpush1.msra.mxu0 %v3955
      %3974 = vmatprep.subr.mxu0 0.0
      %3975 = vmatpush1.msra.mxu0 %v3956
      %3976 = vmatprep.subr.mxu0 0.0
      %3977 = vmatpush1.msra.mxu0 %v3957
      %3978 = vmatprep.subr.mxu0 0.0
      %3979 = vmatpush1.msra.mxu0 0.0
      %3980 = vmatprep.subr.mxu0 0.0
      %3981 = vmatpush1.msra.mxu0 0.0
      %3982 = vmatprep.subr.mxu0 0.0
      %3983 = vmatpush1.msra.mxu0 0.0
      %3984 = vmatprep.subr.mxu0 0.0
      %3985 = vmatpush1.msra.mxu0 0.0
      %3986 = vmatprep.subr.mxu0 0.0
      %3987 = vmatpush1.msra.mxu0 0.0
      %3988 = vmatprep.subr.mxu0 0.0
      %3989 = vmatpush1.msra.mxu0 0.0
      %3990 = vmatprep.subr.mxu0 0.0
      %3991 = vmatpush1.msra.mxu0 0.0
      %3992 = vmatprep.subr.mxu0 0.0
      %3993 = vmatpush1.msra.mxu0 0.0
      %3994 = vmatprep.subr.mxu0 0.0
      %3995 = vmatpush1.msra.mxu0 0.0
      %3996 = vmatprep.subr.mxu0 0.0
      %3997 = vmatpush1.msra.mxu0 0.0
      %3998 = vmatprep.subr.mxu0 0.0
      %3999 = vmatpush1.msra.mxu0 0.0
      %4000 = vmatprep.subr.mxu0 0.0
      %4001 = vmatpush1.msra.mxu0 0.0
      %4002 = vmatprep.subr.mxu0 0.0
      %4003 = vmatpush1.msra.mxu0 0.0
      %4004 = vmatprep.subr.mxu0 0.0
      %4005 = vmatpush1.msra.mxu0 0.0
      %4006 = vmatprep.subr.mxu0 0.0
      %4007 = vmatpush1.msra.mxu0 0.0
      %4008 = vmatprep.subr.mxu0 0.0
      %4009 = vmatpush1.msra.mxu0 0.0
      %4010 = vmatprep.subr.mxu0 0.0
      %4011 = vmatpush1.msra.mxu0 0.0
      %4012 = vmatprep.subr.mxu0 0.0
      %4013 = vmatpush1.msra.mxu0 0.0
      %4014 = vmatprep.subr.mxu0 0.0
      %4015 = vmatpush1.msra.mxu0 0.0
      %4016 = vmatprep.subr.mxu0 0.0
      %4017 = vmatpush1.msra.mxu0 0.0
      %4018 = vmatprep.subr.mxu0 0.0
      %4019 = vmatpush1.msra.mxu0 0.0
      %4020 = vmatprep.subr.mxu0 0.0
      %4021 = vmatpush1.msra.mxu0 0.0
      %4022 = vmatprep.subr.mxu0 0.0
      %4023 = vmatpush1.msra.mxu0 0.0
      %4024 = vmatprep.subr.mxu0 0.0
      %4025 = vmatpush1.msra.mxu0 0.0
      %4026 = vmatprep.subr.mxu0 0.0
      %4027 = vmatpush1.msra.mxu0 0.0
      %4028 = vmatprep.subr.mxu0 0.0
      %4029 = vmatpush1.msra.mxu0 0.0
      %4030 = vmatprep.subr.mxu0 0.0
      %4031 = vmatpush1.msra.mxu0 0.0
      %4032 = vmatprep.subr.mxu0 0.0
      %4033 = vmatpush1.msra.mxu0 0.0
      %4034 = vmatprep.mubr.f32.mxu0 0.0
      %4035 = vmatmul.mubr.f32.gmra.mrb[0].mxu0 %v2869
      %v4036 = vpop.f32.mrb[0].mxu0
      %v4037 = vadd.f32 0.0, %v4036
      %v4038 = vpop.f32.mrb[0].mxu0
      %4039 = vmatprep.mubr.f32.mxu0 0.0
      %4040 = vmatmul.mubr.f32.gmra.mrb[0].mxu0 %v2871
      %v4041 = vpop.f32.mrb[0].mxu0
      %v4042 = vadd.f32 0.0, %v4041
      %v4043 = vpop.f32.mrb[0].mxu0
      %4044 = vmatprep.mubr.f32.mxu0 0.0
      %4045 = vmatmul.mubr.f32.gmra.mrb[0].mxu0 %v2873
      %v4046 = vpop.f32.mrb[0].mxu0
      %v4047 = vpop.f32.mrb[0].mxu0
      %4048 = vmatprep.mubr.f32.mxu0 0.0
      %4049 = vmatmul.mubr.f32.gmra.mrb[0].mxu0 %v2875
      %v4050 = vpop.f32.mrb[0].mxu0
      %v4051 = vadd.f32 0.0, %v4050
      %v4052 = vpop.f32.mrb[0].mxu0
      %4053 = vmatprep.mubr.f32.mxu0 0.0
      %4054 = vmatmul.mubr.f32.gmra.mrb[0].mxu0 %v2877
      %v4055 = vpop.f32.mrb[0].mxu0
      %v4056 = vadd.f32 0.0, %v4055
      %v4057 = vpop.f32.mrb[0].mxu0
      %4058 = vmatprep.mubr.f32.mxu0 0.0
      %4059 = vmatmul.mubr.f32.gmra.mrb[0].mxu0 %v2879
      %v4060 = vpop.f32.mrb[0].mxu0
      %v4061 = vpop.f32.mrb[0].mxu0
      %4062 = vmatprep.mubr.f32.mxu0 0.0
      %4063 = vmatmul.mubr.f32.gmra.mrb[0].mxu0 %v2881
      %v4064 = vpop.f32.mrb[0].mxu0
      %v4065 = vadd.f32 0.0, %v4064
      %v4066 = vpop.f32.mrb[0].mxu0
      %4067 = vmatprep.mubr.f32.mxu0 0.0
      %4068 = vmatmul.mubr.f32.gmra.mrb[0].mxu0 %v2883
      %v4069 = vpop.f32.mrb[0].mxu0
      %v4070 = vadd.f32 0.0, %v4069
      %v4071 = vpop.f32.mrb[0].mxu0
      %4072 = vmatprep.mubr.f32.mxu0 0.0
      %4073 = vmatmul.mubr.f32.gmra.mrb[0].mxu0 %v2885
      %v4074 = vpop.f32.mrb[0].mxu0
      %v4075 = vpop.f32.mrb[0].mxu0
      %4076 = vmatprep.mubr.f32.mxu0 0.0
      %4077 = vmatmul.mubr.f32.gmra.mrb[0].mxu0 %v2887
      %v4078 = vpop.f32.mrb[0].mxu0
      %v4079 = vadd.f32 0.0, %v4078
      %v4080 = vpop.f32.mrb[0].mxu0
      %4081 = vmatprep.mubr.f32.mxu0 0.0
      %4082 = vmatmul.mubr.f32.gmra.mrb[0].mxu0 %v2889
      %v4083 = vpop.f32.mrb[0].mxu0
      %v4084 = vadd.f32 0.0, %v4083
      %v4085 = vpop.f32.mrb[0].mxu0
      %4086 = vmatprep.mubr.f32.mxu0 0.0
      %4087 = vmatmul.mubr.f32.gmra.mrb[0].mxu0 %v2891
      %v4088 = vpop.f32.mrb[0].mxu0
      %v4089 = vpop.f32.mrb[0].mxu0
      %4090 = vmatprep.mubr.f32.mxu0 0.0
      %4091 = vmatmul.mubr.f32.gmra.mrb[0].mxu0 %v2893
      %v4092 = vpop.f32.mrb[0].mxu0
      %v4093 = vadd.f32 0.0, %v4092
      %v4094 = vpop.f32.mrb[0].mxu0
      %4095 = vmatprep.mubr.f32.mxu0 0.0
      %4096 = vmatmul.mubr.f32.gmra.mrb[0].mxu0 %v2895
      %v4097 = vpop.f32.mrb[0].mxu0
      %v4098 = vadd.f32 0.0, %v4097
      %v4099 = vpop.f32.mrb[0].mxu0
      %4100 = vmatprep.mubr.f32.mxu0 0.0
      %4101 = vmatmul.mubr.f32.gmra.mrb[0].mxu0 %v2897
      %v4102 = vpop.f32.mrb[0].mxu0
      %v4103 = vpop.f32.mrb[0].mxu0
      %4104 = vmatprep.mubr.f32.mxu0 0.0
      %4105 = vmatmul.mubr.f32.gmra.mrb[0].mxu0 %v2899
      %v4106 = vpop.f32.mrb[0].mxu0
      %v4107 = vadd.f32 0.0, %v4106
      %v4108 = vpop.f32.mrb[0].mxu0
      %4109 = vmatprep.mubr.f32.mxu0 0.0
      %4110 = vmatmul.mubr.f32.gmra.mrb[0].mxu0 %v2901
      %v4111 = vpop.f32.mrb[0].mxu0
      %v4112 = vadd.f32 0.0, %v4111
      %v4113 = vpop.f32.mrb[0].mxu0
      %4114 = vmatprep.mubr.f32.mxu0 0.0
      %4115 = vmatmul.mubr.f32.gmra.mrb[0].mxu0 %v2903
      %v4116 = vpop.f32.mrb[0].mxu0
      %v4117 = vpop.f32.mrb[0].mxu0
      %4118 = vmatprep.mubr.f32.mxu0 0.0
      %4119 = vmatmul.mubr.f32.gmra.mrb[0].mxu0 %v2905
      %v4120 = vpop.f32.mrb[0].mxu0
      %v4121 = vadd.f32 0.0, %v4120
      %v4122 = vpop.f32.mrb[0].mxu0
      %4123 = vmatprep.mubr.f32.mxu0 0.0
      %4124 = vmatmul.mubr.f32.gmra.mrb[0].mxu0 %v2907
      %v4125 = vpop.f32.mrb[0].mxu0
      %v4126 = vadd.f32 0.0, %v4125
      %v4127 = vpop.f32.mrb[0].mxu0
      %4128 = vmatprep.mubr.f32.mxu0 0.0
      %4129 = vmatmul.mubr.f32.gmra.mrb[0].mxu0 %v2909
      %v4130 = vpop.f32.mrb[0].mxu0
      %v4131 = vpop.f32.mrb[0].mxu0
      %4132 = vmatprep.mubr.f32.mxu0 0.0
      %4133 = vmatmul.mubr.f32.gmra.mrb[0].mxu0 %v2911
      %v4134 = vpop.f32.mrb[0].mxu0
      %v4135 = vadd.f32 0.0, %v4134
      %v4136 = vpop.f32.mrb[0].mxu0
      %4137 = vmatprep.mubr.f32.mxu0 0.0
      %4138 = vmatmul.mubr.f32.gmra.mrb[0].mxu0 %v2913
      %v4139 = vpop.f32.mrb[0].mxu0
      %v4140 = vadd.f32 0.0, %v4139
      %v4141 = vpop.f32.mrb[0].mxu0
      %4142 = vmatprep.mubr.f32.mxu0 0.0
      %4143 = vmatmul.mubr.f32.gmra.mrb[0].mxu0 %v2915
      %v4144 = vpop.f32.mrb[0].mxu0
      %v4145 = vpop.f32.mrb[0].mxu0
      %4146 = vmatprep.mubr.f32.mxu0 0.0
      %4147 = vmatmul.mubr.f32.gmra.mrb[0].mxu0 %v2917
      %v4148 = vpop.f32.mrb[0].mxu0
      %v4149 = vadd.f32 0.0, %v4148
      %v4150 = vpop.f32.mrb[0].mxu0
      %4151 = vmatprep.mubr.f32.mxu0 0.0
      %4152 = vmatmul.mubr.f32.gmra.mrb[0].mxu0 %v2919
      %v4153 = vpop.f32.mrb[0].mxu0
      %v4154 = vadd.f32 0.0, %v4153
      %v4155 = vpop.f32.mrb[0].mxu0
      %4156 = vmatprep.mubr.f32.mxu0 0.0
      %4157 = vmatmul.mubr.f32.gmra.mrb[0].mxu0 %v2921
      %v4158 = vpop.f32.mrb[0].mxu0
      %v4159 = vpop.f32.mrb[0].mxu0
      %4160 = vmatprep.mubr.f32.mxu0 0.0
      %4161 = vmatmul.mubr.f32.gmra.mrb[0].mxu0 %v2923
      %v4162 = vpop.f32.mrb[0].mxu0
      %v4163 = vadd.f32 0.0, %v4162
      %v4164 = vpop.f32.mrb[0].mxu0
      %4165 = vmatprep.mubr.f32.mxu0 0.0
      %4166 = vmatmul.mubr.f32.gmra.mrb[0].mxu0 %v2925
      %v4167 = vpop.f32.mrb[0].mxu0
      %v4168 = vadd.f32 0.0, %v4167
      %v4169 = vpop.f32.mrb[0].mxu0
      %4170 = vmatprep.mubr.f32.mxu0 0.0
      %4171 = vmatmul.mubr.f32.gmra.mrb[0].mxu0 %v2927
      %v4172 = vpop.f32.mrb[0].mxu0
      %v4173 = vpop.f32.mrb[0].mxu0
      %4174 = vmatprep.mubr.f32.mxu0 0.0
      %4175 = vmatmul.mubr.f32.gmra.mrb[0].mxu0 %v2929
      %v4176 = vpop.f32.mrb[0].mxu0
      %v4177 = vadd.f32 0.0, %v4176
      %v4178 = vpop.f32.mrb[0].mxu0
      %4179 = vmatprep.mubr.f32.mxu0 0.0
      %4180 = vmatmul.mubr.f32.gmra.mrb[0].mxu0 %v2931
      %v4181 = vpop.f32.mrb[0].mxu0
      %v4182 = vadd.f32 0.0, %v4181
      %v4183 = vpop.f32.mrb[0].mxu0
      %4184 = vmatprep.mubr.f32.mxu0 0.0
      %4185 = vmatmul.mubr.f32.gmra.mrb[0].mxu0 %v2933
      %v4186 = vpop.f32.mrb[0].mxu0
      %v4187 = vpop.f32.mrb[0].mxu0
      %4188 = vmatprep.mubr.f32.mxu0 0.0
      %4189 = vmatmul.mubr.f32.gmra.mrb[0].mxu0 %v2935
      %v4190 = vpop.f32.mrb[0].mxu0
      %v4191 = vadd.f32 0.0, %v4190
      %v4192 = vpop.f32.mrb[0].mxu0
      %4193 = vmatprep.mubr.f32.mxu0 0.0
      %4194 = vmatmul.mubr.f32.gmra.mrb[0].mxu0 %v2937
      %v4195 = vpop.f32.mrb[0].mxu0
      %v4196 = vadd.f32 0.0, %v4195
      %v4197 = vpop.f32.mrb[0].mxu0
      %4198 = vmatprep.mubr.f32.mxu0 0.0
      %4199 = vmatmul.mubr.f32.gmra.mrb[0].mxu0 %v2939
      %v4200 = vpop.f32.mrb[0].mxu0
      %v4201 = vpop.f32.mrb[0].mxu0
      %4202 = vmatprep.mubr.f32.mxu0 0.0
      %4203 = vmatmul.mubr.f32.gmra.mrb[0].mxu0 %v2941
      %v4204 = vpop.f32.mrb[0].mxu0
      %v4205 = vadd.f32 0.0, %v4204
      %v4206 = vpop.f32.mrb[0].mxu0
      %4207 = vmatprep.mubr.f32.mxu0 0.0
      %4208 = vmatmul.mubr.f32.gmra.mrb[0].mxu0 %v2943
      %v4209 = vpop.f32.mrb[0].mxu0
      %v4210 = vadd.f32 0.0, %v4209
      %v4211 = vpop.f32.mrb[0].mxu0
      %4212 = vmatprep.mubr.f32.mxu0 0.0
      %4213 = vmatmul.mubr.f32.gmra.mrb[0].mxu0 %v2945
      %v4214 = vpop.f32.mrb[0].mxu0
      %v4215 = vpop.f32.mrb[0].mxu0
      %4216 = vmatprep.mubr.f32.mxu0 0.0
      %4217 = vmatmul.mubr.f32.gmra.mrb[0].mxu0 %v2947
      %v4218 = vpop.f32.mrb[0].mxu0
      %v4219 = vadd.f32 0.0, %v4218
      %v4220 = vpop.f32.mrb[0].mxu0
      %4221 = vmatprep.mubr.f32.mxu0 0.0
      %4222 = vmatmul.mubr.f32.gmra.mrb[0].mxu0 %v2949
      %v4223 = vpop.f32.mrb[0].mxu0
      %v4224 = vadd.f32 0.0, %v4223
      %v4225 = vpop.f32.mrb[0].mxu0
      %4226 = vmatprep.mubr.f32.mxu0 0.0
      %4227 = vmatmul.mubr.f32.gmra.mrb[0].mxu0 %v2951
      %v4228 = vpop.f32.mrb[0].mxu0
      %v4229 = vpop.f32.mrb[0].mxu0
      %4230 = vmatprep.mubr.f32.mxu0 0.0
      %4231 = vmatmul.mubr.f32.gmra.mrb[0].mxu0 %v2953
      %v4232 = vpop.f32.mrb[0].mxu0
      %v4233 = vadd.f32 0.0, %v4232
      %v4234 = vpop.f32.mrb[0].mxu0
      %4235 = vmatprep.mubr.f32.mxu0 0.0
      %4236 = vmatmul.mubr.f32.gmra.mrb[0].mxu0 %v2955
      %v4237 = vpop.f32.mrb[0].mxu0
      %v4238 = vadd.f32 0.0, %v4237
      %v4239 = vpop.f32.mrb[0].mxu0
      %4240 = vmatprep.mubr.f32.mxu0 0.0
      %4241 = vmatmul.mubr.f32.gmra.mrb[0].mxu0 %v2957
      %v4242 = vpop.f32.mrb[0].mxu0
      %v4243 = vpop.f32.mrb[0].mxu0
      %4244 = vmatprep.mubr.f32.mxu0 0.0
      %4245 = vmatmul.mubr.f32.gmra.mrb[0].mxu0 %v3964
      %v4246 = vpop.f32.mrb[0].mxu0
      %v4247 = vadd.f32 0.0, %v4246
      %v4248 = vpop.f32.mrb[0].mxu0
      %4249 = vmatprep.mubr.f32.mxu0 0.0
      %4250 = vmatmul.mubr.f32.gmra.mrb[0].mxu0 %v3966
      %v4251 = vpop.f32.mrb[0].mxu0
      %v4252 = vadd.f32 0.0, %v4251
      %v4253 = vpop.f32.mrb[0].mxu0
      %4254 = vmatprep.mubr.f32.mxu0 0.0
      %4255 = vmatmul.mubr.f32.gmra.mrb[0].mxu0 %v3968
      %v4256 = vpop.f32.mrb[0].mxu0
      %v4257 = vpop.f32.mrb[0].mxu0
      %4258 = vdwg.mxu0
      %v4259 = vadd.f32 %v3921, %v4037
      %v4260 = vadd.f32 %v3922, %v4042
      %v4261 = vadd.f32 %v3923, %v4051
      %v4262 = vadd.f32 %v3924, %v4056
      %v4263 = vadd.f32 %v3925, %v4065
      %v4264 = vadd.f32 %v3926, %v4070
      %v4265 = vadd.f32 %v3927, %v4079
      %v4266 = vadd.f32 %v3928, %v4084
      %v4267 = vadd.f32 %v3929, %v4093
      %v4268 = vadd.f32 %v3930, %v4098
      %v4269 = vadd.f32 %v3931, %v4107
      %v4270 = vadd.f32 %v3932, %v4112
      %v4271 = vadd.f32 %v3933, %v4121
      %v4272 = vadd.f32 %v3934, %v4126
      %v4273 = vadd.f32 %v3935, %v4135
      %v4274 = vadd.f32 %v3936, %v4140
      %v4275 = vadd.f32 %v3937, %v4149
      %v4276 = vadd.f32 %v3938, %v4154
      %v4277 = vadd.f32 %v3939, %v4163
      %v4278 = vadd.f32 %v3940, %v4168
      %v4279 = vadd.f32 %v3941, %v4177
      %v4280 = vadd.f32 %v3942, %v4182
      %v4281 = vadd.f32 %v3943, %v4191
      %v4282 = vadd.f32 %v3944, %v4196
      %v4283 = vadd.f32 %v3945, %v4205
      %v4284 = vadd.f32 %v3946, %v4210
      %v4285 = vadd.f32 %v3947, %v4219
      %v4286 = vadd.f32 %v3948, %v4224
      %v4287 = vadd.f32 %v3949, %v4233
      %v4288 = vadd.f32 %v3950, %v4238
      %v4289 = vadd.f32 %v3951, %v4247
      %v4290 = vadd.f32 %v3952, %v4252
      %s4291 = scalar_lea.vmem %s5, 192
      %v4292 = vld [vmem:[%s4291] sm:$0xff]
      %v4293 = vld [vmem:[%s4291 + $0x8] sm:$0xff]
      %v4294 = vld [vmem:[%s4291 + $0x10] sm:$0xff]
      %v4295 = vld [vmem:[%s4291 + $0x18] sm:$0xff]
      %v4296 = vsel %vm492, %v1830, 0
      %v4299 = vsel %vm492, %v1831, 0
      %v4302 = vsel %vm492, %v1832, 0
      %4304 = vmatprep.subr.mxu0 0.0
      %4305 = vmatpush1.msra.mxu0 %v4292
      %4306 = vmatprep.subr.mxu0 0.0
      %4307 = vmatpush1.msra.mxu0 %v4293
      %4308 = vmatprep.subr.mxu0 0.0
      %4309 = vmatpush1.msra.mxu0 %v4294
      %4310 = vmatprep.subr.mxu0 0.0
      %4311 = vmatpush1.msra.mxu0 %v4295
      %4312 = vmatprep.subr.mxu0 0.0
      %4313 = vmatpush1.msra.mxu0 0.0
      %4314 = vmatprep.subr.mxu0 0.0
      %4315 = vmatpush1.msra.mxu0 0.0
      %4316 = vmatprep.subr.mxu0 0.0
      %4317 = vmatpush1.msra.mxu0 0.0
      %4318 = vmatprep.subr.mxu0 0.0
      %4319 = vmatpush1.msra.mxu0 0.0
      %4320 = vmatprep.subr.mxu0 0.0
      %4321 = vmatpush1.msra.mxu0 0.0
      %4322 = vmatprep.subr.mxu0 0.0
      %4323 = vmatpush1.msra.mxu0 0.0
      %4324 = vmatprep.subr.mxu0 0.0
      %4325 = vmatpush1.msra.mxu0 0.0
      %4326 = vmatprep.subr.mxu0 0.0
      %4327 = vmatpush1.msra.mxu0 0.0
      %4328 = vmatprep.subr.mxu0 0.0
      %4329 = vmatpush1.msra.mxu0 0.0
      %4330 = vmatprep.subr.mxu0 0.0
      %4331 = vmatpush1.msra.mxu0 0.0
      %4332 = vmatprep.subr.mxu0 0.0
      %4333 = vmatpush1.msra.mxu0 0.0
      %4334 = vmatprep.subr.mxu0 0.0
      %4335 = vmatpush1.msra.mxu0 0.0
      %4336 = vmatprep.subr.mxu0 0.0
      %4337 = vmatpush1.msra.mxu0 0.0
      %4338 = vmatprep.subr.mxu0 0.0
      %4339 = vmatpush1.msra.mxu0 0.0
      %4340 = vmatprep.subr.mxu0 0.0
      %4341 = vmatpush1.msra.mxu0 0.0
      %4342 = vmatprep.subr.mxu0 0.0
      %4343 = vmatpush1.msra.mxu0 0.0
      %4344 = vmatprep.subr.mxu0 0.0
      %4345 = vmatpush1.msra.mxu0 0.0
      %4346 = vmatprep.subr.mxu0 0.0
      %4347 = vmatpush1.msra.mxu0 0.0
      %4348 = vmatprep.subr.mxu0 0.0
      %4349 = vmatpush1.msra.mxu0 0.0
      %4350 = vmatprep.subr.mxu0 0.0
      %4351 = vmatpush1.msra.mxu0 0.0
      %4352 = vmatprep.subr.mxu0 0.0
      %4353 = vmatpush1.msra.mxu0 0.0
      %4354 = vmatprep.subr.mxu0 0.0
      %4355 = vmatpush1.msra.mxu0 0.0
      %4356 = vmatprep.subr.mxu0 0.0
      %4357 = vmatpush1.msra.mxu0 0.0
      %4358 = vmatprep.subr.mxu0 0.0
      %4359 = vmatpush1.msra.mxu0 0.0
      %4360 = vmatprep.subr.mxu0 0.0
      %4361 = vmatpush1.msra.mxu0 0.0
      %4362 = vmatprep.subr.mxu0 0.0
      %4363 = vmatpush1.msra.mxu0 0.0
      %4364 = vmatprep.subr.mxu0 0.0
      %4365 = vmatpush1.msra.mxu0 0.0
      %4366 = vmatprep.subr.mxu0 0.0
      %4367 = vmatpush1.msra.mxu0 0.0
      %4368 = vmatprep.mubr.f32.mxu0 0.0
      %4369 = vmatmul.mubr.f32.gmra.mrb[0].mxu0 %v2387
      %v4370 = vpop.f32.mrb[0].mxu0
      %v4371 = vadd.f32 0.0, %v4370
      %v4372 = vpop.f32.mrb[0].mxu0
      %4373 = vmatprep.mubr.f32.mxu0 0.0
      %4374 = vmatmul.mubr.f32.gmra.mrb[0].mxu0 %v2389
      %v4375 = vpop.f32.mrb[0].mxu0
      %v4376 = vadd.f32 0.0, %v4375
      %v4377 = vpop.f32.mrb[0].mxu0
      %4378 = vmatprep.mubr.f32.mxu0 0.0
      %4379 = vmatmul.mubr.f32.gmra.mrb[0].mxu0 %v2391
      %v4380 = vpop.f32.mrb[0].mxu0
      %v4381 = vpop.f32.mrb[0].mxu0
      %4382 = vmatprep.mubr.f32.mxu0 0.0
      %4383 = vmatmul.mubr.f32.gmra.mrb[0].mxu0 %v2393
      %v4384 = vpop.f32.mrb[0].mxu0
      %v4385 = vadd.f32 0.0, %v4384
      %v4386 = vpop.f32.mrb[0].mxu0
      %4387 = vmatprep.mubr.f32.mxu0 0.0
      %4388 = vmatmul.mubr.f32.gmra.mrb[0].mxu0 %v2395
      %v4389 = vpop.f32.mrb[0].mxu0
      %v4390 = vadd.f32 0.0, %v4389
      %v4391 = vpop.f32.mrb[0].mxu0
      %4392 = vmatprep.mubr.f32.mxu0 0.0
      %4393 = vmatmul.mubr.f32.gmra.mrb[0].mxu0 %v2397
      %v4394 = vpop.f32.mrb[0].mxu0
      %v4395 = vpop.f32.mrb[0].mxu0
      %4396 = vmatprep.mubr.f32.mxu0 0.0
      %4397 = vmatmul.mubr.f32.gmra.mrb[0].mxu0 %v2399
      %v4398 = vpop.f32.mrb[0].mxu0
      %v4399 = vadd.f32 0.0, %v4398
      %v4400 = vpop.f32.mrb[0].mxu0
      %4401 = vmatprep.mubr.f32.mxu0 0.0
      %4402 = vmatmul.mubr.f32.gmra.mrb[0].mxu0 %v2401
      %v4403 = vpop.f32.mrb[0].mxu0
      %v4404 = vadd.f32 0.0, %v4403
      %v4405 = vpop.f32.mrb[0].mxu0
      %4406 = vmatprep.mubr.f32.mxu0 0.0
      %4407 = vmatmul.mubr.f32.gmra.mrb[0].mxu0 %v2403
      %v4408 = vpop.f32.mrb[0].mxu0
      %v4409 = vpop.f32.mrb[0].mxu0
      %4410 = vmatprep.mubr.f32.mxu0 0.0
      %4411 = vmatmul.mubr.f32.gmra.mrb[0].mxu0 %v2405
      %v4412 = vpop.f32.mrb[0].mxu0
      %v4413 = vadd.f32 0.0, %v4412
      %v4414 = vpop.f32.mrb[0].mxu0
      %4415 = vmatprep.mubr.f32.mxu0 0.0
      %4416 = vmatmul.mubr.f32.gmra.mrb[0].mxu0 %v2407
      %v4417 = vpop.f32.mrb[0].mxu0
      %v4418 = vadd.f32 0.0, %v4417
      %v4419 = vpop.f32.mrb[0].mxu0
      %4420 = vmatprep.mubr.f32.mxu0 0.0
      %4421 = vmatmul.mubr.f32.gmra.mrb[0].mxu0 %v2409
      %v4422 = vpop.f32.mrb[0].mxu0
      %v4423 = vpop.f32.mrb[0].mxu0
      %4424 = vmatprep.mubr.f32.mxu0 0.0
      %4425 = vmatmul.mubr.f32.gmra.mrb[0].mxu0 %v2411
      %v4426 = vpop.f32.mrb[0].mxu0
      %v4427 = vadd.f32 0.0, %v4426
      %v4428 = vpop.f32.mrb[0].mxu0
      %4429 = vmatprep.mubr.f32.mxu0 0.0
      %4430 = vmatmul.mubr.f32.gmra.mrb[0].mxu0 %v2413
      %v4431 = vpop.f32.mrb[0].mxu0
      %v4432 = vadd.f32 0.0, %v4431
      %v4433 = vpop.f32.mrb[0].mxu0
      %4434 = vmatprep.mubr.f32.mxu0 0.0
      %4435 = vmatmul.mubr.f32.gmra.mrb[0].mxu0 %v2415
      %v4436 = vpop.f32.mrb[0].mxu0
      %v4437 = vpop.f32.mrb[0].mxu0
      %4438 = vmatprep.mubr.f32.mxu0 0.0
      %4439 = vmatmul.mubr.f32.gmra.mrb[0].mxu0 %v2417
      %v4440 = vpop.f32.mrb[0].mxu0
      %v4441 = vadd.f32 0.0, %v4440
      %v4442 = vpop.f32.mrb[0].mxu0
      %4443 = vmatprep.mubr.f32.mxu0 0.0
      %4444 = vmatmul.mubr.f32.gmra.mrb[0].mxu0 %v2419
      %v4445 = vpop.f32.mrb[0].mxu0
      %v4446 = vadd.f32 0.0, %v4445
      %v4447 = vpop.f32.mrb[0].mxu0
      %4448 = vmatprep.mubr.f32.mxu0 0.0
      %4449 = vmatmul.mubr.f32.gmra.mrb[0].mxu0 %v2421
      %v4450 = vpop.f32.mrb[0].mxu0
      %v4451 = vpop.f32.mrb[0].mxu0
      %4452 = vmatprep.mubr.f32.mxu0 0.0
      %4453 = vmatmul.mubr.f32.gmra.mrb[0].mxu0 %v2423
      %v4454 = vpop.f32.mrb[0].mxu0
      %v4455 = vadd.f32 0.0, %v4454
      %v4456 = vpop.f32.mrb[0].mxu0
      %4457 = vmatprep.mubr.f32.mxu0 0.0
      %4458 = vmatmul.mubr.f32.gmra.mrb[0].mxu0 %v2425
      %v4459 = vpop.f32.mrb[0].mxu0
      %v4460 = vadd.f32 0.0, %v4459
      %v4461 = vpop.f32.mrb[0].mxu0
      %4462 = vmatprep.mubr.f32.mxu0 0.0
      %4463 = vmatmul.mubr.f32.gmra.mrb[0].mxu0 %v2427
      %v4464 = vpop.f32.mrb[0].mxu0
      %v4465 = vpop.f32.mrb[0].mxu0
      %4466 = vmatprep.mubr.f32.mxu0 0.0
      %4467 = vmatmul.mubr.f32.gmra.mrb[0].mxu0 %v2429
      %v4468 = vpop.f32.mrb[0].mxu0
      %v4469 = vadd.f32 0.0, %v4468
      %v4470 = vpop.f32.mrb[0].mxu0
      %4471 = vmatprep.mubr.f32.mxu0 0.0
      %4472 = vmatmul.mubr.f32.gmra.mrb[0].mxu0 %v2431
      %v4473 = vpop.f32.mrb[0].mxu0
      %v4474 = vadd.f32 0.0, %v4473
      %v4475 = vpop.f32.mrb[0].mxu0
      %4476 = vmatprep.mubr.f32.mxu0 0.0
      %4477 = vmatmul.mubr.f32.gmra.mrb[0].mxu0 %v2433
      %v4478 = vpop.f32.mrb[0].mxu0
      %v4479 = vpop.f32.mrb[0].mxu0
      %4480 = vmatprep.mubr.f32.mxu0 0.0
      %4481 = vmatmul.mubr.f32.gmra.mrb[0].mxu0 %v2435
      %v4482 = vpop.f32.mrb[0].mxu0
      %v4483 = vadd.f32 0.0, %v4482
      %v4484 = vpop.f32.mrb[0].mxu0
      %4485 = vmatprep.mubr.f32.mxu0 0.0
      %4486 = vmatmul.mubr.f32.gmra.mrb[0].mxu0 %v2437
      %v4487 = vpop.f32.mrb[0].mxu0
      %v4488 = vadd.f32 0.0, %v4487
      %v4489 = vpop.f32.mrb[0].mxu0
      %4490 = vmatprep.mubr.f32.mxu0 0.0
      %4491 = vmatmul.mubr.f32.gmra.mrb[0].mxu0 %v2439
      %v4492 = vpop.f32.mrb[0].mxu0
      %v4493 = vpop.f32.mrb[0].mxu0
      %4494 = vmatprep.mubr.f32.mxu0 0.0
      %4495 = vmatmul.mubr.f32.gmra.mrb[0].mxu0 %v2441
      %v4496 = vpop.f32.mrb[0].mxu0
      %v4497 = vadd.f32 0.0, %v4496
      %v4498 = vpop.f32.mrb[0].mxu0
      %4499 = vmatprep.mubr.f32.mxu0 0.0
      %4500 = vmatmul.mubr.f32.gmra.mrb[0].mxu0 %v2443
      %v4501 = vpop.f32.mrb[0].mxu0
      %v4502 = vadd.f32 0.0, %v4501
      %v4503 = vpop.f32.mrb[0].mxu0
      %4504 = vmatprep.mubr.f32.mxu0 0.0
      %4505 = vmatmul.mubr.f32.gmra.mrb[0].mxu0 %v2445
      %v4506 = vpop.f32.mrb[0].mxu0
      %v4507 = vpop.f32.mrb[0].mxu0
      %4508 = vmatprep.mubr.f32.mxu0 0.0
      %4509 = vmatmul.mubr.f32.gmra.mrb[0].mxu0 %v2447
      %v4510 = vpop.f32.mrb[0].mxu0
      %v4511 = vadd.f32 0.0, %v4510
      %v4512 = vpop.f32.mrb[0].mxu0
      %4513 = vmatprep.mubr.f32.mxu0 0.0
      %4514 = vmatmul.mubr.f32.gmra.mrb[0].mxu0 %v2449
      %v4515 = vpop.f32.mrb[0].mxu0
      %v4516 = vadd.f32 0.0, %v4515
      %v4517 = vpop.f32.mrb[0].mxu0
      %4518 = vmatprep.mubr.f32.mxu0 0.0
      %4519 = vmatmul.mubr.f32.gmra.mrb[0].mxu0 %v2451
      %v4520 = vpop.f32.mrb[0].mxu0
      %v4521 = vpop.f32.mrb[0].mxu0
      %4522 = vmatprep.mubr.f32.mxu0 0.0
      %4523 = vmatmul.mubr.f32.gmra.mrb[0].mxu0 %v2453
      %v4524 = vpop.f32.mrb[0].mxu0
      %v4525 = vadd.f32 0.0, %v4524
      %v4526 = vpop.f32.mrb[0].mxu0
      %4527 = vmatprep.mubr.f32.mxu0 0.0
      %4528 = vmatmul.mubr.f32.gmra.mrb[0].mxu0 %v2455
      %v4529 = vpop.f32.mrb[0].mxu0
      %v4530 = vadd.f32 0.0, %v4529
      %v4531 = vpop.f32.mrb[0].mxu0
      %4532 = vmatprep.mubr.f32.mxu0 0.0
      %4533 = vmatmul.mubr.f32.gmra.mrb[0].mxu0 %v2457
      %v4534 = vpop.f32.mrb[0].mxu0
      %v4535 = vpop.f32.mrb[0].mxu0
      %4536 = vmatprep.mubr.f32.mxu0 0.0
      %4537 = vmatmul.mubr.f32.gmra.mrb[0].mxu0 %v2459
      %v4538 = vpop.f32.mrb[0].mxu0
      %v4539 = vadd.f32 0.0, %v4538
      %v4540 = vpop.f32.mrb[0].mxu0
      %4541 = vmatprep.mubr.f32.mxu0 0.0
      %4542 = vmatmul.mubr.f32.gmra.mrb[0].mxu0 %v2461
      %v4543 = vpop.f32.mrb[0].mxu0
      %v4544 = vadd.f32 0.0, %v4543
      %v4545 = vpop.f32.mrb[0].mxu0
      %4546 = vmatprep.mubr.f32.mxu0 0.0
      %4547 = vmatmul.mubr.f32.gmra.mrb[0].mxu0 %v2463
      %v4548 = vpop.f32.mrb[0].mxu0
      %v4549 = vpop.f32.mrb[0].mxu0
      %4550 = vmatprep.mubr.f32.mxu0 0.0
      %4551 = vmatmul.mubr.f32.gmra.mrb[0].mxu0 %v2465
      %v4552 = vpop.f32.mrb[0].mxu0
      %v4553 = vadd.f32 0.0, %v4552
      %v4554 = vpop.f32.mrb[0].mxu0
      %4555 = vmatprep.mubr.f32.mxu0 0.0
      %4556 = vmatmul.mubr.f32.gmra.mrb[0].mxu0 %v2467
      %v4557 = vpop.f32.mrb[0].mxu0
      %v4558 = vadd.f32 0.0, %v4557
      %v4559 = vpop.f32.mrb[0].mxu0
      %4560 = vmatprep.mubr.f32.mxu0 0.0
      %4561 = vmatmul.mubr.f32.gmra.mrb[0].mxu0 %v2469
      %v4562 = vpop.f32.mrb[0].mxu0
      %v4563 = vpop.f32.mrb[0].mxu0
      %4564 = vmatprep.mubr.f32.mxu0 0.0
      %4565 = vmatmul.mubr.f32.gmra.mrb[0].mxu0 %v3285
      %v4566 = vpop.f32.mrb[0].mxu0
      %v4567 = vadd.f32 0.0, %v4566
      %v4568 = vpop.f32.mrb[0].mxu0
      %4569 = vmatprep.mubr.f32.mxu0 0.0
      %4570 = vmatmul.mubr.f32.gmra.mrb[0].mxu0 %v3288
      %v4571 = vpop.f32.mrb[0].mxu0
      %v4572 = vadd.f32 0.0, %v4571
      %v4573 = vpop.f32.mrb[0].mxu0
      %4574 = vmatprep.mubr.f32.mxu0 0.0
      %4575 = vmatmul.mubr.f32.gmra.mrb[0].mxu0 %v3291
      %v4576 = vpop.f32.mrb[0].mxu0
      %v4577 = vpop.f32.mrb[0].mxu0
      %4578 = vmatprep.mubr.f32.mxu0 0.0
      %4579 = vmatmul.mubr.f32.gmra.mrb[0].mxu0 %v4296
      %v4580 = vpop.f32.mrb[0].mxu0
      %v4581 = vadd.f32 0.0, %v4580
      %v4582 = vpop.f32.mrb[0].mxu0
      %4583 = vmatprep.mubr.f32.mxu0 0.0
      %4584 = vmatmul.mubr.f32.gmra.mrb[0].mxu0 %v4299
      %v4585 = vpop.f32.mrb[0].mxu0
      %v4586 = vadd.f32 0.0, %v4585
      %v4587 = vpop.f32.mrb[0].mxu0
      %4588 = vmatprep.mubr.f32.mxu0 0.0
      %4589 = vmatmul.mubr.f32.gmra.mrb[0].mxu0 %v4302
      %v4590 = vpop.f32.mrb[0].mxu0
      %v4591 = vpop.f32.mrb[0].mxu0
      %4592 = vdwg.mxu0
      %v4593 = vadd.f32 %v4259, %v4371
      %v4594 = vadd.f32 %v4260, %v4376
      %v4595 = vadd.f32 %v4261, %v4385
      %v4596 = vadd.f32 %v4262, %v4390
      %v4597 = vadd.f32 %v4263, %v4399
      %v4598 = vadd.f32 %v4264, %v4404
      %v4599 = vadd.f32 %v4265, %v4413
      %v4600 = vadd.f32 %v4266, %v4418
      %v4601 = vadd.f32 %v4267, %v4427
      %v4602 = vadd.f32 %v4268, %v4432
      %v4603 = vadd.f32 %v4269, %v4441
      %v4604 = vadd.f32 %v4270, %v4446
      %v4605 = vadd.f32 %v4271, %v4455
      %v4606 = vadd.f32 %v4272, %v4460
      %v4607 = vadd.f32 %v4273, %v4469
      %v4608 = vadd.f32 %v4274, %v4474
      %v4609 = vadd.f32 %v4275, %v4483
      %v4610 = vadd.f32 %v4276, %v4488
      %v4611 = vadd.f32 %v4277, %v4497
      %v4612 = vadd.f32 %v4278, %v4502
      %v4613 = vadd.f32 %v4279, %v4511
      %v4614 = vadd.f32 %v4280, %v4516
      %v4615 = vadd.f32 %v4281, %v4525
      %v4616 = vadd.f32 %v4282, %v4530
      %v4617 = vadd.f32 %v4283, %v4539
      %v4618 = vadd.f32 %v4284, %v4544
      %v4619 = vadd.f32 %v4285, %v4553
      %v4620 = vadd.f32 %v4286, %v4558
      %v4621 = vadd.f32 %v4287, %v4567
      %v4622 = vadd.f32 %v4288, %v4572
      %v4623 = vadd.f32 %v4289, %v4581
      %v4624 = vadd.f32 %v4290, %v4586
      %s4625 = scalar_lea.vmem %s5, 224
      %v4626 = vld [vmem:[%s4625] sm:$0xff]
      %v4627 = vld [vmem:[%s4625 + $0x8] sm:$0xff]
      %v4628 = vld [vmem:[%s4625 + $0x10] sm:$0xff]
      %v4629 = vld [vmem:[%s4625 + $0x18] sm:$0xff]
      %v4631 = vrot.slane %v1831, 1
      %v4632 = vsel %vm1892, %v3624, %v4631
      %v4633 = vrot.slane %v1832, 1
      %v4634 = vsel %vm1892, %v4631, %v4633
      %v4635 = vrot.slane %v1833, 1
      %v4636 = vsel %vm1892, %v4633, %v4635
      %v4637 = vsel %vm492, %v4632, 0
      %v4639 = vsel %vm492, %v4634, 0
      %v4641 = vsel %vm492, %v4636, 0
      %4643 = vmatprep.subr.mxu0 0.0
      %4644 = vmatpush1.msra.mxu0 %v4626
      %4645 = vmatprep.subr.mxu0 0.0
      %4646 = vmatpush1.msra.mxu0 %v4627
      %4647 = vmatprep.subr.mxu0 0.0
      %4648 = vmatpush1.msra.mxu0 %v4628
      %4649 = vmatprep.subr.mxu0 0.0
      %4650 = vmatpush1.msra.mxu0 %v4629
      %4651 = vmatprep.subr.mxu0 0.0
      %4652 = vmatpush1.msra.mxu0 0.0
      %4653 = vmatprep.subr.mxu0 0.0
      %4654 = vmatpush1.msra.mxu0 0.0
      %4655 = vmatprep.subr.mxu0 0.0
      %4656 = vmatpush1.msra.mxu0 0.0
      %4657 = vmatprep.subr.mxu0 0.0
      %4658 = vmatpush1.msra.mxu0 0.0
      %4659 = vmatprep.subr.mxu0 0.0
      %4660 = vmatpush1.msra.mxu0 0.0
      %4661 = vmatprep.subr.mxu0 0.0
      %4662 = vmatpush1.msra.mxu0 0.0
      %4663 = vmatprep.subr.mxu0 0.0
      %4664 = vmatpush1.msra.mxu0 0.0
      %4665 = vmatprep.subr.mxu0 0.0
      %4666 = vmatpush1.msra.mxu0 0.0
      %4667 = vmatprep.subr.mxu0 0.0
      %4668 = vmatpush1.msra.mxu0 0.0
      %4669 = vmatprep.subr.mxu0 0.0
      %4670 = vmatpush1.msra.mxu0 0.0
      %4671 = vmatprep.subr.mxu0 0.0
      %4672 = vmatpush1.msra.mxu0 0.0
      %4673 = vmatprep.subr.mxu0 0.0
      %4674 = vmatpush1.msra.mxu0 0.0
      %4675 = vmatprep.subr.mxu0 0.0
      %4676 = vmatpush1.msra.mxu0 0.0
      %4677 = vmatprep.subr.mxu0 0.0
      %4678 = vmatpush1.msra.mxu0 0.0
      %4679 = vmatprep.subr.mxu0 0.0
      %4680 = vmatpush1.msra.mxu0 0.0
      %4681 = vmatprep.subr.mxu0 0.0
      %4682 = vmatpush1.msra.mxu0 0.0
      %4683 = vmatprep.subr.mxu0 0.0
      %4684 = vmatpush1.msra.mxu0 0.0
      %4685 = vmatprep.subr.mxu0 0.0
      %4686 = vmatpush1.msra.mxu0 0.0
      %4687 = vmatprep.subr.mxu0 0.0
      %4688 = vmatpush1.msra.mxu0 0.0
      %4689 = vmatprep.subr.mxu0 0.0
      %4690 = vmatpush1.msra.mxu0 0.0
      %4691 = vmatprep.subr.mxu0 0.0
      %4692 = vmatpush1.msra.mxu0 0.0
      %4693 = vmatprep.subr.mxu0 0.0
      %4694 = vmatpush1.msra.mxu0 0.0
      %4695 = vmatprep.subr.mxu0 0.0
      %4696 = vmatpush1.msra.mxu0 0.0
      %4697 = vmatprep.subr.mxu0 0.0
      %4698 = vmatpush1.msra.mxu0 0.0
      %4699 = vmatprep.subr.mxu0 0.0
      %4700 = vmatpush1.msra.mxu0 0.0
      %4701 = vmatprep.subr.mxu0 0.0
      %4702 = vmatpush1.msra.mxu0 0.0
      %4703 = vmatprep.subr.mxu0 0.0
      %4704 = vmatpush1.msra.mxu0 0.0
      %4705 = vmatprep.subr.mxu0 0.0
      %4706 = vmatpush1.msra.mxu0 0.0
      %4707 = vmatprep.mubr.f32.mxu0 0.0
      %4708 = vmatmul.mubr.f32.gmra.mrb[0].mxu0 %v2002
      %v4709 = vpop.f32.mrb[0].mxu0
      %v4710 = vadd.f32 0.0, %v4709
      %v4711 = vpop.f32.mrb[0].mxu0
      %4712 = vmatprep.mubr.f32.mxu0 0.0
      %4713 = vmatmul.mubr.f32.gmra.mrb[0].mxu0 %v2004
      %v4714 = vpop.f32.mrb[0].mxu0
      %v4715 = vadd.f32 0.0, %v4714
      %v4716 = vpop.f32.mrb[0].mxu0
      %4717 = vmatprep.mubr.f32.mxu0 0.0
      %4718 = vmatmul.mubr.f32.gmra.mrb[0].mxu0 %v2006
      %v4719 = vpop.f32.mrb[0].mxu0
      %v4720 = vpop.f32.mrb[0].mxu0
      %4721 = vmatprep.mubr.f32.mxu0 0.0
      %4722 = vmatmul.mubr.f32.gmra.mrb[0].mxu0 %v2008
      %v4723 = vpop.f32.mrb[0].mxu0
      %v4724 = vadd.f32 0.0, %v4723
      %v4725 = vpop.f32.mrb[0].mxu0
      %4726 = vmatprep.mubr.f32.mxu0 0.0
      %4727 = vmatmul.mubr.f32.gmra.mrb[0].mxu0 %v2010
      %v4728 = vpop.f32.mrb[0].mxu0
      %v4729 = vadd.f32 0.0, %v4728
      %v4730 = vpop.f32.mrb[0].mxu0
      %4731 = vmatprep.mubr.f32.mxu0 0.0
      %4732 = vmatmul.mubr.f32.gmra.mrb[0].mxu0 %v2012
      %v4733 = vpop.f32.mrb[0].mxu0
      %v4734 = vpop.f32.mrb[0].mxu0
      %4735 = vmatprep.mubr.f32.mxu0 0.0
      %4736 = vmatmul.mubr.f32.gmra.mrb[0].mxu0 %v2014
      %v4737 = vpop.f32.mrb[0].mxu0
      %v4738 = vadd.f32 0.0, %v4737
      %v4739 = vpop.f32.mrb[0].mxu0
      %4740 = vmatprep.mubr.f32.mxu0 0.0
      %4741 = vmatmul.mubr.f32.gmra.mrb[0].mxu0 %v2016
      %v4742 = vpop.f32.mrb[0].mxu0
      %v4743 = vadd.f32 0.0, %v4742
      %v4744 = vpop.f32.mrb[0].mxu0
      %4745 = vmatprep.mubr.f32.mxu0 0.0
      %4746 = vmatmul.mubr.f32.gmra.mrb[0].mxu0 %v2018
      %v4747 = vpop.f32.mrb[0].mxu0
      %v4748 = vpop.f32.mrb[0].mxu0
      %4749 = vmatprep.mubr.f32.mxu0 0.0
      %4750 = vmatmul.mubr.f32.gmra.mrb[0].mxu0 %v2020
      %v4751 = vpop.f32.mrb[0].mxu0
      %v4752 = vadd.f32 0.0, %v4751
      %v4753 = vpop.f32.mrb[0].mxu0
      %4754 = vmatprep.mubr.f32.mxu0 0.0
      %4755 = vmatmul.mubr.f32.gmra.mrb[0].mxu0 %v2022
      %v4756 = vpop.f32.mrb[0].mxu0
      %v4757 = vadd.f32 0.0, %v4756
      %v4758 = vpop.f32.mrb[0].mxu0
      %4759 = vmatprep.mubr.f32.mxu0 0.0
      %4760 = vmatmul.mubr.f32.gmra.mrb[0].mxu0 %v2024
      %v4761 = vpop.f32.mrb[0].mxu0
      %v4762 = vpop.f32.mrb[0].mxu0
      %4763 = vmatprep.mubr.f32.mxu0 0.0
      %4764 = vmatmul.mubr.f32.gmra.mrb[0].mxu0 %v2026
      %v4765 = vpop.f32.mrb[0].mxu0
      %v4766 = vadd.f32 0.0, %v4765
      %v4767 = vpop.f32.mrb[0].mxu0
      %4768 = vmatprep.mubr.f32.mxu0 0.0
      %4769 = vmatmul.mubr.f32.gmra.mrb[0].mxu0 %v2028
      %v4770 = vpop.f32.mrb[0].mxu0
      %v4771 = vadd.f32 0.0, %v4770
      %v4772 = vpop.f32.mrb[0].mxu0
      %4773 = vmatprep.mubr.f32.mxu0 0.0
      %4774 = vmatmul.mubr.f32.gmra.mrb[0].mxu0 %v2030
      %v4775 = vpop.f32.mrb[0].mxu0
      %v4776 = vpop.f32.mrb[0].mxu0
      %4777 = vmatprep.mubr.f32.mxu0 0.0
      %4778 = vmatmul.mubr.f32.gmra.mrb[0].mxu0 %v2032
      %v4779 = vpop.f32.mrb[0].mxu0
      %v4780 = vadd.f32 0.0, %v4779
      %v4781 = vpop.f32.mrb[0].mxu0
      %4782 = vmatprep.mubr.f32.mxu0 0.0
      %4783 = vmatmul.mubr.f32.gmra.mrb[0].mxu0 %v2034
      %v4784 = vpop.f32.mrb[0].mxu0
      %v4785 = vadd.f32 0.0, %v4784
      %v4786 = vpop.f32.mrb[0].mxu0
      %4787 = vmatprep.mubr.f32.mxu0 0.0
      %4788 = vmatmul.mubr.f32.gmra.mrb[0].mxu0 %v2036
      %v4789 = vpop.f32.mrb[0].mxu0
      %v4790 = vpop.f32.mrb[0].mxu0
      %4791 = vmatprep.mubr.f32.mxu0 0.0
      %4792 = vmatmul.mubr.f32.gmra.mrb[0].mxu0 %v2038
      %v4793 = vpop.f32.mrb[0].mxu0
      %v4794 = vadd.f32 0.0, %v4793
      %v4795 = vpop.f32.mrb[0].mxu0
      %4796 = vmatprep.mubr.f32.mxu0 0.0
      %4797 = vmatmul.mubr.f32.gmra.mrb[0].mxu0 %v2040
      %v4798 = vpop.f32.mrb[0].mxu0
      %v4799 = vadd.f32 0.0, %v4798
      %v4800 = vpop.f32.mrb[0].mxu0
      %4801 = vmatprep.mubr.f32.mxu0 0.0
      %4802 = vmatmul.mubr.f32.gmra.mrb[0].mxu0 %v2042
      %v4803 = vpop.f32.mrb[0].mxu0
      %v4804 = vpop.f32.mrb[0].mxu0
      %4805 = vmatprep.mubr.f32.mxu0 0.0
      %4806 = vmatmul.mubr.f32.gmra.mrb[0].mxu0 %v2044
      %v4807 = vpop.f32.mrb[0].mxu0
      %v4808 = vadd.f32 0.0, %v4807
      %v4809 = vpop.f32.mrb[0].mxu0
      %4810 = vmatprep.mubr.f32.mxu0 0.0
      %4811 = vmatmul.mubr.f32.gmra.mrb[0].mxu0 %v2046
      %v4812 = vpop.f32.mrb[0].mxu0
      %v4813 = vadd.f32 0.0, %v4812
      %v4814 = vpop.f32.mrb[0].mxu0
      %4815 = vmatprep.mubr.f32.mxu0 0.0
      %4816 = vmatmul.mubr.f32.gmra.mrb[0].mxu0 %v2048
      %v4817 = vpop.f32.mrb[0].mxu0
      %v4818 = vpop.f32.mrb[0].mxu0
      %4819 = vmatprep.mubr.f32.mxu0 0.0
      %4820 = vmatmul.mubr.f32.gmra.mrb[0].mxu0 %v2050
      %v4821 = vpop.f32.mrb[0].mxu0
      %v4822 = vadd.f32 0.0, %v4821
      %v4823 = vpop.f32.mrb[0].mxu0
      %4824 = vmatprep.mubr.f32.mxu0 0.0
      %4825 = vmatmul.mubr.f32.gmra.mrb[0].mxu0 %v2052
      %v4826 = vpop.f32.mrb[0].mxu0
      %v4827 = vadd.f32 0.0, %v4826
      %v4828 = vpop.f32.mrb[0].mxu0
      %4829 = vmatprep.mubr.f32.mxu0 0.0
      %4830 = vmatmul.mubr.f32.gmra.mrb[0].mxu0 %v2054
      %v4831 = vpop.f32.mrb[0].mxu0
      %v4832 = vpop.f32.mrb[0].mxu0
      %4833 = vmatprep.mubr.f32.mxu0 0.0
      %4834 = vmatmul.mubr.f32.gmra.mrb[0].mxu0 %v2056
      %v4835 = vpop.f32.mrb[0].mxu0
      %v4836 = vadd.f32 0.0, %v4835
      %v4837 = vpop.f32.mrb[0].mxu0
      %4838 = vmatprep.mubr.f32.mxu0 0.0
      %4839 = vmatmul.mubr.f32.gmra.mrb[0].mxu0 %v2058
      %v4840 = vpop.f32.mrb[0].mxu0
      %v4841 = vadd.f32 0.0, %v4840
      %v4842 = vpop.f32.mrb[0].mxu0
      %4843 = vmatprep.mubr.f32.mxu0 0.0
      %4844 = vmatmul.mubr.f32.gmra.mrb[0].mxu0 %v2060
      %v4845 = vpop.f32.mrb[0].mxu0
      %v4846 = vpop.f32.mrb[0].mxu0
      %4847 = vmatprep.mubr.f32.mxu0 0.0
      %4848 = vmatmul.mubr.f32.gmra.mrb[0].mxu0 %v2062
      %v4849 = vpop.f32.mrb[0].mxu0
      %v4850 = vadd.f32 0.0, %v4849
      %v4851 = vpop.f32.mrb[0].mxu0
      %4852 = vmatprep.mubr.f32.mxu0 0.0
      %4853 = vmatmul.mubr.f32.gmra.mrb[0].mxu0 %v2064
      %v4854 = vpop.f32.mrb[0].mxu0
      %v4855 = vadd.f32 0.0, %v4854
      %v4856 = vpop.f32.mrb[0].mxu0
      %4857 = vmatprep.mubr.f32.mxu0 0.0
      %4858 = vmatmul.mubr.f32.gmra.mrb[0].mxu0 %v2066
      %v4859 = vpop.f32.mrb[0].mxu0
      %v4860 = vpop.f32.mrb[0].mxu0
      %4861 = vmatprep.mubr.f32.mxu0 0.0
      %4862 = vmatmul.mubr.f32.gmra.mrb[0].mxu0 %v2068
      %v4863 = vpop.f32.mrb[0].mxu0
      %v4864 = vadd.f32 0.0, %v4863
      %v4865 = vpop.f32.mrb[0].mxu0
      %4866 = vmatprep.mubr.f32.mxu0 0.0
      %4867 = vmatmul.mubr.f32.gmra.mrb[0].mxu0 %v2070
      %v4868 = vpop.f32.mrb[0].mxu0
      %v4869 = vadd.f32 0.0, %v4868
      %v4870 = vpop.f32.mrb[0].mxu0
      %4871 = vmatprep.mubr.f32.mxu0 0.0
      %4872 = vmatmul.mubr.f32.gmra.mrb[0].mxu0 %v2072
      %v4873 = vpop.f32.mrb[0].mxu0
      %v4874 = vpop.f32.mrb[0].mxu0
      %4875 = vmatprep.mubr.f32.mxu0 0.0
      %4876 = vmatmul.mubr.f32.gmra.mrb[0].mxu0 %v2074
      %v4877 = vpop.f32.mrb[0].mxu0
      %v4878 = vadd.f32 0.0, %v4877
      %v4879 = vpop.f32.mrb[0].mxu0
      %4880 = vmatprep.mubr.f32.mxu0 0.0
      %4881 = vmatmul.mubr.f32.gmra.mrb[0].mxu0 %v2076
      %v4882 = vpop.f32.mrb[0].mxu0
      %v4883 = vadd.f32 0.0, %v4882
      %v4884 = vpop.f32.mrb[0].mxu0
      %4885 = vmatprep.mubr.f32.mxu0 0.0
      %4886 = vmatmul.mubr.f32.gmra.mrb[0].mxu0 %v2078
      %v4887 = vpop.f32.mrb[0].mxu0
      %v4888 = vpop.f32.mrb[0].mxu0
      %4889 = vmatprep.mubr.f32.mxu0 0.0
      %4890 = vmatmul.mubr.f32.gmra.mrb[0].mxu0 %v2080
      %v4891 = vpop.f32.mrb[0].mxu0
      %v4892 = vadd.f32 0.0, %v4891
      %v4893 = vpop.f32.mrb[0].mxu0
      %4894 = vmatprep.mubr.f32.mxu0 0.0
      %4895 = vmatmul.mubr.f32.gmra.mrb[0].mxu0 %v2082
      %v4896 = vpop.f32.mrb[0].mxu0
      %v4897 = vadd.f32 0.0, %v4896
      %v4898 = vpop.f32.mrb[0].mxu0
      %4899 = vmatprep.mubr.f32.mxu0 0.0
      %4900 = vmatmul.mubr.f32.gmra.mrb[0].mxu0 %v2084
      %v4901 = vpop.f32.mrb[0].mxu0
      %v4902 = vpop.f32.mrb[0].mxu0
      %4903 = vmatprep.mubr.f32.mxu0 0.0
      %4904 = vmatmul.mubr.f32.gmra.mrb[0].mxu0 %v3626
      %v4905 = vpop.f32.mrb[0].mxu0
      %v4906 = vadd.f32 0.0, %v4905
      %v4907 = vpop.f32.mrb[0].mxu0
      %4908 = vmatprep.mubr.f32.mxu0 0.0
      %4909 = vmatmul.mubr.f32.gmra.mrb[0].mxu0 %v3628
      %v4910 = vpop.f32.mrb[0].mxu0
      %v4911 = vadd.f32 0.0, %v4910
      %v4912 = vpop.f32.mrb[0].mxu0
      %4913 = vmatprep.mubr.f32.mxu0 0.0
      %4914 = vmatmul.mubr.f32.gmra.mrb[0].mxu0 %v3630
      %v4915 = vpop.f32.mrb[0].mxu0
      %v4916 = vpop.f32.mrb[0].mxu0
      %4917 = vmatprep.mubr.f32.mxu0 0.0
      %4918 = vmatmul.mubr.f32.gmra.mrb[0].mxu0 %v4637
      %v4919 = vpop.f32.mrb[0].mxu0
      %v4920 = vadd.f32 0.0, %v4919
      %v4921 = vpop.f32.mrb[0].mxu0
      %4922 = vmatprep.mubr.f32.mxu0 0.0
      %4923 = vmatmul.mubr.f32.gmra.mrb[0].mxu0 %v4639
      %v4924 = vpop.f32.mrb[0].mxu0
      %v4925 = vadd.f32 0.0, %v4924
      %v4926 = vpop.f32.mrb[0].mxu0
      %4927 = vmatprep.mubr.f32.mxu0 0.0
      %4928 = vmatmul.mubr.f32.gmra.mrb[0].mxu0 %v4641
      %v4929 = vpop.f32.mrb[0].mxu0
      %v4930 = vpop.f32.mrb[0].mxu0
      %4931 = vdwg.mxu0
      %v4932 = vadd.f32 %v4593, %v4710
      %v4933 = vadd.f32 %v4594, %v4715
      %v4934 = vadd.f32 %v4595, %v4724
      %v4935 = vadd.f32 %v4596, %v4729
      %v4936 = vadd.f32 %v4597, %v4738
      %v4937 = vadd.f32 %v4598, %v4743
      %v4938 = vadd.f32 %v4599, %v4752
      %v4939 = vadd.f32 %v4600, %v4757
      %v4940 = vadd.f32 %v4601, %v4766
      %v4941 = vadd.f32 %v4602, %v4771
      %v4942 = vadd.f32 %v4603, %v4780
      %v4943 = vadd.f32 %v4604, %v4785
      %v4944 = vadd.f32 %v4605, %v4794
      %v4945 = vadd.f32 %v4606, %v4799
      %v4946 = vadd.f32 %v4607, %v4808
      %v4947 = vadd.f32 %v4608, %v4813
      %v4948 = vadd.f32 %v4609, %v4822
      %v4949 = vadd.f32 %v4610, %v4827
      %v4950 = vadd.f32 %v4611, %v4836
      %v4951 = vadd.f32 %v4612, %v4841
      %v4952 = vadd.f32 %v4613, %v4850
      %v4953 = vadd.f32 %v4614, %v4855
      %v4954 = vadd.f32 %v4615, %v4864
      %v4955 = vadd.f32 %v4616, %v4869
      %v4956 = vadd.f32 %v4617, %v4878
      %v4957 = vadd.f32 %v4618, %v4883
      %v4958 = vadd.f32 %v4619, %v4892
      %v4959 = vadd.f32 %v4620, %v4897
      %v4960 = vadd.f32 %v4621, %v4906
      %v4961 = vadd.f32 %v4622, %v4911
      %v4962 = vadd.f32 %v4623, %v4920
      %v4963 = vadd.f32 %v4624, %v4925
      %s4964 = scalar_lea.vmem %s5, 256
      %v4965 = vld [vmem:[%s4964] sm:$0xff]
      %v4966 = vld [vmem:[%s4964 + $0x8] sm:$0xff]
      %v4967 = vld [vmem:[%s4964 + $0x10] sm:$0xff]
      %v4968 = vld [vmem:[%s4964 + $0x18] sm:$0xff]
      %v4969 = vrot.slane %v1831, 2
      %v4970 = vsel %vm2765, %v3962, %v4969
      %v4971 = vrot.slane %v1832, 2
      %v4972 = vsel %vm2765, %v4969, %v4971
      %v4973 = vrot.slane %v1833, 2
      %v4974 = vsel %vm2765, %v4971, %v4973
      %v4975 = vsel %vm492, %v4970, 0
      %v4977 = vsel %vm492, %v4972, 0
      %v4979 = vsel %vm492, %v4974, 0
      %4981 = vmatprep.subr.mxu0 0.0
      %4982 = vmatpush1.msra.mxu0 %v4965
      %4983 = vmatprep.subr.mxu0 0.0
      %4984 = vmatpush1.msra.mxu0 %v4966
      %4985 = vmatprep.subr.mxu0 0.0
      %4986 = vmatpush1.msra.mxu0 %v4967
      %4987 = vmatprep.subr.mxu0 0.0
      %4988 = vmatpush1.msra.mxu0 %v4968
      %4989 = vmatprep.subr.mxu0 0.0
      %4990 = vmatpush1.msra.mxu0 0.0
      %4991 = vmatprep.subr.mxu0 0.0
      %4992 = vmatpush1.msra.mxu0 0.0
      %4993 = vmatprep.subr.mxu0 0.0
      %4994 = vmatpush1.msra.mxu0 0.0
      %4995 = vmatprep.subr.mxu0 0.0
      %4996 = vmatpush1.msra.mxu0 0.0
      %4997 = vmatprep.subr.mxu0 0.0
      %4998 = vmatpush1.msra.mxu0 0.0
      %4999 = vmatprep.subr.mxu0 0.0
      %5000 = vmatpush1.msra.mxu0 0.0
      %5001 = vmatprep.subr.mxu0 0.0
      %5002 = vmatpush1.msra.mxu0 0.0
      %5003 = vmatprep.subr.mxu0 0.0
      %5004 = vmatpush1.msra.mxu0 0.0
      %5005 = vmatprep.subr.mxu0 0.0
      %5006 = vmatpush1.msra.mxu0 0.0
      %5007 = vmatprep.subr.mxu0 0.0
      %5008 = vmatpush1.msra.mxu0 0.0
      %5009 = vmatprep.subr.mxu0 0.0
      %5010 = vmatpush1.msra.mxu0 0.0
      %5011 = vmatprep.subr.mxu0 0.0
      %5012 = vmatpush1.msra.mxu0 0.0
      %5013 = vmatprep.subr.mxu0 0.0
      %5014 = vmatpush1.msra.mxu0 0.0
      %5015 = vmatprep.subr.mxu0 0.0
      %5016 = vmatpush1.msra.mxu0 0.0
      %5017 = vmatprep.subr.mxu0 0.0
      %5018 = vmatpush1.msra.mxu0 0.0
      %5019 = vmatprep.subr.mxu0 0.0
      %5020 = vmatpush1.msra.mxu0 0.0
      %5021 = vmatprep.subr.mxu0 0.0
      %5022 = vmatpush1.msra.mxu0 0.0
      %5023 = vmatprep.subr.mxu0 0.0
      %5024 = vmatpush1.msra.mxu0 0.0
      %5025 = vmatprep.subr.mxu0 0.0
      %5026 = vmatpush1.msra.mxu0 0.0
      %5027 = vmatprep.subr.mxu0 0.0
      %5028 = vmatpush1.msra.mxu0 0.0
      %5029 = vmatprep.subr.mxu0 0.0
      %5030 = vmatpush1.msra.mxu0 0.0
      %5031 = vmatprep.subr.mxu0 0.0
      %5032 = vmatpush1.msra.mxu0 0.0
      %5033 = vmatprep.subr.mxu0 0.0
      %5034 = vmatpush1.msra.mxu0 0.0
      %5035 = vmatprep.subr.mxu0 0.0
      %5036 = vmatpush1.msra.mxu0 0.0
      %5037 = vmatprep.subr.mxu0 0.0
      %5038 = vmatpush1.msra.mxu0 0.0
      %5039 = vmatprep.subr.mxu0 0.0
      %5040 = vmatpush1.msra.mxu0 0.0
      %5041 = vmatprep.subr.mxu0 0.0
      %5042 = vmatpush1.msra.mxu0 0.0
      %5043 = vmatprep.subr.mxu0 0.0
      %5044 = vmatpush1.msra.mxu0 0.0
      %5045 = vmatprep.mubr.f32.mxu0 0.0
      %5046 = vmatmul.mubr.f32.gmra.mrb[0].mxu0 %v2875
      %v5047 = vpop.f32.mrb[0].mxu0
      %v5048 = vadd.f32 0.0, %v5047
      %v5049 = vpop.f32.mrb[0].mxu0
      %5050 = vmatprep.mubr.f32.mxu0 0.0
      %5051 = vmatmul.mubr.f32.gmra.mrb[0].mxu0 %v2877
      %v5052 = vpop.f32.mrb[0].mxu0
      %v5053 = vadd.f32 0.0, %v5052
      %v5054 = vpop.f32.mrb[0].mxu0
      %5055 = vmatprep.mubr.f32.mxu0 0.0
      %5056 = vmatmul.mubr.f32.gmra.mrb[0].mxu0 %v2879
      %v5057 = vpop.f32.mrb[0].mxu0
      %v5058 = vpop.f32.mrb[0].mxu0
      %5059 = vmatprep.mubr.f32.mxu0 0.0
      %5060 = vmatmul.mubr.f32.gmra.mrb[0].mxu0 %v2881
      %v5061 = vpop.f32.mrb[0].mxu0
      %v5062 = vadd.f32 0.0, %v5061
      %v5063 = vpop.f32.mrb[0].mxu0
      %5064 = vmatprep.mubr.f32.mxu0 0.0
      %5065 = vmatmul.mubr.f32.gmra.mrb[0].mxu0 %v2883
      %v5066 = vpop.f32.mrb[0].mxu0
      %v5067 = vadd.f32 0.0, %v5066
      %v5068 = vpop.f32.mrb[0].mxu0
      %5069 = vmatprep.mubr.f32.mxu0 0.0
      %5070 = vmatmul.mubr.f32.gmra.mrb[0].mxu0 %v2885
      %v5071 = vpop.f32.mrb[0].mxu0
      %v5072 = vpop.f32.mrb[0].mxu0
      %5073 = vmatprep.mubr.f32.mxu0 0.0
      %5074 = vmatmul.mubr.f32.gmra.mrb[0].mxu0 %v2887
      %v5075 = vpop.f32.mrb[0].mxu0
      %v5076 = vadd.f32 0.0, %v5075
      %v5077 = vpop.f32.mrb[0].mxu0
      %5078 = vmatprep.mubr.f32.mxu0 0.0
      %5079 = vmatmul.mubr.f32.gmra.mrb[0].mxu0 %v2889
      %v5080 = vpop.f32.mrb[0].mxu0
      %v5081 = vadd.f32 0.0, %v5080
      %v5082 = vpop.f32.mrb[0].mxu0
      %5083 = vmatprep.mubr.f32.mxu0 0.0
      %5084 = vmatmul.mubr.f32.gmra.mrb[0].mxu0 %v2891
      %v5085 = vpop.f32.mrb[0].mxu0
      %v5086 = vpop.f32.mrb[0].mxu0
      %5087 = vmatprep.mubr.f32.mxu0 0.0
      %5088 = vmatmul.mubr.f32.gmra.mrb[0].mxu0 %v2893
      %v5089 = vpop.f32.mrb[0].mxu0
      %v5090 = vadd.f32 0.0, %v5089
      %v5091 = vpop.f32.mrb[0].mxu0
      %5092 = vmatprep.mubr.f32.mxu0 0.0
      %5093 = vmatmul.mubr.f32.gmra.mrb[0].mxu0 %v2895
      %v5094 = vpop.f32.mrb[0].mxu0
      %v5095 = vadd.f32 0.0, %v5094
      %v5096 = vpop.f32.mrb[0].mxu0
      %5097 = vmatprep.mubr.f32.mxu0 0.0
      %5098 = vmatmul.mubr.f32.gmra.mrb[0].mxu0 %v2897
      %v5099 = vpop.f32.mrb[0].mxu0
      %v5100 = vpop.f32.mrb[0].mxu0
      %5101 = vmatprep.mubr.f32.mxu0 0.0
      %5102 = vmatmul.mubr.f32.gmra.mrb[0].mxu0 %v2899
      %v5103 = vpop.f32.mrb[0].mxu0
      %v5104 = vadd.f32 0.0, %v5103
      %v5105 = vpop.f32.mrb[0].mxu0
      %5106 = vmatprep.mubr.f32.mxu0 0.0
      %5107 = vmatmul.mubr.f32.gmra.mrb[0].mxu0 %v2901
      %v5108 = vpop.f32.mrb[0].mxu0
      %v5109 = vadd.f32 0.0, %v5108
      %v5110 = vpop.f32.mrb[0].mxu0
      %5111 = vmatprep.mubr.f32.mxu0 0.0
      %5112 = vmatmul.mubr.f32.gmra.mrb[0].mxu0 %v2903
      %v5113 = vpop.f32.mrb[0].mxu0
      %v5114 = vpop.f32.mrb[0].mxu0
      %5115 = vmatprep.mubr.f32.mxu0 0.0
      %5116 = vmatmul.mubr.f32.gmra.mrb[0].mxu0 %v2905
      %v5117 = vpop.f32.mrb[0].mxu0
      %v5118 = vadd.f32 0.0, %v5117
      %v5119 = vpop.f32.mrb[0].mxu0
      %5120 = vmatprep.mubr.f32.mxu0 0.0
      %5121 = vmatmul.mubr.f32.gmra.mrb[0].mxu0 %v2907
      %v5122 = vpop.f32.mrb[0].mxu0
      %v5123 = vadd.f32 0.0, %v5122
      %v5124 = vpop.f32.mrb[0].mxu0
      %5125 = vmatprep.mubr.f32.mxu0 0.0
      %5126 = vmatmul.mubr.f32.gmra.mrb[0].mxu0 %v2909
      %v5127 = vpop.f32.mrb[0].mxu0
      %v5128 = vpop.f32.mrb[0].mxu0
      %5129 = vmatprep.mubr.f32.mxu0 0.0
      %5130 = vmatmul.mubr.f32.gmra.mrb[0].mxu0 %v2911
      %v5131 = vpop.f32.mrb[0].mxu0
      %v5132 = vadd.f32 0.0, %v5131
      %v5133 = vpop.f32.mrb[0].mxu0
      %5134 = vmatprep.mubr.f32.mxu0 0.0
      %5135 = vmatmul.mubr.f32.gmra.mrb[0].mxu0 %v2913
      %v5136 = vpop.f32.mrb[0].mxu0
      %v5137 = vadd.f32 0.0, %v5136
      %v5138 = vpop.f32.mrb[0].mxu0
      %5139 = vmatprep.mubr.f32.mxu0 0.0
      %5140 = vmatmul.mubr.f32.gmra.mrb[0].mxu0 %v2915
      %v5141 = vpop.f32.mrb[0].mxu0
      %v5142 = vpop.f32.mrb[0].mxu0
      %5143 = vmatprep.mubr.f32.mxu0 0.0
      %5144 = vmatmul.mubr.f32.gmra.mrb[0].mxu0 %v2917
      %v5145 = vpop.f32.mrb[0].mxu0
      %v5146 = vadd.f32 0.0, %v5145
      %v5147 = vpop.f32.mrb[0].mxu0
      %5148 = vmatprep.mubr.f32.mxu0 0.0
      %5149 = vmatmul.mubr.f32.gmra.mrb[0].mxu0 %v2919
      %v5150 = vpop.f32.mrb[0].mxu0
      %v5151 = vadd.f32 0.0, %v5150
      %v5152 = vpop.f32.mrb[0].mxu0
      %5153 = vmatprep.mubr.f32.mxu0 0.0
      %5154 = vmatmul.mubr.f32.gmra.mrb[0].mxu0 %v2921
      %v5155 = vpop.f32.mrb[0].mxu0
      %v5156 = vpop.f32.mrb[0].mxu0
      %5157 = vmatprep.mubr.f32.mxu0 0.0
      %5158 = vmatmul.mubr.f32.gmra.mrb[0].mxu0 %v2923
      %v5159 = vpop.f32.mrb[0].mxu0
      %v5160 = vadd.f32 0.0, %v5159
      %v5161 = vpop.f32.mrb[0].mxu0
      %5162 = vmatprep.mubr.f32.mxu0 0.0
      %5163 = vmatmul.mubr.f32.gmra.mrb[0].mxu0 %v2925
      %v5164 = vpop.f32.mrb[0].mxu0
      %v5165 = vadd.f32 0.0, %v5164
      %v5166 = vpop.f32.mrb[0].mxu0
      %5167 = vmatprep.mubr.f32.mxu0 0.0
      %5168 = vmatmul.mubr.f32.gmra.mrb[0].mxu0 %v2927
      %v5169 = vpop.f32.mrb[0].mxu0
      %v5170 = vpop.f32.mrb[0].mxu0
      %5171 = vmatprep.mubr.f32.mxu0 0.0
      %5172 = vmatmul.mubr.f32.gmra.mrb[0].mxu0 %v2929
      %v5173 = vpop.f32.mrb[0].mxu0
      %v5174 = vadd.f32 0.0, %v5173
      %v5175 = vpop.f32.mrb[0].mxu0
      %5176 = vmatprep.mubr.f32.mxu0 0.0
      %5177 = vmatmul.mubr.f32.gmra.mrb[0].mxu0 %v2931
      %v5178 = vpop.f32.mrb[0].mxu0
      %v5179 = vadd.f32 0.0, %v5178
      %v5180 = vpop.f32.mrb[0].mxu0
      %5181 = vmatprep.mubr.f32.mxu0 0.0
      %5182 = vmatmul.mubr.f32.gmra.mrb[0].mxu0 %v2933
      %v5183 = vpop.f32.mrb[0].mxu0
      %v5184 = vpop.f32.mrb[0].mxu0
      %5185 = vmatprep.mubr.f32.mxu0 0.0
      %5186 = vmatmul.mubr.f32.gmra.mrb[0].mxu0 %v2935
      %v5187 = vpop.f32.mrb[0].mxu0
      %v5188 = vadd.f32 0.0, %v5187
      %v5189 = vpop.f32.mrb[0].mxu0
      %5190 = vmatprep.mubr.f32.mxu0 0.0
      %5191 = vmatmul.mubr.f32.gmra.mrb[0].mxu0 %v2937
      %v5192 = vpop.f32.mrb[0].mxu0
      %v5193 = vadd.f32 0.0, %v5192
      %v5194 = vpop.f32.mrb[0].mxu0
      %5195 = vmatprep.mubr.f32.mxu0 0.0
      %5196 = vmatmul.mubr.f32.gmra.mrb[0].mxu0 %v2939
      %v5197 = vpop.f32.mrb[0].mxu0
      %v5198 = vpop.f32.mrb[0].mxu0
      %5199 = vmatprep.mubr.f32.mxu0 0.0
      %5200 = vmatmul.mubr.f32.gmra.mrb[0].mxu0 %v2941
      %v5201 = vpop.f32.mrb[0].mxu0
      %v5202 = vadd.f32 0.0, %v5201
      %v5203 = vpop.f32.mrb[0].mxu0
      %5204 = vmatprep.mubr.f32.mxu0 0.0
      %5205 = vmatmul.mubr.f32.gmra.mrb[0].mxu0 %v2943
      %v5206 = vpop.f32.mrb[0].mxu0
      %v5207 = vadd.f32 0.0, %v5206
      %v5208 = vpop.f32.mrb[0].mxu0
      %5209 = vmatprep.mubr.f32.mxu0 0.0
      %5210 = vmatmul.mubr.f32.gmra.mrb[0].mxu0 %v2945
      %v5211 = vpop.f32.mrb[0].mxu0
      %v5212 = vpop.f32.mrb[0].mxu0
      %5213 = vmatprep.mubr.f32.mxu0 0.0
      %5214 = vmatmul.mubr.f32.gmra.mrb[0].mxu0 %v2947
      %v5215 = vpop.f32.mrb[0].mxu0
      %v5216 = vadd.f32 0.0, %v5215
      %v5217 = vpop.f32.mrb[0].mxu0
      %5218 = vmatprep.mubr.f32.mxu0 0.0
      %5219 = vmatmul.mubr.f32.gmra.mrb[0].mxu0 %v2949
      %v5220 = vpop.f32.mrb[0].mxu0
      %v5221 = vadd.f32 0.0, %v5220
      %v5222 = vpop.f32.mrb[0].mxu0
      %5223 = vmatprep.mubr.f32.mxu0 0.0
      %5224 = vmatmul.mubr.f32.gmra.mrb[0].mxu0 %v2951
      %v5225 = vpop.f32.mrb[0].mxu0
      %v5226 = vpop.f32.mrb[0].mxu0
      %5227 = vmatprep.mubr.f32.mxu0 0.0
      %5228 = vmatmul.mubr.f32.gmra.mrb[0].mxu0 %v2953
      %v5229 = vpop.f32.mrb[0].mxu0
      %v5230 = vadd.f32 0.0, %v5229
      %v5231 = vpop.f32.mrb[0].mxu0
      %5232 = vmatprep.mubr.f32.mxu0 0.0
      %5233 = vmatmul.mubr.f32.gmra.mrb[0].mxu0 %v2955
      %v5234 = vpop.f32.mrb[0].mxu0
      %v5235 = vadd.f32 0.0, %v5234
      %v5236 = vpop.f32.mrb[0].mxu0
      %5237 = vmatprep.mubr.f32.mxu0 0.0
      %5238 = vmatmul.mubr.f32.gmra.mrb[0].mxu0 %v2957
      %v5239 = vpop.f32.mrb[0].mxu0
      %v5240 = vpop.f32.mrb[0].mxu0
      %5241 = vmatprep.mubr.f32.mxu0 0.0
      %5242 = vmatmul.mubr.f32.gmra.mrb[0].mxu0 %v3964
      %v5243 = vpop.f32.mrb[0].mxu0
      %v5244 = vadd.f32 0.0, %v5243
      %v5245 = vpop.f32.mrb[0].mxu0
      %5246 = vmatprep.mubr.f32.mxu0 0.0
      %5247 = vmatmul.mubr.f32.gmra.mrb[0].mxu0 %v3966
      %v5248 = vpop.f32.mrb[0].mxu0
      %v5249 = vadd.f32 0.0, %v5248
      %v5250 = vpop.f32.mrb[0].mxu0
      %5251 = vmatprep.mubr.f32.mxu0 0.0
      %5252 = vmatmul.mubr.f32.gmra.mrb[0].mxu0 %v3968
      %v5253 = vpop.f32.mrb[0].mxu0
      %v5254 = vpop.f32.mrb[0].mxu0
      %5255 = vmatprep.mubr.f32.mxu0 0.0
      %5256 = vmatmul.mubr.f32.gmra.mrb[0].mxu0 %v4975
      %v5257 = vpop.f32.mrb[0].mxu0
      %v5258 = vadd.f32 0.0, %v5257
      %v5259 = vpop.f32.mrb[0].mxu0
      %5260 = vmatprep.mubr.f32.mxu0 0.0
      %5261 = vmatmul.mubr.f32.gmra.mrb[0].mxu0 %v4977
      %v5262 = vpop.f32.mrb[0].mxu0
      %v5263 = vadd.f32 0.0, %v5262
      %v5264 = vpop.f32.mrb[0].mxu0
      %5265 = vmatprep.mubr.f32.mxu0 0.0
      %5266 = vmatmul.mubr.f32.gmra.mrb[0].mxu0 %v4979
      %v5267 = vpop.f32.mrb[0].mxu0
      %v5268 = vpop.f32.mrb[0].mxu0
      %5269 = vdwg.mxu0
      %v5270 = vadd.f32 %v4932, %v5048
      %v5271 = vadd.f32 %v4933, %v5053
      %v5272 = vadd.f32 %v4934, %v5062
      %v5273 = vadd.f32 %v4935, %v5067
      %v5274 = vadd.f32 %v4936, %v5076
      %v5275 = vadd.f32 %v4937, %v5081
      %v5276 = vadd.f32 %v4938, %v5090
      %v5277 = vadd.f32 %v4939, %v5095
      %v5278 = vadd.f32 %v4940, %v5104
      %v5279 = vadd.f32 %v4941, %v5109
      %v5280 = vadd.f32 %v4942, %v5118
      %v5281 = vadd.f32 %v4943, %v5123
      %v5282 = vadd.f32 %v4944, %v5132
      %v5283 = vadd.f32 %v4945, %v5137
      %v5284 = vadd.f32 %v4946, %v5146
      %v5285 = vadd.f32 %v4947, %v5151
      %v5286 = vadd.f32 %v4948, %v5160
      %v5287 = vadd.f32 %v4949, %v5165
      %v5288 = vadd.f32 %v4950, %v5174
      %v5289 = vadd.f32 %v4951, %v5179
      %v5290 = vadd.f32 %v4952, %v5188
      %v5291 = vadd.f32 %v4953, %v5193
      %v5292 = vadd.f32 %v4954, %v5202
      %v5293 = vadd.f32 %v4955, %v5207
      %v5294 = vadd.f32 %v4956, %v5216
      %v5295 = vadd.f32 %v4957, %v5221
      %v5296 = vadd.f32 %v4958, %v5230
      %v5297 = vadd.f32 %v4959, %v5235
      %v5298 = vadd.f32 %v4960, %v5244
      %v5299 = vadd.f32 %v4961, %v5249
      %v5300 = vadd.f32 %v4962, %v5258
      %v5301 = vadd.f32 %v4963, %v5263
      %v5302 = vld [vmem:[%s368] sm:$0x1]
      %v5303 = vxor.u32 %v5302, 2147483648
      %v5304 = vmul.f32 %v5303, 1.442695
      %v5305 = vpow.pop %v5304
      %v5306 = vadd.f32 %v5305, 1.0
      %v5307 = vrcp.pop %v5306
      %v5308 = vmul.f32 1.0, %v5307
      %v5309 = vmul.f32 %v5302, %v5308
      %v5310 = vld [vmem:[%s8] sm:$0xff]
      %v5311 = vld [vmem:[%s8 + $0x8] sm:$0xff]
      %v5312 = vld [vmem:[%s8 + $0x10] sm:$0xff]
      %v5313 = vld [vmem:[%s8 + $0x18] sm:$0xff]
      %v5314 = vld [vmem:[%s8 + $0x20] sm:$0xff]
      %v5315 = vld [vmem:[%s8 + $0x28] sm:$0xff]
      %v5316 = vld [vmem:[%s8 + $0x30] sm:$0xff]
      %v5317 = vld [vmem:[%s8 + $0x38] sm:$0xff]
      %v5318 = vld [vmem:[%s8 + $0x40] sm:$0xff]
      %v5319 = vld [vmem:[%s8 + $0x48] sm:$0xff]
      %v5320 = vld [vmem:[%s8 + $0x50] sm:$0xff]
      %v5321 = vld [vmem:[%s8 + $0x58] sm:$0xff]
      %v5322 = vld [vmem:[%s8 + $0x60] sm:$0xff]
      %v5323 = vld [vmem:[%s8 + $0x68] sm:$0xff]
      %v5324 = vld [vmem:[%s8 + $0x70] sm:$0xff]
      %v5325 = vld [vmem:[%s8 + $0x78] sm:$0xff]
      %v5326 = vld [vmem:[%s9] sm:$0x1]
      %5327 = vmatprep.subr.mxu0 0.0
      %5328 = vmatpush1.msra.mxu0 %v5310
      %5329 = vmatprep.subr.mxu0 0.0
      %5330 = vmatpush1.msra.mxu0 %v5311
      %5331 = vmatprep.subr.mxu0 0.0
      %5332 = vmatpush1.msra.mxu0 %v5312
      %5333 = vmatprep.subr.mxu0 0.0
      %5334 = vmatpush1.msra.mxu0 %v5313
      %5335 = vmatprep.subr.mxu0 0.0
      %5336 = vmatpush1.msra.mxu0 %v5314
      %5337 = vmatprep.subr.mxu0 0.0
      %5338 = vmatpush1.msra.mxu0 %v5315
      %5339 = vmatprep.subr.mxu0 0.0
      %5340 = vmatpush1.msra.mxu0 %v5316
      %5341 = vmatprep.subr.mxu0 0.0
      %5342 = vmatpush1.msra.mxu0 %v5317
      %5343 = vmatprep.subr.mxu0 0.0
      %5344 = vmatpush1.msra.mxu0 %v5318
      %5345 = vmatprep.subr.mxu0 0.0
      %5346 = vmatpush1.msra.mxu0 %v5319
      %5347 = vmatprep.subr.mxu0 0.0
      %5348 = vmatpush1.msra.mxu0 %v5320
      %5349 = vmatprep.subr.mxu0 0.0
      %5350 = vmatpush1.msra.mxu0 %v5321
      %5351 = vmatprep.subr.mxu0 0.0
      %5352 = vmatpush1.msra.mxu0 %v5322
      %5353 = vmatprep.subr.mxu0 0.0
      %5354 = vmatpush1.msra.mxu0 %v5323
      %5355 = vmatprep.subr.mxu0 0.0
      %5356 = vmatpush1.msra.mxu0 %v5324
      %5357 = vmatprep.subr.mxu0 0.0
      %5358 = vmatpush1.msra.mxu0 %v5325
      %5359 = vmatprep.subr.mxu0 0.0
      %5360 = vmatpush1.msra.mxu0 0.0
      %5361 = vmatprep.subr.mxu0 0.0
      %5362 = vmatpush1.msra.mxu0 0.0
      %5363 = vmatprep.subr.mxu0 0.0
      %5364 = vmatpush1.msra.mxu0 0.0
      %5365 = vmatprep.subr.mxu0 0.0
      %5366 = vmatpush1.msra.mxu0 0.0
      %5367 = vmatprep.subr.mxu0 0.0
      %5368 = vmatpush1.msra.mxu0 0.0
      %5369 = vmatprep.subr.mxu0 0.0
      %5370 = vmatpush1.msra.mxu0 0.0
      %5371 = vmatprep.subr.mxu0 0.0
      %5372 = vmatpush1.msra.mxu0 0.0
      %5373 = vmatprep.subr.mxu0 0.0
      %5374 = vmatpush1.msra.mxu0 0.0
      %5375 = vmatprep.subr.mxu0 0.0
      %5376 = vmatpush1.msra.mxu0 0.0
      %5377 = vmatprep.subr.mxu0 0.0
      %5378 = vmatpush1.msra.mxu0 0.0
      %5379 = vmatprep.subr.mxu0 0.0
      %5380 = vmatpush1.msra.mxu0 0.0
      %5381 = vmatprep.subr.mxu0 0.0
      %5382 = vmatpush1.msra.mxu0 0.0
      %5383 = vmatprep.subr.mxu0 0.0
      %5384 = vmatpush1.msra.mxu0 0.0
      %5385 = vmatprep.subr.mxu0 0.0
      %5386 = vmatpush1.msra.mxu0 0.0
      %5387 = vmatprep.subr.mxu0 0.0
      %5388 = vmatpush1.msra.mxu0 0.0
      %5389 = vmatprep.subr.mxu0 0.0
      %5390 = vmatpush1.msra.mxu0 0.0
      %5391 = vmatprep.mubr.f32.mxu0 0.0
      %5392 = vmatmul.mubr.f32.gmra.mrb[0].mxu0 %v5309
      %v5393 = vpop.f32.mrb[0].mxu0
      %v5394 = vadd.f32 %v5326, %v5393
      %v5395 = vpop.f32.mrb[0].mxu0
      %5396 = vdwg.mxu0
      %v5397 = vld [vmem:[%s6] sm:$0x1]
      %v5399 = vlaneseq
      %v5400 = vshrl.u32 %v5399, 7
      %v5401 = vsub.s32 0, %v5400
      %v5402 = vrot.slane %v5397, %v5401
      %v5404 = vadd.f32 %v5270, %v5402
      %v5405 = vadd.f32 %v5271, %v5402
      %v5406 = vadd.f32 %v5272, %v5402
      %v5407 = vadd.f32 %v5273, %v5402
      %v5408 = vadd.f32 %v5274, %v5402
      %v5409 = vadd.f32 %v5275, %v5402
      %v5410 = vadd.f32 %v5276, %v5402
      %v5411 = vadd.f32 %v5277, %v5402
      %v5412 = vadd.f32 %v5278, %v5402
      %v5413 = vadd.f32 %v5279, %v5402
      %v5414 = vadd.f32 %v5280, %v5402
      %v5415 = vadd.f32 %v5281, %v5402
      %v5416 = vadd.f32 %v5282, %v5402
      %v5417 = vadd.f32 %v5283, %v5402
      %v5418 = vadd.f32 %v5284, %v5402
      %v5419 = vadd.f32 %v5285, %v5402
      %v5420 = vadd.f32 %v5286, %v5402
      %v5421 = vadd.f32 %v5287, %v5402
      %v5422 = vadd.f32 %v5288, %v5402
      %v5423 = vadd.f32 %v5289, %v5402
      %v5424 = vadd.f32 %v5290, %v5402
      %v5425 = vadd.f32 %v5291, %v5402
      %v5426 = vadd.f32 %v5292, %v5402
      %v5427 = vadd.f32 %v5293, %v5402
      %v5428 = vadd.f32 %v5294, %v5402
      %v5429 = vadd.f32 %v5295, %v5402
      %v5430 = vadd.f32 %v5296, %v5402
      %v5431 = vadd.f32 %v5297, %v5402
      %v5432 = vadd.f32 %v5298, %v5402
      %v5433 = vadd.f32 %v5299, %v5402
      %v5434 = vadd.f32 %v5300, %v5402
      %v5435 = vadd.f32 %v5301, %v5402
      %v5436 = vlaneseq
      %v5437 = vshrl.u32 %v5436, 7
      %v5438 = vsub.s32 0, %v5437
      %v5439 = vrot.slane %v5394, %v5438
      %v5440 = vadd.f32 %v5404, %v5439
      %v5441 = vadd.f32 %v5405, %v5439
      %v5442 = vadd.f32 %v5406, %v5439
      %v5443 = vadd.f32 %v5407, %v5439
      %v5444 = vadd.f32 %v5408, %v5439
      %v5445 = vadd.f32 %v5409, %v5439
      %v5446 = vadd.f32 %v5410, %v5439
      %v5447 = vadd.f32 %v5411, %v5439
      %v5448 = vadd.f32 %v5412, %v5439
      %v5449 = vadd.f32 %v5413, %v5439
      %v5450 = vadd.f32 %v5414, %v5439
      %v5451 = vadd.f32 %v5415, %v5439
      %v5452 = vadd.f32 %v5416, %v5439
      %v5453 = vadd.f32 %v5417, %v5439
      %v5454 = vadd.f32 %v5418, %v5439
      %v5455 = vadd.f32 %v5419, %v5439
      %v5456 = vadd.f32 %v5420, %v5439
      %v5457 = vadd.f32 %v5421, %v5439
      %v5458 = vadd.f32 %v5422, %v5439
      %v5459 = vadd.f32 %v5423, %v5439
      %v5460 = vadd.f32 %v5424, %v5439
      %v5461 = vadd.f32 %v5425, %v5439
      %v5462 = vadd.f32 %v5426, %v5439
      %v5463 = vadd.f32 %v5427, %v5439
      %v5464 = vadd.f32 %v5428, %v5439
      %v5465 = vadd.f32 %v5429, %v5439
      %v5466 = vadd.f32 %v5430, %v5439
      %v5467 = vadd.f32 %v5431, %v5439
      %v5468 = vadd.f32 %v5432, %v5439
      %v5469 = vadd.f32 %v5433, %v5439
      %v5470 = vadd.f32 %v5434, %v5439
      %v5471 = vadd.f32 %v5435, %v5439
      %vm5472 = vcmask 523264
      %5473 = vst.msk [vmem:[%s373] sm:$0xff] %vm5472, %v5440
      %5474 = vst.msk [vmem:[%s373 + $0x8] sm:$0xff] %vm5472, %v5441
      %5475 = vst.msk [vmem:[%s373 + $0x10] sm:$0xff] %vm5472, %v5442
      %5476 = vst.msk [vmem:[%s373 + $0x18] sm:$0xff] %vm5472, %v5443
      %5477 = vst.msk [vmem:[%s373 + $0x20] sm:$0xff] %vm5472, %v5444
      %5478 = vst.msk [vmem:[%s373 + $0x28] sm:$0xff] %vm5472, %v5445
      %5479 = vst.msk [vmem:[%s373 + $0x30] sm:$0xff] %vm5472, %v5446
      %5480 = vst.msk [vmem:[%s373 + $0x38] sm:$0xff] %vm5472, %v5447
      %5481 = vst.msk [vmem:[%s373 + $0x40] sm:$0xff] %vm5472, %v5448
      %5482 = vst.msk [vmem:[%s373 + $0x48] sm:$0xff] %vm5472, %v5449
      %5483 = vst.msk [vmem:[%s373 + $0x50] sm:$0xff] %vm5472, %v5450
      %5484 = vst.msk [vmem:[%s373 + $0x58] sm:$0xff] %vm5472, %v5451
      %5485 = vst.msk [vmem:[%s373 + $0x60] sm:$0xff] %vm5472, %v5452
      %5486 = vst.msk [vmem:[%s373 + $0x68] sm:$0xff] %vm5472, %v5453
      %5487 = vst.msk [vmem:[%s373 + $0x70] sm:$0xff] %vm5472, %v5454
      %5488 = vst.msk [vmem:[%s373 + $0x78] sm:$0xff] %vm5472, %v5455
      %5489 = vst.msk [vmem:[%s373 + $0x80] sm:$0xff] %vm5472, %v5456
      %5490 = vst.msk [vmem:[%s373 + $0x88] sm:$0xff] %vm5472, %v5457
      %5491 = vst.msk [vmem:[%s373 + $0x90] sm:$0xff] %vm5472, %v5458
      %5492 = vst.msk [vmem:[%s373 + $0x98] sm:$0xff] %vm5472, %v5459
      %5493 = vst.msk [vmem:[%s373 + $0xa0] sm:$0xff] %vm5472, %v5460
      %5494 = vst.msk [vmem:[%s373 + $0xa8] sm:$0xff] %vm5472, %v5461
      %5495 = vst.msk [vmem:[%s373 + $0xb0] sm:$0xff] %vm5472, %v5462
      %5496 = vst.msk [vmem:[%s373 + $0xb8] sm:$0xff] %vm5472, %v5463
      %5497 = vst.msk [vmem:[%s373 + $0xc0] sm:$0xff] %vm5472, %v5464
      %5498 = vst.msk [vmem:[%s373 + $0xc8] sm:$0xff] %vm5472, %v5465
      %5499 = vst.msk [vmem:[%s373 + $0xd0] sm:$0xff] %vm5472, %v5466
      %5500 = vst.msk [vmem:[%s373 + $0xd8] sm:$0xff] %vm5472, %v5467
      %5501 = vst.msk [vmem:[%s373 + $0xe0] sm:$0xff] %vm5472, %v5468
      %5502 = vst.msk [vmem:[%s373 + $0xe8] sm:$0xff] %vm5472, %v5469
      %5503 = vst.msk [vmem:[%s373 + $0xf0] sm:$0xff] %vm5472, %v5470
      %5504 = vst.msk [vmem:[%s373 + $0xf8] sm:$0xff] %vm5472, %v5471
      %p5505 = scmp.lt.s32.totalorder %s21, 1
      %s5506 = scalar_select %p5505, %s21, 1
      %s5507 = smul.addr %s5506, 32
      %s5508 = smul.addr %s5507, 8
      %s5509 = scalar_lea.vmem %s10, %s5508
      // Predicated region
      $region61: #{unet_residual_block.2} parent=59 // pred_check
        %p5510 = pneg %p259
      $region62: #{unet_residual_block.2} parent=59 // pred_check_branch
        %5512 = sbr.rel (%p5510) target = $region64
      $region63: #{unet_residual_block.2} parent=59 // pred_region
        _
      $region64: #{unet_residual_block.2} parent=59 // pred_fallthru
        _
    $region60: #{unet_residual_block.2} parent=5 // pred_fallthru
      _
    %p5513 = scmp.le.s32.totalorder 2, %s16
    // Predicated region
    $region65: #{unet_residual_block.2} parent=5 // pred_check
      %p5514 = pneg %p5513
    $region66: #{unet_residual_block.2} parent=5 // pred_check_branch
      %5516 = sbr.rel (%p5514) target = $region68
    $region67: #{unet_residual_block.2} parent=5 // pred_region
      %s5517 = ssub.s32 %s16, 2
      // Predicated region
      $region69: #{unet_residual_block.2} parent=67 // pred_check
        %p5518 = pneg %p265
      $region70: #{unet_residual_block.2} parent=67 // pred_check_branch
        %5520 = sbr.rel (%p5518) target = $region72
      $region71: #{unet_residual_block.2} parent=67 // pred_region
        %p5521 = scmp.lt.s32.totalorder %s22, 1
        %s5522 = scalar_select %p5521, %s22, 1
        %s5523 = smul.addr %s5522, 32
        %s5524 = smul.addr %s5523, 8
        %s5525 = scalar_lea.vmem %s10, %s5524
      $region72: #{unet_residual_block.2} parent=67 // pred_fallthru
        _
    $region68: #{unet_residual_block.2} parent=5 // pred_fallthru
      _
  $region6: #{unet_residual_block.2} parent=0 // loop_footer
    %s20 = sadd.s32 1, %s16
  $region7: #{unet_residual_block.2} parent=0 // loop_footer_branch
    %15 = sbr.rel target = $region3
  $region8: #{unet_residual_block.2} parent=0 // loop_exit
    _

</llo_original>
